<compile_context>
chip_gen: v5e
topology: v5e:2x2
jax: 0.10.0
libtpu: 0.0.40
codegen_flags: <defaults>
</compile_context>

<pallas_src>
import numpy as np
import jax
import jax.numpy as jnp
from jax.experimental import pallas as pl
from jax.experimental.pallas import tpu as pltpu

NUM_TF_LAYERS = 3   # nn.TransformerEncoder num_layers (also the sequence length)
NUM_HEADS = 8
LN_EPS = 1e-5       # PyTorch TransformerEncoderLayer default layer_norm_eps


def _round_up(a, b):
    return (a + b - 1) // b * b


def _layernorm(x, w, b):
    mu = jnp.mean(x, axis=-1, keepdims=True)
    xc = x - mu
    var = jnp.mean(xc * xc, axis=-1, keepdims=True)
    return xc * jax.lax.rsqrt(var + LN_EPS) * w + b


def transformer_kernel(x_ref, pos_ref, p_ref,
                       inw_ref, inb_ref, outw_ref, outb_ref,
                       ln1w_ref, ln1b_ref, ln2w_ref, ln2b_ref,
                       w1_ref, b1_ref, w2_ref, b2_ref,
                       o_ref,
                       x_sc, qkv_sc, attn_sc, ff_sc):
    L, TN, D = x_ref.shape            # (seq len, node tile, dim), position-major tile
    mm = p_ref.dtype                  # matmul input dtype (bf16 on v6e/v7x, f32 check)
    n_tf = inw_ref.shape[0]

    P = p_ref[...]                    # (D, D) block-diagonal head matrix
    pos = pos_ref[...].astype(jnp.float32)

    # Stage the input as ONE position-major (L*TN, D) f32 slab so every weight
    # matmul below runs with M = L*TN.
    for s in range(L):
        x_sc[s * TN:(s + 1) * TN, :] = (
            x_ref[s].astype(jnp.float32) + pos[s:s + 1, :])

    for l in range(n_tf):
        Win, bin_ = inw_ref[l], inb_ref[l]        # (D, 3D) mm, (1, 3D) f32
        Wout, bout = outw_ref[l], outb_ref[l]     # (D, D)  mm, (1, D)  f32
        g1, be1 = ln1w_ref[l], ln1b_ref[l]
        g2, be2 = ln2w_ref[l], ln2b_ref[l]
        W1, b1 = w1_ref[l], b1_ref[l]             # (D, 4D), (1, 4D)
        W2, b2 = w2_ref[l], b2_ref[l]             # (4D, D), (1, D)

        # fused QKV projection over the whole slab (q scale pre-folded into Win/bin)
        qkv = jnp.dot(x_sc[...].astype(mm), Win,
                      preferred_element_type=jnp.float32) + bin_
        qkv_sc[0] = qkv[:, 0:D]          # Q  (L*TN, D)
        qkv_sc[1] = qkv[:, D:2 * D]      # K
        qkv_sc[2] = qkv[:, 2 * D:3 * D]  # V

        # attention: per query position, one batched score matmul against all keys
        for s in range(L):
            q_s = qkv_sc[0, s * TN:(s + 1) * TN, :]          # (TN, D)
            k_all = qkv_sc[1]                                # (L*TN, D)
            qk = jnp.concatenate([q_s] * L, axis=0) * k_all  # (L*TN, D)
            # per-head scores, already broadcast across each head's lanes
            sfull = jnp.dot(qk.astype(mm), P,
                            preferred_element_type=jnp.float32)   # (L*TN, D)
            blocks = [sfull[m * TN:(m + 1) * TN, :] for m in range(L)]
            mx = blocks[0]
            for m in range(1, L):
                mx = jnp.maximum(mx, blocks[m])
            ex = [jnp.exp(b - mx) for b in blocks]
            denom = ex[0]
            for m in range(1, L):
                denom = denom + ex[m]
            inv = pl.reciprocal(denom, approx=True)          # EUP slot
            acc = (ex[0] * inv) * qkv_sc[2, 0:TN, :]
            for m in range(1, L):
                acc = acc + (ex[m] * inv) * qkv_sc[2, m * TN:(m + 1) * TN, :]
            attn_sc[s * TN:(s + 1) * TN, :] = acc

        # out-projection + post-norm residual 1 (full slab)
        a = jnp.dot(attn_sc[...].astype(mm), Wout,
                    preferred_element_type=jnp.float32) + bout
        x_sc[...] = _layernorm(x_sc[...] + a, g1, be1)

        # FFN + post-norm residual 2 (full slab); hidden staged through VMEM
        ff_sc[...] = jnp.maximum(
            jnp.dot(x_sc[...].astype(mm), W1,
                    preferred_element_type=jnp.float32) + b1, 0.0).astype(mm)
        ff = jnp.dot(ff_sc[...], W2, preferred_element_type=jnp.float32) + b2
        x_sc[...] = _layernorm(x_sc[...] + ff, g2, be2)

    # mean over the sequence (layer) axis
    mean_x = x_sc[0:TN, :]
    for s in range(1, L):
        mean_x = mean_x + x_sc[s * TN:(s + 1) * TN, :]
    o_ref[...] = (mean_x * (1.0 / float(L))).astype(o_ref.dtype)


def init_params(key, dim, num_tf_layers=NUM_TF_LAYERS):
    ks = jax.random.split(key, 13)

    def rnd(k, shape, scale=0.1):
        return jax.random.normal(k, shape, jnp.float32) * scale

    return {
        'pos':    jax.random.normal(ks[0], (num_tf_layers, dim), jnp.float32),
        'in_w':   rnd(ks[1], (num_tf_layers, 3 * dim, dim)),
        'in_b':   rnd(ks[2], (num_tf_layers, 3 * dim)),
        'out_w':  rnd(ks[3], (num_tf_layers, dim, dim)),
        'out_b':  rnd(ks[4], (num_tf_layers, dim)),
        'lin1_w': rnd(ks[5], (num_tf_layers, 4 * dim, dim)),
        'lin1_b': rnd(ks[6], (num_tf_layers, 4 * dim)),
        'lin2_w': rnd(ks[7], (num_tf_layers, dim, 4 * dim)),
        'lin2_b': rnd(ks[8], (num_tf_layers, dim)),
        'ln1_w':  1.0 + rnd(ks[9], (num_tf_layers, dim)),
        'ln1_b':  rnd(ks[10], (num_tf_layers, dim)),
        'ln2_w':  1.0 + rnd(ks[11], (num_tf_layers, dim)),
        'ln2_b':  rnd(ks[12], (num_tf_layers, dim)),
    }


def gnn_transformer_block(gnn_outputs, params, *, num_heads=NUM_HEADS,
                          block_nodes=128, matmul_dtype=jnp.bfloat16):
    NL, N, D = gnn_outputs.shape
    assert D % num_heads == 0
    hd = D // num_heads
    scale = float(hd) ** -0.5

    # PyTorch `.view(batch*num_nodes, num_layers, dim)` is a flat reshape (NOT a transpose).
    x = jnp.reshape(gnn_outputs, (N, NL, D))

    # Node tile: big enough to fill the MXU M-dim (128+), padded so the grid divides.
    # Keep >=2 grid steps at real node counts so both v7x TensorCores get work.
    bn = _round_up(min(block_nodes, N), 8)
    Np = _round_up(N, bn)
    xt = jnp.transpose(x, (1, 0, 2))                  # (NL, N, D) position-major
    if Np != N:
        xt = jnp.pad(xt, ((0, 0), (0, Np - N), (0, 0)))

    mm = matmul_dtype
    # pre-transpose weights so the kernel does plain x @ W matmuls; fold the
    # 1/sqrt(hd) query scale into the Q columns of the in-projection (host-side, free)
    inw = jnp.transpose(params['in_w'], (0, 2, 1))    # (NL, D, 3D)
    inw = inw.at[:, :, :D].multiply(scale)
    inb = params['in_b'].at[:, :D].multiply(scale)[:, None, :]
    outw = jnp.transpose(params['out_w'], (0, 2, 1))  # (NL, D, D)
    w1 = jnp.transpose(params['lin1_w'], (0, 2, 1))   # (NL, D, 4D)
    w2 = jnp.transpose(params['lin2_w'], (0, 2, 1))   # (NL, 4D, D)
    outb = params['out_b'][:, None, :]
    b1 = params['lin1_b'][:, None, :]
    b2 = params['lin2_b'][:, None, :]
    ln1w = params['ln1_w'][:, None, :]
    ln1b = params['ln1_b'][:, None, :]
    ln2w = params['ln2_w'][:, None, :]
    ln2b = params['ln2_b'][:, None, :]
    inw, outw, w1, w2 = (a.astype(mm) for a in (inw, outw, w1, w2))

    # block-diagonal head matrix: P[d, e] = 1 iff d, e belong to the same head.
    # (q*k) @ P reduces each head's lanes AND re-broadcasts the per-head score across
    # that head's lanes, so the weighted-V mix needs no second (poolT) matmul.
    p_np = np.zeros((D, D), np.float32)
    for h in range(num_heads):
        p_np[h * hd:(h + 1) * hd, h * hd:(h + 1) * hd] = 1.0
    P = jnp.asarray(p_np, dtype=mm)

    def full_spec(shape):
        return pl.BlockSpec(shape, lambda i, _r=len(shape): (0,) * _r)

    grid = (Np // bn,)
    out = pl.pallas_call(
        transformer_kernel,
        out_shape=jax.ShapeDtypeStruct((Np, D), x.dtype),
        grid_spec=pltpu.PrefetchScalarGridSpec(
            num_scalar_prefetch=0,
            grid=grid,
            in_specs=[
                pl.BlockSpec((NL, bn, D), lambda i: (0, i, 0)),   # activations
                full_spec((NL, D)),                               # positional encoding
                full_spec(P.shape),
                full_spec(inw.shape), full_spec(inb.shape),
                full_spec(outw.shape), full_spec(outb.shape),
                full_spec(ln1w.shape), full_spec(ln1b.shape),
                full_spec(ln2w.shape), full_spec(ln2b.shape),
                full_spec(w1.shape), full_spec(b1.shape),
                full_spec(w2.shape), full_spec(b2.shape),
            ],
            out_specs=pl.BlockSpec((bn, D), lambda i: (i, 0)),
            scratch_shapes=[
                pltpu.VMEM((NL * bn, D), jnp.float32),        # x slab (residual stream)
                pltpu.VMEM((3, NL * bn, D), jnp.float32),     # Q / K / V slabs
                pltpu.VMEM((NL * bn, D), jnp.float32),        # attention-output slab
                pltpu.VMEM((NL * bn, 4 * D), mm),             # FFN hidden slab
            ],
        ),
        compiler_params=pltpu.CompilerParams(
            dimension_semantics=("parallel",),
            vmem_limit_bytes=32 * 1024 * 1024,
        ),
    )(xt, params['pos'], P, inw, inb, outw, outb,
      ln1w, ln1b, ln2w, ln2b, w1, b1, w2, b2)
    return out[:N]


def reference_forward(gnn_outputs, p, num_heads=NUM_HEADS):
    """Pure-JAX mirror of the PyTorch module (eval mode)."""
    NL, N, D = gnn_outputs.shape
    hd = D // num_heads

    def ln(x, w, b):
        mu = jnp.mean(x, axis=-1, keepdims=True)
        var = jnp.mean((x - mu) ** 2, axis=-1, keepdims=True)
        return (x - mu) / jnp.sqrt(var + LN_EPS) * w + b

    x = jnp.reshape(gnn_outputs, (N, NL, D)) + p['pos'][None]
    for l in range(NUM_TF_LAYERS):
        qkv = x @ p['in_w'][l].T + p['in_b'][l]
        q, k, v = jnp.split(qkv, 3, axis=-1)
        q = q.reshape(N, NL, num_heads, hd).transpose(0, 2, 1, 3)
        k = k.reshape(N, NL, num_heads, hd).transpose(0, 2, 1, 3)
        v = v.reshape(N, NL, num_heads, hd).transpose(0, 2, 1, 3)
        s = (q @ jnp.swapaxes(k, -1, -2)) * (float(hd) ** -0.5)
        a = jax.nn.softmax(s, axis=-1) @ v
        a = a.transpose(0, 2, 1, 3).reshape(N, NL, D)
        a = a @ p['out_w'][l].T + p['out_b'][l]
        x = ln(x + a, p['ln1_w'][l], p['ln1_b'][l])
        h = jax.nn.relu(x @ p['lin1_w'][l].T + p['lin1_b'][l])
        ff = h @ p['lin2_w'][l].T + p['lin2_b'][l]
        x = ln(x + ff, p['ln2_w'][l], p['ln2_b'][l])
    return jnp.mean(x, axis=1)


if __name__ == "__main__":
    key = jax.random.PRNGKey(0)
    k_in, k_par = jax.random.split(key)

    num_layers, num_nodes, dim = NUM_TF_LAYERS, 64, 32
    gnn_outputs = jax.random.normal(k_in, (num_layers, num_nodes, dim), jnp.float32)
    params = init_params(k_par, dim)

    ref = jax.block_until_ready(reference_forward(gnn_outputs, params))

    # f32-matmul path: tight-ish check (approx-reciprocal softmax is the only approx op)
    out_f32 = jax.block_until_ready(
        gnn_transformer_block(gnn_outputs, params, matmul_dtype=jnp.float32))
    np.testing.assert_allclose(np.asarray(out_f32), np.asarray(ref), rtol=1e-2, atol=1e-2)

    # bf16-matmul fast path (v6e/v7x MXU): looser tolerance for bf16 weight rounding
    out_bf16 = jax.block_until_ready(
        gnn_transformer_block(gnn_outputs, params, matmul_dtype=jnp.bfloat16))
    np.testing.assert_allclose(np.asarray(out_bf16), np.asarray(ref), rtol=5e-2, atol=5e-2)

    # TODO(synk): dropout is an inference-mode identity here (no stochastic path).
    print("KERNEL_OK")
</pallas_src>

<mosaic_0001>
module attributes {stable_mosaic.version = 11 : i64} {
  func.func @transformer_kernel(%arg0: i32, %arg1: memref<3x64x32xf32, #tpu.memory_space<vmem>>, %arg2: memref<3x32xf32, #tpu.memory_space<vmem>>, %arg3: memref<32x32xf32, #tpu.memory_space<vmem>>, %arg4: memref<3x32x96xf32, #tpu.memory_space<vmem>>, %arg5: memref<3x1x96xf32, #tpu.memory_space<vmem>>, %arg6: memref<3x32x32xf32, #tpu.memory_space<vmem>>, %arg7: memref<3x1x32xf32, #tpu.memory_space<vmem>>, %arg8: memref<3x1x32xf32, #tpu.memory_space<vmem>>, %arg9: memref<3x1x32xf32, #tpu.memory_space<vmem>>, %arg10: memref<3x1x32xf32, #tpu.memory_space<vmem>>, %arg11: memref<3x1x32xf32, #tpu.memory_space<vmem>>, %arg12: memref<3x32x128xf32, #tpu.memory_space<vmem>>, %arg13: memref<3x1x128xf32, #tpu.memory_space<vmem>>, %arg14: memref<3x128x32xf32, #tpu.memory_space<vmem>>, %arg15: memref<3x1x32xf32, #tpu.memory_space<vmem>>, %arg16: memref<64x32xf32, #tpu.memory_space<vmem>>, %arg17: memref<192x32xf32, #tpu.memory_space<vmem>>, %arg18: memref<3x192x32xf32, #tpu.memory_space<vmem>>, %arg19: memref<192x32xf32, #tpu.memory_space<vmem>>, %arg20: memref<192x128xf32, #tpu.memory_space<vmem>>) attributes {dimension_semantics = [#tpu.dimension_semantics<parallel>], iteration_bounds = array<i64: 1>, scalar_prefetch = 0 : i64, scratch_operands = 4 : i64, tpu.core_type = #tpu.core_type<tc>, window_params = [{transform_indices = @transform_0, window_bounds = array<i64: 3, 64, 32>}, {pipeline_mode = #tpu.pipeline_mode<synchronous>, transform_indices = @transform_1, window_bounds = array<i64: 3, 32>}, {pipeline_mode = #tpu.pipeline_mode<synchronous>, transform_indices = @transform_2, window_bounds = array<i64: 32, 32>}, {pipeline_mode = #tpu.pipeline_mode<synchronous>, transform_indices = @transform_3, window_bounds = array<i64: 3, 32, 96>}, {pipeline_mode = #tpu.pipeline_mode<synchronous>, transform_indices = @transform_4, window_bounds = array<i64: 3, 1, 96>}, {pipeline_mode = #tpu.pipeline_mode<synchronous>, transform_indices = @transform_5, window_bounds = array<i64: 3, 32, 32>}, {pipeline_mode = #tpu.pipeline_mode<synchronous>, transform_indices = @transform_6, window_bounds = array<i64: 3, 1, 32>}, {pipeline_mode = #tpu.pipeline_mode<synchronous>, transform_indices = @transform_7, window_bounds = array<i64: 3, 1, 32>}, {pipeline_mode = #tpu.pipeline_mode<synchronous>, transform_indices = @transform_8, window_bounds = array<i64: 3, 1, 32>}, {pipeline_mode = #tpu.pipeline_mode<synchronous>, transform_indices = @transform_9, window_bounds = array<i64: 3, 1, 32>}, {pipeline_mode = #tpu.pipeline_mode<synchronous>, transform_indices = @transform_10, window_bounds = array<i64: 3, 1, 32>}, {pipeline_mode = #tpu.pipeline_mode<synchronous>, transform_indices = @transform_11, window_bounds = array<i64: 3, 32, 128>}, {pipeline_mode = #tpu.pipeline_mode<synchronous>, transform_indices = @transform_12, window_bounds = array<i64: 3, 1, 128>}, {pipeline_mode = #tpu.pipeline_mode<synchronous>, transform_indices = @transform_13, window_bounds = array<i64: 3, 128, 32>}, {pipeline_mode = #tpu.pipeline_mode<synchronous>, transform_indices = @transform_14, window_bounds = array<i64: 3, 1, 32>}, {transform_indices = @transform_15, window_bounds = array<i64: 64, 32>}]} {
    %c0 = arith.constant 0 : index
    %c0_0 = arith.constant 0 : index
    %0 = vector.load %arg3[%c0, %c0_0] : memref<32x32xf32, #tpu.memory_space<vmem>>, vector<32x32xf32>
    %c0_1 = arith.constant 0 : index
    %c0_2 = arith.constant 0 : index
    %1 = vector.load %arg2[%c0_1, %c0_2] : memref<3x32xf32, #tpu.memory_space<vmem>>, vector<3x32xf32>
    %c0_3 = arith.constant 0 : index
    %c0_4 = arith.constant 0 : index
    %c0_5 = arith.constant 0 : index
    %2 = vector.load %arg1[%c0_3, %c0_4, %c0_5] : memref<3x64x32xf32, #tpu.memory_space<vmem>>, vector<1x64x32xf32>
    %3 = vector.shape_cast %2 : vector<1x64x32xf32> to vector<64x32xf32>
    %4 = vector.extract_strided_slice %1 {offsets = [0, 0], sizes = [1, 32], strides = [1, 1]} : vector<3x32xf32> to vector<1x32xf32>
    %5 = vector.broadcast %4 : vector<1x32xf32> to vector<64x32xf32>
    %6 = arith.addf %3, %5 : vector<64x32xf32>
    %c0_6 = arith.constant 0 : index
    %c0_7 = arith.constant 0 : index
    %7 = vector.load %arg17[%c0_6, %c0_7] : memref<192x32xf32, #tpu.memory_space<vmem>>, vector<64x32xf32>
    tpu.vector_store %arg17[%c0_6, %c0_7], %6 {strides = array<i32>} : memref<192x32xf32, #tpu.memory_space<vmem>>, vector<64x32xf32>,
    %c1 = arith.constant 1 : index
    %c0_8 = arith.constant 0 : index
    %c0_9 = arith.constant 0 : index
    %8 = vector.load %arg1[%c1, %c0_8, %c0_9] : memref<3x64x32xf32, #tpu.memory_space<vmem>>, vector<1x64x32xf32>
    %9 = vector.shape_cast %8 : vector<1x64x32xf32> to vector<64x32xf32>
    %10 = vector.extract_strided_slice %1 {offsets = [1, 0], sizes = [1, 32], strides = [1, 1]} : vector<3x32xf32> to vector<1x32xf32>
    %11 = vector.broadcast %10 : vector<1x32xf32> to vector<64x32xf32>
    %12 = arith.addf %9, %11 : vector<64x32xf32>
    %c64 = arith.constant 64 : index
    %c0_10 = arith.constant 0 : index
    %13 = vector.load %arg17[%c64, %c0_10] : memref<192x32xf32, #tpu.memory_space<vmem>>, vector<64x32xf32>
    tpu.vector_store %arg17[%c64, %c0_10], %12 {strides = array<i32>} : memref<192x32xf32, #tpu.memory_space<vmem>>, vector<64x32xf32>,
    %c2 = arith.constant 2 : index
    %c0_11 = arith.constant 0 : index
    %c0_12 = arith.constant 0 : index
    %14 = vector.load %arg1[%c2, %c0_11, %c0_12] : memref<3x64x32xf32, #tpu.memory_space<vmem>>, vector<1x64x32xf32>
    %15 = vector.shape_cast %14 : vector<1x64x32xf32> to vector<64x32xf32>
    %16 = vector.extract_strided_slice %1 {offsets = [2, 0], sizes = [1, 32], strides = [1, 1]} : vector<3x32xf32> to vector<1x32xf32>
    %17 = vector.broadcast %16 : vector<1x32xf32> to vector<64x32xf32>
    %18 = arith.addf %15, %17 : vector<64x32xf32>
    %c128 = arith.constant 128 : index
    %c0_13 = arith.constant 0 : index
    %19 = vector.load %arg17[%c128, %c0_13] : memref<192x32xf32, #tpu.memory_space<vmem>>, vector<64x32xf32>
    tpu.vector_store %arg17[%c128, %c0_13], %18 {strides = array<i32>} : memref<192x32xf32, #tpu.memory_space<vmem>>, vector<64x32xf32>,
    %c0_14 = arith.constant 0 : index
    %c0_15 = arith.constant 0 : index
    %c0_16 = arith.constant 0 : index
    %20 = vector.load %arg4[%c0_14, %c0_15, %c0_16] : memref<3x32x96xf32, #tpu.memory_space<vmem>>, vector<1x32x96xf32>
    %21 = vector.shape_cast %20 : vector<1x32x96xf32> to vector<32x96xf32>
    %c0_17 = arith.constant 0 : index
    %c0_18 = arith.constant 0 : index
    %c0_19 = arith.constant 0 : index
    %22 = vector.load %arg5[%c0_17, %c0_18, %c0_19] : memref<3x1x96xf32, #tpu.memory_space<vmem>>, vector<1x1x96xf32>
    %23 = vector.shape_cast %22 : vector<1x1x96xf32> to vector<1x96xf32>
    %c0_20 = arith.constant 0 : index
    %c0_21 = arith.constant 0 : index
    %c0_22 = arith.constant 0 : index
    %24 = vector.load %arg6[%c0_20, %c0_21, %c0_22] : memref<3x32x32xf32, #tpu.memory_space<vmem>>, vector<1x32x32xf32>
    %25 = vector.shape_cast %24 : vector<1x32x32xf32> to vector<32x32xf32>
    %c0_23 = arith.constant 0 : index
    %c0_24 = arith.constant 0 : index
    %c0_25 = arith.constant 0 : index
    %26 = vector.load %arg7[%c0_23, %c0_24, %c0_25] : memref<3x1x32xf32, #tpu.memory_space<vmem>>, vector<1x1x32xf32>
    %27 = vector.shape_cast %26 : vector<1x1x32xf32> to vector<1x32xf32>
    %c0_26 = arith.constant 0 : index
    %c0_27 = arith.constant 0 : index
    %c0_28 = arith.constant 0 : index
    %28 = vector.load %arg8[%c0_26, %c0_27, %c0_28] : memref<3x1x32xf32, #tpu.memory_space<vmem>>, vector<1x1x32xf32>
    %29 = vector.shape_cast %28 : vector<1x1x32xf32> to vector<1x32xf32>
    %c0_29 = arith.constant 0 : index
    %c0_30 = arith.constant 0 : index
    %c0_31 = arith.constant 0 : index
    %30 = vector.load %arg9[%c0_29, %c0_30, %c0_31] : memref<3x1x32xf32, #tpu.memory_space<vmem>>, vector<1x1x32xf32>
    %31 = vector.shape_cast %30 : vector<1x1x32xf32> to vector<1x32xf32>
    %c0_32 = arith.constant 0 : index
    %c0_33 = arith.constant 0 : index
    %c0_34 = arith.constant 0 : index
    %32 = vector.load %arg10[%c0_32, %c0_33, %c0_34] : memref<3x1x32xf32, #tpu.memory_space<vmem>>, vector<1x1x32xf32>
    %33 = vector.shape_cast %32 : vector<1x1x32xf32> to vector<1x32xf32>
    %c0_35 = arith.constant 0 : index
    %c0_36 = arith.constant 0 : index
    %c0_37 = arith.constant 0 : index
    %34 = vector.load %arg11[%c0_35, %c0_36, %c0_37] : memref<3x1x32xf32, #tpu.memory_space<vmem>>, vector<1x1x32xf32>
    %35 = vector.shape_cast %34 : vector<1x1x32xf32> to vector<1x32xf32>
    %c0_38 = arith.constant 0 : index
    %c0_39 = arith.constant 0 : index
    %c0_40 = arith.constant 0 : index
    %36 = vector.load %arg12[%c0_38, %c0_39, %c0_40] : memref<3x32x128xf32, #tpu.memory_space<vmem>>, vector<1x32x128xf32>
    %37 = vector.shape_cast %36 : vector<1x32x128xf32> to vector<32x128xf32>
    %c0_41 = arith.constant 0 : index
    %c0_42 = arith.constant 0 : index
    %c0_43 = arith.constant 0 : index
    %38 = vector.load %arg13[%c0_41, %c0_42, %c0_43] : memref<3x1x128xf32, #tpu.memory_space<vmem>>, vector<1x1x128xf32>
    %39 = vector.shape_cast %38 : vector<1x1x128xf32> to vector<1x128xf32>
    %c0_44 = arith.constant 0 : index
    %c0_45 = arith.constant 0 : index
    %c0_46 = arith.constant 0 : index
    %40 = vector.load %arg14[%c0_44, %c0_45, %c0_46] : memref<3x128x32xf32, #tpu.memory_space<vmem>>, vector<1x128x32xf32>
    %41 = vector.shape_cast %40 : vector<1x128x32xf32> to vector<128x32xf32>
    %c0_47 = arith.constant 0 : index
    %c0_48 = arith.constant 0 : index
    %c0_49 = arith.constant 0 : index
    %42 = vector.load %arg15[%c0_47, %c0_48, %c0_49] : memref<3x1x32xf32, #tpu.memory_space<vmem>>, vector<1x1x32xf32>
    %43 = vector.shape_cast %42 : vector<1x1x32xf32> to vector<1x32xf32>
    %c0_50 = arith.constant 0 : index
    %c0_51 = arith.constant 0 : index
    %44 = vector.load %arg17[%c0_50, %c0_51] : memref<192x32xf32, #tpu.memory_space<vmem>>, vector<192x32xf32>
    %cst = arith.constant dense<0.000000e+00> : vector<192x96xf32>
    %45 = tpu.matmul %44, %21, %cst {dimension_numbers = #tpu.dot_dimension_numbers<[1], [0], [0], [1], [0, 0, 1, 1], [], []>} : vector<192x32xf32>, vector<32x96xf32>, vector<192x96xf32> -> vector<192x96xf32>
    %46 = vector.broadcast %23 : vector<1x96xf32> to vector<192x96xf32>
    %47 = arith.addf %45, %46 : vector<192x96xf32>
    %48 = vector.extract_strided_slice %47 {offsets = [0, 0], sizes = [192, 32], strides = [1, 1]} : vector<192x96xf32> to vector<192x32xf32>
    %c0_52 = arith.constant 0 : index
    %c0_53 = arith.constant 0 : index
    %c0_54 = arith.constant 0 : index
    %49 = vector.load %arg18[%c0_52, %c0_53, %c0_54] : memref<3x192x32xf32, #tpu.memory_space<vmem>>, vector<1x192x32xf32>
    %50 = vector.shape_cast %49 : vector<1x192x32xf32> to vector<192x32xf32>
    %51 = vector.shape_cast %48 : vector<192x32xf32> to vector<1x192x32xf32>
    tpu.vector_store %arg18[%c0_52, %c0_53, %c0_54], %51 {strides = array<i32>} : memref<3x192x32xf32, #tpu.memory_space<vmem>>, vector<1x192x32xf32>,
    %52 = vector.extract_strided_slice %47 {offsets = [0, 32], sizes = [192, 32], strides = [1, 1]} : vector<192x96xf32> to vector<192x32xf32>
    %c1_55 = arith.constant 1 : index
    %c0_56 = arith.constant 0 : index
    %c0_57 = arith.constant 0 : index
    %53 = vector.load %arg18[%c1_55, %c0_56, %c0_57] : memref<3x192x32xf32, #tpu.memory_space<vmem>>, vector<1x192x32xf32>
    %54 = vector.shape_cast %53 : vector<1x192x32xf32> to vector<192x32xf32>
    %55 = vector.shape_cast %52 : vector<192x32xf32> to vector<1x192x32xf32>
    tpu.vector_store %arg18[%c1_55, %c0_56, %c0_57], %55 {strides = array<i32>} : memref<3x192x32xf32, #tpu.memory_space<vmem>>, vector<1x192x32xf32>,
    %56 = vector.extract_strided_slice %47 {offsets = [0, 64], sizes = [192, 32], strides = [1, 1]} : vector<192x96xf32> to vector<192x32xf32>
    %c2_58 = arith.constant 2 : index
    %c0_59 = arith.constant 0 : index
    %c0_60 = arith.constant 0 : index
    %57 = vector.load %arg18[%c2_58, %c0_59, %c0_60] : memref<3x192x32xf32, #tpu.memory_space<vmem>>, vector<1x192x32xf32>
    %58 = vector.shape_cast %57 : vector<1x192x32xf32> to vector<192x32xf32>
    %59 = vector.shape_cast %56 : vector<192x32xf32> to vector<1x192x32xf32>
    tpu.vector_store %arg18[%c2_58, %c0_59, %c0_60], %59 {strides = array<i32>} : memref<3x192x32xf32, #tpu.memory_space<vmem>>, vector<1x192x32xf32>,
    %c0_61 = arith.constant 0 : index
    %c0_62 = arith.constant 0 : index
    %c0_63 = arith.constant 0 : index
    %60 = vector.load %arg18[%c0_61, %c0_62, %c0_63] : memref<3x192x32xf32, #tpu.memory_space<vmem>>, vector<1x64x32xf32>
    %61 = vector.shape_cast %60 : vector<1x64x32xf32> to vector<64x32xf32>
    %c1_64 = arith.constant 1 : index
    %c0_65 = arith.constant 0 : index
    %c0_66 = arith.constant 0 : index
    %62 = vector.load %arg18[%c1_64, %c0_65, %c0_66] : memref<3x192x32xf32, #tpu.memory_space<vmem>>, vector<1x192x32xf32>
    %63 = vector.shape_cast %62 : vector<1x192x32xf32> to vector<192x32xf32>
    %64 = tpu.concatenate %61, %61, %61 in 0 : vector<64x32xf32>, vector<64x32xf32>, vector<64x32xf32> -> vector<192x32xf32>
    %65 = arith.mulf %64, %63 : vector<192x32xf32>
    %cst_67 = arith.constant dense<0.000000e+00> : vector<192x32xf32>
    %66 = tpu.matmul %65, %0, %cst_67 {dimension_numbers = #tpu.dot_dimension_numbers<[1], [0], [0], [1], [0, 0, 1, 1], [], []>} : vector<192x32xf32>, vector<32x32xf32>, vector<192x32xf32> -> vector<192x32xf32>
    %67 = vector.extract_strided_slice %66 {offsets = [0, 0], sizes = [64, 32], strides = [1, 1]} : vector<192x32xf32> to vector<64x32xf32>
    %68 = vector.extract_strided_slice %66 {offsets = [64, 0], sizes = [64, 32], strides = [1, 1]} : vector<192x32xf32> to vector<64x32xf32>
    %69 = vector.extract_strided_slice %66 {offsets = [128, 0], sizes = [64, 32], strides = [1, 1]} : vector<192x32xf32> to vector<64x32xf32>
    %70 = arith.maximumf %67, %68 : vector<64x32xf32>
    %71 = arith.maximumf %70, %69 : vector<64x32xf32>
    %72 = arith.subf %67, %71 : vector<64x32xf32>
    %73 = math.exp %72 : vector<64x32xf32>
    %74 = arith.subf %68, %71 : vector<64x32xf32>
    %75 = math.exp %74 : vector<64x32xf32>
    %76 = arith.subf %69, %71 : vector<64x32xf32>
    %77 = math.exp %76 : vector<64x32xf32>
    %78 = arith.addf %73, %75 : vector<64x32xf32>
    %79 = arith.addf %78, %77 : vector<64x32xf32>
    %80 = tpu.reciprocal %79 {approx = true} : vector<64x32xf32> -> vector<64x32xf32>
    %81 = arith.mulf %73, %80 : vector<64x32xf32>
    %c2_68 = arith.constant 2 : index
    %c0_69 = arith.constant 0 : index
    %c0_70 = arith.constant 0 : index
    %82 = vector.load %arg18[%c2_68, %c0_69, %c0_70] : memref<3x192x32xf32, #tpu.memory_space<vmem>>, vector<1x64x32xf32>
    %83 = vector.shape_cast %82 : vector<1x64x32xf32> to vector<64x32xf32>
    %84 = arith.mulf %81, %83 : vector<64x32xf32>
    %85 = arith.mulf %75, %80 : vector<64x32xf32>
    %c2_71 = arith.constant 2 : index
    %c64_72 = arith.constant 64 : index
    %c0_73 = arith.constant 0 : index
    %86 = vector.load %arg18[%c2_71, %c64_72, %c0_73] : memref<3x192x32xf32, #tpu.memory_space<vmem>>, vector<1x64x32xf32>
    %87 = vector.shape_cast %86 : vector<1x64x32xf32> to vector<64x32xf32>
    %88 = arith.mulf %85, %87 : vector<64x32xf32>
    %89 = arith.addf %84, %88 : vector<64x32xf32>
    %90 = arith.mulf %77, %80 : vector<64x32xf32>
    %c2_74 = arith.constant 2 : index
    %c128_75 = arith.constant 128 : index
    %c0_76 = arith.constant 0 : index
    %91 = vector.load %arg18[%c2_74, %c128_75, %c0_76] : memref<3x192x32xf32, #tpu.memory_space<vmem>>, vector<1x64x32xf32>
    %92 = vector.shape_cast %91 : vector<1x64x32xf32> to vector<64x32xf32>
    %93 = arith.mulf %90, %92 : vector<64x32xf32>
    %94 = arith.addf %89, %93 : vector<64x32xf32>
    %c0_77 = arith.constant 0 : index
    %c0_78 = arith.constant 0 : index
    %95 = vector.load %arg19[%c0_77, %c0_78] : memref<192x32xf32, #tpu.memory_space<vmem>>, vector<64x32xf32>
    tpu.vector_store %arg19[%c0_77, %c0_78], %94 {strides = array<i32>} : memref<192x32xf32, #tpu.memory_space<vmem>>, vector<64x32xf32>,
    %c0_79 = arith.constant 0 : index
    %c64_80 = arith.constant 64 : index
    %c0_81 = arith.constant 0 : index
    %96 = vector.load %arg18[%c0_79, %c64_80, %c0_81] : memref<3x192x32xf32, #tpu.memory_space<vmem>>, vector<1x64x32xf32>
    %97 = vector.shape_cast %96 : vector<1x64x32xf32> to vector<64x32xf32>
    %c1_82 = arith.constant 1 : index
    %c0_83 = arith.constant 0 : index
    %c0_84 = arith.constant 0 : index
    %98 = vector.load %arg18[%c1_82, %c0_83, %c0_84] : memref<3x192x32xf32, #tpu.memory_space<vmem>>, vector<1x192x32xf32>
    %99 = vector.shape_cast %98 : vector<1x192x32xf32> to vector<192x32xf32>
    %100 = tpu.concatenate %97, %97, %97 in 0 : vector<64x32xf32>, vector<64x32xf32>, vector<64x32xf32> -> vector<192x32xf32>
    %101 = arith.mulf %100, %99 : vector<192x32xf32>
    %cst_85 = arith.constant dense<0.000000e+00> : vector<192x32xf32>
    %102 = tpu.matmul %101, %0, %cst_85 {dimension_numbers = #tpu.dot_dimension_numbers<[1], [0], [0], [1], [0, 0, 1, 1], [], []>} : vector<192x32xf32>, vector<32x32xf32>, vector<192x32xf32> -> vector<192x32xf32>
    %103 = vector.extract_strided_slice %102 {offsets = [0, 0], sizes = [64, 32], strides = [1, 1]} : vector<192x32xf32> to vector<64x32xf32>
    %104 = vector.extract_strided_slice %102 {offsets = [64, 0], sizes = [64, 32], strides = [1, 1]} : vector<192x32xf32> to vector<64x32xf32>
    %105 = vector.extract_strided_slice %102 {offsets = [128, 0], sizes = [64, 32], strides = [1, 1]} : vector<192x32xf32> to vector<64x32xf32>
    %106 = arith.maximumf %103, %104 : vector<64x32xf32>
    %107 = arith.maximumf %106, %105 : vector<64x32xf32>
    %108 = arith.subf %103, %107 : vector<64x32xf32>
    %109 = math.exp %108 : vector<64x32xf32>
    %110 = arith.subf %104, %107 : vector<64x32xf32>
    %111 = math.exp %110 : vector<64x32xf32>
    %112 = arith.subf %105, %107 : vector<64x32xf32>
    %113 = math.exp %112 : vector<64x32xf32>
    %114 = arith.addf %109, %111 : vector<64x32xf32>
    %115 = arith.addf %114, %113 : vector<64x32xf32>
    %116 = tpu.reciprocal %115 {approx = true} : vector<64x32xf32> -> vector<64x32xf32>
    %117 = arith.mulf %109, %116 : vector<64x32xf32>
    %c2_86 = arith.constant 2 : index
    %c0_87 = arith.constant 0 : index
    %c0_88 = arith.constant 0 : index
    %118 = vector.load %arg18[%c2_86, %c0_87, %c0_88] : memref<3x192x32xf32, #tpu.memory_space<vmem>>, vector<1x64x32xf32>
    %119 = vector.shape_cast %118 : vector<1x64x32xf32> to vector<64x32xf32>
    %120 = arith.mulf %117, %119 : vector<64x32xf32>
    %121 = arith.mulf %111, %116 : vector<64x32xf32>
    %c2_89 = arith.constant 2 : index
    %c64_90 = arith.constant 64 : index
    %c0_91 = arith.constant 0 : index
    %122 = vector.load %arg18[%c2_89, %c64_90, %c0_91] : memref<3x192x32xf32, #tpu.memory_space<vmem>>, vector<1x64x32xf32>
    %123 = vector.shape_cast %122 : vector<1x64x32xf32> to vector<64x32xf32>
    %124 = arith.mulf %121, %123 : vector<64x32xf32>
    %125 = arith.addf %120, %124 : vector<64x32xf32>
    %126 = arith.mulf %113, %116 : vector<64x32xf32>
    %c2_92 = arith.constant 2 : index
    %c128_93 = arith.constant 128 : index
    %c0_94 = arith.constant 0 : index
    %127 = vector.load %arg18[%c2_92, %c128_93, %c0_94] : memref<3x192x32xf32, #tpu.memory_space<vmem>>, vector<1x64x32xf32>
    %128 = vector.shape_cast %127 : vector<1x64x32xf32> to vector<64x32xf32>
    %129 = arith.mulf %126, %128 : vector<64x32xf32>
    %130 = arith.addf %125, %129 : vector<64x32xf32>
    %c64_95 = arith.constant 64 : index
    %c0_96 = arith.constant 0 : index
    %131 = vector.load %arg19[%c64_95, %c0_96] : memref<192x32xf32, #tpu.memory_space<vmem>>, vector<64x32xf32>
    tpu.vector_store %arg19[%c64_95, %c0_96], %130 {strides = array<i32>} : memref<192x32xf32, #tpu.memory_space<vmem>>, vector<64x32xf32>,
    %c0_97 = arith.constant 0 : index
    %c128_98 = arith.constant 128 : index
    %c0_99 = arith.constant 0 : index
    %132 = vector.load %arg18[%c0_97, %c128_98, %c0_99] : memref<3x192x32xf32, #tpu.memory_space<vmem>>, vector<1x64x32xf32>
    %133 = vector.shape_cast %132 : vector<1x64x32xf32> to vector<64x32xf32>
    %c1_100 = arith.constant 1 : index
    %c0_101 = arith.constant 0 : index
    %c0_102 = arith.constant 0 : index
    %134 = vector.load %arg18[%c1_100, %c0_101, %c0_102] : memref<3x192x32xf32, #tpu.memory_space<vmem>>, vector<1x192x32xf32>
    %135 = vector.shape_cast %134 : vector<1x192x32xf32> to vector<192x32xf32>
    %136 = tpu.concatenate %133, %133, %133 in 0 : vector<64x32xf32>, vector<64x32xf32>, vector<64x32xf32> -> vector<192x32xf32>
    %137 = arith.mulf %136, %135 : vector<192x32xf32>
    %cst_103 = arith.constant dense<0.000000e+00> : vector<192x32xf32>
    %138 = tpu.matmul %137, %0, %cst_103 {dimension_numbers = #tpu.dot_dimension_numbers<[1], [0], [0], [1], [0, 0, 1, 1], [], []>} : vector<192x32xf32>, vector<32x32xf32>, vector<192x32xf32> -> vector<192x32xf32>
    %139 = vector.extract_strided_slice %138 {offsets = [0, 0], sizes = [64, 32], strides = [1, 1]} : vector<192x32xf32> to vector<64x32xf32>
    %140 = vector.extract_strided_slice %138 {offsets = [64, 0], sizes = [64, 32], strides = [1, 1]} : vector<192x32xf32> to vector<64x32xf32>
    %141 = vector.extract_strided_slice %138 {offsets = [128, 0], sizes = [64, 32], strides = [1, 1]} : vector<192x32xf32> to vector<64x32xf32>
    %142 = arith.maximumf %139, %140 : vector<64x32xf32>
    %143 = arith.maximumf %142, %141 : vector<64x32xf32>
    %144 = arith.subf %139, %143 : vector<64x32xf32>
    %145 = math.exp %144 : vector<64x32xf32>
    %146 = arith.subf %140, %143 : vector<64x32xf32>
    %147 = math.exp %146 : vector<64x32xf32>
    %148 = arith.subf %141, %143 : vector<64x32xf32>
    %149 = math.exp %148 : vector<64x32xf32>
    %150 = arith.addf %145, %147 : vector<64x32xf32>
    %151 = arith.addf %150, %149 : vector<64x32xf32>
    %152 = tpu.reciprocal %151 {approx = true} : vector<64x32xf32> -> vector<64x32xf32>
    %153 = arith.mulf %145, %152 : vector<64x32xf32>
    %c2_104 = arith.constant 2 : index
    %c0_105 = arith.constant 0 : index
    %c0_106 = arith.constant 0 : index
    %154 = vector.load %arg18[%c2_104, %c0_105, %c0_106] : memref<3x192x32xf32, #tpu.memory_space<vmem>>, vector<1x64x32xf32>
    %155 = vector.shape_cast %154 : vector<1x64x32xf32> to vector<64x32xf32>
    %156 = arith.mulf %153, %155 : vector<64x32xf32>
    %157 = arith.mulf %147, %152 : vector<64x32xf32>
    %c2_107 = arith.constant 2 : index
    %c64_108 = arith.constant 64 : index
    %c0_109 = arith.constant 0 : index
    %158 = vector.load %arg18[%c2_107, %c64_108, %c0_109] : memref<3x192x32xf32, #tpu.memory_space<vmem>>, vector<1x64x32xf32>
    %159 = vector.shape_cast %158 : vector<1x64x32xf32> to vector<64x32xf32>
    %160 = arith.mulf %157, %159 : vector<64x32xf32>
    %161 = arith.addf %156, %160 : vector<64x32xf32>
    %162 = arith.mulf %149, %152 : vector<64x32xf32>
    %c2_110 = arith.constant 2 : index
    %c128_111 = arith.constant 128 : index
    %c0_112 = arith.constant 0 : index
    %163 = vector.load %arg18[%c2_110, %c128_111, %c0_112] : memref<3x192x32xf32, #tpu.memory_space<vmem>>, vector<1x64x32xf32>
    %164 = vector.shape_cast %163 : vector<1x64x32xf32> to vector<64x32xf32>
    %165 = arith.mulf %162, %164 : vector<64x32xf32>
    %166 = arith.addf %161, %165 : vector<64x32xf32>
    %c128_113 = arith.constant 128 : index
    %c0_114 = arith.constant 0 : index
    %167 = vector.load %arg19[%c128_113, %c0_114] : memref<192x32xf32, #tpu.memory_space<vmem>>, vector<64x32xf32>
    tpu.vector_store %arg19[%c128_113, %c0_114], %166 {strides = array<i32>} : memref<192x32xf32, #tpu.memory_space<vmem>>, vector<64x32xf32>,
    %c0_115 = arith.constant 0 : index
    %c0_116 = arith.constant 0 : index
    %168 = vector.load %arg19[%c0_115, %c0_116] : memref<192x32xf32, #tpu.memory_space<vmem>>, vector<192x32xf32>
    %cst_117 = arith.constant dense<0.000000e+00> : vector<192x32xf32>
    %169 = tpu.matmul %168, %25, %cst_117 {dimension_numbers = #tpu.dot_dimension_numbers<[1], [0], [0], [1], [0, 0, 1, 1], [], []>} : vector<192x32xf32>, vector<32x32xf32>, vector<192x32xf32> -> vector<192x32xf32>
    %170 = vector.broadcast %27 : vector<1x32xf32> to vector<192x32xf32>
    %171 = arith.addf %169, %170 : vector<192x32xf32>
    %c0_118 = arith.constant 0 : index
    %c0_119 = arith.constant 0 : index
    %172 = vector.load %arg17[%c0_118, %c0_119] : memref<192x32xf32, #tpu.memory_space<vmem>>, vector<192x32xf32>
    %173 = arith.addf %172, %171 : vector<192x32xf32>
    %cst_120 = arith.constant dense<0.000000e+00> : vector<192xf32>
    %174 = vector.multi_reduction <add>, %173, %cst_120 [1] : vector<192x32xf32> to vector<192xf32>
    %175 = vector.shape_cast %174 : vector<192xf32> to vector<192x1xf32>
    %cst_121 = arith.constant 3.200000e+01 : f32
    %176 = vector.broadcast %cst_121 : f32 to vector<192x1xf32>
    %177 = arith.divf %175, %176 : vector<192x1xf32>
    %178 = vector.broadcast %177 : vector<192x1xf32> to vector<192x32xf32>
    %179 = arith.subf %173, %178 : vector<192x32xf32>
    %180 = arith.mulf %179, %179 : vector<192x32xf32>
    %cst_122 = arith.constant dense<0.000000e+00> : vector<192xf32>
    %181 = vector.multi_reduction <add>, %180, %cst_122 [1] : vector<192x32xf32> to vector<192xf32>
    %182 = vector.shape_cast %181 : vector<192xf32> to vector<192x1xf32>
    %cst_123 = arith.constant 3.200000e+01 : f32
    %183 = vector.broadcast %cst_123 : f32 to vector<192x1xf32>
    %184 = arith.divf %182, %183 : vector<192x1xf32>
    %cst_124 = arith.constant 9.99999974E-6 : f32
    %185 = vector.broadcast %cst_124 : f32 to vector<192x1xf32>
    %186 = arith.addf %184, %185 : vector<192x1xf32>
    %187 = math.rsqrt %186 : vector<192x1xf32>
    %188 = vector.broadcast %187 : vector<192x1xf32> to vector<192x32xf32>
    %189 = arith.mulf %179, %188 : vector<192x32xf32>
    %190 = vector.broadcast %29 : vector<1x32xf32> to vector<192x32xf32>
    %191 = arith.mulf %189, %190 : vector<192x32xf32>
    %192 = vector.broadcast %31 : vector<1x32xf32> to vector<192x32xf32>
    %193 = arith.addf %191, %192 : vector<192x32xf32>
    %c0_125 = arith.constant 0 : index
    %c0_126 = arith.constant 0 : index
    %194 = vector.load %arg17[%c0_125, %c0_126] : memref<192x32xf32, #tpu.memory_space<vmem>>, vector<192x32xf32>
    tpu.vector_store %arg17[%c0_125, %c0_126], %193 {strides = array<i32>} : memref<192x32xf32, #tpu.memory_space<vmem>>, vector<192x32xf32>,
    %c0_127 = arith.constant 0 : index
    %c0_128 = arith.constant 0 : index
    %195 = vector.load %arg17[%c0_127, %c0_128] : memref<192x32xf32, #tpu.memory_space<vmem>>, vector<192x32xf32>
    %cst_129 = arith.constant dense<0.000000e+00> : vector<192x128xf32>
    %196 = tpu.matmul %195, %37, %cst_129 {dimension_numbers = #tpu.dot_dimension_numbers<[1], [0], [0], [1], [0, 0, 1, 1], [], []>} : vector<192x32xf32>, vector<32x128xf32>, vector<192x128xf32> -> vector<192x128xf32>
    %197 = vector.broadcast %39 : vector<1x128xf32> to vector<192x128xf32>
    %198 = arith.addf %196, %197 : vector<192x128xf32>
    %cst_130 = arith.constant 0.000000e+00 : f32
    %199 = vector.broadcast %cst_130 : f32 to vector<192x128xf32>
    %200 = arith.maximumf %198, %199 : vector<192x128xf32>
    %c0_131 = arith.constant 0 : index
    %c0_132 = arith.constant 0 : index
    %201 = vector.load %arg20[%c0_131, %c0_132] : memref<192x128xf32, #tpu.memory_space<vmem>>, vector<192x128xf32>
    tpu.vector_store %arg20[%c0_131, %c0_132], %200 {strides = array<i32>} : memref<192x128xf32, #tpu.memory_space<vmem>>, vector<192x128xf32>,
    %c0_133 = arith.constant 0 : index
    %c0_134 = arith.constant 0 : index
    %202 = vector.load %arg20[%c0_133, %c0_134] : memref<192x128xf32, #tpu.memory_space<vmem>>, vector<192x128xf32>
    %cst_135 = arith.constant dense<0.000000e+00> : vector<192x32xf32>
    %203 = tpu.matmul %202, %41, %cst_135 {dimension_numbers = #tpu.dot_dimension_numbers<[1], [0], [0], [1], [0, 0, 1, 1], [], []>} : vector<192x128xf32>, vector<128x32xf32>, vector<192x32xf32> -> vector<192x32xf32>
    %204 = vector.broadcast %43 : vector<1x32xf32> to vector<192x32xf32>
    %205 = arith.addf %203, %204 : vector<192x32xf32>
    %c0_136 = arith.constant 0 : index
    %c0_137 = arith.constant 0 : index
    %206 = vector.load %arg17[%c0_136, %c0_137] : memref<192x32xf32, #tpu.memory_space<vmem>>, vector<192x32xf32>
    %207 = arith.addf %206, %205 : vector<192x32xf32>
    %cst_138 = arith.constant dense<0.000000e+00> : vector<192xf32>
    %208 = vector.multi_reduction <add>, %207, %cst_138 [1] : vector<192x32xf32> to vector<192xf32>
    %209 = vector.shape_cast %208 : vector<192xf32> to vector<192x1xf32>
    %cst_139 = arith.constant 3.200000e+01 : f32
    %210 = vector.broadcast %cst_139 : f32 to vector<192x1xf32>
    %211 = arith.divf %209, %210 : vector<192x1xf32>
    %212 = vector.broadcast %211 : vector<192x1xf32> to vector<192x32xf32>
    %213 = arith.subf %207, %212 : vector<192x32xf32>
    %214 = arith.mulf %213, %213 : vector<192x32xf32>
    %cst_140 = arith.constant dense<0.000000e+00> : vector<192xf32>
    %215 = vector.multi_reduction <add>, %214, %cst_140 [1] : vector<192x32xf32> to vector<192xf32>
    %216 = vector.shape_cast %215 : vector<192xf32> to vector<192x1xf32>
    %cst_141 = arith.constant 3.200000e+01 : f32
    %217 = vector.broadcast %cst_141 : f32 to vector<192x1xf32>
    %218 = arith.divf %216, %217 : vector<192x1xf32>
    %cst_142 = arith.constant 9.99999974E-6 : f32
    %219 = vector.broadcast %cst_142 : f32 to vector<192x1xf32>
    %220 = arith.addf %218, %219 : vector<192x1xf32>
    %221 = math.rsqrt %220 : vector<192x1xf32>
    %222 = vector.broadcast %221 : vector<192x1xf32> to vector<192x32xf32>
    %223 = arith.mulf %213, %222 : vector<192x32xf32>
    %224 = vector.broadcast %33 : vector<1x32xf32> to vector<192x32xf32>
    %225 = arith.mulf %223, %224 : vector<192x32xf32>
    %226 = vector.broadcast %35 : vector<1x32xf32> to vector<192x32xf32>
    %227 = arith.addf %225, %226 : vector<192x32xf32>
    %c0_143 = arith.constant 0 : index
    %c0_144 = arith.constant 0 : index
    %228 = vector.load %arg17[%c0_143, %c0_144] : memref<192x32xf32, #tpu.memory_space<vmem>>, vector<192x32xf32>
    tpu.vector_store %arg17[%c0_143, %c0_144], %227 {strides = array<i32>} : memref<192x32xf32, #tpu.memory_space<vmem>>, vector<192x32xf32>,
    %c1_145 = arith.constant 1 : index
    %c0_146 = arith.constant 0 : index
    %c0_147 = arith.constant 0 : index
    %229 = vector.load %arg4[%c1_145, %c0_146, %c0_147] : memref<3x32x96xf32, #tpu.memory_space<vmem>>, vector<1x32x96xf32>
    %230 = vector.shape_cast %229 : vector<1x32x96xf32> to vector<32x96xf32>
    %c1_148 = arith.constant 1 : index
    %c0_149 = arith.constant 0 : index
    %c0_150 = arith.constant 0 : index
    %231 = vector.load %arg5[%c1_148, %c0_149, %c0_150] : memref<3x1x96xf32, #tpu.memory_space<vmem>>, vector<1x1x96xf32>
    %232 = vector.shape_cast %231 : vector<1x1x96xf32> to vector<1x96xf32>
    %c1_151 = arith.constant 1 : index
    %c0_152 = arith.constant 0 : index
    %c0_153 = arith.constant 0 : index
    %233 = vector.load %arg6[%c1_151, %c0_152, %c0_153] : memref<3x32x32xf32, #tpu.memory_space<vmem>>, vector<1x32x32xf32>
    %234 = vector.shape_cast %233 : vector<1x32x32xf32> to vector<32x32xf32>
    %c1_154 = arith.constant 1 : index
    %c0_155 = arith.constant 0 : index
    %c0_156 = arith.constant 0 : index
    %235 = vector.load %arg7[%c1_154, %c0_155, %c0_156] : memref<3x1x32xf32, #tpu.memory_space<vmem>>, vector<1x1x32xf32>
    %236 = vector.shape_cast %235 : vector<1x1x32xf32> to vector<1x32xf32>
    %c1_157 = arith.constant 1 : index
    %c0_158 = arith.constant 0 : index
    %c0_159 = arith.constant 0 : index
    %237 = vector.load %arg8[%c1_157, %c0_158, %c0_159] : memref<3x1x32xf32, #tpu.memory_space<vmem>>, vector<1x1x32xf32>
    %238 = vector.shape_cast %237 : vector<1x1x32xf32> to vector<1x32xf32>
    %c1_160 = arith.constant 1 : index
    %c0_161 = arith.constant 0 : index
    %c0_162 = arith.constant 0 : index
    %239 = vector.load %arg9[%c1_160, %c0_161, %c0_162] : memref<3x1x32xf32, #tpu.memory_space<vmem>>, vector<1x1x32xf32>
    %240 = vector.shape_cast %239 : vector<1x1x32xf32> to vector<1x32xf32>
    %c1_163 = arith.constant 1 : index
    %c0_164 = arith.constant 0 : index
    %c0_165 = arith.constant 0 : index
    %241 = vector.load %arg10[%c1_163, %c0_164, %c0_165] : memref<3x1x32xf32, #tpu.memory_space<vmem>>, vector<1x1x32xf32>
    %242 = vector.shape_cast %241 : vector<1x1x32xf32> to vector<1x32xf32>
    %c1_166 = arith.constant 1 : index
    %c0_167 = arith.constant 0 : index
    %c0_168 = arith.constant 0 : index
    %243 = vector.load %arg11[%c1_166, %c0_167, %c0_168] : memref<3x1x32xf32, #tpu.memory_space<vmem>>, vector<1x1x32xf32>
    %244 = vector.shape_cast %243 : vector<1x1x32xf32> to vector<1x32xf32>
    %c1_169 = arith.constant 1 : index
    %c0_170 = arith.constant 0 : index
    %c0_171 = arith.constant 0 : index
    %245 = vector.load %arg12[%c1_169, %c0_170, %c0_171] : memref<3x32x128xf32, #tpu.memory_space<vmem>>, vector<1x32x128xf32>
    %246 = vector.shape_cast %245 : vector<1x32x128xf32> to vector<32x128xf32>
    %c1_172 = arith.constant 1 : index
    %c0_173 = arith.constant 0 : index
    %c0_174 = arith.constant 0 : index
    %247 = vector.load %arg13[%c1_172, %c0_173, %c0_174] : memref<3x1x128xf32, #tpu.memory_space<vmem>>, vector<1x1x128xf32>
    %248 = vector.shape_cast %247 : vector<1x1x128xf32> to vector<1x128xf32>
    %c1_175 = arith.constant 1 : index
    %c0_176 = arith.constant 0 : index
    %c0_177 = arith.constant 0 : index
    %249 = vector.load %arg14[%c1_175, %c0_176, %c0_177] : memref<3x128x32xf32, #tpu.memory_space<vmem>>, vector<1x128x32xf32>
    %250 = vector.shape_cast %249 : vector<1x128x32xf32> to vector<128x32xf32>
    %c1_178 = arith.constant 1 : index
    %c0_179 = arith.constant 0 : index
    %c0_180 = arith.constant 0 : index
    %251 = vector.load %arg15[%c1_178, %c0_179, %c0_180] : memref<3x1x32xf32, #tpu.memory_space<vmem>>, vector<1x1x32xf32>
    %252 = vector.shape_cast %251 : vector<1x1x32xf32> to vector<1x32xf32>
    %c0_181 = arith.constant 0 : index
    %c0_182 = arith.constant 0 : index
    %253 = vector.load %arg17[%c0_181, %c0_182] : memref<192x32xf32, #tpu.memory_space<vmem>>, vector<192x32xf32>
    %cst_183 = arith.constant dense<0.000000e+00> : vector<192x96xf32>
    %254 = tpu.matmul %253, %230, %cst_183 {dimension_numbers = #tpu.dot_dimension_numbers<[1], [0], [0], [1], [0, 0, 1, 1], [], []>} : vector<192x32xf32>, vector<32x96xf32>, vector<192x96xf32> -> vector<192x96xf32>
    %255 = vector.broadcast %232 : vector<1x96xf32> to vector<192x96xf32>
    %256 = arith.addf %254, %255 : vector<192x96xf32>
    %257 = vector.extract_strided_slice %256 {offsets = [0, 0], sizes = [192, 32], strides = [1, 1]} : vector<192x96xf32> to vector<192x32xf32>
    %c0_184 = arith.constant 0 : index
    %c0_185 = arith.constant 0 : index
    %c0_186 = arith.constant 0 : index
    %258 = vector.load %arg18[%c0_184, %c0_185, %c0_186] : memref<3x192x32xf32, #tpu.memory_space<vmem>>, vector<1x192x32xf32>
    %259 = vector.shape_cast %258 : vector<1x192x32xf32> to vector<192x32xf32>
    %260 = vector.shape_cast %257 : vector<192x32xf32> to vector<1x192x32xf32>
    tpu.vector_store %arg18[%c0_184, %c0_185, %c0_186], %260 {strides = array<i32>} : memref<3x192x32xf32, #tpu.memory_space<vmem>>, vector<1x192x32xf32>,
    %261 = vector.extract_strided_slice %256 {offsets = [0, 32], sizes = [192, 32], strides = [1, 1]} : vector<192x96xf32> to vector<192x32xf32>
    %c1_187 = arith.constant 1 : index
    %c0_188 = arith.constant 0 : index
    %c0_189 = arith.constant 0 : index
    %262 = vector.load %arg18[%c1_187, %c0_188, %c0_189] : memref<3x192x32xf32, #tpu.memory_space<vmem>>, vector<1x192x32xf32>
    %263 = vector.shape_cast %262 : vector<1x192x32xf32> to vector<192x32xf32>
    %264 = vector.shape_cast %261 : vector<192x32xf32> to vector<1x192x32xf32>
    tpu.vector_store %arg18[%c1_187, %c0_188, %c0_189], %264 {strides = array<i32>} : memref<3x192x32xf32, #tpu.memory_space<vmem>>, vector<1x192x32xf32>,
    %265 = vector.extract_strided_slice %256 {offsets = [0, 64], sizes = [192, 32], strides = [1, 1]} : vector<192x96xf32> to vector<192x32xf32>
    %c2_190 = arith.constant 2 : index
    %c0_191 = arith.constant 0 : index
    %c0_192 = arith.constant 0 : index
    %266 = vector.load %arg18[%c2_190, %c0_191, %c0_192] : memref<3x192x32xf32, #tpu.memory_space<vmem>>, vector<1x192x32xf32>
    %267 = vector.shape_cast %266 : vector<1x192x32xf32> to vector<192x32xf32>
    %268 = vector.shape_cast %265 : vector<192x32xf32> to vector<1x192x32xf32>
    tpu.vector_store %arg18[%c2_190, %c0_191, %c0_192], %268 {strides = array<i32>} : memref<3x192x32xf32, #tpu.memory_space<vmem>>, vector<1x192x32xf32>,
    %c0_193 = arith.constant 0 : index
    %c0_194 = arith.constant 0 : index
    %c0_195 = arith.constant 0 : index
    %269 = vector.load %arg18[%c0_193, %c0_194, %c0_195] : memref<3x192x32xf32, #tpu.memory_space<vmem>>, vector<1x64x32xf32>
    %270 = vector.shape_cast %269 : vector<1x64x32xf32> to vector<64x32xf32>
    %c1_196 = arith.constant 1 : index
    %c0_197 = arith.constant 0 : index
    %c0_198 = arith.constant 0 : index
    %271 = vector.load %arg18[%c1_196, %c0_197, %c0_198] : memref<3x192x32xf32, #tpu.memory_space<vmem>>, vector<1x192x32xf32>
    %272 = vector.shape_cast %271 : vector<1x192x32xf32> to vector<192x32xf32>
    %273 = tpu.concatenate %270, %270, %270 in 0 : vector<64x32xf32>, vector<64x32xf32>, vector<64x32xf32> -> vector<192x32xf32>
    %274 = arith.mulf %273, %272 : vector<192x32xf32>
    %cst_199 = arith.constant dense<0.000000e+00> : vector<192x32xf32>
    %275 = tpu.matmul %274, %0, %cst_199 {dimension_numbers = #tpu.dot_dimension_numbers<[1], [0], [0], [1], [0, 0, 1, 1], [], []>} : vector<192x32xf32>, vector<32x32xf32>, vector<192x32xf32> -> vector<192x32xf32>
    %276 = vector.extract_strided_slice %275 {offsets = [0, 0], sizes = [64, 32], strides = [1, 1]} : vector<192x32xf32> to vector<64x32xf32>
    %277 = vector.extract_strided_slice %275 {offsets = [64, 0], sizes = [64, 32], strides = [1, 1]} : vector<192x32xf32> to vector<64x32xf32>
    %278 = vector.extract_strided_slice %275 {offsets = [128, 0], sizes = [64, 32], strides = [1, 1]} : vector<192x32xf32> to vector<64x32xf32>
    %279 = arith.maximumf %276, %277 : vector<64x32xf32>
    %280 = arith.maximumf %279, %278 : vector<64x32xf32>
    %281 = arith.subf %276, %280 : vector<64x32xf32>
    %282 = math.exp %281 : vector<64x32xf32>
    %283 = arith.subf %277, %280 : vector<64x32xf32>
    %284 = math.exp %283 : vector<64x32xf32>
    %285 = arith.subf %278, %280 : vector<64x32xf32>
    %286 = math.exp %285 : vector<64x32xf32>
    %287 = arith.addf %282, %284 : vector<64x32xf32>
    %288 = arith.addf %287, %286 : vector<64x32xf32>
    %289 = tpu.reciprocal %288 {approx = true} : vector<64x32xf32> -> vector<64x32xf32>
    %290 = arith.mulf %282, %289 : vector<64x32xf32>
    %c2_200 = arith.constant 2 : index
    %c0_201 = arith.constant 0 : index
    %c0_202 = arith.constant 0 : index
    %291 = vector.load %arg18[%c2_200, %c0_201, %c0_202] : memref<3x192x32xf32, #tpu.memory_space<vmem>>, vector<1x64x32xf32>
    %292 = vector.shape_cast %291 : vector<1x64x32xf32> to vector<64x32xf32>
    %293 = arith.mulf %290, %292 : vector<64x32xf32>
    %294 = arith.mulf %284, %289 : vector<64x32xf32>
    %c2_203 = arith.constant 2 : index
    %c64_204 = arith.constant 64 : index
    %c0_205 = arith.constant 0 : index
    %295 = vector.load %arg18[%c2_203, %c64_204, %c0_205] : memref<3x192x32xf32, #tpu.memory_space<vmem>>, vector<1x64x32xf32>
    %296 = vector.shape_cast %295 : vector<1x64x32xf32> to vector<64x32xf32>
    %297 = arith.mulf %294, %296 : vector<64x32xf32>
    %298 = arith.addf %293, %297 : vector<64x32xf32>
    %299 = arith.mulf %286, %289 : vector<64x32xf32>
    %c2_206 = arith.constant 2 : index
    %c128_207 = arith.constant 128 : index
    %c0_208 = arith.constant 0 : index
    %300 = vector.load %arg18[%c2_206, %c128_207, %c0_208] : memref<3x192x32xf32, #tpu.memory_space<vmem>>, vector<1x64x32xf32>
    %301 = vector.shape_cast %300 : vector<1x64x32xf32> to vector<64x32xf32>
    %302 = arith.mulf %299, %301 : vector<64x32xf32>
    %303 = arith.addf %298, %302 : vector<64x32xf32>
    %c0_209 = arith.constant 0 : index
    %c0_210 = arith.constant 0 : index
    %304 = vector.load %arg19[%c0_209, %c0_210] : memref<192x32xf32, #tpu.memory_space<vmem>>, vector<64x32xf32>
    tpu.vector_store %arg19[%c0_209, %c0_210], %303 {strides = array<i32>} : memref<192x32xf32, #tpu.memory_space<vmem>>, vector<64x32xf32>,
    %c0_211 = arith.constant 0 : index
    %c64_212 = arith.constant 64 : index
    %c0_213 = arith.constant 0 : index
    %305 = vector.load %arg18[%c0_211, %c64_212, %c0_213] : memref<3x192x32xf32, #tpu.memory_space<vmem>>, vector<1x64x32xf32>
    %306 = vector.shape_cast %305 : vector<1x64x32xf32> to vector<64x32xf32>
    %c1_214 = arith.constant 1 : index
    %c0_215 = arith.constant 0 : index
    %c0_216 = arith.constant 0 : index
    %307 = vector.load %arg18[%c1_214, %c0_215, %c0_216] : memref<3x192x32xf32, #tpu.memory_space<vmem>>, vector<1x192x32xf32>
    %308 = vector.shape_cast %307 : vector<1x192x32xf32> to vector<192x32xf32>
    %309 = tpu.concatenate %306, %306, %306 in 0 : vector<64x32xf32>, vector<64x32xf32>, vector<64x32xf32> -> vector<192x32xf32>
    %310 = arith.mulf %309, %308 : vector<192x32xf32>
    %cst_217 = arith.constant dense<0.000000e+00> : vector<192x32xf32>
    %311 = tpu.matmul %310, %0, %cst_217 {dimension_numbers = #tpu.dot_dimension_numbers<[1], [0], [0], [1], [0, 0, 1, 1], [], []>} : vector<192x32xf32>, vector<32x32xf32>, vector<192x32xf32> -> vector<192x32xf32>
    %312 = vector.extract_strided_slice %311 {offsets = [0, 0], sizes = [64, 32], strides = [1, 1]} : vector<192x32xf32> to vector<64x32xf32>
    %313 = vector.extract_strided_slice %311 {offsets = [64, 0], sizes = [64, 32], strides = [1, 1]} : vector<192x32xf32> to vector<64x32xf32>
    %314 = vector.extract_strided_slice %311 {offsets = [128, 0], sizes = [64, 32], strides = [1, 1]} : vector<192x32xf32> to vector<64x32xf32>
    %315 = arith.maximumf %312, %313 : vector<64x32xf32>
    %316 = arith.maximumf %315, %314 : vector<64x32xf32>
    %317 = arith.subf %312, %316 : vector<64x32xf32>
    %318 = math.exp %317 : vector<64x32xf32>
    %319 = arith.subf %313, %316 : vector<64x32xf32>
    %320 = math.exp %319 : vector<64x32xf32>
    %321 = arith.subf %314, %316 : vector<64x32xf32>
    %322 = math.exp %321 : vector<64x32xf32>
    %323 = arith.addf %318, %320 : vector<64x32xf32>
    %324 = arith.addf %323, %322 : vector<64x32xf32>
    %325 = tpu.reciprocal %324 {approx = true} : vector<64x32xf32> -> vector<64x32xf32>
    %326 = arith.mulf %318, %325 : vector<64x32xf32>
    %c2_218 = arith.constant 2 : index
    %c0_219 = arith.constant 0 : index
    %c0_220 = arith.constant 0 : index
    %327 = vector.load %arg18[%c2_218, %c0_219, %c0_220] : memref<3x192x32xf32, #tpu.memory_space<vmem>>, vector<1x64x32xf32>
    %328 = vector.shape_cast %327 : vector<1x64x32xf32> to vector<64x32xf32>
    %329 = arith.mulf %326, %328 : vector<64x32xf32>
    %330 = arith.mulf %320, %325 : vector<64x32xf32>
    %c2_221 = arith.constant 2 : index
    %c64_222 = arith.constant 64 : index
    %c0_223 = arith.constant 0 : index
    %331 = vector.load %arg18[%c2_221, %c64_222, %c0_223] : memref<3x192x32xf32, #tpu.memory_space<vmem>>, vector<1x64x32xf32>
    %332 = vector.shape_cast %331 : vector<1x64x32xf32> to vector<64x32xf32>
    %333 = arith.mulf %330, %332 : vector<64x32xf32>
    %334 = arith.addf %329, %333 : vector<64x32xf32>
    %335 = arith.mulf %322, %325 : vector<64x32xf32>
    %c2_224 = arith.constant 2 : index
    %c128_225 = arith.constant 128 : index
    %c0_226 = arith.constant 0 : index
    %336 = vector.load %arg18[%c2_224, %c128_225, %c0_226] : memref<3x192x32xf32, #tpu.memory_space<vmem>>, vector<1x64x32xf32>
    %337 = vector.shape_cast %336 : vector<1x64x32xf32> to vector<64x32xf32>
    %338 = arith.mulf %335, %337 : vector<64x32xf32>
    %339 = arith.addf %334, %338 : vector<64x32xf32>
    %c64_227 = arith.constant 64 : index
    %c0_228 = arith.constant 0 : index
    %340 = vector.load %arg19[%c64_227, %c0_228] : memref<192x32xf32, #tpu.memory_space<vmem>>, vector<64x32xf32>
    tpu.vector_store %arg19[%c64_227, %c0_228], %339 {strides = array<i32>} : memref<192x32xf32, #tpu.memory_space<vmem>>, vector<64x32xf32>,
    %c0_229 = arith.constant 0 : index
    %c128_230 = arith.constant 128 : index
    %c0_231 = arith.constant 0 : index
    %341 = vector.load %arg18[%c0_229, %c128_230, %c0_231] : memref<3x192x32xf32, #tpu.memory_space<vmem>>, vector<1x64x32xf32>
    %342 = vector.shape_cast %341 : vector<1x64x32xf32> to vector<64x32xf32>
    %c1_232 = arith.constant 1 : index
    %c0_233 = arith.constant 0 : index
    %c0_234 = arith.constant 0 : index
    %343 = vector.load %arg18[%c1_232, %c0_233, %c0_234] : memref<3x192x32xf32, #tpu.memory_space<vmem>>, vector<1x192x32xf32>
    %344 = vector.shape_cast %343 : vector<1x192x32xf32> to vector<192x32xf32>
    %345 = tpu.concatenate %342, %342, %342 in 0 : vector<64x32xf32>, vector<64x32xf32>, vector<64x32xf32> -> vector<192x32xf32>
    %346 = arith.mulf %345, %344 : vector<192x32xf32>
    %cst_235 = arith.constant dense<0.000000e+00> : vector<192x32xf32>
    %347 = tpu.matmul %346, %0, %cst_235 {dimension_numbers = #tpu.dot_dimension_numbers<[1], [0], [0], [1], [0, 0, 1, 1], [], []>} : vector<192x32xf32>, vector<32x32xf32>, vector<192x32xf32> -> vector<192x32xf32>
    %348 = vector.extract_strided_slice %347 {offsets = [0, 0], sizes = [64, 32], strides = [1, 1]} : vector<192x32xf32> to vector<64x32xf32>
    %349 = vector.extract_strided_slice %347 {offsets = [64, 0], sizes = [64, 32], strides = [1, 1]} : vector<192x32xf32> to vector<64x32xf32>
    %350 = vector.extract_strided_slice %347 {offsets = [128, 0], sizes = [64, 32], strides = [1, 1]} : vector<192x32xf32> to vector<64x32xf32>
    %351 = arith.maximumf %348, %349 : vector<64x32xf32>
    %352 = arith.maximumf %351, %350 : vector<64x32xf32>
    %353 = arith.subf %348, %352 : vector<64x32xf32>
    %354 = math.exp %353 : vector<64x32xf32>
    %355 = arith.subf %349, %352 : vector<64x32xf32>
    %356 = math.exp %355 : vector<64x32xf32>
    %357 = arith.subf %350, %352 : vector<64x32xf32>
    %358 = math.exp %357 : vector<64x32xf32>
    %359 = arith.addf %354, %356 : vector<64x32xf32>
    %360 = arith.addf %359, %358 : vector<64x32xf32>
    %361 = tpu.reciprocal %360 {approx = true} : vector<64x32xf32> -> vector<64x32xf32>
    %362 = arith.mulf %354, %361 : vector<64x32xf32>
    %c2_236 = arith.constant 2 : index
    %c0_237 = arith.constant 0 : index
    %c0_238 = arith.constant 0 : index
    %363 = vector.load %arg18[%c2_236, %c0_237, %c0_238] : memref<3x192x32xf32, #tpu.memory_space<vmem>>, vector<1x64x32xf32>
    %364 = vector.shape_cast %363 : vector<1x64x32xf32> to vector<64x32xf32>
    %365 = arith.mulf %362, %364 : vector<64x32xf32>
    %366 = arith.mulf %356, %361 : vector<64x32xf32>
    %c2_239 = arith.constant 2 : index
    %c64_240 = arith.constant 64 : index
    %c0_241 = arith.constant 0 : index
    %367 = vector.load %arg18[%c2_239, %c64_240, %c0_241] : memref<3x192x32xf32, #tpu.memory_space<vmem>>, vector<1x64x32xf32>
    %368 = vector.shape_cast %367 : vector<1x64x32xf32> to vector<64x32xf32>
    %369 = arith.mulf %366, %368 : vector<64x32xf32>
    %370 = arith.addf %365, %369 : vector<64x32xf32>
    %371 = arith.mulf %358, %361 : vector<64x32xf32>
    %c2_242 = arith.constant 2 : index
    %c128_243 = arith.constant 128 : index
    %c0_244 = arith.constant 0 : index
    %372 = vector.load %arg18[%c2_242, %c128_243, %c0_244] : memref<3x192x32xf32, #tpu.memory_space<vmem>>, vector<1x64x32xf32>
    %373 = vector.shape_cast %372 : vector<1x64x32xf32> to vector<64x32xf32>
    %374 = arith.mulf %371, %373 : vector<64x32xf32>
    %375 = arith.addf %370, %374 : vector<64x32xf32>
    %c128_245 = arith.constant 128 : index
    %c0_246 = arith.constant 0 : index
    %376 = vector.load %arg19[%c128_245, %c0_246] : memref<192x32xf32, #tpu.memory_space<vmem>>, vector<64x32xf32>
    tpu.vector_store %arg19[%c128_245, %c0_246], %375 {strides = array<i32>} : memref<192x32xf32, #tpu.memory_space<vmem>>, vector<64x32xf32>,
    %c0_247 = arith.constant 0 : index
    %c0_248 = arith.constant 0 : index
    %377 = vector.load %arg19[%c0_247, %c0_248] : memref<192x32xf32, #tpu.memory_space<vmem>>, vector<192x32xf32>
    %cst_249 = arith.constant dense<0.000000e+00> : vector<192x32xf32>
    %378 = tpu.matmul %377, %234, %cst_249 {dimension_numbers = #tpu.dot_dimension_numbers<[1], [0], [0], [1], [0, 0, 1, 1], [], []>} : vector<192x32xf32>, vector<32x32xf32>, vector<192x32xf32> -> vector<192x32xf32>
    %379 = vector.broadcast %236 : vector<1x32xf32> to vector<192x32xf32>
    %380 = arith.addf %378, %379 : vector<192x32xf32>
    %c0_250 = arith.constant 0 : index
    %c0_251 = arith.constant 0 : index
    %381 = vector.load %arg17[%c0_250, %c0_251] : memref<192x32xf32, #tpu.memory_space<vmem>>, vector<192x32xf32>
    %382 = arith.addf %381, %380 : vector<192x32xf32>
    %cst_252 = arith.constant dense<0.000000e+00> : vector<192xf32>
    %383 = vector.multi_reduction <add>, %382, %cst_252 [1] : vector<192x32xf32> to vector<192xf32>
    %384 = vector.shape_cast %383 : vector<192xf32> to vector<192x1xf32>
    %cst_253 = arith.constant 3.200000e+01 : f32
    %385 = vector.broadcast %cst_253 : f32 to vector<192x1xf32>
    %386 = arith.divf %384, %385 : vector<192x1xf32>
    %387 = vector.broadcast %386 : vector<192x1xf32> to vector<192x32xf32>
    %388 = arith.subf %382, %387 : vector<192x32xf32>
    %389 = arith.mulf %388, %388 : vector<192x32xf32>
    %cst_254 = arith.constant dense<0.000000e+00> : vector<192xf32>
    %390 = vector.multi_reduction <add>, %389, %cst_254 [1] : vector<192x32xf32> to vector<192xf32>
    %391 = vector.shape_cast %390 : vector<192xf32> to vector<192x1xf32>
    %cst_255 = arith.constant 3.200000e+01 : f32
    %392 = vector.broadcast %cst_255 : f32 to vector<192x1xf32>
    %393 = arith.divf %391, %392 : vector<192x1xf32>
    %cst_256 = arith.constant 9.99999974E-6 : f32
    %394 = vector.broadcast %cst_256 : f32 to vector<192x1xf32>
    %395 = arith.addf %393, %394 : vector<192x1xf32>
    %396 = math.rsqrt %395 : vector<192x1xf32>
    %397 = vector.broadcast %396 : vector<192x1xf32> to vector<192x32xf32>
    %398 = arith.mulf %388, %397 : vector<192x32xf32>
    %399 = vector.broadcast %238 : vector<1x32xf32> to vector<192x32xf32>
    %400 = arith.mulf %398, %399 : vector<192x32xf32>
    %401 = vector.broadcast %240 : vector<1x32xf32> to vector<192x32xf32>
    %402 = arith.addf %400, %401 : vector<192x32xf32>
    %c0_257 = arith.constant 0 : index
    %c0_258 = arith.constant 0 : index
    %403 = vector.load %arg17[%c0_257, %c0_258] : memref<192x32xf32, #tpu.memory_space<vmem>>, vector<192x32xf32>
    tpu.vector_store %arg17[%c0_257, %c0_258], %402 {strides = array<i32>} : memref<192x32xf32, #tpu.memory_space<vmem>>, vector<192x32xf32>,
    %c0_259 = arith.constant 0 : index
    %c0_260 = arith.constant 0 : index
    %404 = vector.load %arg17[%c0_259, %c0_260] : memref<192x32xf32, #tpu.memory_space<vmem>>, vector<192x32xf32>
    %cst_261 = arith.constant dense<0.000000e+00> : vector<192x128xf32>
    %405 = tpu.matmul %404, %246, %cst_261 {dimension_numbers = #tpu.dot_dimension_numbers<[1], [0], [0], [1], [0, 0, 1, 1], [], []>} : vector<192x32xf32>, vector<32x128xf32>, vector<192x128xf32> -> vector<192x128xf32>
    %406 = vector.broadcast %248 : vector<1x128xf32> to vector<192x128xf32>
    %407 = arith.addf %405, %406 : vector<192x128xf32>
    %cst_262 = arith.constant 0.000000e+00 : f32
    %408 = vector.broadcast %cst_262 : f32 to vector<192x128xf32>
    %409 = arith.maximumf %407, %408 : vector<192x128xf32>
    %c0_263 = arith.constant 0 : index
    %c0_264 = arith.constant 0 : index
    %410 = vector.load %arg20[%c0_263, %c0_264] : memref<192x128xf32, #tpu.memory_space<vmem>>, vector<192x128xf32>
    tpu.vector_store %arg20[%c0_263, %c0_264], %409 {strides = array<i32>} : memref<192x128xf32, #tpu.memory_space<vmem>>, vector<192x128xf32>,
    %c0_265 = arith.constant 0 : index
    %c0_266 = arith.constant 0 : index
    %411 = vector.load %arg20[%c0_265, %c0_266] : memref<192x128xf32, #tpu.memory_space<vmem>>, vector<192x128xf32>
    %cst_267 = arith.constant dense<0.000000e+00> : vector<192x32xf32>
    %412 = tpu.matmul %411, %250, %cst_267 {dimension_numbers = #tpu.dot_dimension_numbers<[1], [0], [0], [1], [0, 0, 1, 1], [], []>} : vector<192x128xf32>, vector<128x32xf32>, vector<192x32xf32> -> vector<192x32xf32>
    %413 = vector.broadcast %252 : vector<1x32xf32> to vector<192x32xf32>
    %414 = arith.addf %412, %413 : vector<192x32xf32>
    %c0_268 = arith.constant 0 : index
    %c0_269 = arith.constant 0 : index
    %415 = vector.load %arg17[%c0_268, %c0_269] : memref<192x32xf32, #tpu.memory_space<vmem>>, vector<192x32xf32>
    %416 = arith.addf %415, %414 : vector<192x32xf32>
    %cst_270 = arith.constant dense<0.000000e+00> : vector<192xf32>
    %417 = vector.multi_reduction <add>, %416, %cst_270 [1] : vector<192x32xf32> to vector<192xf32>
    %418 = vector.shape_cast %417 : vector<192xf32> to vector<192x1xf32>
    %cst_271 = arith.constant 3.200000e+01 : f32
    %419 = vector.broadcast %cst_271 : f32 to vector<192x1xf32>
    %420 = arith.divf %418, %419 : vector<192x1xf32>
    %421 = vector.broadcast %420 : vector<192x1xf32> to vector<192x32xf32>
    %422 = arith.subf %416, %421 : vector<192x32xf32>
    %423 = arith.mulf %422, %422 : vector<192x32xf32>
    %cst_272 = arith.constant dense<0.000000e+00> : vector<192xf32>
    %424 = vector.multi_reduction <add>, %423, %cst_272 [1] : vector<192x32xf32> to vector<192xf32>
    %425 = vector.shape_cast %424 : vector<192xf32> to vector<192x1xf32>
    %cst_273 = arith.constant 3.200000e+01 : f32
    %426 = vector.broadcast %cst_273 : f32 to vector<192x1xf32>
    %427 = arith.divf %425, %426 : vector<192x1xf32>
    %cst_274 = arith.constant 9.99999974E-6 : f32
    %428 = vector.broadcast %cst_274 : f32 to vector<192x1xf32>
    %429 = arith.addf %427, %428 : vector<192x1xf32>
    %430 = math.rsqrt %429 : vector<192x1xf32>
    %431 = vector.broadcast %430 : vector<192x1xf32> to vector<192x32xf32>
    %432 = arith.mulf %422, %431 : vector<192x32xf32>
    %433 = vector.broadcast %242 : vector<1x32xf32> to vector<192x32xf32>
    %434 = arith.mulf %432, %433 : vector<192x32xf32>
    %435 = vector.broadcast %244 : vector<1x32xf32> to vector<192x32xf32>
    %436 = arith.addf %434, %435 : vector<192x32xf32>
    %c0_275 = arith.constant 0 : index
    %c0_276 = arith.constant 0 : index
    %437 = vector.load %arg17[%c0_275, %c0_276] : memref<192x32xf32, #tpu.memory_space<vmem>>, vector<192x32xf32>
    tpu.vector_store %arg17[%c0_275, %c0_276], %436 {strides = array<i32>} : memref<192x32xf32, #tpu.memory_space<vmem>>, vector<192x32xf32>,
    %c2_277 = arith.constant 2 : index
    %c0_278 = arith.constant 0 : index
    %c0_279 = arith.constant 0 : index
    %438 = vector.load %arg4[%c2_277, %c0_278, %c0_279] : memref<3x32x96xf32, #tpu.memory_space<vmem>>, vector<1x32x96xf32>
    %439 = vector.shape_cast %438 : vector<1x32x96xf32> to vector<32x96xf32>
    %c2_280 = arith.constant 2 : index
    %c0_281 = arith.constant 0 : index
    %c0_282 = arith.constant 0 : index
    %440 = vector.load %arg5[%c2_280, %c0_281, %c0_282] : memref<3x1x96xf32, #tpu.memory_space<vmem>>, vector<1x1x96xf32>
    %441 = vector.shape_cast %440 : vector<1x1x96xf32> to vector<1x96xf32>
    %c2_283 = arith.constant 2 : index
    %c0_284 = arith.constant 0 : index
    %c0_285 = arith.constant 0 : index
    %442 = vector.load %arg6[%c2_283, %c0_284, %c0_285] : memref<3x32x32xf32, #tpu.memory_space<vmem>>, vector<1x32x32xf32>
    %443 = vector.shape_cast %442 : vector<1x32x32xf32> to vector<32x32xf32>
    %c2_286 = arith.constant 2 : index
    %c0_287 = arith.constant 0 : index
    %c0_288 = arith.constant 0 : index
    %444 = vector.load %arg7[%c2_286, %c0_287, %c0_288] : memref<3x1x32xf32, #tpu.memory_space<vmem>>, vector<1x1x32xf32>
    %445 = vector.shape_cast %444 : vector<1x1x32xf32> to vector<1x32xf32>
    %c2_289 = arith.constant 2 : index
    %c0_290 = arith.constant 0 : index
    %c0_291 = arith.constant 0 : index
    %446 = vector.load %arg8[%c2_289, %c0_290, %c0_291] : memref<3x1x32xf32, #tpu.memory_space<vmem>>, vector<1x1x32xf32>
    %447 = vector.shape_cast %446 : vector<1x1x32xf32> to vector<1x32xf32>
    %c2_292 = arith.constant 2 : index
    %c0_293 = arith.constant 0 : index
    %c0_294 = arith.constant 0 : index
    %448 = vector.load %arg9[%c2_292, %c0_293, %c0_294] : memref<3x1x32xf32, #tpu.memory_space<vmem>>, vector<1x1x32xf32>
    %449 = vector.shape_cast %448 : vector<1x1x32xf32> to vector<1x32xf32>
    %c2_295 = arith.constant 2 : index
    %c0_296 = arith.constant 0 : index
    %c0_297 = arith.constant 0 : index
    %450 = vector.load %arg10[%c2_295, %c0_296, %c0_297] : memref<3x1x32xf32, #tpu.memory_space<vmem>>, vector<1x1x32xf32>
    %451 = vector.shape_cast %450 : vector<1x1x32xf32> to vector<1x32xf32>
    %c2_298 = arith.constant 2 : index
    %c0_299 = arith.constant 0 : index
    %c0_300 = arith.constant 0 : index
    %452 = vector.load %arg11[%c2_298, %c0_299, %c0_300] : memref<3x1x32xf32, #tpu.memory_space<vmem>>, vector<1x1x32xf32>
    %453 = vector.shape_cast %452 : vector<1x1x32xf32> to vector<1x32xf32>
    %c2_301 = arith.constant 2 : index
    %c0_302 = arith.constant 0 : index
    %c0_303 = arith.constant 0 : index
    %454 = vector.load %arg12[%c2_301, %c0_302, %c0_303] : memref<3x32x128xf32, #tpu.memory_space<vmem>>, vector<1x32x128xf32>
    %455 = vector.shape_cast %454 : vector<1x32x128xf32> to vector<32x128xf32>
    %c2_304 = arith.constant 2 : index
    %c0_305 = arith.constant 0 : index
    %c0_306 = arith.constant 0 : index
    %456 = vector.load %arg13[%c2_304, %c0_305, %c0_306] : memref<3x1x128xf32, #tpu.memory_space<vmem>>, vector<1x1x128xf32>
    %457 = vector.shape_cast %456 : vector<1x1x128xf32> to vector<1x128xf32>
    %c2_307 = arith.constant 2 : index
    %c0_308 = arith.constant 0 : index
    %c0_309 = arith.constant 0 : index
    %458 = vector.load %arg14[%c2_307, %c0_308, %c0_309] : memref<3x128x32xf32, #tpu.memory_space<vmem>>, vector<1x128x32xf32>
    %459 = vector.shape_cast %458 : vector<1x128x32xf32> to vector<128x32xf32>
    %c2_310 = arith.constant 2 : index
    %c0_311 = arith.constant 0 : index
    %c0_312 = arith.constant 0 : index
    %460 = vector.load %arg15[%c2_310, %c0_311, %c0_312] : memref<3x1x32xf32, #tpu.memory_space<vmem>>, vector<1x1x32xf32>
    %461 = vector.shape_cast %460 : vector<1x1x32xf32> to vector<1x32xf32>
    %c0_313 = arith.constant 0 : index
    %c0_314 = arith.constant 0 : index
    %462 = vector.load %arg17[%c0_313, %c0_314] : memref<192x32xf32, #tpu.memory_space<vmem>>, vector<192x32xf32>
    %cst_315 = arith.constant dense<0.000000e+00> : vector<192x96xf32>
    %463 = tpu.matmul %462, %439, %cst_315 {dimension_numbers = #tpu.dot_dimension_numbers<[1], [0], [0], [1], [0, 0, 1, 1], [], []>} : vector<192x32xf32>, vector<32x96xf32>, vector<192x96xf32> -> vector<192x96xf32>
    %464 = vector.broadcast %441 : vector<1x96xf32> to vector<192x96xf32>
    %465 = arith.addf %463, %464 : vector<192x96xf32>
    %466 = vector.extract_strided_slice %465 {offsets = [0, 0], sizes = [192, 32], strides = [1, 1]} : vector<192x96xf32> to vector<192x32xf32>
    %c0_316 = arith.constant 0 : index
    %c0_317 = arith.constant 0 : index
    %c0_318 = arith.constant 0 : index
    %467 = vector.load %arg18[%c0_316, %c0_317, %c0_318] : memref<3x192x32xf32, #tpu.memory_space<vmem>>, vector<1x192x32xf32>
    %468 = vector.shape_cast %467 : vector<1x192x32xf32> to vector<192x32xf32>
    %469 = vector.shape_cast %466 : vector<192x32xf32> to vector<1x192x32xf32>
    tpu.vector_store %arg18[%c0_316, %c0_317, %c0_318], %469 {strides = array<i32>} : memref<3x192x32xf32, #tpu.memory_space<vmem>>, vector<1x192x32xf32>,
    %470 = vector.extract_strided_slice %465 {offsets = [0, 32], sizes = [192, 32], strides = [1, 1]} : vector<192x96xf32> to vector<192x32xf32>
    %c1_319 = arith.constant 1 : index
    %c0_320 = arith.constant 0 : index
    %c0_321 = arith.constant 0 : index
    %471 = vector.load %arg18[%c1_319, %c0_320, %c0_321] : memref<3x192x32xf32, #tpu.memory_space<vmem>>, vector<1x192x32xf32>
    %472 = vector.shape_cast %471 : vector<1x192x32xf32> to vector<192x32xf32>
    %473 = vector.shape_cast %470 : vector<192x32xf32> to vector<1x192x32xf32>
    tpu.vector_store %arg18[%c1_319, %c0_320, %c0_321], %473 {strides = array<i32>} : memref<3x192x32xf32, #tpu.memory_space<vmem>>, vector<1x192x32xf32>,
    %474 = vector.extract_strided_slice %465 {offsets = [0, 64], sizes = [192, 32], strides = [1, 1]} : vector<192x96xf32> to vector<192x32xf32>
    %c2_322 = arith.constant 2 : index
    %c0_323 = arith.constant 0 : index
    %c0_324 = arith.constant 0 : index
    %475 = vector.load %arg18[%c2_322, %c0_323, %c0_324] : memref<3x192x32xf32, #tpu.memory_space<vmem>>, vector<1x192x32xf32>
    %476 = vector.shape_cast %475 : vector<1x192x32xf32> to vector<192x32xf32>
    %477 = vector.shape_cast %474 : vector<192x32xf32> to vector<1x192x32xf32>
    tpu.vector_store %arg18[%c2_322, %c0_323, %c0_324], %477 {strides = array<i32>} : memref<3x192x32xf32, #tpu.memory_space<vmem>>, vector<1x192x32xf32>,
    %c0_325 = arith.constant 0 : index
    %c0_326 = arith.constant 0 : index
    %c0_327 = arith.constant 0 : index
    %478 = vector.load %arg18[%c0_325, %c0_326, %c0_327] : memref<3x192x32xf32, #tpu.memory_space<vmem>>, vector<1x64x32xf32>
    %479 = vector.shape_cast %478 : vector<1x64x32xf32> to vector<64x32xf32>
    %c1_328 = arith.constant 1 : index
    %c0_329 = arith.constant 0 : index
    %c0_330 = arith.constant 0 : index
    %480 = vector.load %arg18[%c1_328, %c0_329, %c0_330] : memref<3x192x32xf32, #tpu.memory_space<vmem>>, vector<1x192x32xf32>
    %481 = vector.shape_cast %480 : vector<1x192x32xf32> to vector<192x32xf32>
    %482 = tpu.concatenate %479, %479, %479 in 0 : vector<64x32xf32>, vector<64x32xf32>, vector<64x32xf32> -> vector<192x32xf32>
    %483 = arith.mulf %482, %481 : vector<192x32xf32>
    %cst_331 = arith.constant dense<0.000000e+00> : vector<192x32xf32>
    %484 = tpu.matmul %483, %0, %cst_331 {dimension_numbers = #tpu.dot_dimension_numbers<[1], [0], [0], [1], [0, 0, 1, 1], [], []>} : vector<192x32xf32>, vector<32x32xf32>, vector<192x32xf32> -> vector<192x32xf32>
    %485 = vector.extract_strided_slice %484 {offsets = [0, 0], sizes = [64, 32], strides = [1, 1]} : vector<192x32xf32> to vector<64x32xf32>
    %486 = vector.extract_strided_slice %484 {offsets = [64, 0], sizes = [64, 32], strides = [1, 1]} : vector<192x32xf32> to vector<64x32xf32>
    %487 = vector.extract_strided_slice %484 {offsets = [128, 0], sizes = [64, 32], strides = [1, 1]} : vector<192x32xf32> to vector<64x32xf32>
    %488 = arith.maximumf %485, %486 : vector<64x32xf32>
    %489 = arith.maximumf %488, %487 : vector<64x32xf32>
    %490 = arith.subf %485, %489 : vector<64x32xf32>
    %491 = math.exp %490 : vector<64x32xf32>
    %492 = arith.subf %486, %489 : vector<64x32xf32>
    %493 = math.exp %492 : vector<64x32xf32>
    %494 = arith.subf %487, %489 : vector<64x32xf32>
    %495 = math.exp %494 : vector<64x32xf32>
    %496 = arith.addf %491, %493 : vector<64x32xf32>
    %497 = arith.addf %496, %495 : vector<64x32xf32>
    %498 = tpu.reciprocal %497 {approx = true} : vector<64x32xf32> -> vector<64x32xf32>
    %499 = arith.mulf %491, %498 : vector<64x32xf32>
    %c2_332 = arith.constant 2 : index
    %c0_333 = arith.constant 0 : index
    %c0_334 = arith.constant 0 : index
    %500 = vector.load %arg18[%c2_332, %c0_333, %c0_334] : memref<3x192x32xf32, #tpu.memory_space<vmem>>, vector<1x64x32xf32>
    %501 = vector.shape_cast %500 : vector<1x64x32xf32> to vector<64x32xf32>
    %502 = arith.mulf %499, %501 : vector<64x32xf32>
    %503 = arith.mulf %493, %498 : vector<64x32xf32>
    %c2_335 = arith.constant 2 : index
    %c64_336 = arith.constant 64 : index
    %c0_337 = arith.constant 0 : index
    %504 = vector.load %arg18[%c2_335, %c64_336, %c0_337] : memref<3x192x32xf32, #tpu.memory_space<vmem>>, vector<1x64x32xf32>
    %505 = vector.shape_cast %504 : vector<1x64x32xf32> to vector<64x32xf32>
    %506 = arith.mulf %503, %505 : vector<64x32xf32>
    %507 = arith.addf %502, %506 : vector<64x32xf32>
    %508 = arith.mulf %495, %498 : vector<64x32xf32>
    %c2_338 = arith.constant 2 : index
    %c128_339 = arith.constant 128 : index
    %c0_340 = arith.constant 0 : index
    %509 = vector.load %arg18[%c2_338, %c128_339, %c0_340] : memref<3x192x32xf32, #tpu.memory_space<vmem>>, vector<1x64x32xf32>
    %510 = vector.shape_cast %509 : vector<1x64x32xf32> to vector<64x32xf32>
    %511 = arith.mulf %508, %510 : vector<64x32xf32>
    %512 = arith.addf %507, %511 : vector<64x32xf32>
    %c0_341 = arith.constant 0 : index
    %c0_342 = arith.constant 0 : index
    %513 = vector.load %arg19[%c0_341, %c0_342] : memref<192x32xf32, #tpu.memory_space<vmem>>, vector<64x32xf32>
    tpu.vector_store %arg19[%c0_341, %c0_342], %512 {strides = array<i32>} : memref<192x32xf32, #tpu.memory_space<vmem>>, vector<64x32xf32>,
    %c0_343 = arith.constant 0 : index
    %c64_344 = arith.constant 64 : index
    %c0_345 = arith.constant 0 : index
    %514 = vector.load %arg18[%c0_343, %c64_344, %c0_345] : memref<3x192x32xf32, #tpu.memory_space<vmem>>, vector<1x64x32xf32>
    %515 = vector.shape_cast %514 : vector<1x64x32xf32> to vector<64x32xf32>
    %c1_346 = arith.constant 1 : index
    %c0_347 = arith.constant 0 : index
    %c0_348 = arith.constant 0 : index
    %516 = vector.load %arg18[%c1_346, %c0_347, %c0_348] : memref<3x192x32xf32, #tpu.memory_space<vmem>>, vector<1x192x32xf32>
    %517 = vector.shape_cast %516 : vector<1x192x32xf32> to vector<192x32xf32>
    %518 = tpu.concatenate %515, %515, %515 in 0 : vector<64x32xf32>, vector<64x32xf32>, vector<64x32xf32> -> vector<192x32xf32>
    %519 = arith.mulf %518, %517 : vector<192x32xf32>
    %cst_349 = arith.constant dense<0.000000e+00> : vector<192x32xf32>
    %520 = tpu.matmul %519, %0, %cst_349 {dimension_numbers = #tpu.dot_dimension_numbers<[1], [0], [0], [1], [0, 0, 1, 1], [], []>} : vector<192x32xf32>, vector<32x32xf32>, vector<192x32xf32> -> vector<192x32xf32>
    %521 = vector.extract_strided_slice %520 {offsets = [0, 0], sizes = [64, 32], strides = [1, 1]} : vector<192x32xf32> to vector<64x32xf32>
    %522 = vector.extract_strided_slice %520 {offsets = [64, 0], sizes = [64, 32], strides = [1, 1]} : vector<192x32xf32> to vector<64x32xf32>
    %523 = vector.extract_strided_slice %520 {offsets = [128, 0], sizes = [64, 32], strides = [1, 1]} : vector<192x32xf32> to vector<64x32xf32>
    %524 = arith.maximumf %521, %522 : vector<64x32xf32>
    %525 = arith.maximumf %524, %523 : vector<64x32xf32>
    %526 = arith.subf %521, %525 : vector<64x32xf32>
    %527 = math.exp %526 : vector<64x32xf32>
    %528 = arith.subf %522, %525 : vector<64x32xf32>
    %529 = math.exp %528 : vector<64x32xf32>
    %530 = arith.subf %523, %525 : vector<64x32xf32>
    %531 = math.exp %530 : vector<64x32xf32>
    %532 = arith.addf %527, %529 : vector<64x32xf32>
    %533 = arith.addf %532, %531 : vector<64x32xf32>
    %534 = tpu.reciprocal %533 {approx = true} : vector<64x32xf32> -> vector<64x32xf32>
    %535 = arith.mulf %527, %534 : vector<64x32xf32>
    %c2_350 = arith.constant 2 : index
    %c0_351 = arith.constant 0 : index
    %c0_352 = arith.constant 0 : index
    %536 = vector.load %arg18[%c2_350, %c0_351, %c0_352] : memref<3x192x32xf32, #tpu.memory_space<vmem>>, vector<1x64x32xf32>
    %537 = vector.shape_cast %536 : vector<1x64x32xf32> to vector<64x32xf32>
    %538 = arith.mulf %535, %537 : vector<64x32xf32>
    %539 = arith.mulf %529, %534 : vector<64x32xf32>
    %c2_353 = arith.constant 2 : index
    %c64_354 = arith.constant 64 : index
    %c0_355 = arith.constant 0 : index
    %540 = vector.load %arg18[%c2_353, %c64_354, %c0_355] : memref<3x192x32xf32, #tpu.memory_space<vmem>>, vector<1x64x32xf32>
    %541 = vector.shape_cast %540 : vector<1x64x32xf32> to vector<64x32xf32>
    %542 = arith.mulf %539, %541 : vector<64x32xf32>
    %543 = arith.addf %538, %542 : vector<64x32xf32>
    %544 = arith.mulf %531, %534 : vector<64x32xf32>
    %c2_356 = arith.constant 2 : index
    %c128_357 = arith.constant 128 : index
    %c0_358 = arith.constant 0 : index
    %545 = vector.load %arg18[%c2_356, %c128_357, %c0_358] : memref<3x192x32xf32, #tpu.memory_space<vmem>>, vector<1x64x32xf32>
    %546 = vector.shape_cast %545 : vector<1x64x32xf32> to vector<64x32xf32>
    %547 = arith.mulf %544, %546 : vector<64x32xf32>
    %548 = arith.addf %543, %547 : vector<64x32xf32>
    %c64_359 = arith.constant 64 : index
    %c0_360 = arith.constant 0 : index
    %549 = vector.load %arg19[%c64_359, %c0_360] : memref<192x32xf32, #tpu.memory_space<vmem>>, vector<64x32xf32>
    tpu.vector_store %arg19[%c64_359, %c0_360], %548 {strides = array<i32>} : memref<192x32xf32, #tpu.memory_space<vmem>>, vector<64x32xf32>,
    %c0_361 = arith.constant 0 : index
    %c128_362 = arith.constant 128 : index
    %c0_363 = arith.constant 0 : index
    %550 = vector.load %arg18[%c0_361, %c128_362, %c0_363] : memref<3x192x32xf32, #tpu.memory_space<vmem>>, vector<1x64x32xf32>
    %551 = vector.shape_cast %550 : vector<1x64x32xf32> to vector<64x32xf32>
    %c1_364 = arith.constant 1 : index
    %c0_365 = arith.constant 0 : index
    %c0_366 = arith.constant 0 : index
    %552 = vector.load %arg18[%c1_364, %c0_365, %c0_366] : memref<3x192x32xf32, #tpu.memory_space<vmem>>, vector<1x192x32xf32>
    %553 = vector.shape_cast %552 : vector<1x192x32xf32> to vector<192x32xf32>
    %554 = tpu.concatenate %551, %551, %551 in 0 : vector<64x32xf32>, vector<64x32xf32>, vector<64x32xf32> -> vector<192x32xf32>
    %555 = arith.mulf %554, %553 : vector<192x32xf32>
    %cst_367 = arith.constant dense<0.000000e+00> : vector<192x32xf32>
    %556 = tpu.matmul %555, %0, %cst_367 {dimension_numbers = #tpu.dot_dimension_numbers<[1], [0], [0], [1], [0, 0, 1, 1], [], []>} : vector<192x32xf32>, vector<32x32xf32>, vector<192x32xf32> -> vector<192x32xf32>
    %557 = vector.extract_strided_slice %556 {offsets = [0, 0], sizes = [64, 32], strides = [1, 1]} : vector<192x32xf32> to vector<64x32xf32>
    %558 = vector.extract_strided_slice %556 {offsets = [64, 0], sizes = [64, 32], strides = [1, 1]} : vector<192x32xf32> to vector<64x32xf32>
    %559 = vector.extract_strided_slice %556 {offsets = [128, 0], sizes = [64, 32], strides = [1, 1]} : vector<192x32xf32> to vector<64x32xf32>
    %560 = arith.maximumf %557, %558 : vector<64x32xf32>
    %561 = arith.maximumf %560, %559 : vector<64x32xf32>
    %562 = arith.subf %557, %561 : vector<64x32xf32>
    %563 = math.exp %562 : vector<64x32xf32>
    %564 = arith.subf %558, %561 : vector<64x32xf32>
    %565 = math.exp %564 : vector<64x32xf32>
    %566 = arith.subf %559, %561 : vector<64x32xf32>
    %567 = math.exp %566 : vector<64x32xf32>
    %568 = arith.addf %563, %565 : vector<64x32xf32>
    %569 = arith.addf %568, %567 : vector<64x32xf32>
    %570 = tpu.reciprocal %569 {approx = true} : vector<64x32xf32> -> vector<64x32xf32>
    %571 = arith.mulf %563, %570 : vector<64x32xf32>
    %c2_368 = arith.constant 2 : index
    %c0_369 = arith.constant 0 : index
    %c0_370 = arith.constant 0 : index
    %572 = vector.load %arg18[%c2_368, %c0_369, %c0_370] : memref<3x192x32xf32, #tpu.memory_space<vmem>>, vector<1x64x32xf32>
    %573 = vector.shape_cast %572 : vector<1x64x32xf32> to vector<64x32xf32>
    %574 = arith.mulf %571, %573 : vector<64x32xf32>
    %575 = arith.mulf %565, %570 : vector<64x32xf32>
    %c2_371 = arith.constant 2 : index
    %c64_372 = arith.constant 64 : index
    %c0_373 = arith.constant 0 : index
    %576 = vector.load %arg18[%c2_371, %c64_372, %c0_373] : memref<3x192x32xf32, #tpu.memory_space<vmem>>, vector<1x64x32xf32>
    %577 = vector.shape_cast %576 : vector<1x64x32xf32> to vector<64x32xf32>
    %578 = arith.mulf %575, %577 : vector<64x32xf32>
    %579 = arith.addf %574, %578 : vector<64x32xf32>
    %580 = arith.mulf %567, %570 : vector<64x32xf32>
    %c2_374 = arith.constant 2 : index
    %c128_375 = arith.constant 128 : index
    %c0_376 = arith.constant 0 : index
    %581 = vector.load %arg18[%c2_374, %c128_375, %c0_376] : memref<3x192x32xf32, #tpu.memory_space<vmem>>, vector<1x64x32xf32>
    %582 = vector.shape_cast %581 : vector<1x64x32xf32> to vector<64x32xf32>
    %583 = arith.mulf %580, %582 : vector<64x32xf32>
    %584 = arith.addf %579, %583 : vector<64x32xf32>
    %c128_377 = arith.constant 128 : index
    %c0_378 = arith.constant 0 : index
    %585 = vector.load %arg19[%c128_377, %c0_378] : memref<192x32xf32, #tpu.memory_space<vmem>>, vector<64x32xf32>
    tpu.vector_store %arg19[%c128_377, %c0_378], %584 {strides = array<i32>} : memref<192x32xf32, #tpu.memory_space<vmem>>, vector<64x32xf32>,
    %c0_379 = arith.constant 0 : index
    %c0_380 = arith.constant 0 : index
    %586 = vector.load %arg19[%c0_379, %c0_380] : memref<192x32xf32, #tpu.memory_space<vmem>>, vector<192x32xf32>
    %cst_381 = arith.constant dense<0.000000e+00> : vector<192x32xf32>
    %587 = tpu.matmul %586, %443, %cst_381 {dimension_numbers = #tpu.dot_dimension_numbers<[1], [0], [0], [1], [0, 0, 1, 1], [], []>} : vector<192x32xf32>, vector<32x32xf32>, vector<192x32xf32> -> vector<192x32xf32>
    %588 = vector.broadcast %445 : vector<1x32xf32> to vector<192x32xf32>
    %589 = arith.addf %587, %588 : vector<192x32xf32>
    %c0_382 = arith.constant 0 : index
    %c0_383 = arith.constant 0 : index
    %590 = vector.load %arg17[%c0_382, %c0_383] : memref<192x32xf32, #tpu.memory_space<vmem>>, vector<192x32xf32>
    %591 = arith.addf %590, %589 : vector<192x32xf32>
    %cst_384 = arith.constant dense<0.000000e+00> : vector<192xf32>
    %592 = vector.multi_reduction <add>, %591, %cst_384 [1] : vector<192x32xf32> to vector<192xf32>
    %593 = vector.shape_cast %592 : vector<192xf32> to vector<192x1xf32>
    %cst_385 = arith.constant 3.200000e+01 : f32
    %594 = vector.broadcast %cst_385 : f32 to vector<192x1xf32>
    %595 = arith.divf %593, %594 : vector<192x1xf32>
    %596 = vector.broadcast %595 : vector<192x1xf32> to vector<192x32xf32>
    %597 = arith.subf %591, %596 : vector<192x32xf32>
    %598 = arith.mulf %597, %597 : vector<192x32xf32>
    %cst_386 = arith.constant dense<0.000000e+00> : vector<192xf32>
    %599 = vector.multi_reduction <add>, %598, %cst_386 [1] : vector<192x32xf32> to vector<192xf32>
    %600 = vector.shape_cast %599 : vector<192xf32> to vector<192x1xf32>
    %cst_387 = arith.constant 3.200000e+01 : f32
    %601 = vector.broadcast %cst_387 : f32 to vector<192x1xf32>
    %602 = arith.divf %600, %601 : vector<192x1xf32>
    %cst_388 = arith.constant 9.99999974E-6 : f32
    %603 = vector.broadcast %cst_388 : f32 to vector<192x1xf32>
    %604 = arith.addf %602, %603 : vector<192x1xf32>
    %605 = math.rsqrt %604 : vector<192x1xf32>
    %606 = vector.broadcast %605 : vector<192x1xf32> to vector<192x32xf32>
    %607 = arith.mulf %597, %606 : vector<192x32xf32>
    %608 = vector.broadcast %447 : vector<1x32xf32> to vector<192x32xf32>
    %609 = arith.mulf %607, %608 : vector<192x32xf32>
    %610 = vector.broadcast %449 : vector<1x32xf32> to vector<192x32xf32>
    %611 = arith.addf %609, %610 : vector<192x32xf32>
    %c0_389 = arith.constant 0 : index
    %c0_390 = arith.constant 0 : index
    %612 = vector.load %arg17[%c0_389, %c0_390] : memref<192x32xf32, #tpu.memory_space<vmem>>, vector<192x32xf32>
    tpu.vector_store %arg17[%c0_389, %c0_390], %611 {strides = array<i32>} : memref<192x32xf32, #tpu.memory_space<vmem>>, vector<192x32xf32>,
    %c0_391 = arith.constant 0 : index
    %c0_392 = arith.constant 0 : index
    %613 = vector.load %arg17[%c0_391, %c0_392] : memref<192x32xf32, #tpu.memory_space<vmem>>, vector<192x32xf32>
    %cst_393 = arith.constant dense<0.000000e+00> : vector<192x128xf32>
    %614 = tpu.matmul %613, %455, %cst_393 {dimension_numbers = #tpu.dot_dimension_numbers<[1], [0], [0], [1], [0, 0, 1, 1], [], []>} : vector<192x32xf32>, vector<32x128xf32>, vector<192x128xf32> -> vector<192x128xf32>
    %615 = vector.broadcast %457 : vector<1x128xf32> to vector<192x128xf32>
    %616 = arith.addf %614, %615 : vector<192x128xf32>
    %cst_394 = arith.constant 0.000000e+00 : f32
    %617 = vector.broadcast %cst_394 : f32 to vector<192x128xf32>
    %618 = arith.maximumf %616, %617 : vector<192x128xf32>
    %c0_395 = arith.constant 0 : index
    %c0_396 = arith.constant 0 : index
    %619 = vector.load %arg20[%c0_395, %c0_396] : memref<192x128xf32, #tpu.memory_space<vmem>>, vector<192x128xf32>
    tpu.vector_store %arg20[%c0_395, %c0_396], %618 {strides = array<i32>} : memref<192x128xf32, #tpu.memory_space<vmem>>, vector<192x128xf32>,
    %c0_397 = arith.constant 0 : index
    %c0_398 = arith.constant 0 : index
    %620 = vector.load %arg20[%c0_397, %c0_398] : memref<192x128xf32, #tpu.memory_space<vmem>>, vector<192x128xf32>
    %cst_399 = arith.constant dense<0.000000e+00> : vector<192x32xf32>
    %621 = tpu.matmul %620, %459, %cst_399 {dimension_numbers = #tpu.dot_dimension_numbers<[1], [0], [0], [1], [0, 0, 1, 1], [], []>} : vector<192x128xf32>, vector<128x32xf32>, vector<192x32xf32> -> vector<192x32xf32>
    %622 = vector.broadcast %461 : vector<1x32xf32> to vector<192x32xf32>
    %623 = arith.addf %621, %622 : vector<192x32xf32>
    %c0_400 = arith.constant 0 : index
    %c0_401 = arith.constant 0 : index
    %624 = vector.load %arg17[%c0_400, %c0_401] : memref<192x32xf32, #tpu.memory_space<vmem>>, vector<192x32xf32>
    %625 = arith.addf %624, %623 : vector<192x32xf32>
    %cst_402 = arith.constant dense<0.000000e+00> : vector<192xf32>
    %626 = vector.multi_reduction <add>, %625, %cst_402 [1] : vector<192x32xf32> to vector<192xf32>
    %627 = vector.shape_cast %626 : vector<192xf32> to vector<192x1xf32>
    %cst_403 = arith.constant 3.200000e+01 : f32
    %628 = vector.broadcast %cst_403 : f32 to vector<192x1xf32>
    %629 = arith.divf %627, %628 : vector<192x1xf32>
    %630 = vector.broadcast %629 : vector<192x1xf32> to vector<192x32xf32>
    %631 = arith.subf %625, %630 : vector<192x32xf32>
    %632 = arith.mulf %631, %631 : vector<192x32xf32>
    %cst_404 = arith.constant dense<0.000000e+00> : vector<192xf32>
    %633 = vector.multi_reduction <add>, %632, %cst_404 [1] : vector<192x32xf32> to vector<192xf32>
    %634 = vector.shape_cast %633 : vector<192xf32> to vector<192x1xf32>
    %cst_405 = arith.constant 3.200000e+01 : f32
    %635 = vector.broadcast %cst_405 : f32 to vector<192x1xf32>
    %636 = arith.divf %634, %635 : vector<192x1xf32>
    %cst_406 = arith.constant 9.99999974E-6 : f32
    %637 = vector.broadcast %cst_406 : f32 to vector<192x1xf32>
    %638 = arith.addf %636, %637 : vector<192x1xf32>
    %639 = math.rsqrt %638 : vector<192x1xf32>
    %640 = vector.broadcast %639 : vector<192x1xf32> to vector<192x32xf32>
    %641 = arith.mulf %631, %640 : vector<192x32xf32>
    %642 = vector.broadcast %451 : vector<1x32xf32> to vector<192x32xf32>
    %643 = arith.mulf %641, %642 : vector<192x32xf32>
    %644 = vector.broadcast %453 : vector<1x32xf32> to vector<192x32xf32>
    %645 = arith.addf %643, %644 : vector<192x32xf32>
    %c0_407 = arith.constant 0 : index
    %c0_408 = arith.constant 0 : index
    %646 = vector.load %arg17[%c0_407, %c0_408] : memref<192x32xf32, #tpu.memory_space<vmem>>, vector<192x32xf32>
    tpu.vector_store %arg17[%c0_407, %c0_408], %645 {strides = array<i32>} : memref<192x32xf32, #tpu.memory_space<vmem>>, vector<192x32xf32>,
    %c0_409 = arith.constant 0 : index
    %c0_410 = arith.constant 0 : index
    %647 = vector.load %arg17[%c0_409, %c0_410] : memref<192x32xf32, #tpu.memory_space<vmem>>, vector<64x32xf32>
    %c64_411 = arith.constant 64 : index
    %c0_412 = arith.constant 0 : index
    %648 = vector.load %arg17[%c64_411, %c0_412] : memref<192x32xf32, #tpu.memory_space<vmem>>, vector<64x32xf32>
    %649 = arith.addf %647, %648 : vector<64x32xf32>
    %c128_413 = arith.constant 128 : index
    %c0_414 = arith.constant 0 : index
    %650 = vector.load %arg17[%c128_413, %c0_414] : memref<192x32xf32, #tpu.memory_space<vmem>>, vector<64x32xf32>
    %651 = arith.addf %649, %650 : vector<64x32xf32>
    %cst_415 = arith.constant 0.333333343 : f32
    %652 = vector.broadcast %cst_415 : f32 to vector<64x32xf32>
    %653 = arith.mulf %651, %652 : vector<64x32xf32>
    %c0_416 = arith.constant 0 : index
    %c0_417 = arith.constant 0 : index
    %654 = vector.load %arg16[%c0_416, %c0_417] : memref<64x32xf32, #tpu.memory_space<vmem>>, vector<64x32xf32>
    tpu.vector_store %arg16[%c0_416, %c0_417], %653 {strides = array<i32>} : memref<64x32xf32, #tpu.memory_space<vmem>>, vector<64x32xf32>,
    return
  }
  func.func @transform_0(%arg0: i32) -> (i32, i32, i32) {
    %c0_i32 = arith.constant 0 : i32
    %c0_i32_0 = arith.constant 0 : i32
    %c0_i32_1 = arith.constant 0 : i32
    return %c0_i32, %arg0, %c0_i32_0 : i32, i32, i32
  }
  func.func @transform_1(%arg0: i32) -> (i32, i32) {
    %c0_i32 = arith.constant 0 : i32
    %c0_i32_0 = arith.constant 0 : i32
    %c0_i32_1 = arith.constant 0 : i32
    return %c0_i32, %c0_i32_0 : i32, i32
  }
  func.func @transform_2(%arg0: i32) -> (i32, i32) {
    %c0_i32 = arith.constant 0 : i32
    %c0_i32_0 = arith.constant 0 : i32
    %c0_i32_1 = arith.constant 0 : i32
    return %c0_i32, %c0_i32_0 : i32, i32
  }
  func.func @transform_3(%arg0: i32) -> (i32, i32, i32) {
    %c0_i32 = arith.constant 0 : i32
    %c0_i32_0 = arith.constant 0 : i32
    %c0_i32_1 = arith.constant 0 : i32
    %c0_i32_2 = arith.constant 0 : i32
    return %c0_i32, %c0_i32_0, %c0_i32_1 : i32, i32, i32
  }
  func.func @transform_4(%arg0: i32) -> (i32, i32, i32) {
    %c0_i32 = arith.constant 0 : i32
    %c0_i32_0 = arith.constant 0 : i32
    %c0_i32_1 = arith.constant 0 : i32
    %c0_i32_2 = arith.constant 0 : i32
    return %c0_i32, %c0_i32_0, %c0_i32_1 : i32, i32, i32
  }
  func.func @transform_5(%arg0: i32) -> (i32, i32, i32) {
    %c0_i32 = arith.constant 0 : i32
    %c0_i32_0 = arith.constant 0 : i32
    %c0_i32_1 = arith.constant 0 : i32
    %c0_i32_2 = arith.constant 0 : i32
    return %c0_i32, %c0_i32_0, %c0_i32_1 : i32, i32, i32
  }
  func.func @transform_6(%arg0: i32) -> (i32, i32, i32) {
    %c0_i32 = arith.constant 0 : i32
    %c0_i32_0 = arith.constant 0 : i32
    %c0_i32_1 = arith.constant 0 : i32
    %c0_i32_2 = arith.constant 0 : i32
    return %c0_i32, %c0_i32_0, %c0_i32_1 : i32, i32, i32
  }
  func.func @transform_7(%arg0: i32) -> (i32, i32, i32) {
    %c0_i32 = arith.constant 0 : i32
    %c0_i32_0 = arith.constant 0 : i32
    %c0_i32_1 = arith.constant 0 : i32
    %c0_i32_2 = arith.constant 0 : i32
    return %c0_i32, %c0_i32_0, %c0_i32_1 : i32, i32, i32
  }
  func.func @transform_8(%arg0: i32) -> (i32, i32, i32) {
    %c0_i32 = arith.constant 0 : i32
    %c0_i32_0 = arith.constant 0 : i32
    %c0_i32_1 = arith.constant 0 : i32
    %c0_i32_2 = arith.constant 0 : i32
    return %c0_i32, %c0_i32_0, %c0_i32_1 : i32, i32, i32
  }
  func.func @transform_9(%arg0: i32) -> (i32, i32, i32) {
    %c0_i32 = arith.constant 0 : i32
    %c0_i32_0 = arith.constant 0 : i32
    %c0_i32_1 = arith.constant 0 : i32
    %c0_i32_2 = arith.constant 0 : i32
    return %c0_i32, %c0_i32_0, %c0_i32_1 : i32, i32, i32
  }
  func.func @transform_10(%arg0: i32) -> (i32, i32, i32) {
    %c0_i32 = arith.constant 0 : i32
    %c0_i32_0 = arith.constant 0 : i32
    %c0_i32_1 = arith.constant 0 : i32
    %c0_i32_2 = arith.constant 0 : i32
    return %c0_i32, %c0_i32_0, %c0_i32_1 : i32, i32, i32
  }
  func.func @transform_11(%arg0: i32) -> (i32, i32, i32) {
    %c0_i32 = arith.constant 0 : i32
    %c0_i32_0 = arith.constant 0 : i32
    %c0_i32_1 = arith.constant 0 : i32
    %c0_i32_2 = arith.constant 0 : i32
    return %c0_i32, %c0_i32_0, %c0_i32_1 : i32, i32, i32
  }
  func.func @transform_12(%arg0: i32) -> (i32, i32, i32) {
    %c0_i32 = arith.constant 0 : i32
    %c0_i32_0 = arith.constant 0 : i32
    %c0_i32_1 = arith.constant 0 : i32
    %c0_i32_2 = arith.constant 0 : i32
    return %c0_i32, %c0_i32_0, %c0_i32_1 : i32, i32, i32
  }
  func.func @transform_13(%arg0: i32) -> (i32, i32, i32) {
    %c0_i32 = arith.constant 0 : i32
    %c0_i32_0 = arith.constant 0 : i32
    %c0_i32_1 = arith.constant 0 : i32
    %c0_i32_2 = arith.constant 0 : i32
    return %c0_i32, %c0_i32_0, %c0_i32_1 : i32, i32, i32
  }
  func.func @transform_14(%arg0: i32) -> (i32, i32, i32) {
    %c0_i32 = arith.constant 0 : i32
    %c0_i32_0 = arith.constant 0 : i32
    %c0_i32_1 = arith.constant 0 : i32
    %c0_i32_2 = arith.constant 0 : i32
    return %c0_i32, %c0_i32_0, %c0_i32_1 : i32, i32, i32
  }
  func.func @transform_15(%arg0: i32) -> (i32, i32) {
    %c0_i32 = arith.constant 0 : i32
    %c0_i32_0 = arith.constant 0 : i32
    return %arg0, %c0_i32 : i32, i32
  }
}

</mosaic_0001>

<llo_original>
// kernel: tpu_custom_call.1
$region0: #{tpu_custom_call.1}
  #allocation0 [shape = 'u32[]', space=smem, size = 0x4, offset = 0x4, fixed_abs, tag = 'smem constant byte address 0x4 - core index']
  #allocation1 [shape = 'u32[72,128]{1,0:T(1,128)}', space=vmem, size = 0x9000, scoped, tag = 'internal scratch']
  #allocation2 [shape = 'f32[192,32]{1,0:T(8,128)}', space=vmem, size = 0x18000, scoped, tag = 'scratch operand']
  #allocation3 [shape = 'f32[3,192,32]{2,1,0:T(8,128)}', space=vmem, size = 0x48000, scoped, tag = 'scratch operand']
  #allocation4 [shape = 'f32[192,32]{1,0:T(8,128)}', space=vmem, size = 0x18000, scoped, tag = 'scratch operand']
  #allocation5 [shape = 'f32[192,128]{1,0:T(8,128)}', space=vmem, size = 0x18000, scoped, tag = 'scratch operand']
  %s0 = inlined_call_operand.vmem [shape: f32[3,64,32], index: 0, kind: input, shape index: {}]
  %s1 = inlined_call_operand.vmem [shape: f32[3,32], index: 1, kind: input, shape index: {}]
  %s2 = inlined_call_operand.vmem [shape: f32[32,32], index: 2, kind: input, shape index: {}]
  %s3 = inlined_call_operand.vmem [shape: f32[3,32,96], index: 3, kind: input, shape index: {}]
  %s4 = inlined_call_operand.vmem [shape: f32[3,1,96], index: 4, kind: input, shape index: {}]
  %s5 = inlined_call_operand.vmem [shape: f32[3,32,32], index: 5, kind: input, shape index: {}]
  %s6 = inlined_call_operand.vmem [shape: f32[3,1,32], index: 6, kind: input, shape index: {}]
  %s7 = inlined_call_operand.vmem [shape: f32[3,1,32], index: 7, kind: input, shape index: {}]
  %s8 = inlined_call_operand.vmem [shape: f32[3,1,32], index: 8, kind: input, shape index: {}]
  %s9 = inlined_call_operand.vmem [shape: f32[3,1,32], index: 9, kind: input, shape index: {}]
  %s10 = inlined_call_operand.vmem [shape: f32[3,1,32], index: 10, kind: input, shape index: {}]
  %s11 = inlined_call_operand.vmem [shape: f32[3,32,128], index: 11, kind: input, shape index: {}]
  %s12 = inlined_call_operand.vmem [shape: f32[3,1,128], index: 12, kind: input, shape index: {}]
  %s13 = inlined_call_operand.vmem [shape: f32[3,128,32], index: 13, kind: input, shape index: {}]
  %s14 = inlined_call_operand.vmem [shape: f32[3,1,32], index: 14, kind: input, shape index: {}]
  %s15 = inlined_call_operand.vmem [shape: f32[64,32], index: 15, kind: output, shape index: {}]
  %s16 = sld [smem:[#allocation0]]
  $region70: #{tpu_custom_call.1} parent=0
    _
  %s18 = ssub.s32 1, %s16
  %s19 = scalar_select 0, %s18, %s16
  // Predicated region
  $region2: #{tpu_custom_call.1} parent=0 // pred_check
    _
  $region3: #{tpu_custom_call.1} parent=0 // pred_check_branch
    %21 = sbr.rel (0) target = $region5
  $region4: #{tpu_custom_call.1} parent=0 // pred_region
    _
  $region5: #{tpu_custom_call.1} parent=0 // pred_fallthru
    _
  // Predicated region
  $region6: #{tpu_custom_call.1} parent=0 // pred_check
    _
  $region7: #{tpu_custom_call.1} parent=0 // pred_check_branch
    %23 = sbr.rel (0) target = $region9
  $region8: #{tpu_custom_call.1} parent=0 // pred_region
    _
  $region9: #{tpu_custom_call.1} parent=0 // pred_fallthru
    _
  // Predicated region
  $region10: #{tpu_custom_call.1} parent=0 // pred_check
    _
  $region11: #{tpu_custom_call.1} parent=0 // pred_check_branch
    %25 = sbr.rel (0) target = $region13
  $region12: #{tpu_custom_call.1} parent=0 // pred_region
    _
  $region13: #{tpu_custom_call.1} parent=0 // pred_fallthru
    _
  // Predicated region
  $region14: #{tpu_custom_call.1} parent=0 // pred_check
    _
  $region15: #{tpu_custom_call.1} parent=0 // pred_check_branch
    %27 = sbr.rel (0) target = $region17
  $region16: #{tpu_custom_call.1} parent=0 // pred_region
    _
  $region17: #{tpu_custom_call.1} parent=0 // pred_fallthru
    _
  // Predicated region
  $region18: #{tpu_custom_call.1} parent=0 // pred_check
    _
  $region19: #{tpu_custom_call.1} parent=0 // pred_check_branch
    %29 = sbr.rel (0) target = $region21
  $region20: #{tpu_custom_call.1} parent=0 // pred_region
    _
  $region21: #{tpu_custom_call.1} parent=0 // pred_fallthru
    _
  // Predicated region
  $region22: #{tpu_custom_call.1} parent=0 // pred_check
    _
  $region23: #{tpu_custom_call.1} parent=0 // pred_check_branch
    %31 = sbr.rel (0) target = $region25
  $region24: #{tpu_custom_call.1} parent=0 // pred_region
    _
  $region25: #{tpu_custom_call.1} parent=0 // pred_fallthru
    _
  // Predicated region
  $region26: #{tpu_custom_call.1} parent=0 // pred_check
    _
  $region27: #{tpu_custom_call.1} parent=0 // pred_check_branch
    %33 = sbr.rel (0) target = $region29
  $region28: #{tpu_custom_call.1} parent=0 // pred_region
    _
  $region29: #{tpu_custom_call.1} parent=0 // pred_fallthru
    _
  // Predicated region
  $region30: #{tpu_custom_call.1} parent=0 // pred_check
    _
  $region31: #{tpu_custom_call.1} parent=0 // pred_check_branch
    %35 = sbr.rel (0) target = $region33
  $region32: #{tpu_custom_call.1} parent=0 // pred_region
    _
  $region33: #{tpu_custom_call.1} parent=0 // pred_fallthru
    _
  // Predicated region
  $region34: #{tpu_custom_call.1} parent=0 // pred_check
    _
  $region35: #{tpu_custom_call.1} parent=0 // pred_check_branch
    %37 = sbr.rel (0) target = $region37
  $region36: #{tpu_custom_call.1} parent=0 // pred_region
    _
  $region37: #{tpu_custom_call.1} parent=0 // pred_fallthru
    _
  // Predicated region
  $region38: #{tpu_custom_call.1} parent=0 // pred_check
    _
  $region39: #{tpu_custom_call.1} parent=0 // pred_check_branch
    %39 = sbr.rel (0) target = $region41
  $region40: #{tpu_custom_call.1} parent=0 // pred_region
    _
  $region41: #{tpu_custom_call.1} parent=0 // pred_fallthru
    _
  // Predicated region
  $region42: #{tpu_custom_call.1} parent=0 // pred_check
    _
  $region43: #{tpu_custom_call.1} parent=0 // pred_check_branch
    %41 = sbr.rel (0) target = $region45
  $region44: #{tpu_custom_call.1} parent=0 // pred_region
    _
  $region45: #{tpu_custom_call.1} parent=0 // pred_fallthru
    _
  // Predicated region
  $region46: #{tpu_custom_call.1} parent=0 // pred_check
    _
  $region47: #{tpu_custom_call.1} parent=0 // pred_check_branch
    %43 = sbr.rel (0) target = $region49
  $region48: #{tpu_custom_call.1} parent=0 // pred_region
    _
  $region49: #{tpu_custom_call.1} parent=0 // pred_fallthru
    _
  // Predicated region
  $region50: #{tpu_custom_call.1} parent=0 // pred_check
    _
  $region51: #{tpu_custom_call.1} parent=0 // pred_check_branch
    %45 = sbr.rel (0) target = $region53
  $region52: #{tpu_custom_call.1} parent=0 // pred_region
    _
  $region53: #{tpu_custom_call.1} parent=0 // pred_fallthru
    _
  // Predicated region
  $region54: #{tpu_custom_call.1} parent=0 // pred_check
    _
  $region55: #{tpu_custom_call.1} parent=0 // pred_check_branch
    %47 = sbr.rel (0) target = $region57
  $region56: #{tpu_custom_call.1} parent=0 // pred_region
    _
  $region57: #{tpu_custom_call.1} parent=0 // pred_fallthru
    _
  // Predicated region
  $region58: #{tpu_custom_call.1} parent=0 // pred_check
    _
  $region59: #{tpu_custom_call.1} parent=0 // pred_check_branch
    %49 = sbr.rel (0) target = $region61
  $region60: #{tpu_custom_call.1} parent=0 // pred_region
    _
  $region61: #{tpu_custom_call.1} parent=0 // pred_fallthru
    _
  %v50 = vld [vmem:[%s2] sm:$0xff]
  %v51 = vld [vmem:[%s2 + $0x8] sm:$0xff]
  %v52 = vld [vmem:[%s2 + $0x10] sm:$0xff]
  %v53 = vld [vmem:[%s2 + $0x18] sm:$0xff]
  %v54 = vld [vmem:[%s1] sm:$0x7]
  %v55 = vld [vmem:[%s0] sm:$0xff]
  %v56 = vld [vmem:[%s0 + $0x8] sm:$0xff]
  %v57 = vld [vmem:[%s0 + $0x10] sm:$0xff]
  %v58 = vld [vmem:[%s0 + $0x18] sm:$0xff]
  %v59 = vld [vmem:[%s0 + $0x20] sm:$0xff]
  %v60 = vld [vmem:[%s0 + $0x28] sm:$0xff]
  %v61 = vld [vmem:[%s0 + $0x30] sm:$0xff]
  %v62 = vld [vmem:[%s0 + $0x38] sm:$0xff]
  %v63 = vperm.slane %v54, 0
  %v64 = vadd.f32 %v55, %v63
  %v65 = vadd.f32 %v56, %v63
  %v66 = vadd.f32 %v57, %v63
  %v67 = vadd.f32 %v58, %v63
  %v68 = vadd.f32 %v59, %v63
  %v69 = vadd.f32 %v60, %v63
  %v70 = vadd.f32 %v61, %v63
  %v71 = vadd.f32 %v62, %v63
  %vm72 = vcmask 261120
  %73 = vst.msk [vmem:[#allocation2] sm:$0xff] %vm72, %v64
  %74 = vst.msk [vmem:[#allocation2 + $0x8] sm:$0xff] %vm72, %v65
  %75 = vst.msk [vmem:[#allocation2 + $0x10] sm:$0xff] %vm72, %v66
  %76 = vst.msk [vmem:[#allocation2 + $0x18] sm:$0xff] %vm72, %v67
  %77 = vst.msk [vmem:[#allocation2 + $0x20] sm:$0xff] %vm72, %v68
  %78 = vst.msk [vmem:[#allocation2 + $0x28] sm:$0xff] %vm72, %v69
  %79 = vst.msk [vmem:[#allocation2 + $0x30] sm:$0xff] %vm72, %v70
  %80 = vst.msk [vmem:[#allocation2 + $0x38] sm:$0xff] %vm72, %v71
  %s81 = scalar_lea.vmem %s0, 64
  %v82 = vld [vmem:[%s81] sm:$0xff]
  %v83 = vld [vmem:[%s81 + $0x8] sm:$0xff]
  %v84 = vld [vmem:[%s81 + $0x10] sm:$0xff]
  %v85 = vld [vmem:[%s81 + $0x18] sm:$0xff]
  %v86 = vld [vmem:[%s81 + $0x20] sm:$0xff]
  %v87 = vld [vmem:[%s81 + $0x28] sm:$0xff]
  %v88 = vld [vmem:[%s81 + $0x30] sm:$0xff]
  %v89 = vld [vmem:[%s81 + $0x38] sm:$0xff]
  %v90 = vperm.slane %v54, 1
  %v91 = vadd.f32 %v82, %v90
  %v92 = vadd.f32 %v83, %v90
  %v93 = vadd.f32 %v84, %v90
  %v94 = vadd.f32 %v85, %v90
  %v95 = vadd.f32 %v86, %v90
  %v96 = vadd.f32 %v87, %v90
  %v97 = vadd.f32 %v88, %v90
  %v98 = vadd.f32 %v89, %v90
  %99 = vst.msk [vmem:[#allocation2 + $0x40] sm:$0xff] %vm72, %v91
  %100 = vst.msk [vmem:[#allocation2 + $0x48] sm:$0xff] %vm72, %v92
  %101 = vst.msk [vmem:[#allocation2 + $0x50] sm:$0xff] %vm72, %v93
  %102 = vst.msk [vmem:[#allocation2 + $0x58] sm:$0xff] %vm72, %v94
  %103 = vst.msk [vmem:[#allocation2 + $0x60] sm:$0xff] %vm72, %v95
  %104 = vst.msk [vmem:[#allocation2 + $0x68] sm:$0xff] %vm72, %v96
  %105 = vst.msk [vmem:[#allocation2 + $0x70] sm:$0xff] %vm72, %v97
  %106 = vst.msk [vmem:[#allocation2 + $0x78] sm:$0xff] %vm72, %v98
  %s107 = scalar_lea.vmem %s0, 128
  %v108 = vld [vmem:[%s107] sm:$0xff]
  %v109 = vld [vmem:[%s107 + $0x8] sm:$0xff]
  %v110 = vld [vmem:[%s107 + $0x10] sm:$0xff]
  %v111 = vld [vmem:[%s107 + $0x18] sm:$0xff]
  %v112 = vld [vmem:[%s107 + $0x20] sm:$0xff]
  %v113 = vld [vmem:[%s107 + $0x28] sm:$0xff]
  %v114 = vld [vmem:[%s107 + $0x30] sm:$0xff]
  %v115 = vld [vmem:[%s107 + $0x38] sm:$0xff]
  %v116 = vperm.slane %v54, 2
  %v117 = vadd.f32 %v108, %v116
  %v118 = vadd.f32 %v109, %v116
  %v119 = vadd.f32 %v110, %v116
  %v120 = vadd.f32 %v111, %v116
  %v121 = vadd.f32 %v112, %v116
  %v122 = vadd.f32 %v113, %v116
  %v123 = vadd.f32 %v114, %v116
  %v124 = vadd.f32 %v115, %v116
  %125 = vst.msk [vmem:[#allocation2 + $0x80] sm:$0xff] %vm72, %v117
  %126 = vst.msk [vmem:[#allocation2 + $0x88] sm:$0xff] %vm72, %v118
  %127 = vst.msk [vmem:[#allocation2 + $0x90] sm:$0xff] %vm72, %v119
  %128 = vst.msk [vmem:[#allocation2 + $0x98] sm:$0xff] %vm72, %v120
  %129 = vst.msk [vmem:[#allocation2 + $0xa0] sm:$0xff] %vm72, %v121
  %130 = vst.msk [vmem:[#allocation2 + $0xa8] sm:$0xff] %vm72, %v122
  %131 = vst.msk [vmem:[#allocation2 + $0xb0] sm:$0xff] %vm72, %v123
  %132 = vst.msk [vmem:[#allocation2 + $0xb8] sm:$0xff] %vm72, %v124
  %v133 = vld [vmem:[%s3] sm:$0xff]
  %v134 = vld [vmem:[%s3 + $0x8] sm:$0xff]
  %v135 = vld [vmem:[%s3 + $0x10] sm:$0xff]
  %v136 = vld [vmem:[%s3 + $0x18] sm:$0xff]
  %v137 = vld [vmem:[%s4] sm:$0x1]
  %v138 = vld [vmem:[%s5] sm:$0xff]
  %v139 = vld [vmem:[%s5 + $0x8] sm:$0xff]
  %v140 = vld [vmem:[%s5 + $0x10] sm:$0xff]
  %v141 = vld [vmem:[%s5 + $0x18] sm:$0xff]
  %v142 = vld [vmem:[%s6] sm:$0x1]
  %v143 = vld [vmem:[%s7] sm:$0x1]
  %v144 = vld [vmem:[%s8] sm:$0x1]
  %v145 = vld [vmem:[%s9] sm:$0x1]
  %v146 = vld [vmem:[%s10] sm:$0x1]
  %v147 = vld [vmem:[%s11] sm:$0xff]
  %v148 = vld [vmem:[%s11 + $0x8] sm:$0xff]
  %v149 = vld [vmem:[%s11 + $0x10] sm:$0xff]
  %v150 = vld [vmem:[%s11 + $0x18] sm:$0xff]
  %v151 = vld [vmem:[%s12] sm:$0x1]
  %v152 = vld [vmem:[%s13] sm:$0xff]
  %v153 = vld [vmem:[%s13 + $0x8] sm:$0xff]
  %v154 = vld [vmem:[%s13 + $0x10] sm:$0xff]
  %v155 = vld [vmem:[%s13 + $0x18] sm:$0xff]
  %v156 = vld [vmem:[%s13 + $0x20] sm:$0xff]
  %v157 = vld [vmem:[%s13 + $0x28] sm:$0xff]
  %v158 = vld [vmem:[%s13 + $0x30] sm:$0xff]
  %v159 = vld [vmem:[%s13 + $0x38] sm:$0xff]
  %v160 = vld [vmem:[%s13 + $0x40] sm:$0xff]
  %v161 = vld [vmem:[%s13 + $0x48] sm:$0xff]
  %v162 = vld [vmem:[%s13 + $0x50] sm:$0xff]
  %v163 = vld [vmem:[%s13 + $0x58] sm:$0xff]
  %v164 = vld [vmem:[%s13 + $0x60] sm:$0xff]
  %v165 = vld [vmem:[%s13 + $0x68] sm:$0xff]
  %v166 = vld [vmem:[%s13 + $0x70] sm:$0xff]
  %v167 = vld [vmem:[%s13 + $0x78] sm:$0xff]
  %v168 = vld [vmem:[%s14] sm:$0x1]
  %v169 = vld [vmem:[#allocation2] sm:$0xff]
  %v170 = vld [vmem:[#allocation2 + $0x8] sm:$0xff]
  %v171 = vld [vmem:[#allocation2 + $0x10] sm:$0xff]
  %v172 = vld [vmem:[#allocation2 + $0x18] sm:$0xff]
  %v173 = vld [vmem:[#allocation2 + $0x20] sm:$0xff]
  %v174 = vld [vmem:[#allocation2 + $0x28] sm:$0xff]
  %v175 = vld [vmem:[#allocation2 + $0x30] sm:$0xff]
  %v176 = vld [vmem:[#allocation2 + $0x38] sm:$0xff]
  %v177 = vld [vmem:[#allocation2 + $0x40] sm:$0xff]
  %v178 = vld [vmem:[#allocation2 + $0x48] sm:$0xff]
  %v179 = vld [vmem:[#allocation2 + $0x50] sm:$0xff]
  %v180 = vld [vmem:[#allocation2 + $0x58] sm:$0xff]
  %v181 = vld [vmem:[#allocation2 + $0x60] sm:$0xff]
  %v182 = vld [vmem:[#allocation2 + $0x68] sm:$0xff]
  %v183 = vld [vmem:[#allocation2 + $0x70] sm:$0xff]
  %v184 = vld [vmem:[#allocation2 + $0x78] sm:$0xff]
  %v185 = vld [vmem:[#allocation2 + $0x80] sm:$0xff]
  %v186 = vld [vmem:[#allocation2 + $0x88] sm:$0xff]
  %v187 = vld [vmem:[#allocation2 + $0x90] sm:$0xff]
  %v188 = vld [vmem:[#allocation2 + $0x98] sm:$0xff]
  %v189 = vld [vmem:[#allocation2 + $0xa0] sm:$0xff]
  %v190 = vld [vmem:[#allocation2 + $0xa8] sm:$0xff]
  %v191 = vld [vmem:[#allocation2 + $0xb0] sm:$0xff]
  %v192 = vld [vmem:[#allocation2 + $0xb8] sm:$0xff]
  %v194 = vperm.slane %v137, 0
  %v197 = vsel %vm72, %v169, 0
  %v200 = vsel %vm72, %v170, 0
  %v203 = vsel %vm72, %v171, 0
  %v206 = vsel %vm72, %v172, 0
  %v209 = vsel %vm72, %v173, 0
  %v212 = vsel %vm72, %v174, 0
  %v215 = vsel %vm72, %v175, 0
  %v218 = vsel %vm72, %v176, 0
  %v221 = vsel %vm72, %v177, 0
  %v224 = vsel %vm72, %v178, 0
  %v227 = vsel %vm72, %v179, 0
  %v230 = vsel %vm72, %v180, 0
  %v233 = vsel %vm72, %v181, 0
  %v236 = vsel %vm72, %v182, 0
  %v239 = vsel %vm72, %v183, 0
  %v242 = vsel %vm72, %v184, 0
  %v245 = vsel %vm72, %v185, 0
  %v248 = vsel %vm72, %v186, 0
  %v251 = vsel %vm72, %v187, 0
  %v254 = vsel %vm72, %v188, 0
  %v257 = vsel %vm72, %v189, 0
  %v260 = vsel %vm72, %v190, 0
  %v263 = vsel %vm72, %v191, 0
  %v266 = vsel %vm72, %v192, 0
  %268 = vmatpush.msra.mxu0 0.0
  %269 = vmatpush.msra.mxu0 0.0
  %270 = vmatpush.msra.mxu0 0.0
  %271 = vmatpush.msra.mxu0 0.0
  %272 = vmatpush.msra.mxu0 0.0
  %273 = vmatpush.msra.mxu0 0.0
  %274 = vmatpush.msra.mxu0 0.0
  %275 = vmatpush.msra.mxu0 0.0
  %276 = vmatpush.msra.mxu0 0.0
  %277 = vmatpush.msra.mxu0 0.0
  %278 = vmatpush.msra.mxu0 0.0
  %279 = vmatpush.msra.mxu0 0.0
  %280 = vmatpush.msra.mxu0 %v136
  %281 = vmatpush.msra.mxu0 %v135
  %282 = vmatpush.msra.mxu0 %v134
  %283 = vmatpush.msra.mxu0 %v133
  %284 = vmatmul.f32.gmra.mxu0 %v197
  %v285 = vpop.f32.mrf.mxu0
  %v286 = vadd.f32 %v194, %v285
  %287 = vmatmul.f32.gmra.mxu0 %v200
  %v288 = vpop.f32.mrf.mxu0
  %v289 = vadd.f32 %v194, %v288
  %290 = vmatmul.f32.gmra.mxu0 %v203
  %v291 = vpop.f32.mrf.mxu0
  %v292 = vadd.f32 %v194, %v291
  %293 = vmatmul.f32.gmra.mxu0 %v206
  %v294 = vpop.f32.mrf.mxu0
  %v295 = vadd.f32 %v194, %v294
  %296 = vmatmul.f32.gmra.mxu0 %v209
  %v297 = vpop.f32.mrf.mxu0
  %v298 = vadd.f32 %v194, %v297
  %299 = vmatmul.f32.gmra.mxu0 %v212
  %v300 = vpop.f32.mrf.mxu0
  %v301 = vadd.f32 %v194, %v300
  %302 = vmatmul.f32.gmra.mxu0 %v215
  %v303 = vpop.f32.mrf.mxu0
  %v304 = vadd.f32 %v194, %v303
  %305 = vmatmul.f32.gmra.mxu0 %v218
  %v306 = vpop.f32.mrf.mxu0
  %v307 = vadd.f32 %v194, %v306
  %308 = vmatmul.f32.gmra.mxu0 %v221
  %v309 = vpop.f32.mrf.mxu0
  %v310 = vadd.f32 %v194, %v309
  %311 = vmatmul.f32.gmra.mxu0 %v224
  %v312 = vpop.f32.mrf.mxu0
  %v313 = vadd.f32 %v194, %v312
  %314 = vmatmul.f32.gmra.mxu0 %v227
  %v315 = vpop.f32.mrf.mxu0
  %v316 = vadd.f32 %v194, %v315
  %317 = vmatmul.f32.gmra.mxu0 %v230
  %v318 = vpop.f32.mrf.mxu0
  %v319 = vadd.f32 %v194, %v318
  %320 = vmatmul.f32.gmra.mxu0 %v233
  %v321 = vpop.f32.mrf.mxu0
  %v322 = vadd.f32 %v194, %v321
  %323 = vmatmul.f32.gmra.mxu0 %v236
  %v324 = vpop.f32.mrf.mxu0
  %v325 = vadd.f32 %v194, %v324
  %326 = vmatmul.f32.gmra.mxu0 %v239
  %v327 = vpop.f32.mrf.mxu0
  %v328 = vadd.f32 %v194, %v327
  %329 = vmatmul.f32.gmra.mxu0 %v242
  %v330 = vpop.f32.mrf.mxu0
  %v331 = vadd.f32 %v194, %v330
  %332 = vmatmul.f32.gmra.mxu0 %v245
  %v333 = vpop.f32.mrf.mxu0
  %v334 = vadd.f32 %v194, %v333
  %335 = vmatmul.f32.gmra.mxu0 %v248
  %v336 = vpop.f32.mrf.mxu0
  %v337 = vadd.f32 %v194, %v336
  %338 = vmatmul.f32.gmra.mxu0 %v251
  %v339 = vpop.f32.mrf.mxu0
  %v340 = vadd.f32 %v194, %v339
  %341 = vmatmul.f32.gmra.mxu0 %v254
  %v342 = vpop.f32.mrf.mxu0
  %v343 = vadd.f32 %v194, %v342
  %344 = vmatmul.f32.gmra.mxu0 %v257
  %v345 = vpop.f32.mrf.mxu0
  %v346 = vadd.f32 %v194, %v345
  %347 = vmatmul.f32.gmra.mxu0 %v260
  %v348 = vpop.f32.mrf.mxu0
  %v349 = vadd.f32 %v194, %v348
  %350 = vmatmul.f32.gmra.mxu0 %v263
  %v351 = vpop.f32.mrf.mxu0
  %v352 = vadd.f32 %v194, %v351
  %353 = vmatmul.f32.gmra.mxu0 %v266
  %v354 = vpop.f32.mrf.mxu0
  %v355 = vadd.f32 %v194, %v354
  %356 = vdwg.mxu0
  %357 = vst.msk [vmem:[#allocation3] sm:$0xff] %vm72, %v286
  %358 = vst.msk [vmem:[#allocation3 + $0x8] sm:$0xff] %vm72, %v289
  %359 = vst.msk [vmem:[#allocation3 + $0x10] sm:$0xff] %vm72, %v292
  %360 = vst.msk [vmem:[#allocation3 + $0x18] sm:$0xff] %vm72, %v295
  %361 = vst.msk [vmem:[#allocation3 + $0x20] sm:$0xff] %vm72, %v298
  %362 = vst.msk [vmem:[#allocation3 + $0x28] sm:$0xff] %vm72, %v301
  %363 = vst.msk [vmem:[#allocation3 + $0x30] sm:$0xff] %vm72, %v304
  %364 = vst.msk [vmem:[#allocation3 + $0x38] sm:$0xff] %vm72, %v307
  %365 = vst.msk [vmem:[#allocation3 + $0x40] sm:$0xff] %vm72, %v310
  %366 = vst.msk [vmem:[#allocation3 + $0x48] sm:$0xff] %vm72, %v313
  %367 = vst.msk [vmem:[#allocation3 + $0x50] sm:$0xff] %vm72, %v316
  %368 = vst.msk [vmem:[#allocation3 + $0x58] sm:$0xff] %vm72, %v319
  %369 = vst.msk [vmem:[#allocation3 + $0x60] sm:$0xff] %vm72, %v322
  %370 = vst.msk [vmem:[#allocation3 + $0x68] sm:$0xff] %vm72, %v325
  %371 = vst.msk [vmem:[#allocation3 + $0x70] sm:$0xff] %vm72, %v328
  %372 = vst.msk [vmem:[#allocation3 + $0x78] sm:$0xff] %vm72, %v331
  %373 = vst.msk [vmem:[#allocation3 + $0x80] sm:$0xff] %vm72, %v334
  %374 = vst.msk [vmem:[#allocation3 + $0x88] sm:$0xff] %vm72, %v337
  %375 = vst.msk [vmem:[#allocation3 + $0x90] sm:$0xff] %vm72, %v340
  %376 = vst.msk [vmem:[#allocation3 + $0x98] sm:$0xff] %vm72, %v343
  %377 = vst.msk [vmem:[#allocation3 + $0xa0] sm:$0xff] %vm72, %v346
  %378 = vst.msk [vmem:[#allocation3 + $0xa8] sm:$0xff] %vm72, %v349
  %379 = vst.msk [vmem:[#allocation3 + $0xb0] sm:$0xff] %vm72, %v352
  %380 = vst.msk [vmem:[#allocation3 + $0xb8] sm:$0xff] %vm72, %v355
  %405 = vrot.lane.b32.xlu0 %v286, 96
  %v406 = vpop.permute.xlu0 %405
  %407 = vrot.lane.b32.xlu0 %v289, 96
  %v408 = vpop.permute.xlu0 %407
  %409 = vrot.lane.b32.xlu0 %v292, 96
  %v410 = vpop.permute.xlu0 %409
  %411 = vrot.lane.b32.xlu0 %v295, 96
  %v412 = vpop.permute.xlu0 %411
  %413 = vrot.lane.b32.xlu0 %v298, 96
  %v414 = vpop.permute.xlu0 %413
  %415 = vrot.lane.b32.xlu0 %v301, 96
  %v416 = vpop.permute.xlu0 %415
  %417 = vrot.lane.b32.xlu0 %v304, 96
  %v418 = vpop.permute.xlu0 %417
  %419 = vrot.lane.b32.xlu0 %v307, 96
  %v420 = vpop.permute.xlu0 %419
  %421 = vrot.lane.b32.xlu0 %v310, 96
  %v422 = vpop.permute.xlu0 %421
  %423 = vrot.lane.b32.xlu0 %v313, 96
  %v424 = vpop.permute.xlu0 %423
  %425 = vrot.lane.b32.xlu0 %v316, 96
  %v426 = vpop.permute.xlu0 %425
  %427 = vrot.lane.b32.xlu0 %v319, 96
  %v428 = vpop.permute.xlu0 %427
  %429 = vrot.lane.b32.xlu0 %v322, 96
  %v430 = vpop.permute.xlu0 %429
  %431 = vrot.lane.b32.xlu0 %v325, 96
  %v432 = vpop.permute.xlu0 %431
  %433 = vrot.lane.b32.xlu0 %v328, 96
  %v434 = vpop.permute.xlu0 %433
  %435 = vrot.lane.b32.xlu0 %v331, 96
  %v436 = vpop.permute.xlu0 %435
  %437 = vrot.lane.b32.xlu0 %v334, 96
  %v438 = vpop.permute.xlu0 %437
  %439 = vrot.lane.b32.xlu0 %v337, 96
  %v440 = vpop.permute.xlu0 %439
  %441 = vrot.lane.b32.xlu0 %v340, 96
  %v442 = vpop.permute.xlu0 %441
  %443 = vrot.lane.b32.xlu0 %v343, 96
  %v444 = vpop.permute.xlu0 %443
  %445 = vrot.lane.b32.xlu0 %v346, 96
  %v446 = vpop.permute.xlu0 %445
  %447 = vrot.lane.b32.xlu0 %v349, 96
  %v448 = vpop.permute.xlu0 %447
  %449 = vrot.lane.b32.xlu0 %v352, 96
  %v450 = vpop.permute.xlu0 %449
  %451 = vrot.lane.b32.xlu0 %v355, 96
  %v452 = vpop.permute.xlu0 %451
  %s477 = scalar_lea.vmem [#allocation3], 192
  %478 = vst.msk [vmem:[%s477] sm:$0xff] %vm72, %v406
  %479 = vst.msk [vmem:[%s477 + $0x8] sm:$0xff] %vm72, %v408
  %480 = vst.msk [vmem:[%s477 + $0x10] sm:$0xff] %vm72, %v410
  %481 = vst.msk [vmem:[%s477 + $0x18] sm:$0xff] %vm72, %v412
  %482 = vst.msk [vmem:[%s477 + $0x20] sm:$0xff] %vm72, %v414
  %483 = vst.msk [vmem:[%s477 + $0x28] sm:$0xff] %vm72, %v416
  %484 = vst.msk [vmem:[%s477 + $0x30] sm:$0xff] %vm72, %v418
  %485 = vst.msk [vmem:[%s477 + $0x38] sm:$0xff] %vm72, %v420
  %486 = vst.msk [vmem:[%s477 + $0x40] sm:$0xff] %vm72, %v422
  %487 = vst.msk [vmem:[%s477 + $0x48] sm:$0xff] %vm72, %v424
  %488 = vst.msk [vmem:[%s477 + $0x50] sm:$0xff] %vm72, %v426
  %489 = vst.msk [vmem:[%s477 + $0x58] sm:$0xff] %vm72, %v428
  %490 = vst.msk [vmem:[%s477 + $0x60] sm:$0xff] %vm72, %v430
  %491 = vst.msk [vmem:[%s477 + $0x68] sm:$0xff] %vm72, %v432
  %492 = vst.msk [vmem:[%s477 + $0x70] sm:$0xff] %vm72, %v434
  %493 = vst.msk [vmem:[%s477 + $0x78] sm:$0xff] %vm72, %v436
  %494 = vst.msk [vmem:[%s477 + $0x80] sm:$0xff] %vm72, %v438
  %495 = vst.msk [vmem:[%s477 + $0x88] sm:$0xff] %vm72, %v440
  %496 = vst.msk [vmem:[%s477 + $0x90] sm:$0xff] %vm72, %v442
  %497 = vst.msk [vmem:[%s477 + $0x98] sm:$0xff] %vm72, %v444
  %498 = vst.msk [vmem:[%s477 + $0xa0] sm:$0xff] %vm72, %v446
  %499 = vst.msk [vmem:[%s477 + $0xa8] sm:$0xff] %vm72, %v448
  %500 = vst.msk [vmem:[%s477 + $0xb0] sm:$0xff] %vm72, %v450
  %501 = vst.msk [vmem:[%s477 + $0xb8] sm:$0xff] %vm72, %v452
  %502 = vrot.lane.b32.xlu0 %v286, 64
  %v503 = vpop.permute.xlu0 %502
  %504 = vrot.lane.b32.xlu0 %v289, 64
  %v505 = vpop.permute.xlu0 %504
  %506 = vrot.lane.b32.xlu0 %v292, 64
  %v507 = vpop.permute.xlu0 %506
  %508 = vrot.lane.b32.xlu0 %v295, 64
  %v509 = vpop.permute.xlu0 %508
  %510 = vrot.lane.b32.xlu0 %v298, 64
  %v511 = vpop.permute.xlu0 %510
  %512 = vrot.lane.b32.xlu0 %v301, 64
  %v513 = vpop.permute.xlu0 %512
  %514 = vrot.lane.b32.xlu0 %v304, 64
  %v515 = vpop.permute.xlu0 %514
  %516 = vrot.lane.b32.xlu0 %v307, 64
  %v517 = vpop.permute.xlu0 %516
  %518 = vrot.lane.b32.xlu0 %v310, 64
  %v519 = vpop.permute.xlu0 %518
  %520 = vrot.lane.b32.xlu0 %v313, 64
  %v521 = vpop.permute.xlu0 %520
  %522 = vrot.lane.b32.xlu0 %v316, 64
  %v523 = vpop.permute.xlu0 %522
  %524 = vrot.lane.b32.xlu0 %v319, 64
  %v525 = vpop.permute.xlu0 %524
  %526 = vrot.lane.b32.xlu0 %v322, 64
  %v527 = vpop.permute.xlu0 %526
  %528 = vrot.lane.b32.xlu0 %v325, 64
  %v529 = vpop.permute.xlu0 %528
  %530 = vrot.lane.b32.xlu0 %v328, 64
  %v531 = vpop.permute.xlu0 %530
  %532 = vrot.lane.b32.xlu0 %v331, 64
  %v533 = vpop.permute.xlu0 %532
  %534 = vrot.lane.b32.xlu0 %v334, 64
  %v535 = vpop.permute.xlu0 %534
  %536 = vrot.lane.b32.xlu0 %v337, 64
  %v537 = vpop.permute.xlu0 %536
  %538 = vrot.lane.b32.xlu0 %v340, 64
  %v539 = vpop.permute.xlu0 %538
  %540 = vrot.lane.b32.xlu0 %v343, 64
  %v541 = vpop.permute.xlu0 %540
  %542 = vrot.lane.b32.xlu0 %v346, 64
  %v543 = vpop.permute.xlu0 %542
  %544 = vrot.lane.b32.xlu0 %v349, 64
  %v545 = vpop.permute.xlu0 %544
  %546 = vrot.lane.b32.xlu0 %v352, 64
  %v547 = vpop.permute.xlu0 %546
  %548 = vrot.lane.b32.xlu0 %v355, 64
  %v549 = vpop.permute.xlu0 %548
  %s574 = scalar_lea.vmem [#allocation3], 384
  %575 = vst.msk [vmem:[%s574] sm:$0xff] %vm72, %v503
  %576 = vst.msk [vmem:[%s574 + $0x8] sm:$0xff] %vm72, %v505
  %577 = vst.msk [vmem:[%s574 + $0x10] sm:$0xff] %vm72, %v507
  %578 = vst.msk [vmem:[%s574 + $0x18] sm:$0xff] %vm72, %v509
  %579 = vst.msk [vmem:[%s574 + $0x20] sm:$0xff] %vm72, %v511
  %580 = vst.msk [vmem:[%s574 + $0x28] sm:$0xff] %vm72, %v513
  %581 = vst.msk [vmem:[%s574 + $0x30] sm:$0xff] %vm72, %v515
  %582 = vst.msk [vmem:[%s574 + $0x38] sm:$0xff] %vm72, %v517
  %583 = vst.msk [vmem:[%s574 + $0x40] sm:$0xff] %vm72, %v519
  %584 = vst.msk [vmem:[%s574 + $0x48] sm:$0xff] %vm72, %v521
  %585 = vst.msk [vmem:[%s574 + $0x50] sm:$0xff] %vm72, %v523
  %586 = vst.msk [vmem:[%s574 + $0x58] sm:$0xff] %vm72, %v525
  %587 = vst.msk [vmem:[%s574 + $0x60] sm:$0xff] %vm72, %v527
  %588 = vst.msk [vmem:[%s574 + $0x68] sm:$0xff] %vm72, %v529
  %589 = vst.msk [vmem:[%s574 + $0x70] sm:$0xff] %vm72, %v531
  %590 = vst.msk [vmem:[%s574 + $0x78] sm:$0xff] %vm72, %v533
  %591 = vst.msk [vmem:[%s574 + $0x80] sm:$0xff] %vm72, %v535
  %592 = vst.msk [vmem:[%s574 + $0x88] sm:$0xff] %vm72, %v537
  %593 = vst.msk [vmem:[%s574 + $0x90] sm:$0xff] %vm72, %v539
  %594 = vst.msk [vmem:[%s574 + $0x98] sm:$0xff] %vm72, %v541
  %595 = vst.msk [vmem:[%s574 + $0xa0] sm:$0xff] %vm72, %v543
  %596 = vst.msk [vmem:[%s574 + $0xa8] sm:$0xff] %vm72, %v545
  %597 = vst.msk [vmem:[%s574 + $0xb0] sm:$0xff] %vm72, %v547
  %598 = vst.msk [vmem:[%s574 + $0xb8] sm:$0xff] %vm72, %v549
  %v599 = vld [vmem:[#allocation3] sm:$0xff]
  %v600 = vld [vmem:[#allocation3 + $0x8] sm:$0xff]
  %v601 = vld [vmem:[#allocation3 + $0x10] sm:$0xff]
  %v602 = vld [vmem:[#allocation3 + $0x18] sm:$0xff]
  %v603 = vld [vmem:[#allocation3 + $0x20] sm:$0xff]
  %v604 = vld [vmem:[#allocation3 + $0x28] sm:$0xff]
  %v605 = vld [vmem:[#allocation3 + $0x30] sm:$0xff]
  %v606 = vld [vmem:[#allocation3 + $0x38] sm:$0xff]
  %v607 = vld [vmem:[%s477] sm:$0xff]
  %v608 = vld [vmem:[%s477 + $0x8] sm:$0xff]
  %v609 = vld [vmem:[%s477 + $0x10] sm:$0xff]
  %v610 = vld [vmem:[%s477 + $0x18] sm:$0xff]
  %v611 = vld [vmem:[%s477 + $0x20] sm:$0xff]
  %v612 = vld [vmem:[%s477 + $0x28] sm:$0xff]
  %v613 = vld [vmem:[%s477 + $0x30] sm:$0xff]
  %v614 = vld [vmem:[%s477 + $0x38] sm:$0xff]
  %v615 = vld [vmem:[%s477 + $0x40] sm:$0xff]
  %v616 = vld [vmem:[%s477 + $0x48] sm:$0xff]
  %v617 = vld [vmem:[%s477 + $0x50] sm:$0xff]
  %v618 = vld [vmem:[%s477 + $0x58] sm:$0xff]
  %v619 = vld [vmem:[%s477 + $0x60] sm:$0xff]
  %v620 = vld [vmem:[%s477 + $0x68] sm:$0xff]
  %v621 = vld [vmem:[%s477 + $0x70] sm:$0xff]
  %v622 = vld [vmem:[%s477 + $0x78] sm:$0xff]
  %v623 = vld [vmem:[%s477 + $0x80] sm:$0xff]
  %v624 = vld [vmem:[%s477 + $0x88] sm:$0xff]
  %v625 = vld [vmem:[%s477 + $0x90] sm:$0xff]
  %v626 = vld [vmem:[%s477 + $0x98] sm:$0xff]
  %v627 = vld [vmem:[%s477 + $0xa0] sm:$0xff]
  %v628 = vld [vmem:[%s477 + $0xa8] sm:$0xff]
  %v629 = vld [vmem:[%s477 + $0xb0] sm:$0xff]
  %v630 = vld [vmem:[%s477 + $0xb8] sm:$0xff]
  %v631 = vmul.f32 %v599, %v607
  %v632 = vmul.f32 %v600, %v608
  %v633 = vmul.f32 %v601, %v609
  %v634 = vmul.f32 %v602, %v610
  %v635 = vmul.f32 %v603, %v611
  %v636 = vmul.f32 %v604, %v612
  %v637 = vmul.f32 %v605, %v613
  %v638 = vmul.f32 %v606, %v614
  %v639 = vmul.f32 %v599, %v615
  %v640 = vmul.f32 %v600, %v616
  %v641 = vmul.f32 %v601, %v617
  %v642 = vmul.f32 %v602, %v618
  %v643 = vmul.f32 %v603, %v619
  %v644 = vmul.f32 %v604, %v620
  %v645 = vmul.f32 %v605, %v621
  %v646 = vmul.f32 %v606, %v622
  %v647 = vmul.f32 %v599, %v623
  %v648 = vmul.f32 %v600, %v624
  %v649 = vmul.f32 %v601, %v625
  %v650 = vmul.f32 %v602, %v626
  %v651 = vmul.f32 %v603, %v627
  %v652 = vmul.f32 %v604, %v628
  %v653 = vmul.f32 %v605, %v629
  %v654 = vmul.f32 %v606, %v630
  %v656 = vsel %vm72, %v631, 0
  %v659 = vsel %vm72, %v632, 0
  %v662 = vsel %vm72, %v633, 0
  %v665 = vsel %vm72, %v634, 0
  %v668 = vsel %vm72, %v635, 0
  %v671 = vsel %vm72, %v636, 0
  %v674 = vsel %vm72, %v637, 0
  %v677 = vsel %vm72, %v638, 0
  %v680 = vsel %vm72, %v639, 0
  %v683 = vsel %vm72, %v640, 0
  %v686 = vsel %vm72, %v641, 0
  %v689 = vsel %vm72, %v642, 0
  %v692 = vsel %vm72, %v643, 0
  %v695 = vsel %vm72, %v644, 0
  %v698 = vsel %vm72, %v645, 0
  %v701 = vsel %vm72, %v646, 0
  %v704 = vsel %vm72, %v647, 0
  %v707 = vsel %vm72, %v648, 0
  %v710 = vsel %vm72, %v649, 0
  %v713 = vsel %vm72, %v650, 0
  %v716 = vsel %vm72, %v651, 0
  %v719 = vsel %vm72, %v652, 0
  %v722 = vsel %vm72, %v653, 0
  %v725 = vsel %vm72, %v654, 0
  %727 = vmatpush.msra.mxu0 0.0
  %728 = vmatpush.msra.mxu0 0.0
  %729 = vmatpush.msra.mxu0 0.0
  %730 = vmatpush.msra.mxu0 0.0
  %731 = vmatpush.msra.mxu0 0.0
  %732 = vmatpush.msra.mxu0 0.0
  %733 = vmatpush.msra.mxu0 0.0
  %734 = vmatpush.msra.mxu0 0.0
  %735 = vmatpush.msra.mxu0 0.0
  %736 = vmatpush.msra.mxu0 0.0
  %737 = vmatpush.msra.mxu0 0.0
  %738 = vmatpush.msra.mxu0 0.0
  %739 = vmatpush.msra.mxu0 %v53
  %740 = vmatpush.msra.mxu0 %v52
  %741 = vmatpush.msra.mxu0 %v51
  %742 = vmatpush.msra.mxu0 %v50
  %743 = vmatmul.f32.gmra.mxu0 %v656
  %v744 = vpop.f32.mrf.mxu0
  %v745 = vadd.f32 0.0, %v744
  %746 = vmatmul.f32.gmra.mxu0 %v659
  %v747 = vpop.f32.mrf.mxu0
  %v748 = vadd.f32 0.0, %v747
  %749 = vmatmul.f32.gmra.mxu0 %v662
  %v750 = vpop.f32.mrf.mxu0
  %v751 = vadd.f32 0.0, %v750
  %752 = vmatmul.f32.gmra.mxu0 %v665
  %v753 = vpop.f32.mrf.mxu0
  %v754 = vadd.f32 0.0, %v753
  %755 = vmatmul.f32.gmra.mxu0 %v668
  %v756 = vpop.f32.mrf.mxu0
  %v757 = vadd.f32 0.0, %v756
  %758 = vmatmul.f32.gmra.mxu0 %v671
  %v759 = vpop.f32.mrf.mxu0
  %v760 = vadd.f32 0.0, %v759
  %761 = vmatmul.f32.gmra.mxu0 %v674
  %v762 = vpop.f32.mrf.mxu0
  %v763 = vadd.f32 0.0, %v762
  %764 = vmatmul.f32.gmra.mxu0 %v677
  %v765 = vpop.f32.mrf.mxu0
  %v766 = vadd.f32 0.0, %v765
  %767 = vmatmul.f32.gmra.mxu0 %v680
  %v768 = vpop.f32.mrf.mxu0
  %v769 = vadd.f32 0.0, %v768
  %770 = vmatmul.f32.gmra.mxu0 %v683
  %v771 = vpop.f32.mrf.mxu0
  %v772 = vadd.f32 0.0, %v771
  %773 = vmatmul.f32.gmra.mxu0 %v686
  %v774 = vpop.f32.mrf.mxu0
  %v775 = vadd.f32 0.0, %v774
  %776 = vmatmul.f32.gmra.mxu0 %v689
  %v777 = vpop.f32.mrf.mxu0
  %v778 = vadd.f32 0.0, %v777
  %779 = vmatmul.f32.gmra.mxu0 %v692
  %v780 = vpop.f32.mrf.mxu0
  %v781 = vadd.f32 0.0, %v780
  %782 = vmatmul.f32.gmra.mxu0 %v695
  %v783 = vpop.f32.mrf.mxu0
  %v784 = vadd.f32 0.0, %v783
  %785 = vmatmul.f32.gmra.mxu0 %v698
  %v786 = vpop.f32.mrf.mxu0
  %v787 = vadd.f32 0.0, %v786
  %788 = vmatmul.f32.gmra.mxu0 %v701
  %v789 = vpop.f32.mrf.mxu0
  %v790 = vadd.f32 0.0, %v789
  %791 = vmatmul.f32.gmra.mxu0 %v704
  %v792 = vpop.f32.mrf.mxu0
  %v793 = vadd.f32 0.0, %v792
  %794 = vmatmul.f32.gmra.mxu0 %v707
  %v795 = vpop.f32.mrf.mxu0
  %v796 = vadd.f32 0.0, %v795
  %797 = vmatmul.f32.gmra.mxu0 %v710
  %v798 = vpop.f32.mrf.mxu0
  %v799 = vadd.f32 0.0, %v798
  %800 = vmatmul.f32.gmra.mxu0 %v713
  %v801 = vpop.f32.mrf.mxu0
  %v802 = vadd.f32 0.0, %v801
  %803 = vmatmul.f32.gmra.mxu0 %v716
  %v804 = vpop.f32.mrf.mxu0
  %v805 = vadd.f32 0.0, %v804
  %806 = vmatmul.f32.gmra.mxu0 %v719
  %v807 = vpop.f32.mrf.mxu0
  %v808 = vadd.f32 0.0, %v807
  %809 = vmatmul.f32.gmra.mxu0 %v722
  %v810 = vpop.f32.mrf.mxu0
  %v811 = vadd.f32 0.0, %v810
  %812 = vmatmul.f32.gmra.mxu0 %v725
  %v813 = vpop.f32.mrf.mxu0
  %v814 = vadd.f32 0.0, %v813
  %815 = vdwg.mxu0
  %v816 = vmax.f32 %v745, %v769
  %v817 = vmax.f32 %v748, %v772
  %v818 = vmax.f32 %v751, %v775
  %v819 = vmax.f32 %v754, %v778
  %v820 = vmax.f32 %v757, %v781
  %v821 = vmax.f32 %v760, %v784
  %v822 = vmax.f32 %v763, %v787
  %v823 = vmax.f32 %v766, %v790
  %v824 = vmax.f32 %v816, %v793
  %v825 = vmax.f32 %v817, %v796
  %v826 = vmax.f32 %v818, %v799
  %v827 = vmax.f32 %v819, %v802
  %v828 = vmax.f32 %v820, %v805
  %v829 = vmax.f32 %v821, %v808
  %v830 = vmax.f32 %v822, %v811
  %v831 = vmax.f32 %v823, %v814
  %v832 = vsub.f32 %v745, %v824
  %v833 = vsub.f32 %v748, %v825
  %v834 = vsub.f32 %v751, %v826
  %v835 = vsub.f32 %v754, %v827
  %v836 = vsub.f32 %v757, %v828
  %v837 = vsub.f32 %v760, %v829
  %v838 = vsub.f32 %v763, %v830
  %v839 = vsub.f32 %v766, %v831
  %v840 = vmul.f32 %v832, 1.442695
  %v841 = vpow.pop %v840
  %v842 = vmul.f32 %v833, 1.442695
  %v843 = vpow.pop %v842
  %v844 = vmul.f32 %v834, 1.442695
  %v845 = vpow.pop %v844
  %v846 = vmul.f32 %v835, 1.442695
  %v847 = vpow.pop %v846
  %v848 = vmul.f32 %v836, 1.442695
  %v849 = vpow.pop %v848
  %v850 = vmul.f32 %v837, 1.442695
  %v851 = vpow.pop %v850
  %v852 = vmul.f32 %v838, 1.442695
  %v853 = vpow.pop %v852
  %v854 = vmul.f32 %v839, 1.442695
  %v855 = vpow.pop %v854
  %v856 = vsub.f32 %v769, %v824
  %v857 = vsub.f32 %v772, %v825
  %v858 = vsub.f32 %v775, %v826
  %v859 = vsub.f32 %v778, %v827
  %v860 = vsub.f32 %v781, %v828
  %v861 = vsub.f32 %v784, %v829
  %v862 = vsub.f32 %v787, %v830
  %v863 = vsub.f32 %v790, %v831
  %v864 = vmul.f32 %v856, 1.442695
  %v865 = vpow.pop %v864
  %v866 = vmul.f32 %v857, 1.442695
  %v867 = vpow.pop %v866
  %v868 = vmul.f32 %v858, 1.442695
  %v869 = vpow.pop %v868
  %v870 = vmul.f32 %v859, 1.442695
  %v871 = vpow.pop %v870
  %v872 = vmul.f32 %v860, 1.442695
  %v873 = vpow.pop %v872
  %v874 = vmul.f32 %v861, 1.442695
  %v875 = vpow.pop %v874
  %v876 = vmul.f32 %v862, 1.442695
  %v877 = vpow.pop %v876
  %v878 = vmul.f32 %v863, 1.442695
  %v879 = vpow.pop %v878
  %v880 = vsub.f32 %v793, %v824
  %v881 = vsub.f32 %v796, %v825
  %v882 = vsub.f32 %v799, %v826
  %v883 = vsub.f32 %v802, %v827
  %v884 = vsub.f32 %v805, %v828
  %v885 = vsub.f32 %v808, %v829
  %v886 = vsub.f32 %v811, %v830
  %v887 = vsub.f32 %v814, %v831
  %v888 = vmul.f32 %v880, 1.442695
  %v889 = vpow.pop %v888
  %v890 = vmul.f32 %v881, 1.442695
  %v891 = vpow.pop %v890
  %v892 = vmul.f32 %v882, 1.442695
  %v893 = vpow.pop %v892
  %v894 = vmul.f32 %v883, 1.442695
  %v895 = vpow.pop %v894
  %v896 = vmul.f32 %v884, 1.442695
  %v897 = vpow.pop %v896
  %v898 = vmul.f32 %v885, 1.442695
  %v899 = vpow.pop %v898
  %v900 = vmul.f32 %v886, 1.442695
  %v901 = vpow.pop %v900
  %v902 = vmul.f32 %v887, 1.442695
  %v903 = vpow.pop %v902
  %v904 = vadd.f32 %v841, %v865
  %v905 = vadd.f32 %v843, %v867
  %v906 = vadd.f32 %v845, %v869
  %v907 = vadd.f32 %v847, %v871
  %v908 = vadd.f32 %v849, %v873
  %v909 = vadd.f32 %v851, %v875
  %v910 = vadd.f32 %v853, %v877
  %v911 = vadd.f32 %v855, %v879
  %v912 = vadd.f32 %v904, %v889
  %v913 = vadd.f32 %v905, %v891
  %v914 = vadd.f32 %v906, %v893
  %v915 = vadd.f32 %v907, %v895
  %v916 = vadd.f32 %v908, %v897
  %v917 = vadd.f32 %v909, %v899
  %v918 = vadd.f32 %v910, %v901
  %v919 = vadd.f32 %v911, %v903
  %v920 = vrcp.pop %v912
  %v921 = vrcp.pop %v913
  %v922 = vrcp.pop %v914
  %v923 = vrcp.pop %v915
  %v924 = vrcp.pop %v916
  %v925 = vrcp.pop %v917
  %v926 = vrcp.pop %v918
  %v927 = vrcp.pop %v919
  %v928 = vmul.f32 %v841, %v920
  %v929 = vmul.f32 %v843, %v921
  %v930 = vmul.f32 %v845, %v922
  %v931 = vmul.f32 %v847, %v923
  %v932 = vmul.f32 %v849, %v924
  %v933 = vmul.f32 %v851, %v925
  %v934 = vmul.f32 %v853, %v926
  %v935 = vmul.f32 %v855, %v927
  %v936 = vld [vmem:[%s574] sm:$0xff]
  %v937 = vld [vmem:[%s574 + $0x8] sm:$0xff]
  %v938 = vld [vmem:[%s574 + $0x10] sm:$0xff]
  %v939 = vld [vmem:[%s574 + $0x18] sm:$0xff]
  %v940 = vld [vmem:[%s574 + $0x20] sm:$0xff]
  %v941 = vld [vmem:[%s574 + $0x28] sm:$0xff]
  %v942 = vld [vmem:[%s574 + $0x30] sm:$0xff]
  %v943 = vld [vmem:[%s574 + $0x38] sm:$0xff]
  %v944 = vmul.f32 %v928, %v936
  %v945 = vmul.f32 %v929, %v937
  %v946 = vmul.f32 %v930, %v938
  %v947 = vmul.f32 %v931, %v939
  %v948 = vmul.f32 %v932, %v940
  %v949 = vmul.f32 %v933, %v941
  %v950 = vmul.f32 %v934, %v942
  %v951 = vmul.f32 %v935, %v943
  %v952 = vmul.f32 %v865, %v920
  %v953 = vmul.f32 %v867, %v921
  %v954 = vmul.f32 %v869, %v922
  %v955 = vmul.f32 %v871, %v923
  %v956 = vmul.f32 %v873, %v924
  %v957 = vmul.f32 %v875, %v925
  %v958 = vmul.f32 %v877, %v926
  %v959 = vmul.f32 %v879, %v927
  %v960 = vld [vmem:[%s574 + $0x40] sm:$0xff]
  %v961 = vld [vmem:[%s574 + $0x48] sm:$0xff]
  %v962 = vld [vmem:[%s574 + $0x50] sm:$0xff]
  %v963 = vld [vmem:[%s574 + $0x58] sm:$0xff]
  %v964 = vld [vmem:[%s574 + $0x60] sm:$0xff]
  %v965 = vld [vmem:[%s574 + $0x68] sm:$0xff]
  %v966 = vld [vmem:[%s574 + $0x70] sm:$0xff]
  %v967 = vld [vmem:[%s574 + $0x78] sm:$0xff]
  %v968 = vmul.f32 %v952, %v960
  %v969 = vmul.f32 %v953, %v961
  %v970 = vmul.f32 %v954, %v962
  %v971 = vmul.f32 %v955, %v963
  %v972 = vmul.f32 %v956, %v964
  %v973 = vmul.f32 %v957, %v965
  %v974 = vmul.f32 %v958, %v966
  %v975 = vmul.f32 %v959, %v967
  %v976 = vadd.f32 %v944, %v968
  %v977 = vadd.f32 %v945, %v969
  %v978 = vadd.f32 %v946, %v970
  %v979 = vadd.f32 %v947, %v971
  %v980 = vadd.f32 %v948, %v972
  %v981 = vadd.f32 %v949, %v973
  %v982 = vadd.f32 %v950, %v974
  %v983 = vadd.f32 %v951, %v975
  %v984 = vmul.f32 %v889, %v920
  %v985 = vmul.f32 %v891, %v921
  %v986 = vmul.f32 %v893, %v922
  %v987 = vmul.f32 %v895, %v923
  %v988 = vmul.f32 %v897, %v924
  %v989 = vmul.f32 %v899, %v925
  %v990 = vmul.f32 %v901, %v926
  %v991 = vmul.f32 %v903, %v927
  %v992 = vld [vmem:[%s574 + $0x80] sm:$0xff]
  %v993 = vld [vmem:[%s574 + $0x88] sm:$0xff]
  %v994 = vld [vmem:[%s574 + $0x90] sm:$0xff]
  %v995 = vld [vmem:[%s574 + $0x98] sm:$0xff]
  %v996 = vld [vmem:[%s574 + $0xa0] sm:$0xff]
  %v997 = vld [vmem:[%s574 + $0xa8] sm:$0xff]
  %v998 = vld [vmem:[%s574 + $0xb0] sm:$0xff]
  %v999 = vld [vmem:[%s574 + $0xb8] sm:$0xff]
  %v1000 = vmul.f32 %v984, %v992
  %v1001 = vmul.f32 %v985, %v993
  %v1002 = vmul.f32 %v986, %v994
  %v1003 = vmul.f32 %v987, %v995
  %v1004 = vmul.f32 %v988, %v996
  %v1005 = vmul.f32 %v989, %v997
  %v1006 = vmul.f32 %v990, %v998
  %v1007 = vmul.f32 %v991, %v999
  %v1008 = vadd.f32 %v976, %v1000
  %v1009 = vadd.f32 %v977, %v1001
  %v1010 = vadd.f32 %v978, %v1002
  %v1011 = vadd.f32 %v979, %v1003
  %v1012 = vadd.f32 %v980, %v1004
  %v1013 = vadd.f32 %v981, %v1005
  %v1014 = vadd.f32 %v982, %v1006
  %v1015 = vadd.f32 %v983, %v1007
  %1016 = vst.msk [vmem:[#allocation4] sm:$0xff] %vm72, %v1008
  %1017 = vst.msk [vmem:[#allocation4 + $0x8] sm:$0xff] %vm72, %v1009
  %1018 = vst.msk [vmem:[#allocation4 + $0x10] sm:$0xff] %vm72, %v1010
  %1019 = vst.msk [vmem:[#allocation4 + $0x18] sm:$0xff] %vm72, %v1011
  %1020 = vst.msk [vmem:[#allocation4 + $0x20] sm:$0xff] %vm72, %v1012
  %1021 = vst.msk [vmem:[#allocation4 + $0x28] sm:$0xff] %vm72, %v1013
  %1022 = vst.msk [vmem:[#allocation4 + $0x30] sm:$0xff] %vm72, %v1014
  %1023 = vst.msk [vmem:[#allocation4 + $0x38] sm:$0xff] %vm72, %v1015
  %v1024 = vld [vmem:[#allocation3 + $0x40] sm:$0xff]
  %v1025 = vld [vmem:[#allocation3 + $0x48] sm:$0xff]
  %v1026 = vld [vmem:[#allocation3 + $0x50] sm:$0xff]
  %v1027 = vld [vmem:[#allocation3 + $0x58] sm:$0xff]
  %v1028 = vld [vmem:[#allocation3 + $0x60] sm:$0xff]
  %v1029 = vld [vmem:[#allocation3 + $0x68] sm:$0xff]
  %v1030 = vld [vmem:[#allocation3 + $0x70] sm:$0xff]
  %v1031 = vld [vmem:[#allocation3 + $0x78] sm:$0xff]
  %v1032 = vld [vmem:[%s477] sm:$0xff]
  %v1033 = vld [vmem:[%s477 + $0x8] sm:$0xff]
  %v1034 = vld [vmem:[%s477 + $0x10] sm:$0xff]
  %v1035 = vld [vmem:[%s477 + $0x18] sm:$0xff]
  %v1036 = vld [vmem:[%s477 + $0x20] sm:$0xff]
  %v1037 = vld [vmem:[%s477 + $0x28] sm:$0xff]
  %v1038 = vld [vmem:[%s477 + $0x30] sm:$0xff]
  %v1039 = vld [vmem:[%s477 + $0x38] sm:$0xff]
  %v1040 = vld [vmem:[%s477 + $0x40] sm:$0xff]
  %v1041 = vld [vmem:[%s477 + $0x48] sm:$0xff]
  %v1042 = vld [vmem:[%s477 + $0x50] sm:$0xff]
  %v1043 = vld [vmem:[%s477 + $0x58] sm:$0xff]
  %v1044 = vld [vmem:[%s477 + $0x60] sm:$0xff]
  %v1045 = vld [vmem:[%s477 + $0x68] sm:$0xff]
  %v1046 = vld [vmem:[%s477 + $0x70] sm:$0xff]
  %v1047 = vld [vmem:[%s477 + $0x78] sm:$0xff]
  %v1048 = vld [vmem:[%s477 + $0x80] sm:$0xff]
  %v1049 = vld [vmem:[%s477 + $0x88] sm:$0xff]
  %v1050 = vld [vmem:[%s477 + $0x90] sm:$0xff]
  %v1051 = vld [vmem:[%s477 + $0x98] sm:$0xff]
  %v1052 = vld [vmem:[%s477 + $0xa0] sm:$0xff]
  %v1053 = vld [vmem:[%s477 + $0xa8] sm:$0xff]
  %v1054 = vld [vmem:[%s477 + $0xb0] sm:$0xff]
  %v1055 = vld [vmem:[%s477 + $0xb8] sm:$0xff]
  %v1056 = vmul.f32 %v1024, %v1032
  %v1057 = vmul.f32 %v1025, %v1033
  %v1058 = vmul.f32 %v1026, %v1034
  %v1059 = vmul.f32 %v1027, %v1035
  %v1060 = vmul.f32 %v1028, %v1036
  %v1061 = vmul.f32 %v1029, %v1037
  %v1062 = vmul.f32 %v1030, %v1038
  %v1063 = vmul.f32 %v1031, %v1039
  %v1064 = vmul.f32 %v1024, %v1040
  %v1065 = vmul.f32 %v1025, %v1041
  %v1066 = vmul.f32 %v1026, %v1042
  %v1067 = vmul.f32 %v1027, %v1043
  %v1068 = vmul.f32 %v1028, %v1044
  %v1069 = vmul.f32 %v1029, %v1045
  %v1070 = vmul.f32 %v1030, %v1046
  %v1071 = vmul.f32 %v1031, %v1047
  %v1072 = vmul.f32 %v1024, %v1048
  %v1073 = vmul.f32 %v1025, %v1049
  %v1074 = vmul.f32 %v1026, %v1050
  %v1075 = vmul.f32 %v1027, %v1051
  %v1076 = vmul.f32 %v1028, %v1052
  %v1077 = vmul.f32 %v1029, %v1053
  %v1078 = vmul.f32 %v1030, %v1054
  %v1079 = vmul.f32 %v1031, %v1055
  %v1081 = vsel %vm72, %v1056, 0
  %v1084 = vsel %vm72, %v1057, 0
  %v1087 = vsel %vm72, %v1058, 0
  %v1090 = vsel %vm72, %v1059, 0
  %v1093 = vsel %vm72, %v1060, 0
  %v1096 = vsel %vm72, %v1061, 0
  %v1099 = vsel %vm72, %v1062, 0
  %v1102 = vsel %vm72, %v1063, 0
  %v1105 = vsel %vm72, %v1064, 0
  %v1108 = vsel %vm72, %v1065, 0
  %v1111 = vsel %vm72, %v1066, 0
  %v1114 = vsel %vm72, %v1067, 0
  %v1117 = vsel %vm72, %v1068, 0
  %v1120 = vsel %vm72, %v1069, 0
  %v1123 = vsel %vm72, %v1070, 0
  %v1126 = vsel %vm72, %v1071, 0
  %v1129 = vsel %vm72, %v1072, 0
  %v1132 = vsel %vm72, %v1073, 0
  %v1135 = vsel %vm72, %v1074, 0
  %v1138 = vsel %vm72, %v1075, 0
  %v1141 = vsel %vm72, %v1076, 0
  %v1144 = vsel %vm72, %v1077, 0
  %v1147 = vsel %vm72, %v1078, 0
  %v1150 = vsel %vm72, %v1079, 0
  %1152 = vmatpush.msra.mxu0 0.0
  %1153 = vmatpush.msra.mxu0 0.0
  %1154 = vmatpush.msra.mxu0 0.0
  %1155 = vmatpush.msra.mxu0 0.0
  %1156 = vmatpush.msra.mxu0 0.0
  %1157 = vmatpush.msra.mxu0 0.0
  %1158 = vmatpush.msra.mxu0 0.0
  %1159 = vmatpush.msra.mxu0 0.0
  %1160 = vmatpush.msra.mxu0 0.0
  %1161 = vmatpush.msra.mxu0 0.0
  %1162 = vmatpush.msra.mxu0 0.0
  %1163 = vmatpush.msra.mxu0 0.0
  %1164 = vmatpush.msra.mxu0 %v53
  %1165 = vmatpush.msra.mxu0 %v52
  %1166 = vmatpush.msra.mxu0 %v51
  %1167 = vmatpush.msra.mxu0 %v50
  %1168 = vmatmul.f32.gmra.mxu0 %v1081
  %v1169 = vpop.f32.mrf.mxu0
  %v1170 = vadd.f32 0.0, %v1169
  %1171 = vmatmul.f32.gmra.mxu0 %v1084
  %v1172 = vpop.f32.mrf.mxu0
  %v1173 = vadd.f32 0.0, %v1172
  %1174 = vmatmul.f32.gmra.mxu0 %v1087
  %v1175 = vpop.f32.mrf.mxu0
  %v1176 = vadd.f32 0.0, %v1175
  %1177 = vmatmul.f32.gmra.mxu0 %v1090
  %v1178 = vpop.f32.mrf.mxu0
  %v1179 = vadd.f32 0.0, %v1178
  %1180 = vmatmul.f32.gmra.mxu0 %v1093
  %v1181 = vpop.f32.mrf.mxu0
  %v1182 = vadd.f32 0.0, %v1181
  %1183 = vmatmul.f32.gmra.mxu0 %v1096
  %v1184 = vpop.f32.mrf.mxu0
  %v1185 = vadd.f32 0.0, %v1184
  %1186 = vmatmul.f32.gmra.mxu0 %v1099
  %v1187 = vpop.f32.mrf.mxu0
  %v1188 = vadd.f32 0.0, %v1187
  %1189 = vmatmul.f32.gmra.mxu0 %v1102
  %v1190 = vpop.f32.mrf.mxu0
  %v1191 = vadd.f32 0.0, %v1190
  %1192 = vmatmul.f32.gmra.mxu0 %v1105
  %v1193 = vpop.f32.mrf.mxu0
  %v1194 = vadd.f32 0.0, %v1193
  %1195 = vmatmul.f32.gmra.mxu0 %v1108
  %v1196 = vpop.f32.mrf.mxu0
  %v1197 = vadd.f32 0.0, %v1196
  %1198 = vmatmul.f32.gmra.mxu0 %v1111
  %v1199 = vpop.f32.mrf.mxu0
  %v1200 = vadd.f32 0.0, %v1199
  %1201 = vmatmul.f32.gmra.mxu0 %v1114
  %v1202 = vpop.f32.mrf.mxu0
  %v1203 = vadd.f32 0.0, %v1202
  %1204 = vmatmul.f32.gmra.mxu0 %v1117
  %v1205 = vpop.f32.mrf.mxu0
  %v1206 = vadd.f32 0.0, %v1205
  %1207 = vmatmul.f32.gmra.mxu0 %v1120
  %v1208 = vpop.f32.mrf.mxu0
  %v1209 = vadd.f32 0.0, %v1208
  %1210 = vmatmul.f32.gmra.mxu0 %v1123
  %v1211 = vpop.f32.mrf.mxu0
  %v1212 = vadd.f32 0.0, %v1211
  %1213 = vmatmul.f32.gmra.mxu0 %v1126
  %v1214 = vpop.f32.mrf.mxu0
  %v1215 = vadd.f32 0.0, %v1214
  %1216 = vmatmul.f32.gmra.mxu0 %v1129
  %v1217 = vpop.f32.mrf.mxu0
  %v1218 = vadd.f32 0.0, %v1217
  %1219 = vmatmul.f32.gmra.mxu0 %v1132
  %v1220 = vpop.f32.mrf.mxu0
  %v1221 = vadd.f32 0.0, %v1220
  %1222 = vmatmul.f32.gmra.mxu0 %v1135
  %v1223 = vpop.f32.mrf.mxu0
  %v1224 = vadd.f32 0.0, %v1223
  %1225 = vmatmul.f32.gmra.mxu0 %v1138
  %v1226 = vpop.f32.mrf.mxu0
  %v1227 = vadd.f32 0.0, %v1226
  %1228 = vmatmul.f32.gmra.mxu0 %v1141
  %v1229 = vpop.f32.mrf.mxu0
  %v1230 = vadd.f32 0.0, %v1229
  %1231 = vmatmul.f32.gmra.mxu0 %v1144
  %v1232 = vpop.f32.mrf.mxu0
  %v1233 = vadd.f32 0.0, %v1232
  %1234 = vmatmul.f32.gmra.mxu0 %v1147
  %v1235 = vpop.f32.mrf.mxu0
  %v1236 = vadd.f32 0.0, %v1235
  %1237 = vmatmul.f32.gmra.mxu0 %v1150
  %v1238 = vpop.f32.mrf.mxu0
  %v1239 = vadd.f32 0.0, %v1238
  %1240 = vdwg.mxu0
  %v1241 = vmax.f32 %v1170, %v1194
  %v1242 = vmax.f32 %v1173, %v1197
  %v1243 = vmax.f32 %v1176, %v1200
  %v1244 = vmax.f32 %v1179, %v1203
  %v1245 = vmax.f32 %v1182, %v1206
  %v1246 = vmax.f32 %v1185, %v1209
  %v1247 = vmax.f32 %v1188, %v1212
  %v1248 = vmax.f32 %v1191, %v1215
  %v1249 = vmax.f32 %v1241, %v1218
  %v1250 = vmax.f32 %v1242, %v1221
  %v1251 = vmax.f32 %v1243, %v1224
  %v1252 = vmax.f32 %v1244, %v1227
  %v1253 = vmax.f32 %v1245, %v1230
  %v1254 = vmax.f32 %v1246, %v1233
  %v1255 = vmax.f32 %v1247, %v1236
  %v1256 = vmax.f32 %v1248, %v1239
  %v1257 = vsub.f32 %v1170, %v1249
  %v1258 = vsub.f32 %v1173, %v1250
  %v1259 = vsub.f32 %v1176, %v1251
  %v1260 = vsub.f32 %v1179, %v1252
  %v1261 = vsub.f32 %v1182, %v1253
  %v1262 = vsub.f32 %v1185, %v1254
  %v1263 = vsub.f32 %v1188, %v1255
  %v1264 = vsub.f32 %v1191, %v1256
  %v1265 = vmul.f32 %v1257, 1.442695
  %v1266 = vpow.pop %v1265
  %v1267 = vmul.f32 %v1258, 1.442695
  %v1268 = vpow.pop %v1267
  %v1269 = vmul.f32 %v1259, 1.442695
  %v1270 = vpow.pop %v1269
  %v1271 = vmul.f32 %v1260, 1.442695
  %v1272 = vpow.pop %v1271
  %v1273 = vmul.f32 %v1261, 1.442695
  %v1274 = vpow.pop %v1273
  %v1275 = vmul.f32 %v1262, 1.442695
  %v1276 = vpow.pop %v1275
  %v1277 = vmul.f32 %v1263, 1.442695
  %v1278 = vpow.pop %v1277
  %v1279 = vmul.f32 %v1264, 1.442695
  %v1280 = vpow.pop %v1279
  %v1281 = vsub.f32 %v1194, %v1249
  %v1282 = vsub.f32 %v1197, %v1250
  %v1283 = vsub.f32 %v1200, %v1251
  %v1284 = vsub.f32 %v1203, %v1252
  %v1285 = vsub.f32 %v1206, %v1253
  %v1286 = vsub.f32 %v1209, %v1254
  %v1287 = vsub.f32 %v1212, %v1255
  %v1288 = vsub.f32 %v1215, %v1256
  %v1289 = vmul.f32 %v1281, 1.442695
  %v1290 = vpow.pop %v1289
  %v1291 = vmul.f32 %v1282, 1.442695
  %v1292 = vpow.pop %v1291
  %v1293 = vmul.f32 %v1283, 1.442695
  %v1294 = vpow.pop %v1293
  %v1295 = vmul.f32 %v1284, 1.442695
  %v1296 = vpow.pop %v1295
  %v1297 = vmul.f32 %v1285, 1.442695
  %v1298 = vpow.pop %v1297
  %v1299 = vmul.f32 %v1286, 1.442695
  %v1300 = vpow.pop %v1299
  %v1301 = vmul.f32 %v1287, 1.442695
  %v1302 = vpow.pop %v1301
  %v1303 = vmul.f32 %v1288, 1.442695
  %v1304 = vpow.pop %v1303
  %v1305 = vsub.f32 %v1218, %v1249
  %v1306 = vsub.f32 %v1221, %v1250
  %v1307 = vsub.f32 %v1224, %v1251
  %v1308 = vsub.f32 %v1227, %v1252
  %v1309 = vsub.f32 %v1230, %v1253
  %v1310 = vsub.f32 %v1233, %v1254
  %v1311 = vsub.f32 %v1236, %v1255
  %v1312 = vsub.f32 %v1239, %v1256
  %v1313 = vmul.f32 %v1305, 1.442695
  %v1314 = vpow.pop %v1313
  %v1315 = vmul.f32 %v1306, 1.442695
  %v1316 = vpow.pop %v1315
  %v1317 = vmul.f32 %v1307, 1.442695
  %v1318 = vpow.pop %v1317
  %v1319 = vmul.f32 %v1308, 1.442695
  %v1320 = vpow.pop %v1319
  %v1321 = vmul.f32 %v1309, 1.442695
  %v1322 = vpow.pop %v1321
  %v1323 = vmul.f32 %v1310, 1.442695
  %v1324 = vpow.pop %v1323
  %v1325 = vmul.f32 %v1311, 1.442695
  %v1326 = vpow.pop %v1325
  %v1327 = vmul.f32 %v1312, 1.442695
  %v1328 = vpow.pop %v1327
  %v1329 = vadd.f32 %v1266, %v1290
  %v1330 = vadd.f32 %v1268, %v1292
  %v1331 = vadd.f32 %v1270, %v1294
  %v1332 = vadd.f32 %v1272, %v1296
  %v1333 = vadd.f32 %v1274, %v1298
  %v1334 = vadd.f32 %v1276, %v1300
  %v1335 = vadd.f32 %v1278, %v1302
  %v1336 = vadd.f32 %v1280, %v1304
  %v1337 = vadd.f32 %v1329, %v1314
  %v1338 = vadd.f32 %v1330, %v1316
  %v1339 = vadd.f32 %v1331, %v1318
  %v1340 = vadd.f32 %v1332, %v1320
  %v1341 = vadd.f32 %v1333, %v1322
  %v1342 = vadd.f32 %v1334, %v1324
  %v1343 = vadd.f32 %v1335, %v1326
  %v1344 = vadd.f32 %v1336, %v1328
  %v1345 = vrcp.pop %v1337
  %v1346 = vrcp.pop %v1338
  %v1347 = vrcp.pop %v1339
  %v1348 = vrcp.pop %v1340
  %v1349 = vrcp.pop %v1341
  %v1350 = vrcp.pop %v1342
  %v1351 = vrcp.pop %v1343
  %v1352 = vrcp.pop %v1344
  %v1353 = vmul.f32 %v1266, %v1345
  %v1354 = vmul.f32 %v1268, %v1346
  %v1355 = vmul.f32 %v1270, %v1347
  %v1356 = vmul.f32 %v1272, %v1348
  %v1357 = vmul.f32 %v1274, %v1349
  %v1358 = vmul.f32 %v1276, %v1350
  %v1359 = vmul.f32 %v1278, %v1351
  %v1360 = vmul.f32 %v1280, %v1352
  %v1361 = vld [vmem:[%s574] sm:$0xff]
  %v1362 = vld [vmem:[%s574 + $0x8] sm:$0xff]
  %v1363 = vld [vmem:[%s574 + $0x10] sm:$0xff]
  %v1364 = vld [vmem:[%s574 + $0x18] sm:$0xff]
  %v1365 = vld [vmem:[%s574 + $0x20] sm:$0xff]
  %v1366 = vld [vmem:[%s574 + $0x28] sm:$0xff]
  %v1367 = vld [vmem:[%s574 + $0x30] sm:$0xff]
  %v1368 = vld [vmem:[%s574 + $0x38] sm:$0xff]
  %v1369 = vmul.f32 %v1353, %v1361
  %v1370 = vmul.f32 %v1354, %v1362
  %v1371 = vmul.f32 %v1355, %v1363
  %v1372 = vmul.f32 %v1356, %v1364
  %v1373 = vmul.f32 %v1357, %v1365
  %v1374 = vmul.f32 %v1358, %v1366
  %v1375 = vmul.f32 %v1359, %v1367
  %v1376 = vmul.f32 %v1360, %v1368
  %v1377 = vmul.f32 %v1290, %v1345
  %v1378 = vmul.f32 %v1292, %v1346
  %v1379 = vmul.f32 %v1294, %v1347
  %v1380 = vmul.f32 %v1296, %v1348
  %v1381 = vmul.f32 %v1298, %v1349
  %v1382 = vmul.f32 %v1300, %v1350
  %v1383 = vmul.f32 %v1302, %v1351
  %v1384 = vmul.f32 %v1304, %v1352
  %v1385 = vld [vmem:[%s574 + $0x40] sm:$0xff]
  %v1386 = vld [vmem:[%s574 + $0x48] sm:$0xff]
  %v1387 = vld [vmem:[%s574 + $0x50] sm:$0xff]
  %v1388 = vld [vmem:[%s574 + $0x58] sm:$0xff]
  %v1389 = vld [vmem:[%s574 + $0x60] sm:$0xff]
  %v1390 = vld [vmem:[%s574 + $0x68] sm:$0xff]
  %v1391 = vld [vmem:[%s574 + $0x70] sm:$0xff]
  %v1392 = vld [vmem:[%s574 + $0x78] sm:$0xff]
  %v1393 = vmul.f32 %v1377, %v1385
  %v1394 = vmul.f32 %v1378, %v1386
  %v1395 = vmul.f32 %v1379, %v1387
  %v1396 = vmul.f32 %v1380, %v1388
  %v1397 = vmul.f32 %v1381, %v1389
  %v1398 = vmul.f32 %v1382, %v1390
  %v1399 = vmul.f32 %v1383, %v1391
  %v1400 = vmul.f32 %v1384, %v1392
  %v1401 = vadd.f32 %v1369, %v1393
  %v1402 = vadd.f32 %v1370, %v1394
  %v1403 = vadd.f32 %v1371, %v1395
  %v1404 = vadd.f32 %v1372, %v1396
  %v1405 = vadd.f32 %v1373, %v1397
  %v1406 = vadd.f32 %v1374, %v1398
  %v1407 = vadd.f32 %v1375, %v1399
  %v1408 = vadd.f32 %v1376, %v1400
  %v1409 = vmul.f32 %v1314, %v1345
  %v1410 = vmul.f32 %v1316, %v1346
  %v1411 = vmul.f32 %v1318, %v1347
  %v1412 = vmul.f32 %v1320, %v1348
  %v1413 = vmul.f32 %v1322, %v1349
  %v1414 = vmul.f32 %v1324, %v1350
  %v1415 = vmul.f32 %v1326, %v1351
  %v1416 = vmul.f32 %v1328, %v1352
  %v1417 = vld [vmem:[%s574 + $0x80] sm:$0xff]
  %v1418 = vld [vmem:[%s574 + $0x88] sm:$0xff]
  %v1419 = vld [vmem:[%s574 + $0x90] sm:$0xff]
  %v1420 = vld [vmem:[%s574 + $0x98] sm:$0xff]
  %v1421 = vld [vmem:[%s574 + $0xa0] sm:$0xff]
  %v1422 = vld [vmem:[%s574 + $0xa8] sm:$0xff]
  %v1423 = vld [vmem:[%s574 + $0xb0] sm:$0xff]
  %v1424 = vld [vmem:[%s574 + $0xb8] sm:$0xff]
  %v1425 = vmul.f32 %v1409, %v1417
  %v1426 = vmul.f32 %v1410, %v1418
  %v1427 = vmul.f32 %v1411, %v1419
  %v1428 = vmul.f32 %v1412, %v1420
  %v1429 = vmul.f32 %v1413, %v1421
  %v1430 = vmul.f32 %v1414, %v1422
  %v1431 = vmul.f32 %v1415, %v1423
  %v1432 = vmul.f32 %v1416, %v1424
  %v1433 = vadd.f32 %v1401, %v1425
  %v1434 = vadd.f32 %v1402, %v1426
  %v1435 = vadd.f32 %v1403, %v1427
  %v1436 = vadd.f32 %v1404, %v1428
  %v1437 = vadd.f32 %v1405, %v1429
  %v1438 = vadd.f32 %v1406, %v1430
  %v1439 = vadd.f32 %v1407, %v1431
  %v1440 = vadd.f32 %v1408, %v1432
  %1441 = vst.msk [vmem:[#allocation4 + $0x40] sm:$0xff] %vm72, %v1433
  %1442 = vst.msk [vmem:[#allocation4 + $0x48] sm:$0xff] %vm72, %v1434
  %1443 = vst.msk [vmem:[#allocation4 + $0x50] sm:$0xff] %vm72, %v1435
  %1444 = vst.msk [vmem:[#allocation4 + $0x58] sm:$0xff] %vm72, %v1436
  %1445 = vst.msk [vmem:[#allocation4 + $0x60] sm:$0xff] %vm72, %v1437
  %1446 = vst.msk [vmem:[#allocation4 + $0x68] sm:$0xff] %vm72, %v1438
  %1447 = vst.msk [vmem:[#allocation4 + $0x70] sm:$0xff] %vm72, %v1439
  %1448 = vst.msk [vmem:[#allocation4 + $0x78] sm:$0xff] %vm72, %v1440
  %v1449 = vld [vmem:[#allocation3 + $0x80] sm:$0xff]
  %v1450 = vld [vmem:[#allocation3 + $0x88] sm:$0xff]
  %v1451 = vld [vmem:[#allocation3 + $0x90] sm:$0xff]
  %v1452 = vld [vmem:[#allocation3 + $0x98] sm:$0xff]
  %v1453 = vld [vmem:[#allocation3 + $0xa0] sm:$0xff]
  %v1454 = vld [vmem:[#allocation3 + $0xa8] sm:$0xff]
  %v1455 = vld [vmem:[#allocation3 + $0xb0] sm:$0xff]
  %v1456 = vld [vmem:[#allocation3 + $0xb8] sm:$0xff]
  %v1457 = vld [vmem:[%s477] sm:$0xff]
  %v1458 = vld [vmem:[%s477 + $0x8] sm:$0xff]
  %v1459 = vld [vmem:[%s477 + $0x10] sm:$0xff]
  %v1460 = vld [vmem:[%s477 + $0x18] sm:$0xff]
  %v1461 = vld [vmem:[%s477 + $0x20] sm:$0xff]
  %v1462 = vld [vmem:[%s477 + $0x28] sm:$0xff]
  %v1463 = vld [vmem:[%s477 + $0x30] sm:$0xff]
  %v1464 = vld [vmem:[%s477 + $0x38] sm:$0xff]
  %v1465 = vld [vmem:[%s477 + $0x40] sm:$0xff]
  %v1466 = vld [vmem:[%s477 + $0x48] sm:$0xff]
  %v1467 = vld [vmem:[%s477 + $0x50] sm:$0xff]
  %v1468 = vld [vmem:[%s477 + $0x58] sm:$0xff]
  %v1469 = vld [vmem:[%s477 + $0x60] sm:$0xff]
  %v1470 = vld [vmem:[%s477 + $0x68] sm:$0xff]
  %v1471 = vld [vmem:[%s477 + $0x70] sm:$0xff]
  %v1472 = vld [vmem:[%s477 + $0x78] sm:$0xff]
  %v1473 = vld [vmem:[%s477 + $0x80] sm:$0xff]
  %v1474 = vld [vmem:[%s477 + $0x88] sm:$0xff]
  %v1475 = vld [vmem:[%s477 + $0x90] sm:$0xff]
  %v1476 = vld [vmem:[%s477 + $0x98] sm:$0xff]
  %v1477 = vld [vmem:[%s477 + $0xa0] sm:$0xff]
  %v1478 = vld [vmem:[%s477 + $0xa8] sm:$0xff]
  %v1479 = vld [vmem:[%s477 + $0xb0] sm:$0xff]
  %v1480 = vld [vmem:[%s477 + $0xb8] sm:$0xff]
  %v1481 = vmul.f32 %v1449, %v1457
  %v1482 = vmul.f32 %v1450, %v1458
  %v1483 = vmul.f32 %v1451, %v1459
  %v1484 = vmul.f32 %v1452, %v1460
  %v1485 = vmul.f32 %v1453, %v1461
  %v1486 = vmul.f32 %v1454, %v1462
  %v1487 = vmul.f32 %v1455, %v1463
  %v1488 = vmul.f32 %v1456, %v1464
  %v1489 = vmul.f32 %v1449, %v1465
  %v1490 = vmul.f32 %v1450, %v1466
  %v1491 = vmul.f32 %v1451, %v1467
  %v1492 = vmul.f32 %v1452, %v1468
  %v1493 = vmul.f32 %v1453, %v1469
  %v1494 = vmul.f32 %v1454, %v1470
  %v1495 = vmul.f32 %v1455, %v1471
  %v1496 = vmul.f32 %v1456, %v1472
  %v1497 = vmul.f32 %v1449, %v1473
  %v1498 = vmul.f32 %v1450, %v1474
  %v1499 = vmul.f32 %v1451, %v1475
  %v1500 = vmul.f32 %v1452, %v1476
  %v1501 = vmul.f32 %v1453, %v1477
  %v1502 = vmul.f32 %v1454, %v1478
  %v1503 = vmul.f32 %v1455, %v1479
  %v1504 = vmul.f32 %v1456, %v1480
  %v1506 = vsel %vm72, %v1481, 0
  %v1509 = vsel %vm72, %v1482, 0
  %v1512 = vsel %vm72, %v1483, 0
  %v1515 = vsel %vm72, %v1484, 0
  %v1518 = vsel %vm72, %v1485, 0
  %v1521 = vsel %vm72, %v1486, 0
  %v1524 = vsel %vm72, %v1487, 0
  %v1527 = vsel %vm72, %v1488, 0
  %v1530 = vsel %vm72, %v1489, 0
  %v1533 = vsel %vm72, %v1490, 0
  %v1536 = vsel %vm72, %v1491, 0
  %v1539 = vsel %vm72, %v1492, 0
  %v1542 = vsel %vm72, %v1493, 0
  %v1545 = vsel %vm72, %v1494, 0
  %v1548 = vsel %vm72, %v1495, 0
  %v1551 = vsel %vm72, %v1496, 0
  %v1554 = vsel %vm72, %v1497, 0
  %v1557 = vsel %vm72, %v1498, 0
  %v1560 = vsel %vm72, %v1499, 0
  %v1563 = vsel %vm72, %v1500, 0
  %v1566 = vsel %vm72, %v1501, 0
  %v1569 = vsel %vm72, %v1502, 0
  %v1572 = vsel %vm72, %v1503, 0
  %v1575 = vsel %vm72, %v1504, 0
  %1577 = vmatpush.msra.mxu0 0.0
  %1578 = vmatpush.msra.mxu0 0.0
  %1579 = vmatpush.msra.mxu0 0.0
  %1580 = vmatpush.msra.mxu0 0.0
  %1581 = vmatpush.msra.mxu0 0.0
  %1582 = vmatpush.msra.mxu0 0.0
  %1583 = vmatpush.msra.mxu0 0.0
  %1584 = vmatpush.msra.mxu0 0.0
  %1585 = vmatpush.msra.mxu0 0.0
  %1586 = vmatpush.msra.mxu0 0.0
  %1587 = vmatpush.msra.mxu0 0.0
  %1588 = vmatpush.msra.mxu0 0.0
  %1589 = vmatpush.msra.mxu0 %v53
  %1590 = vmatpush.msra.mxu0 %v52
  %1591 = vmatpush.msra.mxu0 %v51
  %1592 = vmatpush.msra.mxu0 %v50
  %1593 = vmatmul.f32.gmra.mxu0 %v1506
  %v1594 = vpop.f32.mrf.mxu0
  %v1595 = vadd.f32 0.0, %v1594
  %1596 = vmatmul.f32.gmra.mxu0 %v1509
  %v1597 = vpop.f32.mrf.mxu0
  %v1598 = vadd.f32 0.0, %v1597
  %1599 = vmatmul.f32.gmra.mxu0 %v1512
  %v1600 = vpop.f32.mrf.mxu0
  %v1601 = vadd.f32 0.0, %v1600
  %1602 = vmatmul.f32.gmra.mxu0 %v1515
  %v1603 = vpop.f32.mrf.mxu0
  %v1604 = vadd.f32 0.0, %v1603
  %1605 = vmatmul.f32.gmra.mxu0 %v1518
  %v1606 = vpop.f32.mrf.mxu0
  %v1607 = vadd.f32 0.0, %v1606
  %1608 = vmatmul.f32.gmra.mxu0 %v1521
  %v1609 = vpop.f32.mrf.mxu0
  %v1610 = vadd.f32 0.0, %v1609
  %1611 = vmatmul.f32.gmra.mxu0 %v1524
  %v1612 = vpop.f32.mrf.mxu0
  %v1613 = vadd.f32 0.0, %v1612
  %1614 = vmatmul.f32.gmra.mxu0 %v1527
  %v1615 = vpop.f32.mrf.mxu0
  %v1616 = vadd.f32 0.0, %v1615
  %1617 = vmatmul.f32.gmra.mxu0 %v1530
  %v1618 = vpop.f32.mrf.mxu0
  %v1619 = vadd.f32 0.0, %v1618
  %1620 = vmatmul.f32.gmra.mxu0 %v1533
  %v1621 = vpop.f32.mrf.mxu0
  %v1622 = vadd.f32 0.0, %v1621
  %1623 = vmatmul.f32.gmra.mxu0 %v1536
  %v1624 = vpop.f32.mrf.mxu0
  %v1625 = vadd.f32 0.0, %v1624
  %1626 = vmatmul.f32.gmra.mxu0 %v1539
  %v1627 = vpop.f32.mrf.mxu0
  %v1628 = vadd.f32 0.0, %v1627
  %1629 = vmatmul.f32.gmra.mxu0 %v1542
  %v1630 = vpop.f32.mrf.mxu0
  %v1631 = vadd.f32 0.0, %v1630
  %1632 = vmatmul.f32.gmra.mxu0 %v1545
  %v1633 = vpop.f32.mrf.mxu0
  %v1634 = vadd.f32 0.0, %v1633
  %1635 = vmatmul.f32.gmra.mxu0 %v1548
  %v1636 = vpop.f32.mrf.mxu0
  %v1637 = vadd.f32 0.0, %v1636
  %1638 = vmatmul.f32.gmra.mxu0 %v1551
  %v1639 = vpop.f32.mrf.mxu0
  %v1640 = vadd.f32 0.0, %v1639
  %1641 = vmatmul.f32.gmra.mxu0 %v1554
  %v1642 = vpop.f32.mrf.mxu0
  %v1643 = vadd.f32 0.0, %v1642
  %1644 = vmatmul.f32.gmra.mxu0 %v1557
  %v1645 = vpop.f32.mrf.mxu0
  %v1646 = vadd.f32 0.0, %v1645
  %1647 = vmatmul.f32.gmra.mxu0 %v1560
  %v1648 = vpop.f32.mrf.mxu0
  %v1649 = vadd.f32 0.0, %v1648
  %1650 = vmatmul.f32.gmra.mxu0 %v1563
  %v1651 = vpop.f32.mrf.mxu0
  %v1652 = vadd.f32 0.0, %v1651
  %1653 = vmatmul.f32.gmra.mxu0 %v1566
  %v1654 = vpop.f32.mrf.mxu0
  %v1655 = vadd.f32 0.0, %v1654
  %1656 = vmatmul.f32.gmra.mxu0 %v1569
  %v1657 = vpop.f32.mrf.mxu0
  %v1658 = vadd.f32 0.0, %v1657
  %1659 = vmatmul.f32.gmra.mxu0 %v1572
  %v1660 = vpop.f32.mrf.mxu0
  %v1661 = vadd.f32 0.0, %v1660
  %1662 = vmatmul.f32.gmra.mxu0 %v1575
  %v1663 = vpop.f32.mrf.mxu0
  %v1664 = vadd.f32 0.0, %v1663
  %1665 = vdwg.mxu0
  %v1666 = vmax.f32 %v1595, %v1619
  %v1667 = vmax.f32 %v1598, %v1622
  %v1668 = vmax.f32 %v1601, %v1625
  %v1669 = vmax.f32 %v1604, %v1628
  %v1670 = vmax.f32 %v1607, %v1631
  %v1671 = vmax.f32 %v1610, %v1634
  %v1672 = vmax.f32 %v1613, %v1637
  %v1673 = vmax.f32 %v1616, %v1640
  %v1674 = vmax.f32 %v1666, %v1643
  %v1675 = vmax.f32 %v1667, %v1646
  %v1676 = vmax.f32 %v1668, %v1649
  %v1677 = vmax.f32 %v1669, %v1652
  %v1678 = vmax.f32 %v1670, %v1655
  %v1679 = vmax.f32 %v1671, %v1658
  %v1680 = vmax.f32 %v1672, %v1661
  %v1681 = vmax.f32 %v1673, %v1664
  %v1682 = vsub.f32 %v1595, %v1674
  %v1683 = vsub.f32 %v1598, %v1675
  %v1684 = vsub.f32 %v1601, %v1676
  %v1685 = vsub.f32 %v1604, %v1677
  %v1686 = vsub.f32 %v1607, %v1678
  %v1687 = vsub.f32 %v1610, %v1679
  %v1688 = vsub.f32 %v1613, %v1680
  %v1689 = vsub.f32 %v1616, %v1681
  %v1690 = vmul.f32 %v1682, 1.442695
  %v1691 = vpow.pop %v1690
  %v1692 = vmul.f32 %v1683, 1.442695
  %v1693 = vpow.pop %v1692
  %v1694 = vmul.f32 %v1684, 1.442695
  %v1695 = vpow.pop %v1694
  %v1696 = vmul.f32 %v1685, 1.442695
  %v1697 = vpow.pop %v1696
  %v1698 = vmul.f32 %v1686, 1.442695
  %v1699 = vpow.pop %v1698
  %v1700 = vmul.f32 %v1687, 1.442695
  %v1701 = vpow.pop %v1700
  %v1702 = vmul.f32 %v1688, 1.442695
  %v1703 = vpow.pop %v1702
  %v1704 = vmul.f32 %v1689, 1.442695
  %v1705 = vpow.pop %v1704
  %v1706 = vsub.f32 %v1619, %v1674
  %v1707 = vsub.f32 %v1622, %v1675
  %v1708 = vsub.f32 %v1625, %v1676
  %v1709 = vsub.f32 %v1628, %v1677
  %v1710 = vsub.f32 %v1631, %v1678
  %v1711 = vsub.f32 %v1634, %v1679
  %v1712 = vsub.f32 %v1637, %v1680
  %v1713 = vsub.f32 %v1640, %v1681
  %v1714 = vmul.f32 %v1706, 1.442695
  %v1715 = vpow.pop %v1714
  %v1716 = vmul.f32 %v1707, 1.442695
  %v1717 = vpow.pop %v1716
  %v1718 = vmul.f32 %v1708, 1.442695
  %v1719 = vpow.pop %v1718
  %v1720 = vmul.f32 %v1709, 1.442695
  %v1721 = vpow.pop %v1720
  %v1722 = vmul.f32 %v1710, 1.442695
  %v1723 = vpow.pop %v1722
  %v1724 = vmul.f32 %v1711, 1.442695
  %v1725 = vpow.pop %v1724
  %v1726 = vmul.f32 %v1712, 1.442695
  %v1727 = vpow.pop %v1726
  %v1728 = vmul.f32 %v1713, 1.442695
  %v1729 = vpow.pop %v1728
  %v1730 = vsub.f32 %v1643, %v1674
  %v1731 = vsub.f32 %v1646, %v1675
  %v1732 = vsub.f32 %v1649, %v1676
  %v1733 = vsub.f32 %v1652, %v1677
  %v1734 = vsub.f32 %v1655, %v1678
  %v1735 = vsub.f32 %v1658, %v1679
  %v1736 = vsub.f32 %v1661, %v1680
  %v1737 = vsub.f32 %v1664, %v1681
  %v1738 = vmul.f32 %v1730, 1.442695
  %v1739 = vpow.pop %v1738
  %v1740 = vmul.f32 %v1731, 1.442695
  %v1741 = vpow.pop %v1740
  %v1742 = vmul.f32 %v1732, 1.442695
  %v1743 = vpow.pop %v1742
  %v1744 = vmul.f32 %v1733, 1.442695
  %v1745 = vpow.pop %v1744
  %v1746 = vmul.f32 %v1734, 1.442695
  %v1747 = vpow.pop %v1746
  %v1748 = vmul.f32 %v1735, 1.442695
  %v1749 = vpow.pop %v1748
  %v1750 = vmul.f32 %v1736, 1.442695
  %v1751 = vpow.pop %v1750
  %v1752 = vmul.f32 %v1737, 1.442695
  %v1753 = vpow.pop %v1752
  %v1754 = vadd.f32 %v1691, %v1715
  %v1755 = vadd.f32 %v1693, %v1717
  %v1756 = vadd.f32 %v1695, %v1719
  %v1757 = vadd.f32 %v1697, %v1721
  %v1758 = vadd.f32 %v1699, %v1723
  %v1759 = vadd.f32 %v1701, %v1725
  %v1760 = vadd.f32 %v1703, %v1727
  %v1761 = vadd.f32 %v1705, %v1729
  %v1762 = vadd.f32 %v1754, %v1739
  %v1763 = vadd.f32 %v1755, %v1741
  %v1764 = vadd.f32 %v1756, %v1743
  %v1765 = vadd.f32 %v1757, %v1745
  %v1766 = vadd.f32 %v1758, %v1747
  %v1767 = vadd.f32 %v1759, %v1749
  %v1768 = vadd.f32 %v1760, %v1751
  %v1769 = vadd.f32 %v1761, %v1753
  %v1770 = vrcp.pop %v1762
  %v1771 = vrcp.pop %v1763
  %v1772 = vrcp.pop %v1764
  %v1773 = vrcp.pop %v1765
  %v1774 = vrcp.pop %v1766
  %v1775 = vrcp.pop %v1767
  %v1776 = vrcp.pop %v1768
  %v1777 = vrcp.pop %v1769
  %v1778 = vmul.f32 %v1691, %v1770
  %v1779 = vmul.f32 %v1693, %v1771
  %v1780 = vmul.f32 %v1695, %v1772
  %v1781 = vmul.f32 %v1697, %v1773
  %v1782 = vmul.f32 %v1699, %v1774
  %v1783 = vmul.f32 %v1701, %v1775
  %v1784 = vmul.f32 %v1703, %v1776
  %v1785 = vmul.f32 %v1705, %v1777
  %v1786 = vld [vmem:[%s574] sm:$0xff]
  %v1787 = vld [vmem:[%s574 + $0x8] sm:$0xff]
  %v1788 = vld [vmem:[%s574 + $0x10] sm:$0xff]
  %v1789 = vld [vmem:[%s574 + $0x18] sm:$0xff]
  %v1790 = vld [vmem:[%s574 + $0x20] sm:$0xff]
  %v1791 = vld [vmem:[%s574 + $0x28] sm:$0xff]
  %v1792 = vld [vmem:[%s574 + $0x30] sm:$0xff]
  %v1793 = vld [vmem:[%s574 + $0x38] sm:$0xff]
  %v1794 = vmul.f32 %v1778, %v1786
  %v1795 = vmul.f32 %v1779, %v1787
  %v1796 = vmul.f32 %v1780, %v1788
  %v1797 = vmul.f32 %v1781, %v1789
  %v1798 = vmul.f32 %v1782, %v1790
  %v1799 = vmul.f32 %v1783, %v1791
  %v1800 = vmul.f32 %v1784, %v1792
  %v1801 = vmul.f32 %v1785, %v1793
  %v1802 = vmul.f32 %v1715, %v1770
  %v1803 = vmul.f32 %v1717, %v1771
  %v1804 = vmul.f32 %v1719, %v1772
  %v1805 = vmul.f32 %v1721, %v1773
  %v1806 = vmul.f32 %v1723, %v1774
  %v1807 = vmul.f32 %v1725, %v1775
  %v1808 = vmul.f32 %v1727, %v1776
  %v1809 = vmul.f32 %v1729, %v1777
  %v1810 = vld [vmem:[%s574 + $0x40] sm:$0xff]
  %v1811 = vld [vmem:[%s574 + $0x48] sm:$0xff]
  %v1812 = vld [vmem:[%s574 + $0x50] sm:$0xff]
  %v1813 = vld [vmem:[%s574 + $0x58] sm:$0xff]
  %v1814 = vld [vmem:[%s574 + $0x60] sm:$0xff]
  %v1815 = vld [vmem:[%s574 + $0x68] sm:$0xff]
  %v1816 = vld [vmem:[%s574 + $0x70] sm:$0xff]
  %v1817 = vld [vmem:[%s574 + $0x78] sm:$0xff]
  %v1818 = vmul.f32 %v1802, %v1810
  %v1819 = vmul.f32 %v1803, %v1811
  %v1820 = vmul.f32 %v1804, %v1812
  %v1821 = vmul.f32 %v1805, %v1813
  %v1822 = vmul.f32 %v1806, %v1814
  %v1823 = vmul.f32 %v1807, %v1815
  %v1824 = vmul.f32 %v1808, %v1816
  %v1825 = vmul.f32 %v1809, %v1817
  %v1826 = vadd.f32 %v1794, %v1818
  %v1827 = vadd.f32 %v1795, %v1819
  %v1828 = vadd.f32 %v1796, %v1820
  %v1829 = vadd.f32 %v1797, %v1821
  %v1830 = vadd.f32 %v1798, %v1822
  %v1831 = vadd.f32 %v1799, %v1823
  %v1832 = vadd.f32 %v1800, %v1824
  %v1833 = vadd.f32 %v1801, %v1825
  %v1834 = vmul.f32 %v1739, %v1770
  %v1835 = vmul.f32 %v1741, %v1771
  %v1836 = vmul.f32 %v1743, %v1772
  %v1837 = vmul.f32 %v1745, %v1773
  %v1838 = vmul.f32 %v1747, %v1774
  %v1839 = vmul.f32 %v1749, %v1775
  %v1840 = vmul.f32 %v1751, %v1776
  %v1841 = vmul.f32 %v1753, %v1777
  %v1842 = vld [vmem:[%s574 + $0x80] sm:$0xff]
  %v1843 = vld [vmem:[%s574 + $0x88] sm:$0xff]
  %v1844 = vld [vmem:[%s574 + $0x90] sm:$0xff]
  %v1845 = vld [vmem:[%s574 + $0x98] sm:$0xff]
  %v1846 = vld [vmem:[%s574 + $0xa0] sm:$0xff]
  %v1847 = vld [vmem:[%s574 + $0xa8] sm:$0xff]
  %v1848 = vld [vmem:[%s574 + $0xb0] sm:$0xff]
  %v1849 = vld [vmem:[%s574 + $0xb8] sm:$0xff]
  %v1850 = vmul.f32 %v1834, %v1842
  %v1851 = vmul.f32 %v1835, %v1843
  %v1852 = vmul.f32 %v1836, %v1844
  %v1853 = vmul.f32 %v1837, %v1845
  %v1854 = vmul.f32 %v1838, %v1846
  %v1855 = vmul.f32 %v1839, %v1847
  %v1856 = vmul.f32 %v1840, %v1848
  %v1857 = vmul.f32 %v1841, %v1849
  %v1858 = vadd.f32 %v1826, %v1850
  %v1859 = vadd.f32 %v1827, %v1851
  %v1860 = vadd.f32 %v1828, %v1852
  %v1861 = vadd.f32 %v1829, %v1853
  %v1862 = vadd.f32 %v1830, %v1854
  %v1863 = vadd.f32 %v1831, %v1855
  %v1864 = vadd.f32 %v1832, %v1856
  %v1865 = vadd.f32 %v1833, %v1857
  %1866 = vst.msk [vmem:[#allocation4 + $0x80] sm:$0xff] %vm72, %v1858
  %1867 = vst.msk [vmem:[#allocation4 + $0x88] sm:$0xff] %vm72, %v1859
  %1868 = vst.msk [vmem:[#allocation4 + $0x90] sm:$0xff] %vm72, %v1860
  %1869 = vst.msk [vmem:[#allocation4 + $0x98] sm:$0xff] %vm72, %v1861
  %1870 = vst.msk [vmem:[#allocation4 + $0xa0] sm:$0xff] %vm72, %v1862
  %1871 = vst.msk [vmem:[#allocation4 + $0xa8] sm:$0xff] %vm72, %v1863
  %1872 = vst.msk [vmem:[#allocation4 + $0xb0] sm:$0xff] %vm72, %v1864
  %1873 = vst.msk [vmem:[#allocation4 + $0xb8] sm:$0xff] %vm72, %v1865
  %v1874 = vld [vmem:[#allocation4] sm:$0xff]
  %v1875 = vld [vmem:[#allocation4 + $0x8] sm:$0xff]
  %v1876 = vld [vmem:[#allocation4 + $0x10] sm:$0xff]
  %v1877 = vld [vmem:[#allocation4 + $0x18] sm:$0xff]
  %v1878 = vld [vmem:[#allocation4 + $0x20] sm:$0xff]
  %v1879 = vld [vmem:[#allocation4 + $0x28] sm:$0xff]
  %v1880 = vld [vmem:[#allocation4 + $0x30] sm:$0xff]
  %v1881 = vld [vmem:[#allocation4 + $0x38] sm:$0xff]
  %v1882 = vld [vmem:[#allocation4 + $0x40] sm:$0xff]
  %v1883 = vld [vmem:[#allocation4 + $0x48] sm:$0xff]
  %v1884 = vld [vmem:[#allocation4 + $0x50] sm:$0xff]
  %v1885 = vld [vmem:[#allocation4 + $0x58] sm:$0xff]
  %v1886 = vld [vmem:[#allocation4 + $0x60] sm:$0xff]
  %v1887 = vld [vmem:[#allocation4 + $0x68] sm:$0xff]
  %v1888 = vld [vmem:[#allocation4 + $0x70] sm:$0xff]
  %v1889 = vld [vmem:[#allocation4 + $0x78] sm:$0xff]
  %v1890 = vld [vmem:[#allocation4 + $0x80] sm:$0xff]
  %v1891 = vld [vmem:[#allocation4 + $0x88] sm:$0xff]
  %v1892 = vld [vmem:[#allocation4 + $0x90] sm:$0xff]
  %v1893 = vld [vmem:[#allocation4 + $0x98] sm:$0xff]
  %v1894 = vld [vmem:[#allocation4 + $0xa0] sm:$0xff]
  %v1895 = vld [vmem:[#allocation4 + $0xa8] sm:$0xff]
  %v1896 = vld [vmem:[#allocation4 + $0xb0] sm:$0xff]
  %v1897 = vld [vmem:[#allocation4 + $0xb8] sm:$0xff]
  %v1899 = vperm.slane %v142, 0
  %v1902 = vsel %vm72, %v1874, 0
  %v1905 = vsel %vm72, %v1875, 0
  %v1908 = vsel %vm72, %v1876, 0
  %v1911 = vsel %vm72, %v1877, 0
  %v1914 = vsel %vm72, %v1878, 0
  %v1917 = vsel %vm72, %v1879, 0
  %v1920 = vsel %vm72, %v1880, 0
  %v1923 = vsel %vm72, %v1881, 0
  %v1926 = vsel %vm72, %v1882, 0
  %v1929 = vsel %vm72, %v1883, 0
  %v1932 = vsel %vm72, %v1884, 0
  %v1935 = vsel %vm72, %v1885, 0
  %v1938 = vsel %vm72, %v1886, 0
  %v1941 = vsel %vm72, %v1887, 0
  %v1944 = vsel %vm72, %v1888, 0
  %v1947 = vsel %vm72, %v1889, 0
  %v1950 = vsel %vm72, %v1890, 0
  %v1953 = vsel %vm72, %v1891, 0
  %v1956 = vsel %vm72, %v1892, 0
  %v1959 = vsel %vm72, %v1893, 0
  %v1962 = vsel %vm72, %v1894, 0
  %v1965 = vsel %vm72, %v1895, 0
  %v1968 = vsel %vm72, %v1896, 0
  %v1971 = vsel %vm72, %v1897, 0
  %1973 = vmatpush.msra.mxu0 0.0
  %1974 = vmatpush.msra.mxu0 0.0
  %1975 = vmatpush.msra.mxu0 0.0
  %1976 = vmatpush.msra.mxu0 0.0
  %1977 = vmatpush.msra.mxu0 0.0
  %1978 = vmatpush.msra.mxu0 0.0
  %1979 = vmatpush.msra.mxu0 0.0
  %1980 = vmatpush.msra.mxu0 0.0
  %1981 = vmatpush.msra.mxu0 0.0
  %1982 = vmatpush.msra.mxu0 0.0
  %1983 = vmatpush.msra.mxu0 0.0
  %1984 = vmatpush.msra.mxu0 0.0
  %1985 = vmatpush.msra.mxu0 %v141
  %1986 = vmatpush.msra.mxu0 %v140
  %1987 = vmatpush.msra.mxu0 %v139
  %1988 = vmatpush.msra.mxu0 %v138
  %1989 = vmatmul.f32.gmra.mxu0 %v1902
  %v1990 = vpop.f32.mrf.mxu0
  %v1991 = vadd.f32 %v1899, %v1990
  %1992 = vmatmul.f32.gmra.mxu0 %v1905
  %v1993 = vpop.f32.mrf.mxu0
  %v1994 = vadd.f32 %v1899, %v1993
  %1995 = vmatmul.f32.gmra.mxu0 %v1908
  %v1996 = vpop.f32.mrf.mxu0
  %v1997 = vadd.f32 %v1899, %v1996
  %1998 = vmatmul.f32.gmra.mxu0 %v1911
  %v1999 = vpop.f32.mrf.mxu0
  %v2000 = vadd.f32 %v1899, %v1999
  %2001 = vmatmul.f32.gmra.mxu0 %v1914
  %v2002 = vpop.f32.mrf.mxu0
  %v2003 = vadd.f32 %v1899, %v2002
  %2004 = vmatmul.f32.gmra.mxu0 %v1917
  %v2005 = vpop.f32.mrf.mxu0
  %v2006 = vadd.f32 %v1899, %v2005
  %2007 = vmatmul.f32.gmra.mxu0 %v1920
  %v2008 = vpop.f32.mrf.mxu0
  %v2009 = vadd.f32 %v1899, %v2008
  %2010 = vmatmul.f32.gmra.mxu0 %v1923
  %v2011 = vpop.f32.mrf.mxu0
  %v2012 = vadd.f32 %v1899, %v2011
  %2013 = vmatmul.f32.gmra.mxu0 %v1926
  %v2014 = vpop.f32.mrf.mxu0
  %v2015 = vadd.f32 %v1899, %v2014
  %2016 = vmatmul.f32.gmra.mxu0 %v1929
  %v2017 = vpop.f32.mrf.mxu0
  %v2018 = vadd.f32 %v1899, %v2017
  %2019 = vmatmul.f32.gmra.mxu0 %v1932
  %v2020 = vpop.f32.mrf.mxu0
  %v2021 = vadd.f32 %v1899, %v2020
  %2022 = vmatmul.f32.gmra.mxu0 %v1935
  %v2023 = vpop.f32.mrf.mxu0
  %v2024 = vadd.f32 %v1899, %v2023
  %2025 = vmatmul.f32.gmra.mxu0 %v1938
  %v2026 = vpop.f32.mrf.mxu0
  %v2027 = vadd.f32 %v1899, %v2026
  %2028 = vmatmul.f32.gmra.mxu0 %v1941
  %v2029 = vpop.f32.mrf.mxu0
  %v2030 = vadd.f32 %v1899, %v2029
  %2031 = vmatmul.f32.gmra.mxu0 %v1944
  %v2032 = vpop.f32.mrf.mxu0
  %v2033 = vadd.f32 %v1899, %v2032
  %2034 = vmatmul.f32.gmra.mxu0 %v1947
  %v2035 = vpop.f32.mrf.mxu0
  %v2036 = vadd.f32 %v1899, %v2035
  %2037 = vmatmul.f32.gmra.mxu0 %v1950
  %v2038 = vpop.f32.mrf.mxu0
  %v2039 = vadd.f32 %v1899, %v2038
  %2040 = vmatmul.f32.gmra.mxu0 %v1953
  %v2041 = vpop.f32.mrf.mxu0
  %v2042 = vadd.f32 %v1899, %v2041
  %2043 = vmatmul.f32.gmra.mxu0 %v1956
  %v2044 = vpop.f32.mrf.mxu0
  %v2045 = vadd.f32 %v1899, %v2044
  %2046 = vmatmul.f32.gmra.mxu0 %v1959
  %v2047 = vpop.f32.mrf.mxu0
  %v2048 = vadd.f32 %v1899, %v2047
  %2049 = vmatmul.f32.gmra.mxu0 %v1962
  %v2050 = vpop.f32.mrf.mxu0
  %v2051 = vadd.f32 %v1899, %v2050
  %2052 = vmatmul.f32.gmra.mxu0 %v1965
  %v2053 = vpop.f32.mrf.mxu0
  %v2054 = vadd.f32 %v1899, %v2053
  %2055 = vmatmul.f32.gmra.mxu0 %v1968
  %v2056 = vpop.f32.mrf.mxu0
  %v2057 = vadd.f32 %v1899, %v2056
  %2058 = vmatmul.f32.gmra.mxu0 %v1971
  %v2059 = vpop.f32.mrf.mxu0
  %v2060 = vadd.f32 %v1899, %v2059
  %2061 = vdwg.mxu0
  %v2062 = vld [vmem:[#allocation2] sm:$0xff]
  %v2063 = vld [vmem:[#allocation2 + $0x8] sm:$0xff]
  %v2064 = vld [vmem:[#allocation2 + $0x10] sm:$0xff]
  %v2065 = vld [vmem:[#allocation2 + $0x18] sm:$0xff]
  %v2066 = vld [vmem:[#allocation2 + $0x20] sm:$0xff]
  %v2067 = vld [vmem:[#allocation2 + $0x28] sm:$0xff]
  %v2068 = vld [vmem:[#allocation2 + $0x30] sm:$0xff]
  %v2069 = vld [vmem:[#allocation2 + $0x38] sm:$0xff]
  %v2070 = vld [vmem:[#allocation2 + $0x40] sm:$0xff]
  %v2071 = vld [vmem:[#allocation2 + $0x48] sm:$0xff]
  %v2072 = vld [vmem:[#allocation2 + $0x50] sm:$0xff]
  %v2073 = vld [vmem:[#allocation2 + $0x58] sm:$0xff]
  %v2074 = vld [vmem:[#allocation2 + $0x60] sm:$0xff]
  %v2075 = vld [vmem:[#allocation2 + $0x68] sm:$0xff]
  %v2076 = vld [vmem:[#allocation2 + $0x70] sm:$0xff]
  %v2077 = vld [vmem:[#allocation2 + $0x78] sm:$0xff]
  %v2078 = vld [vmem:[#allocation2 + $0x80] sm:$0xff]
  %v2079 = vld [vmem:[#allocation2 + $0x88] sm:$0xff]
  %v2080 = vld [vmem:[#allocation2 + $0x90] sm:$0xff]
  %v2081 = vld [vmem:[#allocation2 + $0x98] sm:$0xff]
  %v2082 = vld [vmem:[#allocation2 + $0xa0] sm:$0xff]
  %v2083 = vld [vmem:[#allocation2 + $0xa8] sm:$0xff]
  %v2084 = vld [vmem:[#allocation2 + $0xb0] sm:$0xff]
  %v2085 = vld [vmem:[#allocation2 + $0xb8] sm:$0xff]
  %v2086 = vadd.f32 %v2062, %v1991
  %v2087 = vadd.f32 %v2063, %v1994
  %v2088 = vadd.f32 %v2064, %v1997
  %v2089 = vadd.f32 %v2065, %v2000
  %v2090 = vadd.f32 %v2066, %v2003
  %v2091 = vadd.f32 %v2067, %v2006
  %v2092 = vadd.f32 %v2068, %v2009
  %v2093 = vadd.f32 %v2069, %v2012
  %v2094 = vadd.f32 %v2070, %v2015
  %v2095 = vadd.f32 %v2071, %v2018
  %v2096 = vadd.f32 %v2072, %v2021
  %v2097 = vadd.f32 %v2073, %v2024
  %v2098 = vadd.f32 %v2074, %v2027
  %v2099 = vadd.f32 %v2075, %v2030
  %v2100 = vadd.f32 %v2076, %v2033
  %v2101 = vadd.f32 %v2077, %v2036
  %v2102 = vadd.f32 %v2078, %v2039
  %v2103 = vadd.f32 %v2079, %v2042
  %v2104 = vadd.f32 %v2080, %v2045
  %v2105 = vadd.f32 %v2081, %v2048
  %v2106 = vadd.f32 %v2082, %v2051
  %v2107 = vadd.f32 %v2083, %v2054
  %v2108 = vadd.f32 %v2084, %v2057
  %v2109 = vadd.f32 %v2085, %v2060
  %v2110 = vsel %vm72, %v2086, 0.0
  %2111 = vadd.xlane.f32.xlu0 %v2110
  %v2112 = vpop.xlane.xlu0 %2111
  %v2113 = vsel %vm72, %v2087, 0.0
  %2114 = vadd.xlane.f32.xlu0 %v2113
  %v2115 = vpop.xlane.xlu0 %2114
  %v2116 = vsel %vm72, %v2088, 0.0
  %2117 = vadd.xlane.f32.xlu0 %v2116
  %v2118 = vpop.xlane.xlu0 %2117
  %v2119 = vsel %vm72, %v2089, 0.0
  %2120 = vadd.xlane.f32.xlu0 %v2119
  %v2121 = vpop.xlane.xlu0 %2120
  %v2122 = vsel %vm72, %v2090, 0.0
  %2123 = vadd.xlane.f32.xlu0 %v2122
  %v2124 = vpop.xlane.xlu0 %2123
  %v2125 = vsel %vm72, %v2091, 0.0
  %2126 = vadd.xlane.f32.xlu0 %v2125
  %v2127 = vpop.xlane.xlu0 %2126
  %v2128 = vsel %vm72, %v2092, 0.0
  %2129 = vadd.xlane.f32.xlu0 %v2128
  %v2130 = vpop.xlane.xlu0 %2129
  %v2131 = vsel %vm72, %v2093, 0.0
  %2132 = vadd.xlane.f32.xlu0 %v2131
  %v2133 = vpop.xlane.xlu0 %2132
  %v2134 = vsel %vm72, %v2094, 0.0
  %2135 = vadd.xlane.f32.xlu0 %v2134
  %v2136 = vpop.xlane.xlu0 %2135
  %v2137 = vsel %vm72, %v2095, 0.0
  %2138 = vadd.xlane.f32.xlu0 %v2137
  %v2139 = vpop.xlane.xlu0 %2138
  %v2140 = vsel %vm72, %v2096, 0.0
  %2141 = vadd.xlane.f32.xlu0 %v2140
  %v2142 = vpop.xlane.xlu0 %2141
  %v2143 = vsel %vm72, %v2097, 0.0
  %2144 = vadd.xlane.f32.xlu0 %v2143
  %v2145 = vpop.xlane.xlu0 %2144
  %v2146 = vsel %vm72, %v2098, 0.0
  %2147 = vadd.xlane.f32.xlu0 %v2146
  %v2148 = vpop.xlane.xlu0 %2147
  %v2149 = vsel %vm72, %v2099, 0.0
  %2150 = vadd.xlane.f32.xlu0 %v2149
  %v2151 = vpop.xlane.xlu0 %2150
  %v2152 = vsel %vm72, %v2100, 0.0
  %2153 = vadd.xlane.f32.xlu0 %v2152
  %v2154 = vpop.xlane.xlu0 %2153
  %v2155 = vsel %vm72, %v2101, 0.0
  %2156 = vadd.xlane.f32.xlu0 %v2155
  %v2157 = vpop.xlane.xlu0 %2156
  %v2158 = vsel %vm72, %v2102, 0.0
  %2159 = vadd.xlane.f32.xlu0 %v2158
  %v2160 = vpop.xlane.xlu0 %2159
  %v2161 = vsel %vm72, %v2103, 0.0
  %2162 = vadd.xlane.f32.xlu0 %v2161
  %v2163 = vpop.xlane.xlu0 %2162
  %v2164 = vsel %vm72, %v2104, 0.0
  %2165 = vadd.xlane.f32.xlu0 %v2164
  %v2166 = vpop.xlane.xlu0 %2165
  %v2167 = vsel %vm72, %v2105, 0.0
  %2168 = vadd.xlane.f32.xlu0 %v2167
  %v2169 = vpop.xlane.xlu0 %2168
  %v2170 = vsel %vm72, %v2106, 0.0
  %2171 = vadd.xlane.f32.xlu0 %v2170
  %v2172 = vpop.xlane.xlu0 %2171
  %v2173 = vsel %vm72, %v2107, 0.0
  %2174 = vadd.xlane.f32.xlu0 %v2173
  %v2175 = vpop.xlane.xlu0 %2174
  %v2176 = vsel %vm72, %v2108, 0.0
  %2177 = vadd.xlane.f32.xlu0 %v2176
  %v2178 = vpop.xlane.xlu0 %2177
  %v2179 = vsel %vm72, %v2109, 0.0
  %2180 = vadd.xlane.f32.xlu0 %v2179
  %v2181 = vpop.xlane.xlu0 %2180
  %v2182 = vrcp.pop 32.0
  %v2183 = vmul.f32 32.0, %v2182
  %v2184 = vsub.f32 1.0, %v2183
  %v2185 = vmul.f32 %v2182, %v2184
  %v2186 = vadd.f32 %v2182, %v2185
  %vm2187 = vweird.f32 %v2182
  %v2188 = vsel %vm2187, %v2182, %v2186
  %v2189 = vmul.f32 %v2112, %v2188
  %v2190 = vmul.f32 %v2115, %v2188
  %v2191 = vmul.f32 %v2118, %v2188
  %v2192 = vmul.f32 %v2121, %v2188
  %v2193 = vmul.f32 %v2124, %v2188
  %v2194 = vmul.f32 %v2127, %v2188
  %v2195 = vmul.f32 %v2130, %v2188
  %v2196 = vmul.f32 %v2133, %v2188
  %v2197 = vmul.f32 %v2136, %v2188
  %v2198 = vmul.f32 %v2139, %v2188
  %v2199 = vmul.f32 %v2142, %v2188
  %v2200 = vmul.f32 %v2145, %v2188
  %v2201 = vmul.f32 %v2148, %v2188
  %v2202 = vmul.f32 %v2151, %v2188
  %v2203 = vmul.f32 %v2154, %v2188
  %v2204 = vmul.f32 %v2157, %v2188
  %v2205 = vmul.f32 %v2160, %v2188
  %v2206 = vmul.f32 %v2163, %v2188
  %v2207 = vmul.f32 %v2166, %v2188
  %v2208 = vmul.f32 %v2169, %v2188
  %v2209 = vmul.f32 %v2172, %v2188
  %v2210 = vmul.f32 %v2175, %v2188
  %v2211 = vmul.f32 %v2178, %v2188
  %v2212 = vmul.f32 %v2181, %v2188
  %v2213 = vsub.f32 %v2086, %v2189
  %v2214 = vsub.f32 %v2087, %v2190
  %v2215 = vsub.f32 %v2088, %v2191
  %v2216 = vsub.f32 %v2089, %v2192
  %v2217 = vsub.f32 %v2090, %v2193
  %v2218 = vsub.f32 %v2091, %v2194
  %v2219 = vsub.f32 %v2092, %v2195
  %v2220 = vsub.f32 %v2093, %v2196
  %v2221 = vsub.f32 %v2094, %v2197
  %v2222 = vsub.f32 %v2095, %v2198
  %v2223 = vsub.f32 %v2096, %v2199
  %v2224 = vsub.f32 %v2097, %v2200
  %v2225 = vsub.f32 %v2098, %v2201
  %v2226 = vsub.f32 %v2099, %v2202
  %v2227 = vsub.f32 %v2100, %v2203
  %v2228 = vsub.f32 %v2101, %v2204
  %v2229 = vsub.f32 %v2102, %v2205
  %v2230 = vsub.f32 %v2103, %v2206
  %v2231 = vsub.f32 %v2104, %v2207
  %v2232 = vsub.f32 %v2105, %v2208
  %v2233 = vsub.f32 %v2106, %v2209
  %v2234 = vsub.f32 %v2107, %v2210
  %v2235 = vsub.f32 %v2108, %v2211
  %v2236 = vsub.f32 %v2109, %v2212
  %v2237 = vmul.f32 %v2213, %v2213
  %v2238 = vmul.f32 %v2214, %v2214
  %v2239 = vmul.f32 %v2215, %v2215
  %v2240 = vmul.f32 %v2216, %v2216
  %v2241 = vmul.f32 %v2217, %v2217
  %v2242 = vmul.f32 %v2218, %v2218
  %v2243 = vmul.f32 %v2219, %v2219
  %v2244 = vmul.f32 %v2220, %v2220
  %v2245 = vmul.f32 %v2221, %v2221
  %v2246 = vmul.f32 %v2222, %v2222
  %v2247 = vmul.f32 %v2223, %v2223
  %v2248 = vmul.f32 %v2224, %v2224
  %v2249 = vmul.f32 %v2225, %v2225
  %v2250 = vmul.f32 %v2226, %v2226
  %v2251 = vmul.f32 %v2227, %v2227
  %v2252 = vmul.f32 %v2228, %v2228
  %v2253 = vmul.f32 %v2229, %v2229
  %v2254 = vmul.f32 %v2230, %v2230
  %v2255 = vmul.f32 %v2231, %v2231
  %v2256 = vmul.f32 %v2232, %v2232
  %v2257 = vmul.f32 %v2233, %v2233
  %v2258 = vmul.f32 %v2234, %v2234
  %v2259 = vmul.f32 %v2235, %v2235
  %v2260 = vmul.f32 %v2236, %v2236
  %v2261 = vsel %vm72, %v2237, 0.0
  %2262 = vadd.xlane.f32.xlu0 %v2261
  %v2263 = vpop.xlane.xlu0 %2262
  %v2264 = vsel %vm72, %v2238, 0.0
  %2265 = vadd.xlane.f32.xlu0 %v2264
  %v2266 = vpop.xlane.xlu0 %2265
  %v2267 = vsel %vm72, %v2239, 0.0
  %2268 = vadd.xlane.f32.xlu0 %v2267
  %v2269 = vpop.xlane.xlu0 %2268
  %v2270 = vsel %vm72, %v2240, 0.0
  %2271 = vadd.xlane.f32.xlu0 %v2270
  %v2272 = vpop.xlane.xlu0 %2271
  %v2273 = vsel %vm72, %v2241, 0.0
  %2274 = vadd.xlane.f32.xlu0 %v2273
  %v2275 = vpop.xlane.xlu0 %2274
  %v2276 = vsel %vm72, %v2242, 0.0
  %2277 = vadd.xlane.f32.xlu0 %v2276
  %v2278 = vpop.xlane.xlu0 %2277
  %v2279 = vsel %vm72, %v2243, 0.0
  %2280 = vadd.xlane.f32.xlu0 %v2279
  %v2281 = vpop.xlane.xlu0 %2280
  %v2282 = vsel %vm72, %v2244, 0.0
  %2283 = vadd.xlane.f32.xlu0 %v2282
  %v2284 = vpop.xlane.xlu0 %2283
  %v2285 = vsel %vm72, %v2245, 0.0
  %2286 = vadd.xlane.f32.xlu0 %v2285
  %v2287 = vpop.xlane.xlu0 %2286
  %v2288 = vsel %vm72, %v2246, 0.0
  %2289 = vadd.xlane.f32.xlu0 %v2288
  %v2290 = vpop.xlane.xlu0 %2289
  %v2291 = vsel %vm72, %v2247, 0.0
  %2292 = vadd.xlane.f32.xlu0 %v2291
  %v2293 = vpop.xlane.xlu0 %2292
  %v2294 = vsel %vm72, %v2248, 0.0
  %2295 = vadd.xlane.f32.xlu0 %v2294
  %v2296 = vpop.xlane.xlu0 %2295
  %v2297 = vsel %vm72, %v2249, 0.0
  %2298 = vadd.xlane.f32.xlu0 %v2297
  %v2299 = vpop.xlane.xlu0 %2298
  %v2300 = vsel %vm72, %v2250, 0.0
  %2301 = vadd.xlane.f32.xlu0 %v2300
  %v2302 = vpop.xlane.xlu0 %2301
  %v2303 = vsel %vm72, %v2251, 0.0
  %2304 = vadd.xlane.f32.xlu0 %v2303
  %v2305 = vpop.xlane.xlu0 %2304
  %v2306 = vsel %vm72, %v2252, 0.0
  %2307 = vadd.xlane.f32.xlu0 %v2306
  %v2308 = vpop.xlane.xlu0 %2307
  %v2309 = vsel %vm72, %v2253, 0.0
  %2310 = vadd.xlane.f32.xlu0 %v2309
  %v2311 = vpop.xlane.xlu0 %2310
  %v2312 = vsel %vm72, %v2254, 0.0
  %2313 = vadd.xlane.f32.xlu0 %v2312
  %v2314 = vpop.xlane.xlu0 %2313
  %v2315 = vsel %vm72, %v2255, 0.0
  %2316 = vadd.xlane.f32.xlu0 %v2315
  %v2317 = vpop.xlane.xlu0 %2316
  %v2318 = vsel %vm72, %v2256, 0.0
  %2319 = vadd.xlane.f32.xlu0 %v2318
  %v2320 = vpop.xlane.xlu0 %2319
  %v2321 = vsel %vm72, %v2257, 0.0
  %2322 = vadd.xlane.f32.xlu0 %v2321
  %v2323 = vpop.xlane.xlu0 %2322
  %v2324 = vsel %vm72, %v2258, 0.0
  %2325 = vadd.xlane.f32.xlu0 %v2324
  %v2326 = vpop.xlane.xlu0 %2325
  %v2327 = vsel %vm72, %v2259, 0.0
  %2328 = vadd.xlane.f32.xlu0 %v2327
  %v2329 = vpop.xlane.xlu0 %2328
  %v2330 = vsel %vm72, %v2260, 0.0
  %2331 = vadd.xlane.f32.xlu0 %v2330
  %v2332 = vpop.xlane.xlu0 %2331
  %v2333 = vmul.f32 %v2263, %v2188
  %v2334 = vmul.f32 %v2266, %v2188
  %v2335 = vmul.f32 %v2269, %v2188
  %v2336 = vmul.f32 %v2272, %v2188
  %v2337 = vmul.f32 %v2275, %v2188
  %v2338 = vmul.f32 %v2278, %v2188
  %v2339 = vmul.f32 %v2281, %v2188
  %v2340 = vmul.f32 %v2284, %v2188
  %v2341 = vmul.f32 %v2287, %v2188
  %v2342 = vmul.f32 %v2290, %v2188
  %v2343 = vmul.f32 %v2293, %v2188
  %v2344 = vmul.f32 %v2296, %v2188
  %v2345 = vmul.f32 %v2299, %v2188
  %v2346 = vmul.f32 %v2302, %v2188
  %v2347 = vmul.f32 %v2305, %v2188
  %v2348 = vmul.f32 %v2308, %v2188
  %v2349 = vmul.f32 %v2311, %v2188
  %v2350 = vmul.f32 %v2314, %v2188
  %v2351 = vmul.f32 %v2317, %v2188
  %v2352 = vmul.f32 %v2320, %v2188
  %v2353 = vmul.f32 %v2323, %v2188
  %v2354 = vmul.f32 %v2326, %v2188
  %v2355 = vmul.f32 %v2329, %v2188
  %v2356 = vmul.f32 %v2332, %v2188
  %v2357 = vadd.f32 %v2333, 1e-05
  %v2358 = vadd.f32 %v2334, 1e-05
  %v2359 = vadd.f32 %v2335, 1e-05
  %v2360 = vadd.f32 %v2336, 1e-05
  %v2361 = vadd.f32 %v2337, 1e-05
  %v2362 = vadd.f32 %v2338, 1e-05
  %v2363 = vadd.f32 %v2339, 1e-05
  %v2364 = vadd.f32 %v2340, 1e-05
  %v2365 = vadd.f32 %v2341, 1e-05
  %v2366 = vadd.f32 %v2342, 1e-05
  %v2367 = vadd.f32 %v2343, 1e-05
  %v2368 = vadd.f32 %v2344, 1e-05
  %v2369 = vadd.f32 %v2345, 1e-05
  %v2370 = vadd.f32 %v2346, 1e-05
  %v2371 = vadd.f32 %v2347, 1e-05
  %v2372 = vadd.f32 %v2348, 1e-05
  %v2373 = vadd.f32 %v2349, 1e-05
  %v2374 = vadd.f32 %v2350, 1e-05
  %v2375 = vadd.f32 %v2351, 1e-05
  %v2376 = vadd.f32 %v2352, 1e-05
  %v2377 = vadd.f32 %v2353, 1e-05
  %v2378 = vadd.f32 %v2354, 1e-05
  %v2379 = vadd.f32 %v2355, 1e-05
  %v2380 = vadd.f32 %v2356, 1e-05
  %v2381 = vrsqrt.pop %v2357
  %v2382 = vmul.f32 %v2381, %v2357
  %v2383 = vmul.f32 %v2382, %v2381
  %v2384 = vmul.f32 0.5, %v2383
  %v2385 = vsub.f32 1.5, %v2384
  %v2386 = vmul.f32 %v2381, %v2385
  %vm2387 = vweird.f32 %v2357
  %vm2388 = vweird.f32 %v2381
  %vm2389 = vmor %vm2387, %vm2388
  %v2390 = vsel %vm2389, %v2381, %v2386
  %v2391 = vrsqrt.pop %v2358
  %v2392 = vmul.f32 %v2391, %v2358
  %v2393 = vmul.f32 %v2392, %v2391
  %v2394 = vmul.f32 0.5, %v2393
  %v2395 = vsub.f32 1.5, %v2394
  %v2396 = vmul.f32 %v2391, %v2395
  %vm2397 = vweird.f32 %v2358
  %vm2398 = vweird.f32 %v2391
  %vm2399 = vmor %vm2397, %vm2398
  %v2400 = vsel %vm2399, %v2391, %v2396
  %v2401 = vrsqrt.pop %v2359
  %v2402 = vmul.f32 %v2401, %v2359
  %v2403 = vmul.f32 %v2402, %v2401
  %v2404 = vmul.f32 0.5, %v2403
  %v2405 = vsub.f32 1.5, %v2404
  %v2406 = vmul.f32 %v2401, %v2405
  %vm2407 = vweird.f32 %v2359
  %vm2408 = vweird.f32 %v2401
  %vm2409 = vmor %vm2407, %vm2408
  %v2410 = vsel %vm2409, %v2401, %v2406
  %v2411 = vrsqrt.pop %v2360
  %v2412 = vmul.f32 %v2411, %v2360
  %v2413 = vmul.f32 %v2412, %v2411
  %v2414 = vmul.f32 0.5, %v2413
  %v2415 = vsub.f32 1.5, %v2414
  %v2416 = vmul.f32 %v2411, %v2415
  %vm2417 = vweird.f32 %v2360
  %vm2418 = vweird.f32 %v2411
  %vm2419 = vmor %vm2417, %vm2418
  %v2420 = vsel %vm2419, %v2411, %v2416
  %v2421 = vrsqrt.pop %v2361
  %v2422 = vmul.f32 %v2421, %v2361
  %v2423 = vmul.f32 %v2422, %v2421
  %v2424 = vmul.f32 0.5, %v2423
  %v2425 = vsub.f32 1.5, %v2424
  %v2426 = vmul.f32 %v2421, %v2425
  %vm2427 = vweird.f32 %v2361
  %vm2428 = vweird.f32 %v2421
  %vm2429 = vmor %vm2427, %vm2428
  %v2430 = vsel %vm2429, %v2421, %v2426
  %v2431 = vrsqrt.pop %v2362
  %v2432 = vmul.f32 %v2431, %v2362
  %v2433 = vmul.f32 %v2432, %v2431
  %v2434 = vmul.f32 0.5, %v2433
  %v2435 = vsub.f32 1.5, %v2434
  %v2436 = vmul.f32 %v2431, %v2435
  %vm2437 = vweird.f32 %v2362
  %vm2438 = vweird.f32 %v2431
  %vm2439 = vmor %vm2437, %vm2438
  %v2440 = vsel %vm2439, %v2431, %v2436
  %v2441 = vrsqrt.pop %v2363
  %v2442 = vmul.f32 %v2441, %v2363
  %v2443 = vmul.f32 %v2442, %v2441
  %v2444 = vmul.f32 0.5, %v2443
  %v2445 = vsub.f32 1.5, %v2444
  %v2446 = vmul.f32 %v2441, %v2445
  %vm2447 = vweird.f32 %v2363
  %vm2448 = vweird.f32 %v2441
  %vm2449 = vmor %vm2447, %vm2448
  %v2450 = vsel %vm2449, %v2441, %v2446
  %v2451 = vrsqrt.pop %v2364
  %v2452 = vmul.f32 %v2451, %v2364
  %v2453 = vmul.f32 %v2452, %v2451
  %v2454 = vmul.f32 0.5, %v2453
  %v2455 = vsub.f32 1.5, %v2454
  %v2456 = vmul.f32 %v2451, %v2455
  %vm2457 = vweird.f32 %v2364
  %vm2458 = vweird.f32 %v2451
  %vm2459 = vmor %vm2457, %vm2458
  %v2460 = vsel %vm2459, %v2451, %v2456
  %v2461 = vrsqrt.pop %v2365
  %v2462 = vmul.f32 %v2461, %v2365
  %v2463 = vmul.f32 %v2462, %v2461
  %v2464 = vmul.f32 0.5, %v2463
  %v2465 = vsub.f32 1.5, %v2464
  %v2466 = vmul.f32 %v2461, %v2465
  %vm2467 = vweird.f32 %v2365
  %vm2468 = vweird.f32 %v2461
  %vm2469 = vmor %vm2467, %vm2468
  %v2470 = vsel %vm2469, %v2461, %v2466
  %v2471 = vrsqrt.pop %v2366
  %v2472 = vmul.f32 %v2471, %v2366
  %v2473 = vmul.f32 %v2472, %v2471
  %v2474 = vmul.f32 0.5, %v2473
  %v2475 = vsub.f32 1.5, %v2474
  %v2476 = vmul.f32 %v2471, %v2475
  %vm2477 = vweird.f32 %v2366
  %vm2478 = vweird.f32 %v2471
  %vm2479 = vmor %vm2477, %vm2478
  %v2480 = vsel %vm2479, %v2471, %v2476
  %v2481 = vrsqrt.pop %v2367
  %v2482 = vmul.f32 %v2481, %v2367
  %v2483 = vmul.f32 %v2482, %v2481
  %v2484 = vmul.f32 0.5, %v2483
  %v2485 = vsub.f32 1.5, %v2484
  %v2486 = vmul.f32 %v2481, %v2485
  %vm2487 = vweird.f32 %v2367
  %vm2488 = vweird.f32 %v2481
  %vm2489 = vmor %vm2487, %vm2488
  %v2490 = vsel %vm2489, %v2481, %v2486
  %v2491 = vrsqrt.pop %v2368
  %v2492 = vmul.f32 %v2491, %v2368
  %v2493 = vmul.f32 %v2492, %v2491
  %v2494 = vmul.f32 0.5, %v2493
  %v2495 = vsub.f32 1.5, %v2494
  %v2496 = vmul.f32 %v2491, %v2495
  %vm2497 = vweird.f32 %v2368
  %vm2498 = vweird.f32 %v2491
  %vm2499 = vmor %vm2497, %vm2498
  %v2500 = vsel %vm2499, %v2491, %v2496
  %v2501 = vrsqrt.pop %v2369
  %v2502 = vmul.f32 %v2501, %v2369
  %v2503 = vmul.f32 %v2502, %v2501
  %v2504 = vmul.f32 0.5, %v2503
  %v2505 = vsub.f32 1.5, %v2504
  %v2506 = vmul.f32 %v2501, %v2505
  %vm2507 = vweird.f32 %v2369
  %vm2508 = vweird.f32 %v2501
  %vm2509 = vmor %vm2507, %vm2508
  %v2510 = vsel %vm2509, %v2501, %v2506
  %v2511 = vrsqrt.pop %v2370
  %v2512 = vmul.f32 %v2511, %v2370
  %v2513 = vmul.f32 %v2512, %v2511
  %v2514 = vmul.f32 0.5, %v2513
  %v2515 = vsub.f32 1.5, %v2514
  %v2516 = vmul.f32 %v2511, %v2515
  %vm2517 = vweird.f32 %v2370
  %vm2518 = vweird.f32 %v2511
  %vm2519 = vmor %vm2517, %vm2518
  %v2520 = vsel %vm2519, %v2511, %v2516
  %v2521 = vrsqrt.pop %v2371
  %v2522 = vmul.f32 %v2521, %v2371
  %v2523 = vmul.f32 %v2522, %v2521
  %v2524 = vmul.f32 0.5, %v2523
  %v2525 = vsub.f32 1.5, %v2524
  %v2526 = vmul.f32 %v2521, %v2525
  %vm2527 = vweird.f32 %v2371
  %vm2528 = vweird.f32 %v2521
  %vm2529 = vmor %vm2527, %vm2528
  %v2530 = vsel %vm2529, %v2521, %v2526
  %v2531 = vrsqrt.pop %v2372
  %v2532 = vmul.f32 %v2531, %v2372
  %v2533 = vmul.f32 %v2532, %v2531
  %v2534 = vmul.f32 0.5, %v2533
  %v2535 = vsub.f32 1.5, %v2534
  %v2536 = vmul.f32 %v2531, %v2535
  %vm2537 = vweird.f32 %v2372
  %vm2538 = vweird.f32 %v2531
  %vm2539 = vmor %vm2537, %vm2538
  %v2540 = vsel %vm2539, %v2531, %v2536
  %v2541 = vrsqrt.pop %v2373
  %v2542 = vmul.f32 %v2541, %v2373
  %v2543 = vmul.f32 %v2542, %v2541
  %v2544 = vmul.f32 0.5, %v2543
  %v2545 = vsub.f32 1.5, %v2544
  %v2546 = vmul.f32 %v2541, %v2545
  %vm2547 = vweird.f32 %v2373
  %vm2548 = vweird.f32 %v2541
  %vm2549 = vmor %vm2547, %vm2548
  %v2550 = vsel %vm2549, %v2541, %v2546
  %v2551 = vrsqrt.pop %v2374
  %v2552 = vmul.f32 %v2551, %v2374
  %v2553 = vmul.f32 %v2552, %v2551
  %v2554 = vmul.f32 0.5, %v2553
  %v2555 = vsub.f32 1.5, %v2554
  %v2556 = vmul.f32 %v2551, %v2555
  %vm2557 = vweird.f32 %v2374
  %vm2558 = vweird.f32 %v2551
  %vm2559 = vmor %vm2557, %vm2558
  %v2560 = vsel %vm2559, %v2551, %v2556
  %v2561 = vrsqrt.pop %v2375
  %v2562 = vmul.f32 %v2561, %v2375
  %v2563 = vmul.f32 %v2562, %v2561
  %v2564 = vmul.f32 0.5, %v2563
  %v2565 = vsub.f32 1.5, %v2564
  %v2566 = vmul.f32 %v2561, %v2565
  %vm2567 = vweird.f32 %v2375
  %vm2568 = vweird.f32 %v2561
  %vm2569 = vmor %vm2567, %vm2568
  %v2570 = vsel %vm2569, %v2561, %v2566
  %v2571 = vrsqrt.pop %v2376
  %v2572 = vmul.f32 %v2571, %v2376
  %v2573 = vmul.f32 %v2572, %v2571
  %v2574 = vmul.f32 0.5, %v2573
  %v2575 = vsub.f32 1.5, %v2574
  %v2576 = vmul.f32 %v2571, %v2575
  %vm2577 = vweird.f32 %v2376
  %vm2578 = vweird.f32 %v2571
  %vm2579 = vmor %vm2577, %vm2578
  %v2580 = vsel %vm2579, %v2571, %v2576
  %v2581 = vrsqrt.pop %v2377
  %v2582 = vmul.f32 %v2581, %v2377
  %v2583 = vmul.f32 %v2582, %v2581
  %v2584 = vmul.f32 0.5, %v2583
  %v2585 = vsub.f32 1.5, %v2584
  %v2586 = vmul.f32 %v2581, %v2585
  %vm2587 = vweird.f32 %v2377
  %vm2588 = vweird.f32 %v2581
  %vm2589 = vmor %vm2587, %vm2588
  %v2590 = vsel %vm2589, %v2581, %v2586
  %v2591 = vrsqrt.pop %v2378
  %v2592 = vmul.f32 %v2591, %v2378
  %v2593 = vmul.f32 %v2592, %v2591
  %v2594 = vmul.f32 0.5, %v2593
  %v2595 = vsub.f32 1.5, %v2594
  %v2596 = vmul.f32 %v2591, %v2595
  %vm2597 = vweird.f32 %v2378
  %vm2598 = vweird.f32 %v2591
  %vm2599 = vmor %vm2597, %vm2598
  %v2600 = vsel %vm2599, %v2591, %v2596
  %v2601 = vrsqrt.pop %v2379
  %v2602 = vmul.f32 %v2601, %v2379
  %v2603 = vmul.f32 %v2602, %v2601
  %v2604 = vmul.f32 0.5, %v2603
  %v2605 = vsub.f32 1.5, %v2604
  %v2606 = vmul.f32 %v2601, %v2605
  %vm2607 = vweird.f32 %v2379
  %vm2608 = vweird.f32 %v2601
  %vm2609 = vmor %vm2607, %vm2608
  %v2610 = vsel %vm2609, %v2601, %v2606
  %v2611 = vrsqrt.pop %v2380
  %v2612 = vmul.f32 %v2611, %v2380
  %v2613 = vmul.f32 %v2612, %v2611
  %v2614 = vmul.f32 0.5, %v2613
  %v2615 = vsub.f32 1.5, %v2614
  %v2616 = vmul.f32 %v2611, %v2615
  %vm2617 = vweird.f32 %v2380
  %vm2618 = vweird.f32 %v2611
  %vm2619 = vmor %vm2617, %vm2618
  %v2620 = vsel %vm2619, %v2611, %v2616
  %v2621 = vmul.f32 %v2213, %v2390
  %v2622 = vmul.f32 %v2214, %v2400
  %v2623 = vmul.f32 %v2215, %v2410
  %v2624 = vmul.f32 %v2216, %v2420
  %v2625 = vmul.f32 %v2217, %v2430
  %v2626 = vmul.f32 %v2218, %v2440
  %v2627 = vmul.f32 %v2219, %v2450
  %v2628 = vmul.f32 %v2220, %v2460
  %v2629 = vmul.f32 %v2221, %v2470
  %v2630 = vmul.f32 %v2222, %v2480
  %v2631 = vmul.f32 %v2223, %v2490
  %v2632 = vmul.f32 %v2224, %v2500
  %v2633 = vmul.f32 %v2225, %v2510
  %v2634 = vmul.f32 %v2226, %v2520
  %v2635 = vmul.f32 %v2227, %v2530
  %v2636 = vmul.f32 %v2228, %v2540
  %v2637 = vmul.f32 %v2229, %v2550
  %v2638 = vmul.f32 %v2230, %v2560
  %v2639 = vmul.f32 %v2231, %v2570
  %v2640 = vmul.f32 %v2232, %v2580
  %v2641 = vmul.f32 %v2233, %v2590
  %v2642 = vmul.f32 %v2234, %v2600
  %v2643 = vmul.f32 %v2235, %v2610
  %v2644 = vmul.f32 %v2236, %v2620
  %v2646 = vperm.slane %v143, 0
  %v2648 = vmul.f32 %v2621, %v2646
  %v2649 = vmul.f32 %v2622, %v2646
  %v2650 = vmul.f32 %v2623, %v2646
  %v2651 = vmul.f32 %v2624, %v2646
  %v2652 = vmul.f32 %v2625, %v2646
  %v2653 = vmul.f32 %v2626, %v2646
  %v2654 = vmul.f32 %v2627, %v2646
  %v2655 = vmul.f32 %v2628, %v2646
  %v2656 = vmul.f32 %v2629, %v2646
  %v2657 = vmul.f32 %v2630, %v2646
  %v2658 = vmul.f32 %v2631, %v2646
  %v2659 = vmul.f32 %v2632, %v2646
  %v2660 = vmul.f32 %v2633, %v2646
  %v2661 = vmul.f32 %v2634, %v2646
  %v2662 = vmul.f32 %v2635, %v2646
  %v2663 = vmul.f32 %v2636, %v2646
  %v2664 = vmul.f32 %v2637, %v2646
  %v2665 = vmul.f32 %v2638, %v2646
  %v2666 = vmul.f32 %v2639, %v2646
  %v2667 = vmul.f32 %v2640, %v2646
  %v2668 = vmul.f32 %v2641, %v2646
  %v2669 = vmul.f32 %v2642, %v2646
  %v2670 = vmul.f32 %v2643, %v2646
  %v2671 = vmul.f32 %v2644, %v2646
  %v2673 = vperm.slane %v144, 0
  %v2675 = vadd.f32 %v2648, %v2673
  %v2676 = vadd.f32 %v2649, %v2673
  %v2677 = vadd.f32 %v2650, %v2673
  %v2678 = vadd.f32 %v2651, %v2673
  %v2679 = vadd.f32 %v2652, %v2673
  %v2680 = vadd.f32 %v2653, %v2673
  %v2681 = vadd.f32 %v2654, %v2673
  %v2682 = vadd.f32 %v2655, %v2673
  %v2683 = vadd.f32 %v2656, %v2673
  %v2684 = vadd.f32 %v2657, %v2673
  %v2685 = vadd.f32 %v2658, %v2673
  %v2686 = vadd.f32 %v2659, %v2673
  %v2687 = vadd.f32 %v2660, %v2673
  %v2688 = vadd.f32 %v2661, %v2673
  %v2689 = vadd.f32 %v2662, %v2673
  %v2690 = vadd.f32 %v2663, %v2673
  %v2691 = vadd.f32 %v2664, %v2673
  %v2692 = vadd.f32 %v2665, %v2673
  %v2693 = vadd.f32 %v2666, %v2673
  %v2694 = vadd.f32 %v2667, %v2673
  %v2695 = vadd.f32 %v2668, %v2673
  %v2696 = vadd.f32 %v2669, %v2673
  %v2697 = vadd.f32 %v2670, %v2673
  %v2698 = vadd.f32 %v2671, %v2673
  %2699 = vst.msk [vmem:[#allocation2] sm:$0xff] %vm72, %v2675
  %2700 = vst.msk [vmem:[#allocation2 + $0x8] sm:$0xff] %vm72, %v2676
  %2701 = vst.msk [vmem:[#allocation2 + $0x10] sm:$0xff] %vm72, %v2677
  %2702 = vst.msk [vmem:[#allocation2 + $0x18] sm:$0xff] %vm72, %v2678
  %2703 = vst.msk [vmem:[#allocation2 + $0x20] sm:$0xff] %vm72, %v2679
  %2704 = vst.msk [vmem:[#allocation2 + $0x28] sm:$0xff] %vm72, %v2680
  %2705 = vst.msk [vmem:[#allocation2 + $0x30] sm:$0xff] %vm72, %v2681
  %2706 = vst.msk [vmem:[#allocation2 + $0x38] sm:$0xff] %vm72, %v2682
  %2707 = vst.msk [vmem:[#allocation2 + $0x40] sm:$0xff] %vm72, %v2683
  %2708 = vst.msk [vmem:[#allocation2 + $0x48] sm:$0xff] %vm72, %v2684
  %2709 = vst.msk [vmem:[#allocation2 + $0x50] sm:$0xff] %vm72, %v2685
  %2710 = vst.msk [vmem:[#allocation2 + $0x58] sm:$0xff] %vm72, %v2686
  %2711 = vst.msk [vmem:[#allocation2 + $0x60] sm:$0xff] %vm72, %v2687
  %2712 = vst.msk [vmem:[#allocation2 + $0x68] sm:$0xff] %vm72, %v2688
  %2713 = vst.msk [vmem:[#allocation2 + $0x70] sm:$0xff] %vm72, %v2689
  %2714 = vst.msk [vmem:[#allocation2 + $0x78] sm:$0xff] %vm72, %v2690
  %2715 = vst.msk [vmem:[#allocation2 + $0x80] sm:$0xff] %vm72, %v2691
  %2716 = vst.msk [vmem:[#allocation2 + $0x88] sm:$0xff] %vm72, %v2692
  %2717 = vst.msk [vmem:[#allocation2 + $0x90] sm:$0xff] %vm72, %v2693
  %2718 = vst.msk [vmem:[#allocation2 + $0x98] sm:$0xff] %vm72, %v2694
  %2719 = vst.msk [vmem:[#allocation2 + $0xa0] sm:$0xff] %vm72, %v2695
  %2720 = vst.msk [vmem:[#allocation2 + $0xa8] sm:$0xff] %vm72, %v2696
  %2721 = vst.msk [vmem:[#allocation2 + $0xb0] sm:$0xff] %vm72, %v2697
  %2722 = vst.msk [vmem:[#allocation2 + $0xb8] sm:$0xff] %vm72, %v2698
  %v2723 = vld [vmem:[#allocation2] sm:$0xff]
  %v2724 = vld [vmem:[#allocation2 + $0x8] sm:$0xff]
  %v2725 = vld [vmem:[#allocation2 + $0x10] sm:$0xff]
  %v2726 = vld [vmem:[#allocation2 + $0x18] sm:$0xff]
  %v2727 = vld [vmem:[#allocation2 + $0x20] sm:$0xff]
  %v2728 = vld [vmem:[#allocation2 + $0x28] sm:$0xff]
  %v2729 = vld [vmem:[#allocation2 + $0x30] sm:$0xff]
  %v2730 = vld [vmem:[#allocation2 + $0x38] sm:$0xff]
  %v2731 = vld [vmem:[#allocation2 + $0x40] sm:$0xff]
  %v2732 = vld [vmem:[#allocation2 + $0x48] sm:$0xff]
  %v2733 = vld [vmem:[#allocation2 + $0x50] sm:$0xff]
  %v2734 = vld [vmem:[#allocation2 + $0x58] sm:$0xff]
  %v2735 = vld [vmem:[#allocation2 + $0x60] sm:$0xff]
  %v2736 = vld [vmem:[#allocation2 + $0x68] sm:$0xff]
  %v2737 = vld [vmem:[#allocation2 + $0x70] sm:$0xff]
  %v2738 = vld [vmem:[#allocation2 + $0x78] sm:$0xff]
  %v2739 = vld [vmem:[#allocation2 + $0x80] sm:$0xff]
  %v2740 = vld [vmem:[#allocation2 + $0x88] sm:$0xff]
  %v2741 = vld [vmem:[#allocation2 + $0x90] sm:$0xff]
  %v2742 = vld [vmem:[#allocation2 + $0x98] sm:$0xff]
  %v2743 = vld [vmem:[#allocation2 + $0xa0] sm:$0xff]
  %v2744 = vld [vmem:[#allocation2 + $0xa8] sm:$0xff]
  %v2745 = vld [vmem:[#allocation2 + $0xb0] sm:$0xff]
  %v2746 = vld [vmem:[#allocation2 + $0xb8] sm:$0xff]
  %v2748 = vperm.slane %v151, 0
  %v2751 = vsel %vm72, %v2723, 0
  %v2754 = vsel %vm72, %v2724, 0
  %v2757 = vsel %vm72, %v2725, 0
  %v2760 = vsel %vm72, %v2726, 0
  %v2763 = vsel %vm72, %v2727, 0
  %v2766 = vsel %vm72, %v2728, 0
  %v2769 = vsel %vm72, %v2729, 0
  %v2772 = vsel %vm72, %v2730, 0
  %v2775 = vsel %vm72, %v2731, 0
  %v2778 = vsel %vm72, %v2732, 0
  %v2781 = vsel %vm72, %v2733, 0
  %v2784 = vsel %vm72, %v2734, 0
  %v2787 = vsel %vm72, %v2735, 0
  %v2790 = vsel %vm72, %v2736, 0
  %v2793 = vsel %vm72, %v2737, 0
  %v2796 = vsel %vm72, %v2738, 0
  %v2799 = vsel %vm72, %v2739, 0
  %v2802 = vsel %vm72, %v2740, 0
  %v2805 = vsel %vm72, %v2741, 0
  %v2808 = vsel %vm72, %v2742, 0
  %v2811 = vsel %vm72, %v2743, 0
  %v2814 = vsel %vm72, %v2744, 0
  %v2817 = vsel %vm72, %v2745, 0
  %v2820 = vsel %vm72, %v2746, 0
  %2822 = vmatpush.msra.mxu0 0.0
  %2823 = vmatpush.msra.mxu0 0.0
  %2824 = vmatpush.msra.mxu0 0.0
  %2825 = vmatpush.msra.mxu0 0.0
  %2826 = vmatpush.msra.mxu0 0.0
  %2827 = vmatpush.msra.mxu0 0.0
  %2828 = vmatpush.msra.mxu0 0.0
  %2829 = vmatpush.msra.mxu0 0.0
  %2830 = vmatpush.msra.mxu0 0.0
  %2831 = vmatpush.msra.mxu0 0.0
  %2832 = vmatpush.msra.mxu0 0.0
  %2833 = vmatpush.msra.mxu0 0.0
  %2834 = vmatpush.msra.mxu0 %v150
  %2835 = vmatpush.msra.mxu0 %v149
  %2836 = vmatpush.msra.mxu0 %v148
  %2837 = vmatpush.msra.mxu0 %v147
  %2838 = vmatmul.f32.gmra.mxu0 %v2751
  %v2839 = vpop.f32.mrf.mxu0
  %v2840 = vadd.f32 %v2748, %v2839
  %2841 = vmatmul.f32.gmra.mxu0 %v2754
  %v2842 = vpop.f32.mrf.mxu0
  %v2843 = vadd.f32 %v2748, %v2842
  %2844 = vmatmul.f32.gmra.mxu0 %v2757
  %v2845 = vpop.f32.mrf.mxu0
  %v2846 = vadd.f32 %v2748, %v2845
  %2847 = vmatmul.f32.gmra.mxu0 %v2760
  %v2848 = vpop.f32.mrf.mxu0
  %v2849 = vadd.f32 %v2748, %v2848
  %2850 = vmatmul.f32.gmra.mxu0 %v2763
  %v2851 = vpop.f32.mrf.mxu0
  %v2852 = vadd.f32 %v2748, %v2851
  %2853 = vmatmul.f32.gmra.mxu0 %v2766
  %v2854 = vpop.f32.mrf.mxu0
  %v2855 = vadd.f32 %v2748, %v2854
  %2856 = vmatmul.f32.gmra.mxu0 %v2769
  %v2857 = vpop.f32.mrf.mxu0
  %v2858 = vadd.f32 %v2748, %v2857
  %2859 = vmatmul.f32.gmra.mxu0 %v2772
  %v2860 = vpop.f32.mrf.mxu0
  %v2861 = vadd.f32 %v2748, %v2860
  %2862 = vmatmul.f32.gmra.mxu0 %v2775
  %v2863 = vpop.f32.mrf.mxu0
  %v2864 = vadd.f32 %v2748, %v2863
  %2865 = vmatmul.f32.gmra.mxu0 %v2778
  %v2866 = vpop.f32.mrf.mxu0
  %v2867 = vadd.f32 %v2748, %v2866
  %2868 = vmatmul.f32.gmra.mxu0 %v2781
  %v2869 = vpop.f32.mrf.mxu0
  %v2870 = vadd.f32 %v2748, %v2869
  %2871 = vmatmul.f32.gmra.mxu0 %v2784
  %v2872 = vpop.f32.mrf.mxu0
  %v2873 = vadd.f32 %v2748, %v2872
  %2874 = vmatmul.f32.gmra.mxu0 %v2787
  %v2875 = vpop.f32.mrf.mxu0
  %v2876 = vadd.f32 %v2748, %v2875
  %2877 = vmatmul.f32.gmra.mxu0 %v2790
  %v2878 = vpop.f32.mrf.mxu0
  %v2879 = vadd.f32 %v2748, %v2878
  %2880 = vmatmul.f32.gmra.mxu0 %v2793
  %v2881 = vpop.f32.mrf.mxu0
  %v2882 = vadd.f32 %v2748, %v2881
  %2883 = vmatmul.f32.gmra.mxu0 %v2796
  %v2884 = vpop.f32.mrf.mxu0
  %v2885 = vadd.f32 %v2748, %v2884
  %2886 = vmatmul.f32.gmra.mxu0 %v2799
  %v2887 = vpop.f32.mrf.mxu0
  %v2888 = vadd.f32 %v2748, %v2887
  %2889 = vmatmul.f32.gmra.mxu0 %v2802
  %v2890 = vpop.f32.mrf.mxu0
  %v2891 = vadd.f32 %v2748, %v2890
  %2892 = vmatmul.f32.gmra.mxu0 %v2805
  %v2893 = vpop.f32.mrf.mxu0
  %v2894 = vadd.f32 %v2748, %v2893
  %2895 = vmatmul.f32.gmra.mxu0 %v2808
  %v2896 = vpop.f32.mrf.mxu0
  %v2897 = vadd.f32 %v2748, %v2896
  %2898 = vmatmul.f32.gmra.mxu0 %v2811
  %v2899 = vpop.f32.mrf.mxu0
  %v2900 = vadd.f32 %v2748, %v2899
  %2901 = vmatmul.f32.gmra.mxu0 %v2814
  %v2902 = vpop.f32.mrf.mxu0
  %v2903 = vadd.f32 %v2748, %v2902
  %2904 = vmatmul.f32.gmra.mxu0 %v2817
  %v2905 = vpop.f32.mrf.mxu0
  %v2906 = vadd.f32 %v2748, %v2905
  %2907 = vmatmul.f32.gmra.mxu0 %v2820
  %v2908 = vpop.f32.mrf.mxu0
  %v2909 = vadd.f32 %v2748, %v2908
  %2910 = vdwg.mxu0
  %v2911 = vmax.f32 %v2840, 0.0
  %v2912 = vmax.f32 %v2843, 0.0
  %v2913 = vmax.f32 %v2846, 0.0
  %v2914 = vmax.f32 %v2849, 0.0
  %v2915 = vmax.f32 %v2852, 0.0
  %v2916 = vmax.f32 %v2855, 0.0
  %v2917 = vmax.f32 %v2858, 0.0
  %v2918 = vmax.f32 %v2861, 0.0
  %v2919 = vmax.f32 %v2864, 0.0
  %v2920 = vmax.f32 %v2867, 0.0
  %v2921 = vmax.f32 %v2870, 0.0
  %v2922 = vmax.f32 %v2873, 0.0
  %v2923 = vmax.f32 %v2876, 0.0
  %v2924 = vmax.f32 %v2879, 0.0
  %v2925 = vmax.f32 %v2882, 0.0
  %v2926 = vmax.f32 %v2885, 0.0
  %v2927 = vmax.f32 %v2888, 0.0
  %v2928 = vmax.f32 %v2891, 0.0
  %v2929 = vmax.f32 %v2894, 0.0
  %v2930 = vmax.f32 %v2897, 0.0
  %v2931 = vmax.f32 %v2900, 0.0
  %v2932 = vmax.f32 %v2903, 0.0
  %v2933 = vmax.f32 %v2906, 0.0
  %v2934 = vmax.f32 %v2909, 0.0
  %2935 = vst [vmem:[#allocation5] sm:$0xff] %v2911
  %2936 = vst [vmem:[#allocation5 + $0x8] sm:$0xff] %v2912
  %2937 = vst [vmem:[#allocation5 + $0x10] sm:$0xff] %v2913
  %2938 = vst [vmem:[#allocation5 + $0x18] sm:$0xff] %v2914
  %2939 = vst [vmem:[#allocation5 + $0x20] sm:$0xff] %v2915
  %2940 = vst [vmem:[#allocation5 + $0x28] sm:$0xff] %v2916
  %2941 = vst [vmem:[#allocation5 + $0x30] sm:$0xff] %v2917
  %2942 = vst [vmem:[#allocation5 + $0x38] sm:$0xff] %v2918
  %2943 = vst [vmem:[#allocation5 + $0x40] sm:$0xff] %v2919
  %2944 = vst [vmem:[#allocation5 + $0x48] sm:$0xff] %v2920
  %2945 = vst [vmem:[#allocation5 + $0x50] sm:$0xff] %v2921
  %2946 = vst [vmem:[#allocation5 + $0x58] sm:$0xff] %v2922
  %2947 = vst [vmem:[#allocation5 + $0x60] sm:$0xff] %v2923
  %2948 = vst [vmem:[#allocation5 + $0x68] sm:$0xff] %v2924
  %2949 = vst [vmem:[#allocation5 + $0x70] sm:$0xff] %v2925
  %2950 = vst [vmem:[#allocation5 + $0x78] sm:$0xff] %v2926
  %2951 = vst [vmem:[#allocation5 + $0x80] sm:$0xff] %v2927
  %2952 = vst [vmem:[#allocation5 + $0x88] sm:$0xff] %v2928
  %2953 = vst [vmem:[#allocation5 + $0x90] sm:$0xff] %v2929
  %2954 = vst [vmem:[#allocation5 + $0x98] sm:$0xff] %v2930
  %2955 = vst [vmem:[#allocation5 + $0xa0] sm:$0xff] %v2931
  %2956 = vst [vmem:[#allocation5 + $0xa8] sm:$0xff] %v2932
  %2957 = vst [vmem:[#allocation5 + $0xb0] sm:$0xff] %v2933
  %2958 = vst [vmem:[#allocation5 + $0xb8] sm:$0xff] %v2934
  %v2959 = vld [vmem:[#allocation5] sm:$0xff]
  %v2960 = vld [vmem:[#allocation5 + $0x8] sm:$0xff]
  %v2961 = vld [vmem:[#allocation5 + $0x10] sm:$0xff]
  %v2962 = vld [vmem:[#allocation5 + $0x18] sm:$0xff]
  %v2963 = vld [vmem:[#allocation5 + $0x20] sm:$0xff]
  %v2964 = vld [vmem:[#allocation5 + $0x28] sm:$0xff]
  %v2965 = vld [vmem:[#allocation5 + $0x30] sm:$0xff]
  %v2966 = vld [vmem:[#allocation5 + $0x38] sm:$0xff]
  %v2967 = vld [vmem:[#allocation5 + $0x40] sm:$0xff]
  %v2968 = vld [vmem:[#allocation5 + $0x48] sm:$0xff]
  %v2969 = vld [vmem:[#allocation5 + $0x50] sm:$0xff]
  %v2970 = vld [vmem:[#allocation5 + $0x58] sm:$0xff]
  %v2971 = vld [vmem:[#allocation5 + $0x60] sm:$0xff]
  %v2972 = vld [vmem:[#allocation5 + $0x68] sm:$0xff]
  %v2973 = vld [vmem:[#allocation5 + $0x70] sm:$0xff]
  %v2974 = vld [vmem:[#allocation5 + $0x78] sm:$0xff]
  %v2975 = vld [vmem:[#allocation5 + $0x80] sm:$0xff]
  %v2976 = vld [vmem:[#allocation5 + $0x88] sm:$0xff]
  %v2977 = vld [vmem:[#allocation5 + $0x90] sm:$0xff]
  %v2978 = vld [vmem:[#allocation5 + $0x98] sm:$0xff]
  %v2979 = vld [vmem:[#allocation5 + $0xa0] sm:$0xff]
  %v2980 = vld [vmem:[#allocation5 + $0xa8] sm:$0xff]
  %v2981 = vld [vmem:[#allocation5 + $0xb0] sm:$0xff]
  %v2982 = vld [vmem:[#allocation5 + $0xb8] sm:$0xff]
  %v2984 = vperm.slane %v168, 0
  %2986 = vmatpush.msra.mxu0 %v167
  %2987 = vmatpush.msra.mxu0 %v166
  %2988 = vmatpush.msra.mxu0 %v165
  %2989 = vmatpush.msra.mxu0 %v164
  %2990 = vmatpush.msra.mxu0 %v163
  %2991 = vmatpush.msra.mxu0 %v162
  %2992 = vmatpush.msra.mxu0 %v161
  %2993 = vmatpush.msra.mxu0 %v160
  %2994 = vmatpush.msra.mxu0 %v159
  %2995 = vmatpush.msra.mxu0 %v158
  %2996 = vmatpush.msra.mxu0 %v157
  %2997 = vmatpush.msra.mxu0 %v156
  %2998 = vmatpush.msra.mxu0 %v155
  %2999 = vmatpush.msra.mxu0 %v154
  %3000 = vmatpush.msra.mxu0 %v153
  %3001 = vmatpush.msra.mxu0 %v152
  %3002 = vmatmul.f32.gmra.mxu0 %v2959
  %v3003 = vpop.f32.mrf.mxu0
  %v3004 = vadd.f32 %v2984, %v3003
  %3005 = vmatmul.f32.gmra.mxu0 %v2960
  %v3006 = vpop.f32.mrf.mxu0
  %v3007 = vadd.f32 %v2984, %v3006
  %3008 = vmatmul.f32.gmra.mxu0 %v2961
  %v3009 = vpop.f32.mrf.mxu0
  %v3010 = vadd.f32 %v2984, %v3009
  %3011 = vmatmul.f32.gmra.mxu0 %v2962
  %v3012 = vpop.f32.mrf.mxu0
  %v3013 = vadd.f32 %v2984, %v3012
  %3014 = vmatmul.f32.gmra.mxu0 %v2963
  %v3015 = vpop.f32.mrf.mxu0
  %v3016 = vadd.f32 %v2984, %v3015
  %3017 = vmatmul.f32.gmra.mxu0 %v2964
  %v3018 = vpop.f32.mrf.mxu0
  %v3019 = vadd.f32 %v2984, %v3018
  %3020 = vmatmul.f32.gmra.mxu0 %v2965
  %v3021 = vpop.f32.mrf.mxu0
  %v3022 = vadd.f32 %v2984, %v3021
  %3023 = vmatmul.f32.gmra.mxu0 %v2966
  %v3024 = vpop.f32.mrf.mxu0
  %v3025 = vadd.f32 %v2984, %v3024
  %3026 = vmatmul.f32.gmra.mxu0 %v2967
  %v3027 = vpop.f32.mrf.mxu0
  %v3028 = vadd.f32 %v2984, %v3027
  %3029 = vmatmul.f32.gmra.mxu0 %v2968
  %v3030 = vpop.f32.mrf.mxu0
  %v3031 = vadd.f32 %v2984, %v3030
  %3032 = vmatmul.f32.gmra.mxu0 %v2969
  %v3033 = vpop.f32.mrf.mxu0
  %v3034 = vadd.f32 %v2984, %v3033
  %3035 = vmatmul.f32.gmra.mxu0 %v2970
  %v3036 = vpop.f32.mrf.mxu0
  %v3037 = vadd.f32 %v2984, %v3036
  %3038 = vmatmul.f32.gmra.mxu0 %v2971
  %v3039 = vpop.f32.mrf.mxu0
  %v3040 = vadd.f32 %v2984, %v3039
  %3041 = vmatmul.f32.gmra.mxu0 %v2972
  %v3042 = vpop.f32.mrf.mxu0
  %v3043 = vadd.f32 %v2984, %v3042
  %3044 = vmatmul.f32.gmra.mxu0 %v2973
  %v3045 = vpop.f32.mrf.mxu0
  %v3046 = vadd.f32 %v2984, %v3045
  %3047 = vmatmul.f32.gmra.mxu0 %v2974
  %v3048 = vpop.f32.mrf.mxu0
  %v3049 = vadd.f32 %v2984, %v3048
  %3050 = vmatmul.f32.gmra.mxu0 %v2975
  %v3051 = vpop.f32.mrf.mxu0
  %v3052 = vadd.f32 %v2984, %v3051
  %3053 = vmatmul.f32.gmra.mxu0 %v2976
  %v3054 = vpop.f32.mrf.mxu0
  %v3055 = vadd.f32 %v2984, %v3054
  %3056 = vmatmul.f32.gmra.mxu0 %v2977
  %v3057 = vpop.f32.mrf.mxu0
  %v3058 = vadd.f32 %v2984, %v3057
  %3059 = vmatmul.f32.gmra.mxu0 %v2978
  %v3060 = vpop.f32.mrf.mxu0
  %v3061 = vadd.f32 %v2984, %v3060
  %3062 = vmatmul.f32.gmra.mxu0 %v2979
  %v3063 = vpop.f32.mrf.mxu0
  %v3064 = vadd.f32 %v2984, %v3063
  %3065 = vmatmul.f32.gmra.mxu0 %v2980
  %v3066 = vpop.f32.mrf.mxu0
  %v3067 = vadd.f32 %v2984, %v3066
  %3068 = vmatmul.f32.gmra.mxu0 %v2981
  %v3069 = vpop.f32.mrf.mxu0
  %v3070 = vadd.f32 %v2984, %v3069
  %3071 = vmatmul.f32.gmra.mxu0 %v2982
  %v3072 = vpop.f32.mrf.mxu0
  %v3073 = vadd.f32 %v2984, %v3072
  %3074 = vdwg.mxu0
  %v3075 = vld [vmem:[#allocation2] sm:$0xff]
  %v3076 = vld [vmem:[#allocation2 + $0x8] sm:$0xff]
  %v3077 = vld [vmem:[#allocation2 + $0x10] sm:$0xff]
  %v3078 = vld [vmem:[#allocation2 + $0x18] sm:$0xff]
  %v3079 = vld [vmem:[#allocation2 + $0x20] sm:$0xff]
  %v3080 = vld [vmem:[#allocation2 + $0x28] sm:$0xff]
  %v3081 = vld [vmem:[#allocation2 + $0x30] sm:$0xff]
  %v3082 = vld [vmem:[#allocation2 + $0x38] sm:$0xff]
  %v3083 = vld [vmem:[#allocation2 + $0x40] sm:$0xff]
  %v3084 = vld [vmem:[#allocation2 + $0x48] sm:$0xff]
  %v3085 = vld [vmem:[#allocation2 + $0x50] sm:$0xff]
  %v3086 = vld [vmem:[#allocation2 + $0x58] sm:$0xff]
  %v3087 = vld [vmem:[#allocation2 + $0x60] sm:$0xff]
  %v3088 = vld [vmem:[#allocation2 + $0x68] sm:$0xff]
  %v3089 = vld [vmem:[#allocation2 + $0x70] sm:$0xff]
  %v3090 = vld [vmem:[#allocation2 + $0x78] sm:$0xff]
  %v3091 = vld [vmem:[#allocation2 + $0x80] sm:$0xff]
  %v3092 = vld [vmem:[#allocation2 + $0x88] sm:$0xff]
  %v3093 = vld [vmem:[#allocation2 + $0x90] sm:$0xff]
  %v3094 = vld [vmem:[#allocation2 + $0x98] sm:$0xff]
  %v3095 = vld [vmem:[#allocation2 + $0xa0] sm:$0xff]
  %v3096 = vld [vmem:[#allocation2 + $0xa8] sm:$0xff]
  %v3097 = vld [vmem:[#allocation2 + $0xb0] sm:$0xff]
  %v3098 = vld [vmem:[#allocation2 + $0xb8] sm:$0xff]
  %v3099 = vadd.f32 %v3075, %v3004
  %v3100 = vadd.f32 %v3076, %v3007
  %v3101 = vadd.f32 %v3077, %v3010
  %v3102 = vadd.f32 %v3078, %v3013
  %v3103 = vadd.f32 %v3079, %v3016
  %v3104 = vadd.f32 %v3080, %v3019
  %v3105 = vadd.f32 %v3081, %v3022
  %v3106 = vadd.f32 %v3082, %v3025
  %v3107 = vadd.f32 %v3083, %v3028
  %v3108 = vadd.f32 %v3084, %v3031
  %v3109 = vadd.f32 %v3085, %v3034
  %v3110 = vadd.f32 %v3086, %v3037
  %v3111 = vadd.f32 %v3087, %v3040
  %v3112 = vadd.f32 %v3088, %v3043
  %v3113 = vadd.f32 %v3089, %v3046
  %v3114 = vadd.f32 %v3090, %v3049
  %v3115 = vadd.f32 %v3091, %v3052
  %v3116 = vadd.f32 %v3092, %v3055
  %v3117 = vadd.f32 %v3093, %v3058
  %v3118 = vadd.f32 %v3094, %v3061
  %v3119 = vadd.f32 %v3095, %v3064
  %v3120 = vadd.f32 %v3096, %v3067
  %v3121 = vadd.f32 %v3097, %v3070
  %v3122 = vadd.f32 %v3098, %v3073
  %v3123 = vsel %vm72, %v3099, 0.0
  %3124 = vadd.xlane.f32.xlu0 %v3123
  %v3125 = vpop.xlane.xlu0 %3124
  %v3126 = vsel %vm72, %v3100, 0.0
  %3127 = vadd.xlane.f32.xlu0 %v3126
  %v3128 = vpop.xlane.xlu0 %3127
  %v3129 = vsel %vm72, %v3101, 0.0
  %3130 = vadd.xlane.f32.xlu0 %v3129
  %v3131 = vpop.xlane.xlu0 %3130
  %v3132 = vsel %vm72, %v3102, 0.0
  %3133 = vadd.xlane.f32.xlu0 %v3132
  %v3134 = vpop.xlane.xlu0 %3133
  %v3135 = vsel %vm72, %v3103, 0.0
  %3136 = vadd.xlane.f32.xlu0 %v3135
  %v3137 = vpop.xlane.xlu0 %3136
  %v3138 = vsel %vm72, %v3104, 0.0
  %3139 = vadd.xlane.f32.xlu0 %v3138
  %v3140 = vpop.xlane.xlu0 %3139
  %v3141 = vsel %vm72, %v3105, 0.0
  %3142 = vadd.xlane.f32.xlu0 %v3141
  %v3143 = vpop.xlane.xlu0 %3142
  %v3144 = vsel %vm72, %v3106, 0.0
  %3145 = vadd.xlane.f32.xlu0 %v3144
  %v3146 = vpop.xlane.xlu0 %3145
  %v3147 = vsel %vm72, %v3107, 0.0
  %3148 = vadd.xlane.f32.xlu0 %v3147
  %v3149 = vpop.xlane.xlu0 %3148
  %v3150 = vsel %vm72, %v3108, 0.0
  %3151 = vadd.xlane.f32.xlu0 %v3150
  %v3152 = vpop.xlane.xlu0 %3151
  %v3153 = vsel %vm72, %v3109, 0.0
  %3154 = vadd.xlane.f32.xlu0 %v3153
  %v3155 = vpop.xlane.xlu0 %3154
  %v3156 = vsel %vm72, %v3110, 0.0
  %3157 = vadd.xlane.f32.xlu0 %v3156
  %v3158 = vpop.xlane.xlu0 %3157
  %v3159 = vsel %vm72, %v3111, 0.0
  %3160 = vadd.xlane.f32.xlu0 %v3159
  %v3161 = vpop.xlane.xlu0 %3160
  %v3162 = vsel %vm72, %v3112, 0.0
  %3163 = vadd.xlane.f32.xlu0 %v3162
  %v3164 = vpop.xlane.xlu0 %3163
  %v3165 = vsel %vm72, %v3113, 0.0
  %3166 = vadd.xlane.f32.xlu0 %v3165
  %v3167 = vpop.xlane.xlu0 %3166
  %v3168 = vsel %vm72, %v3114, 0.0
  %3169 = vadd.xlane.f32.xlu0 %v3168
  %v3170 = vpop.xlane.xlu0 %3169
  %v3171 = vsel %vm72, %v3115, 0.0
  %3172 = vadd.xlane.f32.xlu0 %v3171
  %v3173 = vpop.xlane.xlu0 %3172
  %v3174 = vsel %vm72, %v3116, 0.0
  %3175 = vadd.xlane.f32.xlu0 %v3174
  %v3176 = vpop.xlane.xlu0 %3175
  %v3177 = vsel %vm72, %v3117, 0.0
  %3178 = vadd.xlane.f32.xlu0 %v3177
  %v3179 = vpop.xlane.xlu0 %3178
  %v3180 = vsel %vm72, %v3118, 0.0
  %3181 = vadd.xlane.f32.xlu0 %v3180
  %v3182 = vpop.xlane.xlu0 %3181
  %v3183 = vsel %vm72, %v3119, 0.0
  %3184 = vadd.xlane.f32.xlu0 %v3183
  %v3185 = vpop.xlane.xlu0 %3184
  %v3186 = vsel %vm72, %v3120, 0.0
  %3187 = vadd.xlane.f32.xlu0 %v3186
  %v3188 = vpop.xlane.xlu0 %3187
  %v3189 = vsel %vm72, %v3121, 0.0
  %3190 = vadd.xlane.f32.xlu0 %v3189
  %v3191 = vpop.xlane.xlu0 %3190
  %v3192 = vsel %vm72, %v3122, 0.0
  %3193 = vadd.xlane.f32.xlu0 %v3192
  %v3194 = vpop.xlane.xlu0 %3193
  %v3195 = vmul.f32 %v3125, %v2188
  %v3196 = vmul.f32 %v3128, %v2188
  %v3197 = vmul.f32 %v3131, %v2188
  %v3198 = vmul.f32 %v3134, %v2188
  %v3199 = vmul.f32 %v3137, %v2188
  %v3200 = vmul.f32 %v3140, %v2188
  %v3201 = vmul.f32 %v3143, %v2188
  %v3202 = vmul.f32 %v3146, %v2188
  %v3203 = vmul.f32 %v3149, %v2188
  %v3204 = vmul.f32 %v3152, %v2188
  %v3205 = vmul.f32 %v3155, %v2188
  %v3206 = vmul.f32 %v3158, %v2188
  %v3207 = vmul.f32 %v3161, %v2188
  %v3208 = vmul.f32 %v3164, %v2188
  %v3209 = vmul.f32 %v3167, %v2188
  %v3210 = vmul.f32 %v3170, %v2188
  %v3211 = vmul.f32 %v3173, %v2188
  %v3212 = vmul.f32 %v3176, %v2188
  %v3213 = vmul.f32 %v3179, %v2188
  %v3214 = vmul.f32 %v3182, %v2188
  %v3215 = vmul.f32 %v3185, %v2188
  %v3216 = vmul.f32 %v3188, %v2188
  %v3217 = vmul.f32 %v3191, %v2188
  %v3218 = vmul.f32 %v3194, %v2188
  %v3219 = vsub.f32 %v3099, %v3195
  %v3220 = vsub.f32 %v3100, %v3196
  %v3221 = vsub.f32 %v3101, %v3197
  %v3222 = vsub.f32 %v3102, %v3198
  %v3223 = vsub.f32 %v3103, %v3199
  %v3224 = vsub.f32 %v3104, %v3200
  %v3225 = vsub.f32 %v3105, %v3201
  %v3226 = vsub.f32 %v3106, %v3202
  %v3227 = vsub.f32 %v3107, %v3203
  %v3228 = vsub.f32 %v3108, %v3204
  %v3229 = vsub.f32 %v3109, %v3205
  %v3230 = vsub.f32 %v3110, %v3206
  %v3231 = vsub.f32 %v3111, %v3207
  %v3232 = vsub.f32 %v3112, %v3208
  %v3233 = vsub.f32 %v3113, %v3209
  %v3234 = vsub.f32 %v3114, %v3210
  %v3235 = vsub.f32 %v3115, %v3211
  %v3236 = vsub.f32 %v3116, %v3212
  %v3237 = vsub.f32 %v3117, %v3213
  %v3238 = vsub.f32 %v3118, %v3214
  %v3239 = vsub.f32 %v3119, %v3215
  %v3240 = vsub.f32 %v3120, %v3216
  %v3241 = vsub.f32 %v3121, %v3217
  %v3242 = vsub.f32 %v3122, %v3218
  %v3243 = vmul.f32 %v3219, %v3219
  %v3244 = vmul.f32 %v3220, %v3220
  %v3245 = vmul.f32 %v3221, %v3221
  %v3246 = vmul.f32 %v3222, %v3222
  %v3247 = vmul.f32 %v3223, %v3223
  %v3248 = vmul.f32 %v3224, %v3224
  %v3249 = vmul.f32 %v3225, %v3225
  %v3250 = vmul.f32 %v3226, %v3226
  %v3251 = vmul.f32 %v3227, %v3227
  %v3252 = vmul.f32 %v3228, %v3228
  %v3253 = vmul.f32 %v3229, %v3229
  %v3254 = vmul.f32 %v3230, %v3230
  %v3255 = vmul.f32 %v3231, %v3231
  %v3256 = vmul.f32 %v3232, %v3232
  %v3257 = vmul.f32 %v3233, %v3233
  %v3258 = vmul.f32 %v3234, %v3234
  %v3259 = vmul.f32 %v3235, %v3235
  %v3260 = vmul.f32 %v3236, %v3236
  %v3261 = vmul.f32 %v3237, %v3237
  %v3262 = vmul.f32 %v3238, %v3238
  %v3263 = vmul.f32 %v3239, %v3239
  %v3264 = vmul.f32 %v3240, %v3240
  %v3265 = vmul.f32 %v3241, %v3241
  %v3266 = vmul.f32 %v3242, %v3242
  %v3267 = vsel %vm72, %v3243, 0.0
  %3268 = vadd.xlane.f32.xlu0 %v3267
  %v3269 = vpop.xlane.xlu0 %3268
  %v3270 = vsel %vm72, %v3244, 0.0
  %3271 = vadd.xlane.f32.xlu0 %v3270
  %v3272 = vpop.xlane.xlu0 %3271
  %v3273 = vsel %vm72, %v3245, 0.0
  %3274 = vadd.xlane.f32.xlu0 %v3273
  %v3275 = vpop.xlane.xlu0 %3274
  %v3276 = vsel %vm72, %v3246, 0.0
  %3277 = vadd.xlane.f32.xlu0 %v3276
  %v3278 = vpop.xlane.xlu0 %3277
  %v3279 = vsel %vm72, %v3247, 0.0
  %3280 = vadd.xlane.f32.xlu0 %v3279
  %v3281 = vpop.xlane.xlu0 %3280
  %v3282 = vsel %vm72, %v3248, 0.0
  %3283 = vadd.xlane.f32.xlu0 %v3282
  %v3284 = vpop.xlane.xlu0 %3283
  %v3285 = vsel %vm72, %v3249, 0.0
  %3286 = vadd.xlane.f32.xlu0 %v3285
  %v3287 = vpop.xlane.xlu0 %3286
  %v3288 = vsel %vm72, %v3250, 0.0
  %3289 = vadd.xlane.f32.xlu0 %v3288
  %v3290 = vpop.xlane.xlu0 %3289
  %v3291 = vsel %vm72, %v3251, 0.0
  %3292 = vadd.xlane.f32.xlu0 %v3291
  %v3293 = vpop.xlane.xlu0 %3292
  %v3294 = vsel %vm72, %v3252, 0.0
  %3295 = vadd.xlane.f32.xlu0 %v3294
  %v3296 = vpop.xlane.xlu0 %3295
  %v3297 = vsel %vm72, %v3253, 0.0
  %3298 = vadd.xlane.f32.xlu0 %v3297
  %v3299 = vpop.xlane.xlu0 %3298
  %v3300 = vsel %vm72, %v3254, 0.0
  %3301 = vadd.xlane.f32.xlu0 %v3300
  %v3302 = vpop.xlane.xlu0 %3301
  %v3303 = vsel %vm72, %v3255, 0.0
  %3304 = vadd.xlane.f32.xlu0 %v3303
  %v3305 = vpop.xlane.xlu0 %3304
  %v3306 = vsel %vm72, %v3256, 0.0
  %3307 = vadd.xlane.f32.xlu0 %v3306
  %v3308 = vpop.xlane.xlu0 %3307
  %v3309 = vsel %vm72, %v3257, 0.0
  %3310 = vadd.xlane.f32.xlu0 %v3309
  %v3311 = vpop.xlane.xlu0 %3310
  %v3312 = vsel %vm72, %v3258, 0.0
  %3313 = vadd.xlane.f32.xlu0 %v3312
  %v3314 = vpop.xlane.xlu0 %3313
  %v3315 = vsel %vm72, %v3259, 0.0
  %3316 = vadd.xlane.f32.xlu0 %v3315
  %v3317 = vpop.xlane.xlu0 %3316
  %v3318 = vsel %vm72, %v3260, 0.0
  %3319 = vadd.xlane.f32.xlu0 %v3318
  %v3320 = vpop.xlane.xlu0 %3319
  %v3321 = vsel %vm72, %v3261, 0.0
  %3322 = vadd.xlane.f32.xlu0 %v3321
  %v3323 = vpop.xlane.xlu0 %3322
  %v3324 = vsel %vm72, %v3262, 0.0
  %3325 = vadd.xlane.f32.xlu0 %v3324
  %v3326 = vpop.xlane.xlu0 %3325
  %v3327 = vsel %vm72, %v3263, 0.0
  %3328 = vadd.xlane.f32.xlu0 %v3327
  %v3329 = vpop.xlane.xlu0 %3328
  %v3330 = vsel %vm72, %v3264, 0.0
  %3331 = vadd.xlane.f32.xlu0 %v3330
  %v3332 = vpop.xlane.xlu0 %3331
  %v3333 = vsel %vm72, %v3265, 0.0
  %3334 = vadd.xlane.f32.xlu0 %v3333
  %v3335 = vpop.xlane.xlu0 %3334
  %v3336 = vsel %vm72, %v3266, 0.0
  %3337 = vadd.xlane.f32.xlu0 %v3336
  %v3338 = vpop.xlane.xlu0 %3337
  %v3339 = vmul.f32 %v3269, %v2188
  %v3340 = vmul.f32 %v3272, %v2188
  %v3341 = vmul.f32 %v3275, %v2188
  %v3342 = vmul.f32 %v3278, %v2188
  %v3343 = vmul.f32 %v3281, %v2188
  %v3344 = vmul.f32 %v3284, %v2188
  %v3345 = vmul.f32 %v3287, %v2188
  %v3346 = vmul.f32 %v3290, %v2188
  %v3347 = vmul.f32 %v3293, %v2188
  %v3348 = vmul.f32 %v3296, %v2188
  %v3349 = vmul.f32 %v3299, %v2188
  %v3350 = vmul.f32 %v3302, %v2188
  %v3351 = vmul.f32 %v3305, %v2188
  %v3352 = vmul.f32 %v3308, %v2188
  %v3353 = vmul.f32 %v3311, %v2188
  %v3354 = vmul.f32 %v3314, %v2188
  %v3355 = vmul.f32 %v3317, %v2188
  %v3356 = vmul.f32 %v3320, %v2188
  %v3357 = vmul.f32 %v3323, %v2188
  %v3358 = vmul.f32 %v3326, %v2188
  %v3359 = vmul.f32 %v3329, %v2188
  %v3360 = vmul.f32 %v3332, %v2188
  %v3361 = vmul.f32 %v3335, %v2188
  %v3362 = vmul.f32 %v3338, %v2188
  %v3363 = vadd.f32 %v3339, 1e-05
  %v3364 = vadd.f32 %v3340, 1e-05
  %v3365 = vadd.f32 %v3341, 1e-05
  %v3366 = vadd.f32 %v3342, 1e-05
  %v3367 = vadd.f32 %v3343, 1e-05
  %v3368 = vadd.f32 %v3344, 1e-05
  %v3369 = vadd.f32 %v3345, 1e-05
  %v3370 = vadd.f32 %v3346, 1e-05
  %v3371 = vadd.f32 %v3347, 1e-05
  %v3372 = vadd.f32 %v3348, 1e-05
  %v3373 = vadd.f32 %v3349, 1e-05
  %v3374 = vadd.f32 %v3350, 1e-05
  %v3375 = vadd.f32 %v3351, 1e-05
  %v3376 = vadd.f32 %v3352, 1e-05
  %v3377 = vadd.f32 %v3353, 1e-05
  %v3378 = vadd.f32 %v3354, 1e-05
  %v3379 = vadd.f32 %v3355, 1e-05
  %v3380 = vadd.f32 %v3356, 1e-05
  %v3381 = vadd.f32 %v3357, 1e-05
  %v3382 = vadd.f32 %v3358, 1e-05
  %v3383 = vadd.f32 %v3359, 1e-05
  %v3384 = vadd.f32 %v3360, 1e-05
  %v3385 = vadd.f32 %v3361, 1e-05
  %v3386 = vadd.f32 %v3362, 1e-05
  %v3387 = vrsqrt.pop %v3363
  %v3388 = vmul.f32 %v3387, %v3363
  %v3389 = vmul.f32 %v3388, %v3387
  %v3390 = vmul.f32 0.5, %v3389
  %v3391 = vsub.f32 1.5, %v3390
  %v3392 = vmul.f32 %v3387, %v3391
  %vm3393 = vweird.f32 %v3363
  %vm3394 = vweird.f32 %v3387
  %vm3395 = vmor %vm3393, %vm3394
  %v3396 = vsel %vm3395, %v3387, %v3392
  %v3397 = vrsqrt.pop %v3364
  %v3398 = vmul.f32 %v3397, %v3364
  %v3399 = vmul.f32 %v3398, %v3397
  %v3400 = vmul.f32 0.5, %v3399
  %v3401 = vsub.f32 1.5, %v3400
  %v3402 = vmul.f32 %v3397, %v3401
  %vm3403 = vweird.f32 %v3364
  %vm3404 = vweird.f32 %v3397
  %vm3405 = vmor %vm3403, %vm3404
  %v3406 = vsel %vm3405, %v3397, %v3402
  %v3407 = vrsqrt.pop %v3365
  %v3408 = vmul.f32 %v3407, %v3365
  %v3409 = vmul.f32 %v3408, %v3407
  %v3410 = vmul.f32 0.5, %v3409
  %v3411 = vsub.f32 1.5, %v3410
  %v3412 = vmul.f32 %v3407, %v3411
  %vm3413 = vweird.f32 %v3365
  %vm3414 = vweird.f32 %v3407
  %vm3415 = vmor %vm3413, %vm3414
  %v3416 = vsel %vm3415, %v3407, %v3412
  %v3417 = vrsqrt.pop %v3366
  %v3418 = vmul.f32 %v3417, %v3366
  %v3419 = vmul.f32 %v3418, %v3417
  %v3420 = vmul.f32 0.5, %v3419
  %v3421 = vsub.f32 1.5, %v3420
  %v3422 = vmul.f32 %v3417, %v3421
  %vm3423 = vweird.f32 %v3366
  %vm3424 = vweird.f32 %v3417
  %vm3425 = vmor %vm3423, %vm3424
  %v3426 = vsel %vm3425, %v3417, %v3422
  %v3427 = vrsqrt.pop %v3367
  %v3428 = vmul.f32 %v3427, %v3367
  %v3429 = vmul.f32 %v3428, %v3427
  %v3430 = vmul.f32 0.5, %v3429
  %v3431 = vsub.f32 1.5, %v3430
  %v3432 = vmul.f32 %v3427, %v3431
  %vm3433 = vweird.f32 %v3367
  %vm3434 = vweird.f32 %v3427
  %vm3435 = vmor %vm3433, %vm3434
  %v3436 = vsel %vm3435, %v3427, %v3432
  %v3437 = vrsqrt.pop %v3368
  %v3438 = vmul.f32 %v3437, %v3368
  %v3439 = vmul.f32 %v3438, %v3437
  %v3440 = vmul.f32 0.5, %v3439
  %v3441 = vsub.f32 1.5, %v3440
  %v3442 = vmul.f32 %v3437, %v3441
  %vm3443 = vweird.f32 %v3368
  %vm3444 = vweird.f32 %v3437
  %vm3445 = vmor %vm3443, %vm3444
  %v3446 = vsel %vm3445, %v3437, %v3442
  %v3447 = vrsqrt.pop %v3369
  %v3448 = vmul.f32 %v3447, %v3369
  %v3449 = vmul.f32 %v3448, %v3447
  %v3450 = vmul.f32 0.5, %v3449
  %v3451 = vsub.f32 1.5, %v3450
  %v3452 = vmul.f32 %v3447, %v3451
  %vm3453 = vweird.f32 %v3369
  %vm3454 = vweird.f32 %v3447
  %vm3455 = vmor %vm3453, %vm3454
  %v3456 = vsel %vm3455, %v3447, %v3452
  %v3457 = vrsqrt.pop %v3370
  %v3458 = vmul.f32 %v3457, %v3370
  %v3459 = vmul.f32 %v3458, %v3457
  %v3460 = vmul.f32 0.5, %v3459
  %v3461 = vsub.f32 1.5, %v3460
  %v3462 = vmul.f32 %v3457, %v3461
  %vm3463 = vweird.f32 %v3370
  %vm3464 = vweird.f32 %v3457
  %vm3465 = vmor %vm3463, %vm3464
  %v3466 = vsel %vm3465, %v3457, %v3462
  %v3467 = vrsqrt.pop %v3371
  %v3468 = vmul.f32 %v3467, %v3371
  %v3469 = vmul.f32 %v3468, %v3467
  %v3470 = vmul.f32 0.5, %v3469
  %v3471 = vsub.f32 1.5, %v3470
  %v3472 = vmul.f32 %v3467, %v3471
  %vm3473 = vweird.f32 %v3371
  %vm3474 = vweird.f32 %v3467
  %vm3475 = vmor %vm3473, %vm3474
  %v3476 = vsel %vm3475, %v3467, %v3472
  %v3477 = vrsqrt.pop %v3372
  %v3478 = vmul.f32 %v3477, %v3372
  %v3479 = vmul.f32 %v3478, %v3477
  %v3480 = vmul.f32 0.5, %v3479
  %v3481 = vsub.f32 1.5, %v3480
  %v3482 = vmul.f32 %v3477, %v3481
  %vm3483 = vweird.f32 %v3372
  %vm3484 = vweird.f32 %v3477
  %vm3485 = vmor %vm3483, %vm3484
  %v3486 = vsel %vm3485, %v3477, %v3482
  %v3487 = vrsqrt.pop %v3373
  %v3488 = vmul.f32 %v3487, %v3373
  %v3489 = vmul.f32 %v3488, %v3487
  %v3490 = vmul.f32 0.5, %v3489
  %v3491 = vsub.f32 1.5, %v3490
  %v3492 = vmul.f32 %v3487, %v3491
  %vm3493 = vweird.f32 %v3373
  %vm3494 = vweird.f32 %v3487
  %vm3495 = vmor %vm3493, %vm3494
  %v3496 = vsel %vm3495, %v3487, %v3492
  %v3497 = vrsqrt.pop %v3374
  %v3498 = vmul.f32 %v3497, %v3374
  %v3499 = vmul.f32 %v3498, %v3497
  %v3500 = vmul.f32 0.5, %v3499
  %v3501 = vsub.f32 1.5, %v3500
  %v3502 = vmul.f32 %v3497, %v3501
  %vm3503 = vweird.f32 %v3374
  %vm3504 = vweird.f32 %v3497
  %vm3505 = vmor %vm3503, %vm3504
  %v3506 = vsel %vm3505, %v3497, %v3502
  %v3507 = vrsqrt.pop %v3375
  %v3508 = vmul.f32 %v3507, %v3375
  %v3509 = vmul.f32 %v3508, %v3507
  %v3510 = vmul.f32 0.5, %v3509
  %v3511 = vsub.f32 1.5, %v3510
  %v3512 = vmul.f32 %v3507, %v3511
  %vm3513 = vweird.f32 %v3375
  %vm3514 = vweird.f32 %v3507
  %vm3515 = vmor %vm3513, %vm3514
  %v3516 = vsel %vm3515, %v3507, %v3512
  %v3517 = vrsqrt.pop %v3376
  %v3518 = vmul.f32 %v3517, %v3376
  %v3519 = vmul.f32 %v3518, %v3517
  %v3520 = vmul.f32 0.5, %v3519
  %v3521 = vsub.f32 1.5, %v3520
  %v3522 = vmul.f32 %v3517, %v3521
  %vm3523 = vweird.f32 %v3376
  %vm3524 = vweird.f32 %v3517
  %vm3525 = vmor %vm3523, %vm3524
  %v3526 = vsel %vm3525, %v3517, %v3522
  %v3527 = vrsqrt.pop %v3377
  %v3528 = vmul.f32 %v3527, %v3377
  %v3529 = vmul.f32 %v3528, %v3527
  %v3530 = vmul.f32 0.5, %v3529
  %v3531 = vsub.f32 1.5, %v3530
  %v3532 = vmul.f32 %v3527, %v3531
  %vm3533 = vweird.f32 %v3377
  %vm3534 = vweird.f32 %v3527
  %vm3535 = vmor %vm3533, %vm3534
  %v3536 = vsel %vm3535, %v3527, %v3532
  %v3537 = vrsqrt.pop %v3378
  %v3538 = vmul.f32 %v3537, %v3378
  %v3539 = vmul.f32 %v3538, %v3537
  %v3540 = vmul.f32 0.5, %v3539
  %v3541 = vsub.f32 1.5, %v3540
  %v3542 = vmul.f32 %v3537, %v3541
  %vm3543 = vweird.f32 %v3378
  %vm3544 = vweird.f32 %v3537
  %vm3545 = vmor %vm3543, %vm3544
  %v3546 = vsel %vm3545, %v3537, %v3542
  %v3547 = vrsqrt.pop %v3379
  %v3548 = vmul.f32 %v3547, %v3379
  %v3549 = vmul.f32 %v3548, %v3547
  %v3550 = vmul.f32 0.5, %v3549
  %v3551 = vsub.f32 1.5, %v3550
  %v3552 = vmul.f32 %v3547, %v3551
  %vm3553 = vweird.f32 %v3379
  %vm3554 = vweird.f32 %v3547
  %vm3555 = vmor %vm3553, %vm3554
  %v3556 = vsel %vm3555, %v3547, %v3552
  %v3557 = vrsqrt.pop %v3380
  %v3558 = vmul.f32 %v3557, %v3380
  %v3559 = vmul.f32 %v3558, %v3557
  %v3560 = vmul.f32 0.5, %v3559
  %v3561 = vsub.f32 1.5, %v3560
  %v3562 = vmul.f32 %v3557, %v3561
  %vm3563 = vweird.f32 %v3380
  %vm3564 = vweird.f32 %v3557
  %vm3565 = vmor %vm3563, %vm3564
  %v3566 = vsel %vm3565, %v3557, %v3562
  %v3567 = vrsqrt.pop %v3381
  %v3568 = vmul.f32 %v3567, %v3381
  %v3569 = vmul.f32 %v3568, %v3567
  %v3570 = vmul.f32 0.5, %v3569
  %v3571 = vsub.f32 1.5, %v3570
  %v3572 = vmul.f32 %v3567, %v3571
  %vm3573 = vweird.f32 %v3381
  %vm3574 = vweird.f32 %v3567
  %vm3575 = vmor %vm3573, %vm3574
  %v3576 = vsel %vm3575, %v3567, %v3572
  %v3577 = vrsqrt.pop %v3382
  %v3578 = vmul.f32 %v3577, %v3382
  %v3579 = vmul.f32 %v3578, %v3577
  %v3580 = vmul.f32 0.5, %v3579
  %v3581 = vsub.f32 1.5, %v3580
  %v3582 = vmul.f32 %v3577, %v3581
  %vm3583 = vweird.f32 %v3382
  %vm3584 = vweird.f32 %v3577
  %vm3585 = vmor %vm3583, %vm3584
  %v3586 = vsel %vm3585, %v3577, %v3582
  %v3587 = vrsqrt.pop %v3383
  %v3588 = vmul.f32 %v3587, %v3383
  %v3589 = vmul.f32 %v3588, %v3587
  %v3590 = vmul.f32 0.5, %v3589
  %v3591 = vsub.f32 1.5, %v3590
  %v3592 = vmul.f32 %v3587, %v3591
  %vm3593 = vweird.f32 %v3383
  %vm3594 = vweird.f32 %v3587
  %vm3595 = vmor %vm3593, %vm3594
  %v3596 = vsel %vm3595, %v3587, %v3592
  %v3597 = vrsqrt.pop %v3384
  %v3598 = vmul.f32 %v3597, %v3384
  %v3599 = vmul.f32 %v3598, %v3597
  %v3600 = vmul.f32 0.5, %v3599
  %v3601 = vsub.f32 1.5, %v3600
  %v3602 = vmul.f32 %v3597, %v3601
  %vm3603 = vweird.f32 %v3384
  %vm3604 = vweird.f32 %v3597
  %vm3605 = vmor %vm3603, %vm3604
  %v3606 = vsel %vm3605, %v3597, %v3602
  %v3607 = vrsqrt.pop %v3385
  %v3608 = vmul.f32 %v3607, %v3385
  %v3609 = vmul.f32 %v3608, %v3607
  %v3610 = vmul.f32 0.5, %v3609
  %v3611 = vsub.f32 1.5, %v3610
  %v3612 = vmul.f32 %v3607, %v3611
  %vm3613 = vweird.f32 %v3385
  %vm3614 = vweird.f32 %v3607
  %vm3615 = vmor %vm3613, %vm3614
  %v3616 = vsel %vm3615, %v3607, %v3612
  %v3617 = vrsqrt.pop %v3386
  %v3618 = vmul.f32 %v3617, %v3386
  %v3619 = vmul.f32 %v3618, %v3617
  %v3620 = vmul.f32 0.5, %v3619
  %v3621 = vsub.f32 1.5, %v3620
  %v3622 = vmul.f32 %v3617, %v3621
  %vm3623 = vweird.f32 %v3386
  %vm3624 = vweird.f32 %v3617
  %vm3625 = vmor %vm3623, %vm3624
  %v3626 = vsel %vm3625, %v3617, %v3622
  %v3627 = vmul.f32 %v3219, %v3396
  %v3628 = vmul.f32 %v3220, %v3406
  %v3629 = vmul.f32 %v3221, %v3416
  %v3630 = vmul.f32 %v3222, %v3426
  %v3631 = vmul.f32 %v3223, %v3436
  %v3632 = vmul.f32 %v3224, %v3446
  %v3633 = vmul.f32 %v3225, %v3456
  %v3634 = vmul.f32 %v3226, %v3466
  %v3635 = vmul.f32 %v3227, %v3476
  %v3636 = vmul.f32 %v3228, %v3486
  %v3637 = vmul.f32 %v3229, %v3496
  %v3638 = vmul.f32 %v3230, %v3506
  %v3639 = vmul.f32 %v3231, %v3516
  %v3640 = vmul.f32 %v3232, %v3526
  %v3641 = vmul.f32 %v3233, %v3536
  %v3642 = vmul.f32 %v3234, %v3546
  %v3643 = vmul.f32 %v3235, %v3556
  %v3644 = vmul.f32 %v3236, %v3566
  %v3645 = vmul.f32 %v3237, %v3576
  %v3646 = vmul.f32 %v3238, %v3586
  %v3647 = vmul.f32 %v3239, %v3596
  %v3648 = vmul.f32 %v3240, %v3606
  %v3649 = vmul.f32 %v3241, %v3616
  %v3650 = vmul.f32 %v3242, %v3626
  %v3652 = vperm.slane %v145, 0
  %v3654 = vmul.f32 %v3627, %v3652
  %v3655 = vmul.f32 %v3628, %v3652
  %v3656 = vmul.f32 %v3629, %v3652
  %v3657 = vmul.f32 %v3630, %v3652
  %v3658 = vmul.f32 %v3631, %v3652
  %v3659 = vmul.f32 %v3632, %v3652
  %v3660 = vmul.f32 %v3633, %v3652
  %v3661 = vmul.f32 %v3634, %v3652
  %v3662 = vmul.f32 %v3635, %v3652
  %v3663 = vmul.f32 %v3636, %v3652
  %v3664 = vmul.f32 %v3637, %v3652
  %v3665 = vmul.f32 %v3638, %v3652
  %v3666 = vmul.f32 %v3639, %v3652
  %v3667 = vmul.f32 %v3640, %v3652
  %v3668 = vmul.f32 %v3641, %v3652
  %v3669 = vmul.f32 %v3642, %v3652
  %v3670 = vmul.f32 %v3643, %v3652
  %v3671 = vmul.f32 %v3644, %v3652
  %v3672 = vmul.f32 %v3645, %v3652
  %v3673 = vmul.f32 %v3646, %v3652
  %v3674 = vmul.f32 %v3647, %v3652
  %v3675 = vmul.f32 %v3648, %v3652
  %v3676 = vmul.f32 %v3649, %v3652
  %v3677 = vmul.f32 %v3650, %v3652
  %v3679 = vperm.slane %v146, 0
  %v3681 = vadd.f32 %v3654, %v3679
  %v3682 = vadd.f32 %v3655, %v3679
  %v3683 = vadd.f32 %v3656, %v3679
  %v3684 = vadd.f32 %v3657, %v3679
  %v3685 = vadd.f32 %v3658, %v3679
  %v3686 = vadd.f32 %v3659, %v3679
  %v3687 = vadd.f32 %v3660, %v3679
  %v3688 = vadd.f32 %v3661, %v3679
  %v3689 = vadd.f32 %v3662, %v3679
  %v3690 = vadd.f32 %v3663, %v3679
  %v3691 = vadd.f32 %v3664, %v3679
  %v3692 = vadd.f32 %v3665, %v3679
  %v3693 = vadd.f32 %v3666, %v3679
  %v3694 = vadd.f32 %v3667, %v3679
  %v3695 = vadd.f32 %v3668, %v3679
  %v3696 = vadd.f32 %v3669, %v3679
  %v3697 = vadd.f32 %v3670, %v3679
  %v3698 = vadd.f32 %v3671, %v3679
  %v3699 = vadd.f32 %v3672, %v3679
  %v3700 = vadd.f32 %v3673, %v3679
  %v3701 = vadd.f32 %v3674, %v3679
  %v3702 = vadd.f32 %v3675, %v3679
  %v3703 = vadd.f32 %v3676, %v3679
  %v3704 = vadd.f32 %v3677, %v3679
  %3705 = vst.msk [vmem:[#allocation2] sm:$0xff] %vm72, %v3681
  %3706 = vst.msk [vmem:[#allocation2 + $0x8] sm:$0xff] %vm72, %v3682
  %3707 = vst.msk [vmem:[#allocation2 + $0x10] sm:$0xff] %vm72, %v3683
  %3708 = vst.msk [vmem:[#allocation2 + $0x18] sm:$0xff] %vm72, %v3684
  %3709 = vst.msk [vmem:[#allocation2 + $0x20] sm:$0xff] %vm72, %v3685
  %3710 = vst.msk [vmem:[#allocation2 + $0x28] sm:$0xff] %vm72, %v3686
  %3711 = vst.msk [vmem:[#allocation2 + $0x30] sm:$0xff] %vm72, %v3687
  %3712 = vst.msk [vmem:[#allocation2 + $0x38] sm:$0xff] %vm72, %v3688
  %3713 = vst.msk [vmem:[#allocation2 + $0x40] sm:$0xff] %vm72, %v3689
  %3714 = vst.msk [vmem:[#allocation2 + $0x48] sm:$0xff] %vm72, %v3690
  %3715 = vst.msk [vmem:[#allocation2 + $0x50] sm:$0xff] %vm72, %v3691
  %3716 = vst.msk [vmem:[#allocation2 + $0x58] sm:$0xff] %vm72, %v3692
  %3717 = vst.msk [vmem:[#allocation2 + $0x60] sm:$0xff] %vm72, %v3693
  %3718 = vst.msk [vmem:[#allocation2 + $0x68] sm:$0xff] %vm72, %v3694
  %3719 = vst.msk [vmem:[#allocation2 + $0x70] sm:$0xff] %vm72, %v3695
  %3720 = vst.msk [vmem:[#allocation2 + $0x78] sm:$0xff] %vm72, %v3696
  %3721 = vst.msk [vmem:[#allocation2 + $0x80] sm:$0xff] %vm72, %v3697
  %3722 = vst.msk [vmem:[#allocation2 + $0x88] sm:$0xff] %vm72, %v3698
  %3723 = vst.msk [vmem:[#allocation2 + $0x90] sm:$0xff] %vm72, %v3699
  %3724 = vst.msk [vmem:[#allocation2 + $0x98] sm:$0xff] %vm72, %v3700
  %3725 = vst.msk [vmem:[#allocation2 + $0xa0] sm:$0xff] %vm72, %v3701
  %3726 = vst.msk [vmem:[#allocation2 + $0xa8] sm:$0xff] %vm72, %v3702
  %3727 = vst.msk [vmem:[#allocation2 + $0xb0] sm:$0xff] %vm72, %v3703
  %3728 = vst.msk [vmem:[#allocation2 + $0xb8] sm:$0xff] %vm72, %v3704
  %s3729 = scalar_lea.vmem %s3, 32
  %v3730 = vld [vmem:[%s3729] sm:$0xff]
  %v3731 = vld [vmem:[%s3729 + $0x8] sm:$0xff]
  %v3732 = vld [vmem:[%s3729 + $0x10] sm:$0xff]
  %v3733 = vld [vmem:[%s3729 + $0x18] sm:$0xff]
  %s3734 = scalar_lea.vmem %s4, 1
  %v3735 = vld [vmem:[%s3734] sm:$0x1]
  %s3736 = scalar_lea.vmem %s5, 32
  %v3737 = vld [vmem:[%s3736] sm:$0xff]
  %v3738 = vld [vmem:[%s3736 + $0x8] sm:$0xff]
  %v3739 = vld [vmem:[%s3736 + $0x10] sm:$0xff]
  %v3740 = vld [vmem:[%s3736 + $0x18] sm:$0xff]
  %s3741 = scalar_lea.vmem %s6, 1
  %v3742 = vld [vmem:[%s3741] sm:$0x1]
  %s3743 = scalar_lea.vmem %s7, 1
  %v3744 = vld [vmem:[%s3743] sm:$0x1]
  %s3745 = scalar_lea.vmem %s8, 1
  %v3746 = vld [vmem:[%s3745] sm:$0x1]
  %s3747 = scalar_lea.vmem %s9, 1
  %v3748 = vld [vmem:[%s3747] sm:$0x1]
  %s3749 = scalar_lea.vmem %s10, 1
  %v3750 = vld [vmem:[%s3749] sm:$0x1]
  %s3751 = scalar_lea.vmem %s11, 32
  %v3752 = vld [vmem:[%s3751] sm:$0xff]
  %v3753 = vld [vmem:[%s3751 + $0x8] sm:$0xff]
  %v3754 = vld [vmem:[%s3751 + $0x10] sm:$0xff]
  %v3755 = vld [vmem:[%s3751 + $0x18] sm:$0xff]
  %s3756 = scalar_lea.vmem %s12, 1
  %v3757 = vld [vmem:[%s3756] sm:$0x1]
  %s3758 = scalar_lea.vmem %s13, 128
  %v3759 = vld [vmem:[%s3758] sm:$0xff]
  %v3760 = vld [vmem:[%s3758 + $0x8] sm:$0xff]
  %v3761 = vld [vmem:[%s3758 + $0x10] sm:$0xff]
  %v3762 = vld [vmem:[%s3758 + $0x18] sm:$0xff]
  %v3763 = vld [vmem:[%s3758 + $0x20] sm:$0xff]
  %v3764 = vld [vmem:[%s3758 + $0x28] sm:$0xff]
  %v3765 = vld [vmem:[%s3758 + $0x30] sm:$0xff]
  %v3766 = vld [vmem:[%s3758 + $0x38] sm:$0xff]
  %v3767 = vld [vmem:[%s3758 + $0x40] sm:$0xff]
  %v3768 = vld [vmem:[%s3758 + $0x48] sm:$0xff]
  %v3769 = vld [vmem:[%s3758 + $0x50] sm:$0xff]
  %v3770 = vld [vmem:[%s3758 + $0x58] sm:$0xff]
  %v3771 = vld [vmem:[%s3758 + $0x60] sm:$0xff]
  %v3772 = vld [vmem:[%s3758 + $0x68] sm:$0xff]
  %v3773 = vld [vmem:[%s3758 + $0x70] sm:$0xff]
  %v3774 = vld [vmem:[%s3758 + $0x78] sm:$0xff]
  %s3775 = scalar_lea.vmem %s14, 1
  %v3776 = vld [vmem:[%s3775] sm:$0x1]
  %v3777 = vld [vmem:[#allocation2] sm:$0xff]
  %v3778 = vld [vmem:[#allocation2 + $0x8] sm:$0xff]
  %v3779 = vld [vmem:[#allocation2 + $0x10] sm:$0xff]
  %v3780 = vld [vmem:[#allocation2 + $0x18] sm:$0xff]
  %v3781 = vld [vmem:[#allocation2 + $0x20] sm:$0xff]
  %v3782 = vld [vmem:[#allocation2 + $0x28] sm:$0xff]
  %v3783 = vld [vmem:[#allocation2 + $0x30] sm:$0xff]
  %v3784 = vld [vmem:[#allocation2 + $0x38] sm:$0xff]
  %v3785 = vld [vmem:[#allocation2 + $0x40] sm:$0xff]
  %v3786 = vld [vmem:[#allocation2 + $0x48] sm:$0xff]
  %v3787 = vld [vmem:[#allocation2 + $0x50] sm:$0xff]
  %v3788 = vld [vmem:[#allocation2 + $0x58] sm:$0xff]
  %v3789 = vld [vmem:[#allocation2 + $0x60] sm:$0xff]
  %v3790 = vld [vmem:[#allocation2 + $0x68] sm:$0xff]
  %v3791 = vld [vmem:[#allocation2 + $0x70] sm:$0xff]
  %v3792 = vld [vmem:[#allocation2 + $0x78] sm:$0xff]
  %v3793 = vld [vmem:[#allocation2 + $0x80] sm:$0xff]
  %v3794 = vld [vmem:[#allocation2 + $0x88] sm:$0xff]
  %v3795 = vld [vmem:[#allocation2 + $0x90] sm:$0xff]
  %v3796 = vld [vmem:[#allocation2 + $0x98] sm:$0xff]
  %v3797 = vld [vmem:[#allocation2 + $0xa0] sm:$0xff]
  %v3798 = vld [vmem:[#allocation2 + $0xa8] sm:$0xff]
  %v3799 = vld [vmem:[#allocation2 + $0xb0] sm:$0xff]
  %v3800 = vld [vmem:[#allocation2 + $0xb8] sm:$0xff]
  %v3802 = vperm.slane %v3735, 0
  %v3805 = vsel %vm72, %v3777, 0
  %v3808 = vsel %vm72, %v3778, 0
  %v3811 = vsel %vm72, %v3779, 0
  %v3814 = vsel %vm72, %v3780, 0
  %v3817 = vsel %vm72, %v3781, 0
  %v3820 = vsel %vm72, %v3782, 0
  %v3823 = vsel %vm72, %v3783, 0
  %v3826 = vsel %vm72, %v3784, 0
  %v3829 = vsel %vm72, %v3785, 0
  %v3832 = vsel %vm72, %v3786, 0
  %v3835 = vsel %vm72, %v3787, 0
  %v3838 = vsel %vm72, %v3788, 0
  %v3841 = vsel %vm72, %v3789, 0
  %v3844 = vsel %vm72, %v3790, 0
  %v3847 = vsel %vm72, %v3791, 0
  %v3850 = vsel %vm72, %v3792, 0
  %v3853 = vsel %vm72, %v3793, 0
  %v3856 = vsel %vm72, %v3794, 0
  %v3859 = vsel %vm72, %v3795, 0
  %v3862 = vsel %vm72, %v3796, 0
  %v3865 = vsel %vm72, %v3797, 0
  %v3868 = vsel %vm72, %v3798, 0
  %v3871 = vsel %vm72, %v3799, 0
  %v3874 = vsel %vm72, %v3800, 0
  %3876 = vmatpush.msra.mxu0 0.0
  %3877 = vmatpush.msra.mxu0 0.0
  %3878 = vmatpush.msra.mxu0 0.0
  %3879 = vmatpush.msra.mxu0 0.0
  %3880 = vmatpush.msra.mxu0 0.0
  %3881 = vmatpush.msra.mxu0 0.0
  %3882 = vmatpush.msra.mxu0 0.0
  %3883 = vmatpush.msra.mxu0 0.0
  %3884 = vmatpush.msra.mxu0 0.0
  %3885 = vmatpush.msra.mxu0 0.0
  %3886 = vmatpush.msra.mxu0 0.0
  %3887 = vmatpush.msra.mxu0 0.0
  %3888 = vmatpush.msra.mxu0 %v3733
  %3889 = vmatpush.msra.mxu0 %v3732
  %3890 = vmatpush.msra.mxu0 %v3731
  %3891 = vmatpush.msra.mxu0 %v3730
  %3892 = vmatmul.f32.gmra.mxu0 %v3805
  %v3893 = vpop.f32.mrf.mxu0
  %v3894 = vadd.f32 %v3802, %v3893
  %3895 = vmatmul.f32.gmra.mxu0 %v3808
  %v3896 = vpop.f32.mrf.mxu0
  %v3897 = vadd.f32 %v3802, %v3896
  %3898 = vmatmul.f32.gmra.mxu0 %v3811
  %v3899 = vpop.f32.mrf.mxu0
  %v3900 = vadd.f32 %v3802, %v3899
  %3901 = vmatmul.f32.gmra.mxu0 %v3814
  %v3902 = vpop.f32.mrf.mxu0
  %v3903 = vadd.f32 %v3802, %v3902
  %3904 = vmatmul.f32.gmra.mxu0 %v3817
  %v3905 = vpop.f32.mrf.mxu0
  %v3906 = vadd.f32 %v3802, %v3905
  %3907 = vmatmul.f32.gmra.mxu0 %v3820
  %v3908 = vpop.f32.mrf.mxu0
  %v3909 = vadd.f32 %v3802, %v3908
  %3910 = vmatmul.f32.gmra.mxu0 %v3823
  %v3911 = vpop.f32.mrf.mxu0
  %v3912 = vadd.f32 %v3802, %v3911
  %3913 = vmatmul.f32.gmra.mxu0 %v3826
  %v3914 = vpop.f32.mrf.mxu0
  %v3915 = vadd.f32 %v3802, %v3914
  %3916 = vmatmul.f32.gmra.mxu0 %v3829
  %v3917 = vpop.f32.mrf.mxu0
  %v3918 = vadd.f32 %v3802, %v3917
  %3919 = vmatmul.f32.gmra.mxu0 %v3832
  %v3920 = vpop.f32.mrf.mxu0
  %v3921 = vadd.f32 %v3802, %v3920
  %3922 = vmatmul.f32.gmra.mxu0 %v3835
  %v3923 = vpop.f32.mrf.mxu0
  %v3924 = vadd.f32 %v3802, %v3923
  %3925 = vmatmul.f32.gmra.mxu0 %v3838
  %v3926 = vpop.f32.mrf.mxu0
  %v3927 = vadd.f32 %v3802, %v3926
  %3928 = vmatmul.f32.gmra.mxu0 %v3841
  %v3929 = vpop.f32.mrf.mxu0
  %v3930 = vadd.f32 %v3802, %v3929
  %3931 = vmatmul.f32.gmra.mxu0 %v3844
  %v3932 = vpop.f32.mrf.mxu0
  %v3933 = vadd.f32 %v3802, %v3932
  %3934 = vmatmul.f32.gmra.mxu0 %v3847
  %v3935 = vpop.f32.mrf.mxu0
  %v3936 = vadd.f32 %v3802, %v3935
  %3937 = vmatmul.f32.gmra.mxu0 %v3850
  %v3938 = vpop.f32.mrf.mxu0
  %v3939 = vadd.f32 %v3802, %v3938
  %3940 = vmatmul.f32.gmra.mxu0 %v3853
  %v3941 = vpop.f32.mrf.mxu0
  %v3942 = vadd.f32 %v3802, %v3941
  %3943 = vmatmul.f32.gmra.mxu0 %v3856
  %v3944 = vpop.f32.mrf.mxu0
  %v3945 = vadd.f32 %v3802, %v3944
  %3946 = vmatmul.f32.gmra.mxu0 %v3859
  %v3947 = vpop.f32.mrf.mxu0
  %v3948 = vadd.f32 %v3802, %v3947
  %3949 = vmatmul.f32.gmra.mxu0 %v3862
  %v3950 = vpop.f32.mrf.mxu0
  %v3951 = vadd.f32 %v3802, %v3950
  %3952 = vmatmul.f32.gmra.mxu0 %v3865
  %v3953 = vpop.f32.mrf.mxu0
  %v3954 = vadd.f32 %v3802, %v3953
  %3955 = vmatmul.f32.gmra.mxu0 %v3868
  %v3956 = vpop.f32.mrf.mxu0
  %v3957 = vadd.f32 %v3802, %v3956
  %3958 = vmatmul.f32.gmra.mxu0 %v3871
  %v3959 = vpop.f32.mrf.mxu0
  %v3960 = vadd.f32 %v3802, %v3959
  %3961 = vmatmul.f32.gmra.mxu0 %v3874
  %v3962 = vpop.f32.mrf.mxu0
  %v3963 = vadd.f32 %v3802, %v3962
  %3964 = vdwg.mxu0
  %3965 = vst.msk [vmem:[#allocation3] sm:$0xff] %vm72, %v3894
  %3966 = vst.msk [vmem:[#allocation3 + $0x8] sm:$0xff] %vm72, %v3897
  %3967 = vst.msk [vmem:[#allocation3 + $0x10] sm:$0xff] %vm72, %v3900
  %3968 = vst.msk [vmem:[#allocation3 + $0x18] sm:$0xff] %vm72, %v3903
  %3969 = vst.msk [vmem:[#allocation3 + $0x20] sm:$0xff] %vm72, %v3906
  %3970 = vst.msk [vmem:[#allocation3 + $0x28] sm:$0xff] %vm72, %v3909
  %3971 = vst.msk [vmem:[#allocation3 + $0x30] sm:$0xff] %vm72, %v3912
  %3972 = vst.msk [vmem:[#allocation3 + $0x38] sm:$0xff] %vm72, %v3915
  %3973 = vst.msk [vmem:[#allocation3 + $0x40] sm:$0xff] %vm72, %v3918
  %3974 = vst.msk [vmem:[#allocation3 + $0x48] sm:$0xff] %vm72, %v3921
  %3975 = vst.msk [vmem:[#allocation3 + $0x50] sm:$0xff] %vm72, %v3924
  %3976 = vst.msk [vmem:[#allocation3 + $0x58] sm:$0xff] %vm72, %v3927
  %3977 = vst.msk [vmem:[#allocation3 + $0x60] sm:$0xff] %vm72, %v3930
  %3978 = vst.msk [vmem:[#allocation3 + $0x68] sm:$0xff] %vm72, %v3933
  %3979 = vst.msk [vmem:[#allocation3 + $0x70] sm:$0xff] %vm72, %v3936
  %3980 = vst.msk [vmem:[#allocation3 + $0x78] sm:$0xff] %vm72, %v3939
  %3981 = vst.msk [vmem:[#allocation3 + $0x80] sm:$0xff] %vm72, %v3942
  %3982 = vst.msk [vmem:[#allocation3 + $0x88] sm:$0xff] %vm72, %v3945
  %3983 = vst.msk [vmem:[#allocation3 + $0x90] sm:$0xff] %vm72, %v3948
  %3984 = vst.msk [vmem:[#allocation3 + $0x98] sm:$0xff] %vm72, %v3951
  %3985 = vst.msk [vmem:[#allocation3 + $0xa0] sm:$0xff] %vm72, %v3954
  %3986 = vst.msk [vmem:[#allocation3 + $0xa8] sm:$0xff] %vm72, %v3957
  %3987 = vst.msk [vmem:[#allocation3 + $0xb0] sm:$0xff] %vm72, %v3960
  %3988 = vst.msk [vmem:[#allocation3 + $0xb8] sm:$0xff] %vm72, %v3963
  %4013 = vrot.lane.b32.xlu0 %v3894, 96
  %v4014 = vpop.permute.xlu0 %4013
  %4015 = vrot.lane.b32.xlu0 %v3897, 96
  %v4016 = vpop.permute.xlu0 %4015
  %4017 = vrot.lane.b32.xlu0 %v3900, 96
  %v4018 = vpop.permute.xlu0 %4017
  %4019 = vrot.lane.b32.xlu0 %v3903, 96
  %v4020 = vpop.permute.xlu0 %4019
  %4021 = vrot.lane.b32.xlu0 %v3906, 96
  %v4022 = vpop.permute.xlu0 %4021
  %4023 = vrot.lane.b32.xlu0 %v3909, 96
  %v4024 = vpop.permute.xlu0 %4023
  %4025 = vrot.lane.b32.xlu0 %v3912, 96
  %v4026 = vpop.permute.xlu0 %4025
  %4027 = vrot.lane.b32.xlu0 %v3915, 96
  %v4028 = vpop.permute.xlu0 %4027
  %4029 = vrot.lane.b32.xlu0 %v3918, 96
  %v4030 = vpop.permute.xlu0 %4029
  %4031 = vrot.lane.b32.xlu0 %v3921, 96
  %v4032 = vpop.permute.xlu0 %4031
  %4033 = vrot.lane.b32.xlu0 %v3924, 96
  %v4034 = vpop.permute.xlu0 %4033
  %4035 = vrot.lane.b32.xlu0 %v3927, 96
  %v4036 = vpop.permute.xlu0 %4035
  %4037 = vrot.lane.b32.xlu0 %v3930, 96
  %v4038 = vpop.permute.xlu0 %4037
  %4039 = vrot.lane.b32.xlu0 %v3933, 96
  %v4040 = vpop.permute.xlu0 %4039
  %4041 = vrot.lane.b32.xlu0 %v3936, 96
  %v4042 = vpop.permute.xlu0 %4041
  %4043 = vrot.lane.b32.xlu0 %v3939, 96
  %v4044 = vpop.permute.xlu0 %4043
  %4045 = vrot.lane.b32.xlu0 %v3942, 96
  %v4046 = vpop.permute.xlu0 %4045
  %4047 = vrot.lane.b32.xlu0 %v3945, 96
  %v4048 = vpop.permute.xlu0 %4047
  %4049 = vrot.lane.b32.xlu0 %v3948, 96
  %v4050 = vpop.permute.xlu0 %4049
  %4051 = vrot.lane.b32.xlu0 %v3951, 96
  %v4052 = vpop.permute.xlu0 %4051
  %4053 = vrot.lane.b32.xlu0 %v3954, 96
  %v4054 = vpop.permute.xlu0 %4053
  %4055 = vrot.lane.b32.xlu0 %v3957, 96
  %v4056 = vpop.permute.xlu0 %4055
  %4057 = vrot.lane.b32.xlu0 %v3960, 96
  %v4058 = vpop.permute.xlu0 %4057
  %4059 = vrot.lane.b32.xlu0 %v3963, 96
  %v4060 = vpop.permute.xlu0 %4059
  %4085 = vst.msk [vmem:[%s477] sm:$0xff] %vm72, %v4014
  %4086 = vst.msk [vmem:[%s477 + $0x8] sm:$0xff] %vm72, %v4016
  %4087 = vst.msk [vmem:[%s477 + $0x10] sm:$0xff] %vm72, %v4018
  %4088 = vst.msk [vmem:[%s477 + $0x18] sm:$0xff] %vm72, %v4020
  %4089 = vst.msk [vmem:[%s477 + $0x20] sm:$0xff] %vm72, %v4022
  %4090 = vst.msk [vmem:[%s477 + $0x28] sm:$0xff] %vm72, %v4024
  %4091 = vst.msk [vmem:[%s477 + $0x30] sm:$0xff] %vm72, %v4026
  %4092 = vst.msk [vmem:[%s477 + $0x38] sm:$0xff] %vm72, %v4028
  %4093 = vst.msk [vmem:[%s477 + $0x40] sm:$0xff] %vm72, %v4030
  %4094 = vst.msk [vmem:[%s477 + $0x48] sm:$0xff] %vm72, %v4032
  %4095 = vst.msk [vmem:[%s477 + $0x50] sm:$0xff] %vm72, %v4034
  %4096 = vst.msk [vmem:[%s477 + $0x58] sm:$0xff] %vm72, %v4036
  %4097 = vst.msk [vmem:[%s477 + $0x60] sm:$0xff] %vm72, %v4038
  %4098 = vst.msk [vmem:[%s477 + $0x68] sm:$0xff] %vm72, %v4040
  %4099 = vst.msk [vmem:[%s477 + $0x70] sm:$0xff] %vm72, %v4042
  %4100 = vst.msk [vmem:[%s477 + $0x78] sm:$0xff] %vm72, %v4044
  %4101 = vst.msk [vmem:[%s477 + $0x80] sm:$0xff] %vm72, %v4046
  %4102 = vst.msk [vmem:[%s477 + $0x88] sm:$0xff] %vm72, %v4048
  %4103 = vst.msk [vmem:[%s477 + $0x90] sm:$0xff] %vm72, %v4050
  %4104 = vst.msk [vmem:[%s477 + $0x98] sm:$0xff] %vm72, %v4052
  %4105 = vst.msk [vmem:[%s477 + $0xa0] sm:$0xff] %vm72, %v4054
  %4106 = vst.msk [vmem:[%s477 + $0xa8] sm:$0xff] %vm72, %v4056
  %4107 = vst.msk [vmem:[%s477 + $0xb0] sm:$0xff] %vm72, %v4058
  %4108 = vst.msk [vmem:[%s477 + $0xb8] sm:$0xff] %vm72, %v4060
  %4109 = vrot.lane.b32.xlu0 %v3894, 64
  %v4110 = vpop.permute.xlu0 %4109
  %4111 = vrot.lane.b32.xlu0 %v3897, 64
  %v4112 = vpop.permute.xlu0 %4111
  %4113 = vrot.lane.b32.xlu0 %v3900, 64
  %v4114 = vpop.permute.xlu0 %4113
  %4115 = vrot.lane.b32.xlu0 %v3903, 64
  %v4116 = vpop.permute.xlu0 %4115
  %4117 = vrot.lane.b32.xlu0 %v3906, 64
  %v4118 = vpop.permute.xlu0 %4117
  %4119 = vrot.lane.b32.xlu0 %v3909, 64
  %v4120 = vpop.permute.xlu0 %4119
  %4121 = vrot.lane.b32.xlu0 %v3912, 64
  %v4122 = vpop.permute.xlu0 %4121
  %4123 = vrot.lane.b32.xlu0 %v3915, 64
  %v4124 = vpop.permute.xlu0 %4123
  %4125 = vrot.lane.b32.xlu0 %v3918, 64
  %v4126 = vpop.permute.xlu0 %4125
  %4127 = vrot.lane.b32.xlu0 %v3921, 64
  %v4128 = vpop.permute.xlu0 %4127
  %4129 = vrot.lane.b32.xlu0 %v3924, 64
  %v4130 = vpop.permute.xlu0 %4129
  %4131 = vrot.lane.b32.xlu0 %v3927, 64
  %v4132 = vpop.permute.xlu0 %4131
  %4133 = vrot.lane.b32.xlu0 %v3930, 64
  %v4134 = vpop.permute.xlu0 %4133
  %4135 = vrot.lane.b32.xlu0 %v3933, 64
  %v4136 = vpop.permute.xlu0 %4135
  %4137 = vrot.lane.b32.xlu0 %v3936, 64
  %v4138 = vpop.permute.xlu0 %4137
  %4139 = vrot.lane.b32.xlu0 %v3939, 64
  %v4140 = vpop.permute.xlu0 %4139
  %4141 = vrot.lane.b32.xlu0 %v3942, 64
  %v4142 = vpop.permute.xlu0 %4141
  %4143 = vrot.lane.b32.xlu0 %v3945, 64
  %v4144 = vpop.permute.xlu0 %4143
  %4145 = vrot.lane.b32.xlu0 %v3948, 64
  %v4146 = vpop.permute.xlu0 %4145
  %4147 = vrot.lane.b32.xlu0 %v3951, 64
  %v4148 = vpop.permute.xlu0 %4147
  %4149 = vrot.lane.b32.xlu0 %v3954, 64
  %v4150 = vpop.permute.xlu0 %4149
  %4151 = vrot.lane.b32.xlu0 %v3957, 64
  %v4152 = vpop.permute.xlu0 %4151
  %4153 = vrot.lane.b32.xlu0 %v3960, 64
  %v4154 = vpop.permute.xlu0 %4153
  %4155 = vrot.lane.b32.xlu0 %v3963, 64
  %v4156 = vpop.permute.xlu0 %4155
  %4181 = vst.msk [vmem:[%s574] sm:$0xff] %vm72, %v4110
  %4182 = vst.msk [vmem:[%s574 + $0x8] sm:$0xff] %vm72, %v4112
  %4183 = vst.msk [vmem:[%s574 + $0x10] sm:$0xff] %vm72, %v4114
  %4184 = vst.msk [vmem:[%s574 + $0x18] sm:$0xff] %vm72, %v4116
  %4185 = vst.msk [vmem:[%s574 + $0x20] sm:$0xff] %vm72, %v4118
  %4186 = vst.msk [vmem:[%s574 + $0x28] sm:$0xff] %vm72, %v4120
  %4187 = vst.msk [vmem:[%s574 + $0x30] sm:$0xff] %vm72, %v4122
  %4188 = vst.msk [vmem:[%s574 + $0x38] sm:$0xff] %vm72, %v4124
  %4189 = vst.msk [vmem:[%s574 + $0x40] sm:$0xff] %vm72, %v4126
  %4190 = vst.msk [vmem:[%s574 + $0x48] sm:$0xff] %vm72, %v4128
  %4191 = vst.msk [vmem:[%s574 + $0x50] sm:$0xff] %vm72, %v4130
  %4192 = vst.msk [vmem:[%s574 + $0x58] sm:$0xff] %vm72, %v4132
  %4193 = vst.msk [vmem:[%s574 + $0x60] sm:$0xff] %vm72, %v4134
  %4194 = vst.msk [vmem:[%s574 + $0x68] sm:$0xff] %vm72, %v4136
  %4195 = vst.msk [vmem:[%s574 + $0x70] sm:$0xff] %vm72, %v4138
  %4196 = vst.msk [vmem:[%s574 + $0x78] sm:$0xff] %vm72, %v4140
  %4197 = vst.msk [vmem:[%s574 + $0x80] sm:$0xff] %vm72, %v4142
  %4198 = vst.msk [vmem:[%s574 + $0x88] sm:$0xff] %vm72, %v4144
  %4199 = vst.msk [vmem:[%s574 + $0x90] sm:$0xff] %vm72, %v4146
  %4200 = vst.msk [vmem:[%s574 + $0x98] sm:$0xff] %vm72, %v4148
  %4201 = vst.msk [vmem:[%s574 + $0xa0] sm:$0xff] %vm72, %v4150
  %4202 = vst.msk [vmem:[%s574 + $0xa8] sm:$0xff] %vm72, %v4152
  %4203 = vst.msk [vmem:[%s574 + $0xb0] sm:$0xff] %vm72, %v4154
  %4204 = vst.msk [vmem:[%s574 + $0xb8] sm:$0xff] %vm72, %v4156
  %v4205 = vld [vmem:[#allocation3] sm:$0xff]
  %v4206 = vld [vmem:[#allocation3 + $0x8] sm:$0xff]
  %v4207 = vld [vmem:[#allocation3 + $0x10] sm:$0xff]
  %v4208 = vld [vmem:[#allocation3 + $0x18] sm:$0xff]
  %v4209 = vld [vmem:[#allocation3 + $0x20] sm:$0xff]
  %v4210 = vld [vmem:[#allocation3 + $0x28] sm:$0xff]
  %v4211 = vld [vmem:[#allocation3 + $0x30] sm:$0xff]
  %v4212 = vld [vmem:[#allocation3 + $0x38] sm:$0xff]
  %v4213 = vld [vmem:[%s477] sm:$0xff]
  %v4214 = vld [vmem:[%s477 + $0x8] sm:$0xff]
  %v4215 = vld [vmem:[%s477 + $0x10] sm:$0xff]
  %v4216 = vld [vmem:[%s477 + $0x18] sm:$0xff]
  %v4217 = vld [vmem:[%s477 + $0x20] sm:$0xff]
  %v4218 = vld [vmem:[%s477 + $0x28] sm:$0xff]
  %v4219 = vld [vmem:[%s477 + $0x30] sm:$0xff]
  %v4220 = vld [vmem:[%s477 + $0x38] sm:$0xff]
  %v4221 = vld [vmem:[%s477 + $0x40] sm:$0xff]
  %v4222 = vld [vmem:[%s477 + $0x48] sm:$0xff]
  %v4223 = vld [vmem:[%s477 + $0x50] sm:$0xff]
  %v4224 = vld [vmem:[%s477 + $0x58] sm:$0xff]
  %v4225 = vld [vmem:[%s477 + $0x60] sm:$0xff]
  %v4226 = vld [vmem:[%s477 + $0x68] sm:$0xff]
  %v4227 = vld [vmem:[%s477 + $0x70] sm:$0xff]
  %v4228 = vld [vmem:[%s477 + $0x78] sm:$0xff]
  %v4229 = vld [vmem:[%s477 + $0x80] sm:$0xff]
  %v4230 = vld [vmem:[%s477 + $0x88] sm:$0xff]
  %v4231 = vld [vmem:[%s477 + $0x90] sm:$0xff]
  %v4232 = vld [vmem:[%s477 + $0x98] sm:$0xff]
  %v4233 = vld [vmem:[%s477 + $0xa0] sm:$0xff]
  %v4234 = vld [vmem:[%s477 + $0xa8] sm:$0xff]
  %v4235 = vld [vmem:[%s477 + $0xb0] sm:$0xff]
  %v4236 = vld [vmem:[%s477 + $0xb8] sm:$0xff]
  %v4237 = vmul.f32 %v4205, %v4213
  %v4238 = vmul.f32 %v4206, %v4214
  %v4239 = vmul.f32 %v4207, %v4215
  %v4240 = vmul.f32 %v4208, %v4216
  %v4241 = vmul.f32 %v4209, %v4217
  %v4242 = vmul.f32 %v4210, %v4218
  %v4243 = vmul.f32 %v4211, %v4219
  %v4244 = vmul.f32 %v4212, %v4220
  %v4245 = vmul.f32 %v4205, %v4221
  %v4246 = vmul.f32 %v4206, %v4222
  %v4247 = vmul.f32 %v4207, %v4223
  %v4248 = vmul.f32 %v4208, %v4224
  %v4249 = vmul.f32 %v4209, %v4225
  %v4250 = vmul.f32 %v4210, %v4226
  %v4251 = vmul.f32 %v4211, %v4227
  %v4252 = vmul.f32 %v4212, %v4228
  %v4253 = vmul.f32 %v4205, %v4229
  %v4254 = vmul.f32 %v4206, %v4230
  %v4255 = vmul.f32 %v4207, %v4231
  %v4256 = vmul.f32 %v4208, %v4232
  %v4257 = vmul.f32 %v4209, %v4233
  %v4258 = vmul.f32 %v4210, %v4234
  %v4259 = vmul.f32 %v4211, %v4235
  %v4260 = vmul.f32 %v4212, %v4236
  %v4262 = vsel %vm72, %v4237, 0
  %v4265 = vsel %vm72, %v4238, 0
  %v4268 = vsel %vm72, %v4239, 0
  %v4271 = vsel %vm72, %v4240, 0
  %v4274 = vsel %vm72, %v4241, 0
  %v4277 = vsel %vm72, %v4242, 0
  %v4280 = vsel %vm72, %v4243, 0
  %v4283 = vsel %vm72, %v4244, 0
  %v4286 = vsel %vm72, %v4245, 0
  %v4289 = vsel %vm72, %v4246, 0
  %v4292 = vsel %vm72, %v4247, 0
  %v4295 = vsel %vm72, %v4248, 0
  %v4298 = vsel %vm72, %v4249, 0
  %v4301 = vsel %vm72, %v4250, 0
  %v4304 = vsel %vm72, %v4251, 0
  %v4307 = vsel %vm72, %v4252, 0
  %v4310 = vsel %vm72, %v4253, 0
  %v4313 = vsel %vm72, %v4254, 0
  %v4316 = vsel %vm72, %v4255, 0
  %v4319 = vsel %vm72, %v4256, 0
  %v4322 = vsel %vm72, %v4257, 0
  %v4325 = vsel %vm72, %v4258, 0
  %v4328 = vsel %vm72, %v4259, 0
  %v4331 = vsel %vm72, %v4260, 0
  %4333 = vmatpush.msra.mxu0 0.0
  %4334 = vmatpush.msra.mxu0 0.0
  %4335 = vmatpush.msra.mxu0 0.0
  %4336 = vmatpush.msra.mxu0 0.0
  %4337 = vmatpush.msra.mxu0 0.0
  %4338 = vmatpush.msra.mxu0 0.0
  %4339 = vmatpush.msra.mxu0 0.0
  %4340 = vmatpush.msra.mxu0 0.0
  %4341 = vmatpush.msra.mxu0 0.0
  %4342 = vmatpush.msra.mxu0 0.0
  %4343 = vmatpush.msra.mxu0 0.0
  %4344 = vmatpush.msra.mxu0 0.0
  %4345 = vmatpush.msra.mxu0 %v53
  %4346 = vmatpush.msra.mxu0 %v52
  %4347 = vmatpush.msra.mxu0 %v51
  %4348 = vmatpush.msra.mxu0 %v50
  %4349 = vmatmul.f32.gmra.mxu0 %v4262
  %v4350 = vpop.f32.mrf.mxu0
  %v4351 = vadd.f32 0.0, %v4350
  %4352 = vmatmul.f32.gmra.mxu0 %v4265
  %v4353 = vpop.f32.mrf.mxu0
  %v4354 = vadd.f32 0.0, %v4353
  %4355 = vmatmul.f32.gmra.mxu0 %v4268
  %v4356 = vpop.f32.mrf.mxu0
  %v4357 = vadd.f32 0.0, %v4356
  %4358 = vmatmul.f32.gmra.mxu0 %v4271
  %v4359 = vpop.f32.mrf.mxu0
  %v4360 = vadd.f32 0.0, %v4359
  %4361 = vmatmul.f32.gmra.mxu0 %v4274
  %v4362 = vpop.f32.mrf.mxu0
  %v4363 = vadd.f32 0.0, %v4362
  %4364 = vmatmul.f32.gmra.mxu0 %v4277
  %v4365 = vpop.f32.mrf.mxu0
  %v4366 = vadd.f32 0.0, %v4365
  %4367 = vmatmul.f32.gmra.mxu0 %v4280
  %v4368 = vpop.f32.mrf.mxu0
  %v4369 = vadd.f32 0.0, %v4368
  %4370 = vmatmul.f32.gmra.mxu0 %v4283
  %v4371 = vpop.f32.mrf.mxu0
  %v4372 = vadd.f32 0.0, %v4371
  %4373 = vmatmul.f32.gmra.mxu0 %v4286
  %v4374 = vpop.f32.mrf.mxu0
  %v4375 = vadd.f32 0.0, %v4374
  %4376 = vmatmul.f32.gmra.mxu0 %v4289
  %v4377 = vpop.f32.mrf.mxu0
  %v4378 = vadd.f32 0.0, %v4377
  %4379 = vmatmul.f32.gmra.mxu0 %v4292
  %v4380 = vpop.f32.mrf.mxu0
  %v4381 = vadd.f32 0.0, %v4380
  %4382 = vmatmul.f32.gmra.mxu0 %v4295
  %v4383 = vpop.f32.mrf.mxu0
  %v4384 = vadd.f32 0.0, %v4383
  %4385 = vmatmul.f32.gmra.mxu0 %v4298
  %v4386 = vpop.f32.mrf.mxu0
  %v4387 = vadd.f32 0.0, %v4386
  %4388 = vmatmul.f32.gmra.mxu0 %v4301
  %v4389 = vpop.f32.mrf.mxu0
  %v4390 = vadd.f32 0.0, %v4389
  %4391 = vmatmul.f32.gmra.mxu0 %v4304
  %v4392 = vpop.f32.mrf.mxu0
  %v4393 = vadd.f32 0.0, %v4392
  %4394 = vmatmul.f32.gmra.mxu0 %v4307
  %v4395 = vpop.f32.mrf.mxu0
  %v4396 = vadd.f32 0.0, %v4395
  %4397 = vmatmul.f32.gmra.mxu0 %v4310
  %v4398 = vpop.f32.mrf.mxu0
  %v4399 = vadd.f32 0.0, %v4398
  %4400 = vmatmul.f32.gmra.mxu0 %v4313
  %v4401 = vpop.f32.mrf.mxu0
  %v4402 = vadd.f32 0.0, %v4401
  %4403 = vmatmul.f32.gmra.mxu0 %v4316
  %v4404 = vpop.f32.mrf.mxu0
  %v4405 = vadd.f32 0.0, %v4404
  %4406 = vmatmul.f32.gmra.mxu0 %v4319
  %v4407 = vpop.f32.mrf.mxu0
  %v4408 = vadd.f32 0.0, %v4407
  %4409 = vmatmul.f32.gmra.mxu0 %v4322
  %v4410 = vpop.f32.mrf.mxu0
  %v4411 = vadd.f32 0.0, %v4410
  %4412 = vmatmul.f32.gmra.mxu0 %v4325
  %v4413 = vpop.f32.mrf.mxu0
  %v4414 = vadd.f32 0.0, %v4413
  %4415 = vmatmul.f32.gmra.mxu0 %v4328
  %v4416 = vpop.f32.mrf.mxu0
  %v4417 = vadd.f32 0.0, %v4416
  %4418 = vmatmul.f32.gmra.mxu0 %v4331
  %v4419 = vpop.f32.mrf.mxu0
  %v4420 = vadd.f32 0.0, %v4419
  %4421 = vdwg.mxu0
  %v4422 = vmax.f32 %v4351, %v4375
  %v4423 = vmax.f32 %v4354, %v4378
  %v4424 = vmax.f32 %v4357, %v4381
  %v4425 = vmax.f32 %v4360, %v4384
  %v4426 = vmax.f32 %v4363, %v4387
  %v4427 = vmax.f32 %v4366, %v4390
  %v4428 = vmax.f32 %v4369, %v4393
  %v4429 = vmax.f32 %v4372, %v4396
  %v4430 = vmax.f32 %v4422, %v4399
  %v4431 = vmax.f32 %v4423, %v4402
  %v4432 = vmax.f32 %v4424, %v4405
  %v4433 = vmax.f32 %v4425, %v4408
  %v4434 = vmax.f32 %v4426, %v4411
  %v4435 = vmax.f32 %v4427, %v4414
  %v4436 = vmax.f32 %v4428, %v4417
  %v4437 = vmax.f32 %v4429, %v4420
  %v4438 = vsub.f32 %v4351, %v4430
  %v4439 = vsub.f32 %v4354, %v4431
  %v4440 = vsub.f32 %v4357, %v4432
  %v4441 = vsub.f32 %v4360, %v4433
  %v4442 = vsub.f32 %v4363, %v4434
  %v4443 = vsub.f32 %v4366, %v4435
  %v4444 = vsub.f32 %v4369, %v4436
  %v4445 = vsub.f32 %v4372, %v4437
  %v4446 = vmul.f32 %v4438, 1.442695
  %v4447 = vpow.pop %v4446
  %v4448 = vmul.f32 %v4439, 1.442695
  %v4449 = vpow.pop %v4448
  %v4450 = vmul.f32 %v4440, 1.442695
  %v4451 = vpow.pop %v4450
  %v4452 = vmul.f32 %v4441, 1.442695
  %v4453 = vpow.pop %v4452
  %v4454 = vmul.f32 %v4442, 1.442695
  %v4455 = vpow.pop %v4454
  %v4456 = vmul.f32 %v4443, 1.442695
  %v4457 = vpow.pop %v4456
  %v4458 = vmul.f32 %v4444, 1.442695
  %v4459 = vpow.pop %v4458
  %v4460 = vmul.f32 %v4445, 1.442695
  %v4461 = vpow.pop %v4460
  %v4462 = vsub.f32 %v4375, %v4430
  %v4463 = vsub.f32 %v4378, %v4431
  %v4464 = vsub.f32 %v4381, %v4432
  %v4465 = vsub.f32 %v4384, %v4433
  %v4466 = vsub.f32 %v4387, %v4434
  %v4467 = vsub.f32 %v4390, %v4435
  %v4468 = vsub.f32 %v4393, %v4436
  %v4469 = vsub.f32 %v4396, %v4437
  %v4470 = vmul.f32 %v4462, 1.442695
  %v4471 = vpow.pop %v4470
  %v4472 = vmul.f32 %v4463, 1.442695
  %v4473 = vpow.pop %v4472
  %v4474 = vmul.f32 %v4464, 1.442695
  %v4475 = vpow.pop %v4474
  %v4476 = vmul.f32 %v4465, 1.442695
  %v4477 = vpow.pop %v4476
  %v4478 = vmul.f32 %v4466, 1.442695
  %v4479 = vpow.pop %v4478
  %v4480 = vmul.f32 %v4467, 1.442695
  %v4481 = vpow.pop %v4480
  %v4482 = vmul.f32 %v4468, 1.442695
  %v4483 = vpow.pop %v4482
  %v4484 = vmul.f32 %v4469, 1.442695
  %v4485 = vpow.pop %v4484
  %v4486 = vsub.f32 %v4399, %v4430
  %v4487 = vsub.f32 %v4402, %v4431
  %v4488 = vsub.f32 %v4405, %v4432
  %v4489 = vsub.f32 %v4408, %v4433
  %v4490 = vsub.f32 %v4411, %v4434
  %v4491 = vsub.f32 %v4414, %v4435
  %v4492 = vsub.f32 %v4417, %v4436
  %v4493 = vsub.f32 %v4420, %v4437
  %v4494 = vmul.f32 %v4486, 1.442695
  %v4495 = vpow.pop %v4494
  %v4496 = vmul.f32 %v4487, 1.442695
  %v4497 = vpow.pop %v4496
  %v4498 = vmul.f32 %v4488, 1.442695
  %v4499 = vpow.pop %v4498
  %v4500 = vmul.f32 %v4489, 1.442695
  %v4501 = vpow.pop %v4500
  %v4502 = vmul.f32 %v4490, 1.442695
  %v4503 = vpow.pop %v4502
  %v4504 = vmul.f32 %v4491, 1.442695
  %v4505 = vpow.pop %v4504
  %v4506 = vmul.f32 %v4492, 1.442695
  %v4507 = vpow.pop %v4506
  %v4508 = vmul.f32 %v4493, 1.442695
  %v4509 = vpow.pop %v4508
  %v4510 = vadd.f32 %v4447, %v4471
  %v4511 = vadd.f32 %v4449, %v4473
  %v4512 = vadd.f32 %v4451, %v4475
  %v4513 = vadd.f32 %v4453, %v4477
  %v4514 = vadd.f32 %v4455, %v4479
  %v4515 = vadd.f32 %v4457, %v4481
  %v4516 = vadd.f32 %v4459, %v4483
  %v4517 = vadd.f32 %v4461, %v4485
  %v4518 = vadd.f32 %v4510, %v4495
  %v4519 = vadd.f32 %v4511, %v4497
  %v4520 = vadd.f32 %v4512, %v4499
  %v4521 = vadd.f32 %v4513, %v4501
  %v4522 = vadd.f32 %v4514, %v4503
  %v4523 = vadd.f32 %v4515, %v4505
  %v4524 = vadd.f32 %v4516, %v4507
  %v4525 = vadd.f32 %v4517, %v4509
  %v4526 = vrcp.pop %v4518
  %v4527 = vrcp.pop %v4519
  %v4528 = vrcp.pop %v4520
  %v4529 = vrcp.pop %v4521
  %v4530 = vrcp.pop %v4522
  %v4531 = vrcp.pop %v4523
  %v4532 = vrcp.pop %v4524
  %v4533 = vrcp.pop %v4525
  %v4534 = vmul.f32 %v4447, %v4526
  %v4535 = vmul.f32 %v4449, %v4527
  %v4536 = vmul.f32 %v4451, %v4528
  %v4537 = vmul.f32 %v4453, %v4529
  %v4538 = vmul.f32 %v4455, %v4530
  %v4539 = vmul.f32 %v4457, %v4531
  %v4540 = vmul.f32 %v4459, %v4532
  %v4541 = vmul.f32 %v4461, %v4533
  %v4542 = vld [vmem:[%s574] sm:$0xff]
  %v4543 = vld [vmem:[%s574 + $0x8] sm:$0xff]
  %v4544 = vld [vmem:[%s574 + $0x10] sm:$0xff]
  %v4545 = vld [vmem:[%s574 + $0x18] sm:$0xff]
  %v4546 = vld [vmem:[%s574 + $0x20] sm:$0xff]
  %v4547 = vld [vmem:[%s574 + $0x28] sm:$0xff]
  %v4548 = vld [vmem:[%s574 + $0x30] sm:$0xff]
  %v4549 = vld [vmem:[%s574 + $0x38] sm:$0xff]
  %v4550 = vmul.f32 %v4534, %v4542
  %v4551 = vmul.f32 %v4535, %v4543
  %v4552 = vmul.f32 %v4536, %v4544
  %v4553 = vmul.f32 %v4537, %v4545
  %v4554 = vmul.f32 %v4538, %v4546
  %v4555 = vmul.f32 %v4539, %v4547
  %v4556 = vmul.f32 %v4540, %v4548
  %v4557 = vmul.f32 %v4541, %v4549
  %v4558 = vmul.f32 %v4471, %v4526
  %v4559 = vmul.f32 %v4473, %v4527
  %v4560 = vmul.f32 %v4475, %v4528
  %v4561 = vmul.f32 %v4477, %v4529
  %v4562 = vmul.f32 %v4479, %v4530
  %v4563 = vmul.f32 %v4481, %v4531
  %v4564 = vmul.f32 %v4483, %v4532
  %v4565 = vmul.f32 %v4485, %v4533
  %v4566 = vld [vmem:[%s574 + $0x40] sm:$0xff]
  %v4567 = vld [vmem:[%s574 + $0x48] sm:$0xff]
  %v4568 = vld [vmem:[%s574 + $0x50] sm:$0xff]
  %v4569 = vld [vmem:[%s574 + $0x58] sm:$0xff]
  %v4570 = vld [vmem:[%s574 + $0x60] sm:$0xff]
  %v4571 = vld [vmem:[%s574 + $0x68] sm:$0xff]
  %v4572 = vld [vmem:[%s574 + $0x70] sm:$0xff]
  %v4573 = vld [vmem:[%s574 + $0x78] sm:$0xff]
  %v4574 = vmul.f32 %v4558, %v4566
  %v4575 = vmul.f32 %v4559, %v4567
  %v4576 = vmul.f32 %v4560, %v4568
  %v4577 = vmul.f32 %v4561, %v4569
  %v4578 = vmul.f32 %v4562, %v4570
  %v4579 = vmul.f32 %v4563, %v4571
  %v4580 = vmul.f32 %v4564, %v4572
  %v4581 = vmul.f32 %v4565, %v4573
  %v4582 = vadd.f32 %v4550, %v4574
  %v4583 = vadd.f32 %v4551, %v4575
  %v4584 = vadd.f32 %v4552, %v4576
  %v4585 = vadd.f32 %v4553, %v4577
  %v4586 = vadd.f32 %v4554, %v4578
  %v4587 = vadd.f32 %v4555, %v4579
  %v4588 = vadd.f32 %v4556, %v4580
  %v4589 = vadd.f32 %v4557, %v4581
  %v4590 = vmul.f32 %v4495, %v4526
  %v4591 = vmul.f32 %v4497, %v4527
  %v4592 = vmul.f32 %v4499, %v4528
  %v4593 = vmul.f32 %v4501, %v4529
  %v4594 = vmul.f32 %v4503, %v4530
  %v4595 = vmul.f32 %v4505, %v4531
  %v4596 = vmul.f32 %v4507, %v4532
  %v4597 = vmul.f32 %v4509, %v4533
  %v4598 = vld [vmem:[%s574 + $0x80] sm:$0xff]
  %v4599 = vld [vmem:[%s574 + $0x88] sm:$0xff]
  %v4600 = vld [vmem:[%s574 + $0x90] sm:$0xff]
  %v4601 = vld [vmem:[%s574 + $0x98] sm:$0xff]
  %v4602 = vld [vmem:[%s574 + $0xa0] sm:$0xff]
  %v4603 = vld [vmem:[%s574 + $0xa8] sm:$0xff]
  %v4604 = vld [vmem:[%s574 + $0xb0] sm:$0xff]
  %v4605 = vld [vmem:[%s574 + $0xb8] sm:$0xff]
  %v4606 = vmul.f32 %v4590, %v4598
  %v4607 = vmul.f32 %v4591, %v4599
  %v4608 = vmul.f32 %v4592, %v4600
  %v4609 = vmul.f32 %v4593, %v4601
  %v4610 = vmul.f32 %v4594, %v4602
  %v4611 = vmul.f32 %v4595, %v4603
  %v4612 = vmul.f32 %v4596, %v4604
  %v4613 = vmul.f32 %v4597, %v4605
  %v4614 = vadd.f32 %v4582, %v4606
  %v4615 = vadd.f32 %v4583, %v4607
  %v4616 = vadd.f32 %v4584, %v4608
  %v4617 = vadd.f32 %v4585, %v4609
  %v4618 = vadd.f32 %v4586, %v4610
  %v4619 = vadd.f32 %v4587, %v4611
  %v4620 = vadd.f32 %v4588, %v4612
  %v4621 = vadd.f32 %v4589, %v4613
  %4622 = vst.msk [vmem:[#allocation4] sm:$0xff] %vm72, %v4614
  %4623 = vst.msk [vmem:[#allocation4 + $0x8] sm:$0xff] %vm72, %v4615
  %4624 = vst.msk [vmem:[#allocation4 + $0x10] sm:$0xff] %vm72, %v4616
  %4625 = vst.msk [vmem:[#allocation4 + $0x18] sm:$0xff] %vm72, %v4617
  %4626 = vst.msk [vmem:[#allocation4 + $0x20] sm:$0xff] %vm72, %v4618
  %4627 = vst.msk [vmem:[#allocation4 + $0x28] sm:$0xff] %vm72, %v4619
  %4628 = vst.msk [vmem:[#allocation4 + $0x30] sm:$0xff] %vm72, %v4620
  %4629 = vst.msk [vmem:[#allocation4 + $0x38] sm:$0xff] %vm72, %v4621
  %v4630 = vld [vmem:[#allocation3 + $0x40] sm:$0xff]
  %v4631 = vld [vmem:[#allocation3 + $0x48] sm:$0xff]
  %v4632 = vld [vmem:[#allocation3 + $0x50] sm:$0xff]
  %v4633 = vld [vmem:[#allocation3 + $0x58] sm:$0xff]
  %v4634 = vld [vmem:[#allocation3 + $0x60] sm:$0xff]
  %v4635 = vld [vmem:[#allocation3 + $0x68] sm:$0xff]
  %v4636 = vld [vmem:[#allocation3 + $0x70] sm:$0xff]
  %v4637 = vld [vmem:[#allocation3 + $0x78] sm:$0xff]
  %v4638 = vld [vmem:[%s477] sm:$0xff]
  %v4639 = vld [vmem:[%s477 + $0x8] sm:$0xff]
  %v4640 = vld [vmem:[%s477 + $0x10] sm:$0xff]
  %v4641 = vld [vmem:[%s477 + $0x18] sm:$0xff]
  %v4642 = vld [vmem:[%s477 + $0x20] sm:$0xff]
  %v4643 = vld [vmem:[%s477 + $0x28] sm:$0xff]
  %v4644 = vld [vmem:[%s477 + $0x30] sm:$0xff]
  %v4645 = vld [vmem:[%s477 + $0x38] sm:$0xff]
  %v4646 = vld [vmem:[%s477 + $0x40] sm:$0xff]
  %v4647 = vld [vmem:[%s477 + $0x48] sm:$0xff]
  %v4648 = vld [vmem:[%s477 + $0x50] sm:$0xff]
  %v4649 = vld [vmem:[%s477 + $0x58] sm:$0xff]
  %v4650 = vld [vmem:[%s477 + $0x60] sm:$0xff]
  %v4651 = vld [vmem:[%s477 + $0x68] sm:$0xff]
  %v4652 = vld [vmem:[%s477 + $0x70] sm:$0xff]
  %v4653 = vld [vmem:[%s477 + $0x78] sm:$0xff]
  %v4654 = vld [vmem:[%s477 + $0x80] sm:$0xff]
  %v4655 = vld [vmem:[%s477 + $0x88] sm:$0xff]
  %v4656 = vld [vmem:[%s477 + $0x90] sm:$0xff]
  %v4657 = vld [vmem:[%s477 + $0x98] sm:$0xff]
  %v4658 = vld [vmem:[%s477 + $0xa0] sm:$0xff]
  %v4659 = vld [vmem:[%s477 + $0xa8] sm:$0xff]
  %v4660 = vld [vmem:[%s477 + $0xb0] sm:$0xff]
  %v4661 = vld [vmem:[%s477 + $0xb8] sm:$0xff]
  %v4662 = vmul.f32 %v4630, %v4638
  %v4663 = vmul.f32 %v4631, %v4639
  %v4664 = vmul.f32 %v4632, %v4640
  %v4665 = vmul.f32 %v4633, %v4641
  %v4666 = vmul.f32 %v4634, %v4642
  %v4667 = vmul.f32 %v4635, %v4643
  %v4668 = vmul.f32 %v4636, %v4644
  %v4669 = vmul.f32 %v4637, %v4645
  %v4670 = vmul.f32 %v4630, %v4646
  %v4671 = vmul.f32 %v4631, %v4647
  %v4672 = vmul.f32 %v4632, %v4648
  %v4673 = vmul.f32 %v4633, %v4649
  %v4674 = vmul.f32 %v4634, %v4650
  %v4675 = vmul.f32 %v4635, %v4651
  %v4676 = vmul.f32 %v4636, %v4652
  %v4677 = vmul.f32 %v4637, %v4653
  %v4678 = vmul.f32 %v4630, %v4654
  %v4679 = vmul.f32 %v4631, %v4655
  %v4680 = vmul.f32 %v4632, %v4656
  %v4681 = vmul.f32 %v4633, %v4657
  %v4682 = vmul.f32 %v4634, %v4658
  %v4683 = vmul.f32 %v4635, %v4659
  %v4684 = vmul.f32 %v4636, %v4660
  %v4685 = vmul.f32 %v4637, %v4661
  %v4687 = vsel %vm72, %v4662, 0
  %v4690 = vsel %vm72, %v4663, 0
  %v4693 = vsel %vm72, %v4664, 0
  %v4696 = vsel %vm72, %v4665, 0
  %v4699 = vsel %vm72, %v4666, 0
  %v4702 = vsel %vm72, %v4667, 0
  %v4705 = vsel %vm72, %v4668, 0
  %v4708 = vsel %vm72, %v4669, 0
  %v4711 = vsel %vm72, %v4670, 0
  %v4714 = vsel %vm72, %v4671, 0
  %v4717 = vsel %vm72, %v4672, 0
  %v4720 = vsel %vm72, %v4673, 0
  %v4723 = vsel %vm72, %v4674, 0
  %v4726 = vsel %vm72, %v4675, 0
  %v4729 = vsel %vm72, %v4676, 0
  %v4732 = vsel %vm72, %v4677, 0
  %v4735 = vsel %vm72, %v4678, 0
  %v4738 = vsel %vm72, %v4679, 0
  %v4741 = vsel %vm72, %v4680, 0
  %v4744 = vsel %vm72, %v4681, 0
  %v4747 = vsel %vm72, %v4682, 0
  %v4750 = vsel %vm72, %v4683, 0
  %v4753 = vsel %vm72, %v4684, 0
  %v4756 = vsel %vm72, %v4685, 0
  %4758 = vmatpush.msra.mxu0 0.0
  %4759 = vmatpush.msra.mxu0 0.0
  %4760 = vmatpush.msra.mxu0 0.0
  %4761 = vmatpush.msra.mxu0 0.0
  %4762 = vmatpush.msra.mxu0 0.0
  %4763 = vmatpush.msra.mxu0 0.0
  %4764 = vmatpush.msra.mxu0 0.0
  %4765 = vmatpush.msra.mxu0 0.0
  %4766 = vmatpush.msra.mxu0 0.0
  %4767 = vmatpush.msra.mxu0 0.0
  %4768 = vmatpush.msra.mxu0 0.0
  %4769 = vmatpush.msra.mxu0 0.0
  %4770 = vmatpush.msra.mxu0 %v53
  %4771 = vmatpush.msra.mxu0 %v52
  %4772 = vmatpush.msra.mxu0 %v51
  %4773 = vmatpush.msra.mxu0 %v50
  %4774 = vmatmul.f32.gmra.mxu0 %v4687
  %v4775 = vpop.f32.mrf.mxu0
  %v4776 = vadd.f32 0.0, %v4775
  %4777 = vmatmul.f32.gmra.mxu0 %v4690
  %v4778 = vpop.f32.mrf.mxu0
  %v4779 = vadd.f32 0.0, %v4778
  %4780 = vmatmul.f32.gmra.mxu0 %v4693
  %v4781 = vpop.f32.mrf.mxu0
  %v4782 = vadd.f32 0.0, %v4781
  %4783 = vmatmul.f32.gmra.mxu0 %v4696
  %v4784 = vpop.f32.mrf.mxu0
  %v4785 = vadd.f32 0.0, %v4784
  %4786 = vmatmul.f32.gmra.mxu0 %v4699
  %v4787 = vpop.f32.mrf.mxu0
  %v4788 = vadd.f32 0.0, %v4787
  %4789 = vmatmul.f32.gmra.mxu0 %v4702
  %v4790 = vpop.f32.mrf.mxu0
  %v4791 = vadd.f32 0.0, %v4790
  %4792 = vmatmul.f32.gmra.mxu0 %v4705
  %v4793 = vpop.f32.mrf.mxu0
  %v4794 = vadd.f32 0.0, %v4793
  %4795 = vmatmul.f32.gmra.mxu0 %v4708
  %v4796 = vpop.f32.mrf.mxu0
  %v4797 = vadd.f32 0.0, %v4796
  %4798 = vmatmul.f32.gmra.mxu0 %v4711
  %v4799 = vpop.f32.mrf.mxu0
  %v4800 = vadd.f32 0.0, %v4799
  %4801 = vmatmul.f32.gmra.mxu0 %v4714
  %v4802 = vpop.f32.mrf.mxu0
  %v4803 = vadd.f32 0.0, %v4802
  %4804 = vmatmul.f32.gmra.mxu0 %v4717
  %v4805 = vpop.f32.mrf.mxu0
  %v4806 = vadd.f32 0.0, %v4805
  %4807 = vmatmul.f32.gmra.mxu0 %v4720
  %v4808 = vpop.f32.mrf.mxu0
  %v4809 = vadd.f32 0.0, %v4808
  %4810 = vmatmul.f32.gmra.mxu0 %v4723
  %v4811 = vpop.f32.mrf.mxu0
  %v4812 = vadd.f32 0.0, %v4811
  %4813 = vmatmul.f32.gmra.mxu0 %v4726
  %v4814 = vpop.f32.mrf.mxu0
  %v4815 = vadd.f32 0.0, %v4814
  %4816 = vmatmul.f32.gmra.mxu0 %v4729
  %v4817 = vpop.f32.mrf.mxu0
  %v4818 = vadd.f32 0.0, %v4817
  %4819 = vmatmul.f32.gmra.mxu0 %v4732
  %v4820 = vpop.f32.mrf.mxu0
  %v4821 = vadd.f32 0.0, %v4820
  %4822 = vmatmul.f32.gmra.mxu0 %v4735
  %v4823 = vpop.f32.mrf.mxu0
  %v4824 = vadd.f32 0.0, %v4823
  %4825 = vmatmul.f32.gmra.mxu0 %v4738
  %v4826 = vpop.f32.mrf.mxu0
  %v4827 = vadd.f32 0.0, %v4826
  %4828 = vmatmul.f32.gmra.mxu0 %v4741
  %v4829 = vpop.f32.mrf.mxu0
  %v4830 = vadd.f32 0.0, %v4829
  %4831 = vmatmul.f32.gmra.mxu0 %v4744
  %v4832 = vpop.f32.mrf.mxu0
  %v4833 = vadd.f32 0.0, %v4832
  %4834 = vmatmul.f32.gmra.mxu0 %v4747
  %v4835 = vpop.f32.mrf.mxu0
  %v4836 = vadd.f32 0.0, %v4835
  %4837 = vmatmul.f32.gmra.mxu0 %v4750
  %v4838 = vpop.f32.mrf.mxu0
  %v4839 = vadd.f32 0.0, %v4838
  %4840 = vmatmul.f32.gmra.mxu0 %v4753
  %v4841 = vpop.f32.mrf.mxu0
  %v4842 = vadd.f32 0.0, %v4841
  %4843 = vmatmul.f32.gmra.mxu0 %v4756
  %v4844 = vpop.f32.mrf.mxu0
  %v4845 = vadd.f32 0.0, %v4844
  %4846 = vdwg.mxu0
  %v4847 = vmax.f32 %v4776, %v4800
  %v4848 = vmax.f32 %v4779, %v4803
  %v4849 = vmax.f32 %v4782, %v4806
  %v4850 = vmax.f32 %v4785, %v4809
  %v4851 = vmax.f32 %v4788, %v4812
  %v4852 = vmax.f32 %v4791, %v4815
  %v4853 = vmax.f32 %v4794, %v4818
  %v4854 = vmax.f32 %v4797, %v4821
  %v4855 = vmax.f32 %v4847, %v4824
  %v4856 = vmax.f32 %v4848, %v4827
  %v4857 = vmax.f32 %v4849, %v4830
  %v4858 = vmax.f32 %v4850, %v4833
  %v4859 = vmax.f32 %v4851, %v4836
  %v4860 = vmax.f32 %v4852, %v4839
  %v4861 = vmax.f32 %v4853, %v4842
  %v4862 = vmax.f32 %v4854, %v4845
  %v4863 = vsub.f32 %v4776, %v4855
  %v4864 = vsub.f32 %v4779, %v4856
  %v4865 = vsub.f32 %v4782, %v4857
  %v4866 = vsub.f32 %v4785, %v4858
  %v4867 = vsub.f32 %v4788, %v4859
  %v4868 = vsub.f32 %v4791, %v4860
  %v4869 = vsub.f32 %v4794, %v4861
  %v4870 = vsub.f32 %v4797, %v4862
  %v4871 = vmul.f32 %v4863, 1.442695
  %v4872 = vpow.pop %v4871
  %v4873 = vmul.f32 %v4864, 1.442695
  %v4874 = vpow.pop %v4873
  %v4875 = vmul.f32 %v4865, 1.442695
  %v4876 = vpow.pop %v4875
  %v4877 = vmul.f32 %v4866, 1.442695
  %v4878 = vpow.pop %v4877
  %v4879 = vmul.f32 %v4867, 1.442695
  %v4880 = vpow.pop %v4879
  %v4881 = vmul.f32 %v4868, 1.442695
  %v4882 = vpow.pop %v4881
  %v4883 = vmul.f32 %v4869, 1.442695
  %v4884 = vpow.pop %v4883
  %v4885 = vmul.f32 %v4870, 1.442695
  %v4886 = vpow.pop %v4885
  %v4887 = vsub.f32 %v4800, %v4855
  %v4888 = vsub.f32 %v4803, %v4856
  %v4889 = vsub.f32 %v4806, %v4857
  %v4890 = vsub.f32 %v4809, %v4858
  %v4891 = vsub.f32 %v4812, %v4859
  %v4892 = vsub.f32 %v4815, %v4860
  %v4893 = vsub.f32 %v4818, %v4861
  %v4894 = vsub.f32 %v4821, %v4862
  %v4895 = vmul.f32 %v4887, 1.442695
  %v4896 = vpow.pop %v4895
  %v4897 = vmul.f32 %v4888, 1.442695
  %v4898 = vpow.pop %v4897
  %v4899 = vmul.f32 %v4889, 1.442695
  %v4900 = vpow.pop %v4899
  %v4901 = vmul.f32 %v4890, 1.442695
  %v4902 = vpow.pop %v4901
  %v4903 = vmul.f32 %v4891, 1.442695
  %v4904 = vpow.pop %v4903
  %v4905 = vmul.f32 %v4892, 1.442695
  %v4906 = vpow.pop %v4905
  %v4907 = vmul.f32 %v4893, 1.442695
  %v4908 = vpow.pop %v4907
  %v4909 = vmul.f32 %v4894, 1.442695
  %v4910 = vpow.pop %v4909
  %v4911 = vsub.f32 %v4824, %v4855
  %v4912 = vsub.f32 %v4827, %v4856
  %v4913 = vsub.f32 %v4830, %v4857
  %v4914 = vsub.f32 %v4833, %v4858
  %v4915 = vsub.f32 %v4836, %v4859
  %v4916 = vsub.f32 %v4839, %v4860
  %v4917 = vsub.f32 %v4842, %v4861
  %v4918 = vsub.f32 %v4845, %v4862
  %v4919 = vmul.f32 %v4911, 1.442695
  %v4920 = vpow.pop %v4919
  %v4921 = vmul.f32 %v4912, 1.442695
  %v4922 = vpow.pop %v4921
  %v4923 = vmul.f32 %v4913, 1.442695
  %v4924 = vpow.pop %v4923
  %v4925 = vmul.f32 %v4914, 1.442695
  %v4926 = vpow.pop %v4925
  %v4927 = vmul.f32 %v4915, 1.442695
  %v4928 = vpow.pop %v4927
  %v4929 = vmul.f32 %v4916, 1.442695
  %v4930 = vpow.pop %v4929
  %v4931 = vmul.f32 %v4917, 1.442695
  %v4932 = vpow.pop %v4931
  %v4933 = vmul.f32 %v4918, 1.442695
  %v4934 = vpow.pop %v4933
  %v4935 = vadd.f32 %v4872, %v4896
  %v4936 = vadd.f32 %v4874, %v4898
  %v4937 = vadd.f32 %v4876, %v4900
  %v4938 = vadd.f32 %v4878, %v4902
  %v4939 = vadd.f32 %v4880, %v4904
  %v4940 = vadd.f32 %v4882, %v4906
  %v4941 = vadd.f32 %v4884, %v4908
  %v4942 = vadd.f32 %v4886, %v4910
  %v4943 = vadd.f32 %v4935, %v4920
  %v4944 = vadd.f32 %v4936, %v4922
  %v4945 = vadd.f32 %v4937, %v4924
  %v4946 = vadd.f32 %v4938, %v4926
  %v4947 = vadd.f32 %v4939, %v4928
  %v4948 = vadd.f32 %v4940, %v4930
  %v4949 = vadd.f32 %v4941, %v4932
  %v4950 = vadd.f32 %v4942, %v4934
  %v4951 = vrcp.pop %v4943
  %v4952 = vrcp.pop %v4944
  %v4953 = vrcp.pop %v4945
  %v4954 = vrcp.pop %v4946
  %v4955 = vrcp.pop %v4947
  %v4956 = vrcp.pop %v4948
  %v4957 = vrcp.pop %v4949
  %v4958 = vrcp.pop %v4950
  %v4959 = vmul.f32 %v4872, %v4951
  %v4960 = vmul.f32 %v4874, %v4952
  %v4961 = vmul.f32 %v4876, %v4953
  %v4962 = vmul.f32 %v4878, %v4954
  %v4963 = vmul.f32 %v4880, %v4955
  %v4964 = vmul.f32 %v4882, %v4956
  %v4965 = vmul.f32 %v4884, %v4957
  %v4966 = vmul.f32 %v4886, %v4958
  %v4967 = vld [vmem:[%s574] sm:$0xff]
  %v4968 = vld [vmem:[%s574 + $0x8] sm:$0xff]
  %v4969 = vld [vmem:[%s574 + $0x10] sm:$0xff]
  %v4970 = vld [vmem:[%s574 + $0x18] sm:$0xff]
  %v4971 = vld [vmem:[%s574 + $0x20] sm:$0xff]
  %v4972 = vld [vmem:[%s574 + $0x28] sm:$0xff]
  %v4973 = vld [vmem:[%s574 + $0x30] sm:$0xff]
  %v4974 = vld [vmem:[%s574 + $0x38] sm:$0xff]
  %v4975 = vmul.f32 %v4959, %v4967
  %v4976 = vmul.f32 %v4960, %v4968
  %v4977 = vmul.f32 %v4961, %v4969
  %v4978 = vmul.f32 %v4962, %v4970
  %v4979 = vmul.f32 %v4963, %v4971
  %v4980 = vmul.f32 %v4964, %v4972
  %v4981 = vmul.f32 %v4965, %v4973
  %v4982 = vmul.f32 %v4966, %v4974
  %v4983 = vmul.f32 %v4896, %v4951
  %v4984 = vmul.f32 %v4898, %v4952
  %v4985 = vmul.f32 %v4900, %v4953
  %v4986 = vmul.f32 %v4902, %v4954
  %v4987 = vmul.f32 %v4904, %v4955
  %v4988 = vmul.f32 %v4906, %v4956
  %v4989 = vmul.f32 %v4908, %v4957
  %v4990 = vmul.f32 %v4910, %v4958
  %v4991 = vld [vmem:[%s574 + $0x40] sm:$0xff]
  %v4992 = vld [vmem:[%s574 + $0x48] sm:$0xff]
  %v4993 = vld [vmem:[%s574 + $0x50] sm:$0xff]
  %v4994 = vld [vmem:[%s574 + $0x58] sm:$0xff]
  %v4995 = vld [vmem:[%s574 + $0x60] sm:$0xff]
  %v4996 = vld [vmem:[%s574 + $0x68] sm:$0xff]
  %v4997 = vld [vmem:[%s574 + $0x70] sm:$0xff]
  %v4998 = vld [vmem:[%s574 + $0x78] sm:$0xff]
  %v4999 = vmul.f32 %v4983, %v4991
  %v5000 = vmul.f32 %v4984, %v4992
  %v5001 = vmul.f32 %v4985, %v4993
  %v5002 = vmul.f32 %v4986, %v4994
  %v5003 = vmul.f32 %v4987, %v4995
  %v5004 = vmul.f32 %v4988, %v4996
  %v5005 = vmul.f32 %v4989, %v4997
  %v5006 = vmul.f32 %v4990, %v4998
  %v5007 = vadd.f32 %v4975, %v4999
  %v5008 = vadd.f32 %v4976, %v5000
  %v5009 = vadd.f32 %v4977, %v5001
  %v5010 = vadd.f32 %v4978, %v5002
  %v5011 = vadd.f32 %v4979, %v5003
  %v5012 = vadd.f32 %v4980, %v5004
  %v5013 = vadd.f32 %v4981, %v5005
  %v5014 = vadd.f32 %v4982, %v5006
  %v5015 = vmul.f32 %v4920, %v4951
  %v5016 = vmul.f32 %v4922, %v4952
  %v5017 = vmul.f32 %v4924, %v4953
  %v5018 = vmul.f32 %v4926, %v4954
  %v5019 = vmul.f32 %v4928, %v4955
  %v5020 = vmul.f32 %v4930, %v4956
  %v5021 = vmul.f32 %v4932, %v4957
  %v5022 = vmul.f32 %v4934, %v4958
  %v5023 = vld [vmem:[%s574 + $0x80] sm:$0xff]
  %v5024 = vld [vmem:[%s574 + $0x88] sm:$0xff]
  %v5025 = vld [vmem:[%s574 + $0x90] sm:$0xff]
  %v5026 = vld [vmem:[%s574 + $0x98] sm:$0xff]
  %v5027 = vld [vmem:[%s574 + $0xa0] sm:$0xff]
  %v5028 = vld [vmem:[%s574 + $0xa8] sm:$0xff]
  %v5029 = vld [vmem:[%s574 + $0xb0] sm:$0xff]
  %v5030 = vld [vmem:[%s574 + $0xb8] sm:$0xff]
  %v5031 = vmul.f32 %v5015, %v5023
  %v5032 = vmul.f32 %v5016, %v5024
  %v5033 = vmul.f32 %v5017, %v5025
  %v5034 = vmul.f32 %v5018, %v5026
  %v5035 = vmul.f32 %v5019, %v5027
  %v5036 = vmul.f32 %v5020, %v5028
  %v5037 = vmul.f32 %v5021, %v5029
  %v5038 = vmul.f32 %v5022, %v5030
  %v5039 = vadd.f32 %v5007, %v5031
  %v5040 = vadd.f32 %v5008, %v5032
  %v5041 = vadd.f32 %v5009, %v5033
  %v5042 = vadd.f32 %v5010, %v5034
  %v5043 = vadd.f32 %v5011, %v5035
  %v5044 = vadd.f32 %v5012, %v5036
  %v5045 = vadd.f32 %v5013, %v5037
  %v5046 = vadd.f32 %v5014, %v5038
  %5047 = vst.msk [vmem:[#allocation4 + $0x40] sm:$0xff] %vm72, %v5039
  %5048 = vst.msk [vmem:[#allocation4 + $0x48] sm:$0xff] %vm72, %v5040
  %5049 = vst.msk [vmem:[#allocation4 + $0x50] sm:$0xff] %vm72, %v5041
  %5050 = vst.msk [vmem:[#allocation4 + $0x58] sm:$0xff] %vm72, %v5042
  %5051 = vst.msk [vmem:[#allocation4 + $0x60] sm:$0xff] %vm72, %v5043
  %5052 = vst.msk [vmem:[#allocation4 + $0x68] sm:$0xff] %vm72, %v5044
  %5053 = vst.msk [vmem:[#allocation4 + $0x70] sm:$0xff] %vm72, %v5045
  %5054 = vst.msk [vmem:[#allocation4 + $0x78] sm:$0xff] %vm72, %v5046
  %v5055 = vld [vmem:[#allocation3 + $0x80] sm:$0xff]
  %v5056 = vld [vmem:[#allocation3 + $0x88] sm:$0xff]
  %v5057 = vld [vmem:[#allocation3 + $0x90] sm:$0xff]
  %v5058 = vld [vmem:[#allocation3 + $0x98] sm:$0xff]
  %v5059 = vld [vmem:[#allocation3 + $0xa0] sm:$0xff]
  %v5060 = vld [vmem:[#allocation3 + $0xa8] sm:$0xff]
  %v5061 = vld [vmem:[#allocation3 + $0xb0] sm:$0xff]
  %v5062 = vld [vmem:[#allocation3 + $0xb8] sm:$0xff]
  %v5063 = vld [vmem:[%s477] sm:$0xff]
  %v5064 = vld [vmem:[%s477 + $0x8] sm:$0xff]
  %v5065 = vld [vmem:[%s477 + $0x10] sm:$0xff]
  %v5066 = vld [vmem:[%s477 + $0x18] sm:$0xff]
  %v5067 = vld [vmem:[%s477 + $0x20] sm:$0xff]
  %v5068 = vld [vmem:[%s477 + $0x28] sm:$0xff]
  %v5069 = vld [vmem:[%s477 + $0x30] sm:$0xff]
  %v5070 = vld [vmem:[%s477 + $0x38] sm:$0xff]
  %v5071 = vld [vmem:[%s477 + $0x40] sm:$0xff]
  %v5072 = vld [vmem:[%s477 + $0x48] sm:$0xff]
  %v5073 = vld [vmem:[%s477 + $0x50] sm:$0xff]
  %v5074 = vld [vmem:[%s477 + $0x58] sm:$0xff]
  %v5075 = vld [vmem:[%s477 + $0x60] sm:$0xff]
  %v5076 = vld [vmem:[%s477 + $0x68] sm:$0xff]
  %v5077 = vld [vmem:[%s477 + $0x70] sm:$0xff]
  %v5078 = vld [vmem:[%s477 + $0x78] sm:$0xff]
  %v5079 = vld [vmem:[%s477 + $0x80] sm:$0xff]
  %v5080 = vld [vmem:[%s477 + $0x88] sm:$0xff]
  %v5081 = vld [vmem:[%s477 + $0x90] sm:$0xff]
  %v5082 = vld [vmem:[%s477 + $0x98] sm:$0xff]
  %v5083 = vld [vmem:[%s477 + $0xa0] sm:$0xff]
  %v5084 = vld [vmem:[%s477 + $0xa8] sm:$0xff]
  %v5085 = vld [vmem:[%s477 + $0xb0] sm:$0xff]
  %v5086 = vld [vmem:[%s477 + $0xb8] sm:$0xff]
  %v5087 = vmul.f32 %v5055, %v5063
  %v5088 = vmul.f32 %v5056, %v5064
  %v5089 = vmul.f32 %v5057, %v5065
  %v5090 = vmul.f32 %v5058, %v5066
  %v5091 = vmul.f32 %v5059, %v5067
  %v5092 = vmul.f32 %v5060, %v5068
  %v5093 = vmul.f32 %v5061, %v5069
  %v5094 = vmul.f32 %v5062, %v5070
  %v5095 = vmul.f32 %v5055, %v5071
  %v5096 = vmul.f32 %v5056, %v5072
  %v5097 = vmul.f32 %v5057, %v5073
  %v5098 = vmul.f32 %v5058, %v5074
  %v5099 = vmul.f32 %v5059, %v5075
  %v5100 = vmul.f32 %v5060, %v5076
  %v5101 = vmul.f32 %v5061, %v5077
  %v5102 = vmul.f32 %v5062, %v5078
  %v5103 = vmul.f32 %v5055, %v5079
  %v5104 = vmul.f32 %v5056, %v5080
  %v5105 = vmul.f32 %v5057, %v5081
  %v5106 = vmul.f32 %v5058, %v5082
  %v5107 = vmul.f32 %v5059, %v5083
  %v5108 = vmul.f32 %v5060, %v5084
  %v5109 = vmul.f32 %v5061, %v5085
  %v5110 = vmul.f32 %v5062, %v5086
  %v5112 = vsel %vm72, %v5087, 0
  %v5115 = vsel %vm72, %v5088, 0
  %v5118 = vsel %vm72, %v5089, 0
  %v5121 = vsel %vm72, %v5090, 0
  %v5124 = vsel %vm72, %v5091, 0
  %v5127 = vsel %vm72, %v5092, 0
  %v5130 = vsel %vm72, %v5093, 0
  %v5133 = vsel %vm72, %v5094, 0
  %v5136 = vsel %vm72, %v5095, 0
  %v5139 = vsel %vm72, %v5096, 0
  %v5142 = vsel %vm72, %v5097, 0
  %v5145 = vsel %vm72, %v5098, 0
  %v5148 = vsel %vm72, %v5099, 0
  %v5151 = vsel %vm72, %v5100, 0
  %v5154 = vsel %vm72, %v5101, 0
  %v5157 = vsel %vm72, %v5102, 0
  %v5160 = vsel %vm72, %v5103, 0
  %v5163 = vsel %vm72, %v5104, 0
  %v5166 = vsel %vm72, %v5105, 0
  %v5169 = vsel %vm72, %v5106, 0
  %v5172 = vsel %vm72, %v5107, 0
  %v5175 = vsel %vm72, %v5108, 0
  %v5178 = vsel %vm72, %v5109, 0
  %v5181 = vsel %vm72, %v5110, 0
  %5183 = vmatpush.msra.mxu0 0.0
  %5184 = vmatpush.msra.mxu0 0.0
  %5185 = vmatpush.msra.mxu0 0.0
  %5186 = vmatpush.msra.mxu0 0.0
  %5187 = vmatpush.msra.mxu0 0.0
  %5188 = vmatpush.msra.mxu0 0.0
  %5189 = vmatpush.msra.mxu0 0.0
  %5190 = vmatpush.msra.mxu0 0.0
  %5191 = vmatpush.msra.mxu0 0.0
  %5192 = vmatpush.msra.mxu0 0.0
  %5193 = vmatpush.msra.mxu0 0.0
  %5194 = vmatpush.msra.mxu0 0.0
  %5195 = vmatpush.msra.mxu0 %v53
  %5196 = vmatpush.msra.mxu0 %v52
  %5197 = vmatpush.msra.mxu0 %v51
  %5198 = vmatpush.msra.mxu0 %v50
  %5199 = vmatmul.f32.gmra.mxu0 %v5112
  %v5200 = vpop.f32.mrf.mxu0
  %v5201 = vadd.f32 0.0, %v5200
  %5202 = vmatmul.f32.gmra.mxu0 %v5115
  %v5203 = vpop.f32.mrf.mxu0
  %v5204 = vadd.f32 0.0, %v5203
  %5205 = vmatmul.f32.gmra.mxu0 %v5118
  %v5206 = vpop.f32.mrf.mxu0
  %v5207 = vadd.f32 0.0, %v5206
  %5208 = vmatmul.f32.gmra.mxu0 %v5121
  %v5209 = vpop.f32.mrf.mxu0
  %v5210 = vadd.f32 0.0, %v5209
  %5211 = vmatmul.f32.gmra.mxu0 %v5124
  %v5212 = vpop.f32.mrf.mxu0
  %v5213 = vadd.f32 0.0, %v5212
  %5214 = vmatmul.f32.gmra.mxu0 %v5127
  %v5215 = vpop.f32.mrf.mxu0
  %v5216 = vadd.f32 0.0, %v5215
  %5217 = vmatmul.f32.gmra.mxu0 %v5130
  %v5218 = vpop.f32.mrf.mxu0
  %v5219 = vadd.f32 0.0, %v5218
  %5220 = vmatmul.f32.gmra.mxu0 %v5133
  %v5221 = vpop.f32.mrf.mxu0
  %v5222 = vadd.f32 0.0, %v5221
  %5223 = vmatmul.f32.gmra.mxu0 %v5136
  %v5224 = vpop.f32.mrf.mxu0
  %v5225 = vadd.f32 0.0, %v5224
  %5226 = vmatmul.f32.gmra.mxu0 %v5139
  %v5227 = vpop.f32.mrf.mxu0
  %v5228 = vadd.f32 0.0, %v5227
  %5229 = vmatmul.f32.gmra.mxu0 %v5142
  %v5230 = vpop.f32.mrf.mxu0
  %v5231 = vadd.f32 0.0, %v5230
  %5232 = vmatmul.f32.gmra.mxu0 %v5145
  %v5233 = vpop.f32.mrf.mxu0
  %v5234 = vadd.f32 0.0, %v5233
  %5235 = vmatmul.f32.gmra.mxu0 %v5148
  %v5236 = vpop.f32.mrf.mxu0
  %v5237 = vadd.f32 0.0, %v5236
  %5238 = vmatmul.f32.gmra.mxu0 %v5151
  %v5239 = vpop.f32.mrf.mxu0
  %v5240 = vadd.f32 0.0, %v5239
  %5241 = vmatmul.f32.gmra.mxu0 %v5154
  %v5242 = vpop.f32.mrf.mxu0
  %v5243 = vadd.f32 0.0, %v5242
  %5244 = vmatmul.f32.gmra.mxu0 %v5157
  %v5245 = vpop.f32.mrf.mxu0
  %v5246 = vadd.f32 0.0, %v5245
  %5247 = vmatmul.f32.gmra.mxu0 %v5160
  %v5248 = vpop.f32.mrf.mxu0
  %v5249 = vadd.f32 0.0, %v5248
  %5250 = vmatmul.f32.gmra.mxu0 %v5163
  %v5251 = vpop.f32.mrf.mxu0
  %v5252 = vadd.f32 0.0, %v5251
  %5253 = vmatmul.f32.gmra.mxu0 %v5166
  %v5254 = vpop.f32.mrf.mxu0
  %v5255 = vadd.f32 0.0, %v5254
  %5256 = vmatmul.f32.gmra.mxu0 %v5169
  %v5257 = vpop.f32.mrf.mxu0
  %v5258 = vadd.f32 0.0, %v5257
  %5259 = vmatmul.f32.gmra.mxu0 %v5172
  %v5260 = vpop.f32.mrf.mxu0
  %v5261 = vadd.f32 0.0, %v5260
  %5262 = vmatmul.f32.gmra.mxu0 %v5175
  %v5263 = vpop.f32.mrf.mxu0
  %v5264 = vadd.f32 0.0, %v5263
  %5265 = vmatmul.f32.gmra.mxu0 %v5178
  %v5266 = vpop.f32.mrf.mxu0
  %v5267 = vadd.f32 0.0, %v5266
  %5268 = vmatmul.f32.gmra.mxu0 %v5181
  %v5269 = vpop.f32.mrf.mxu0
  %v5270 = vadd.f32 0.0, %v5269
  %5271 = vdwg.mxu0
  %v5272 = vmax.f32 %v5201, %v5225
  %v5273 = vmax.f32 %v5204, %v5228
  %v5274 = vmax.f32 %v5207, %v5231
  %v5275 = vmax.f32 %v5210, %v5234
  %v5276 = vmax.f32 %v5213, %v5237
  %v5277 = vmax.f32 %v5216, %v5240
  %v5278 = vmax.f32 %v5219, %v5243
  %v5279 = vmax.f32 %v5222, %v5246
  %v5280 = vmax.f32 %v5272, %v5249
  %v5281 = vmax.f32 %v5273, %v5252
  %v5282 = vmax.f32 %v5274, %v5255
  %v5283 = vmax.f32 %v5275, %v5258
  %v5284 = vmax.f32 %v5276, %v5261
  %v5285 = vmax.f32 %v5277, %v5264
  %v5286 = vmax.f32 %v5278, %v5267
  %v5287 = vmax.f32 %v5279, %v5270
  %v5288 = vsub.f32 %v5201, %v5280
  %v5289 = vsub.f32 %v5204, %v5281
  %v5290 = vsub.f32 %v5207, %v5282
  %v5291 = vsub.f32 %v5210, %v5283
  %v5292 = vsub.f32 %v5213, %v5284
  %v5293 = vsub.f32 %v5216, %v5285
  %v5294 = vsub.f32 %v5219, %v5286
  %v5295 = vsub.f32 %v5222, %v5287
  %v5296 = vmul.f32 %v5288, 1.442695
  %v5297 = vpow.pop %v5296
  %v5298 = vmul.f32 %v5289, 1.442695
  %v5299 = vpow.pop %v5298
  %v5300 = vmul.f32 %v5290, 1.442695
  %v5301 = vpow.pop %v5300
  %v5302 = vmul.f32 %v5291, 1.442695
  %v5303 = vpow.pop %v5302
  %v5304 = vmul.f32 %v5292, 1.442695
  %v5305 = vpow.pop %v5304
  %v5306 = vmul.f32 %v5293, 1.442695
  %v5307 = vpow.pop %v5306
  %v5308 = vmul.f32 %v5294, 1.442695
  %v5309 = vpow.pop %v5308
  %v5310 = vmul.f32 %v5295, 1.442695
  %v5311 = vpow.pop %v5310
  %v5312 = vsub.f32 %v5225, %v5280
  %v5313 = vsub.f32 %v5228, %v5281
  %v5314 = vsub.f32 %v5231, %v5282
  %v5315 = vsub.f32 %v5234, %v5283
  %v5316 = vsub.f32 %v5237, %v5284
  %v5317 = vsub.f32 %v5240, %v5285
  %v5318 = vsub.f32 %v5243, %v5286
  %v5319 = vsub.f32 %v5246, %v5287
  %v5320 = vmul.f32 %v5312, 1.442695
  %v5321 = vpow.pop %v5320
  %v5322 = vmul.f32 %v5313, 1.442695
  %v5323 = vpow.pop %v5322
  %v5324 = vmul.f32 %v5314, 1.442695
  %v5325 = vpow.pop %v5324
  %v5326 = vmul.f32 %v5315, 1.442695
  %v5327 = vpow.pop %v5326
  %v5328 = vmul.f32 %v5316, 1.442695
  %v5329 = vpow.pop %v5328
  %v5330 = vmul.f32 %v5317, 1.442695
  %v5331 = vpow.pop %v5330
  %v5332 = vmul.f32 %v5318, 1.442695
  %v5333 = vpow.pop %v5332
  %v5334 = vmul.f32 %v5319, 1.442695
  %v5335 = vpow.pop %v5334
  %v5336 = vsub.f32 %v5249, %v5280
  %v5337 = vsub.f32 %v5252, %v5281
  %v5338 = vsub.f32 %v5255, %v5282
  %v5339 = vsub.f32 %v5258, %v5283
  %v5340 = vsub.f32 %v5261, %v5284
  %v5341 = vsub.f32 %v5264, %v5285
  %v5342 = vsub.f32 %v5267, %v5286
  %v5343 = vsub.f32 %v5270, %v5287
  %v5344 = vmul.f32 %v5336, 1.442695
  %v5345 = vpow.pop %v5344
  %v5346 = vmul.f32 %v5337, 1.442695
  %v5347 = vpow.pop %v5346
  %v5348 = vmul.f32 %v5338, 1.442695
  %v5349 = vpow.pop %v5348
  %v5350 = vmul.f32 %v5339, 1.442695
  %v5351 = vpow.pop %v5350
  %v5352 = vmul.f32 %v5340, 1.442695
  %v5353 = vpow.pop %v5352
  %v5354 = vmul.f32 %v5341, 1.442695
  %v5355 = vpow.pop %v5354
  %v5356 = vmul.f32 %v5342, 1.442695
  %v5357 = vpow.pop %v5356
  %v5358 = vmul.f32 %v5343, 1.442695
  %v5359 = vpow.pop %v5358
  %v5360 = vadd.f32 %v5297, %v5321
  %v5361 = vadd.f32 %v5299, %v5323
  %v5362 = vadd.f32 %v5301, %v5325
  %v5363 = vadd.f32 %v5303, %v5327
  %v5364 = vadd.f32 %v5305, %v5329
  %v5365 = vadd.f32 %v5307, %v5331
  %v5366 = vadd.f32 %v5309, %v5333
  %v5367 = vadd.f32 %v5311, %v5335
  %v5368 = vadd.f32 %v5360, %v5345
  %v5369 = vadd.f32 %v5361, %v5347
  %v5370 = vadd.f32 %v5362, %v5349
  %v5371 = vadd.f32 %v5363, %v5351
  %v5372 = vadd.f32 %v5364, %v5353
  %v5373 = vadd.f32 %v5365, %v5355
  %v5374 = vadd.f32 %v5366, %v5357
  %v5375 = vadd.f32 %v5367, %v5359
  %v5376 = vrcp.pop %v5368
  %v5377 = vrcp.pop %v5369
  %v5378 = vrcp.pop %v5370
  %v5379 = vrcp.pop %v5371
  %v5380 = vrcp.pop %v5372
  %v5381 = vrcp.pop %v5373
  %v5382 = vrcp.pop %v5374
  %v5383 = vrcp.pop %v5375
  %v5384 = vmul.f32 %v5297, %v5376
  %v5385 = vmul.f32 %v5299, %v5377
  %v5386 = vmul.f32 %v5301, %v5378
  %v5387 = vmul.f32 %v5303, %v5379
  %v5388 = vmul.f32 %v5305, %v5380
  %v5389 = vmul.f32 %v5307, %v5381
  %v5390 = vmul.f32 %v5309, %v5382
  %v5391 = vmul.f32 %v5311, %v5383
  %v5392 = vld [vmem:[%s574] sm:$0xff]
  %v5393 = vld [vmem:[%s574 + $0x8] sm:$0xff]
  %v5394 = vld [vmem:[%s574 + $0x10] sm:$0xff]
  %v5395 = vld [vmem:[%s574 + $0x18] sm:$0xff]
  %v5396 = vld [vmem:[%s574 + $0x20] sm:$0xff]
  %v5397 = vld [vmem:[%s574 + $0x28] sm:$0xff]
  %v5398 = vld [vmem:[%s574 + $0x30] sm:$0xff]
  %v5399 = vld [vmem:[%s574 + $0x38] sm:$0xff]
  %v5400 = vmul.f32 %v5384, %v5392
  %v5401 = vmul.f32 %v5385, %v5393
  %v5402 = vmul.f32 %v5386, %v5394
  %v5403 = vmul.f32 %v5387, %v5395
  %v5404 = vmul.f32 %v5388, %v5396
  %v5405 = vmul.f32 %v5389, %v5397
  %v5406 = vmul.f32 %v5390, %v5398
  %v5407 = vmul.f32 %v5391, %v5399
  %v5408 = vmul.f32 %v5321, %v5376
  %v5409 = vmul.f32 %v5323, %v5377
  %v5410 = vmul.f32 %v5325, %v5378
  %v5411 = vmul.f32 %v5327, %v5379
  %v5412 = vmul.f32 %v5329, %v5380
  %v5413 = vmul.f32 %v5331, %v5381
  %v5414 = vmul.f32 %v5333, %v5382
  %v5415 = vmul.f32 %v5335, %v5383
  %v5416 = vld [vmem:[%s574 + $0x40] sm:$0xff]
  %v5417 = vld [vmem:[%s574 + $0x48] sm:$0xff]
  %v5418 = vld [vmem:[%s574 + $0x50] sm:$0xff]
  %v5419 = vld [vmem:[%s574 + $0x58] sm:$0xff]
  %v5420 = vld [vmem:[%s574 + $0x60] sm:$0xff]
  %v5421 = vld [vmem:[%s574 + $0x68] sm:$0xff]
  %v5422 = vld [vmem:[%s574 + $0x70] sm:$0xff]
  %v5423 = vld [vmem:[%s574 + $0x78] sm:$0xff]
  %v5424 = vmul.f32 %v5408, %v5416
  %v5425 = vmul.f32 %v5409, %v5417
  %v5426 = vmul.f32 %v5410, %v5418
  %v5427 = vmul.f32 %v5411, %v5419
  %v5428 = vmul.f32 %v5412, %v5420
  %v5429 = vmul.f32 %v5413, %v5421
  %v5430 = vmul.f32 %v5414, %v5422
  %v5431 = vmul.f32 %v5415, %v5423
  %v5432 = vadd.f32 %v5400, %v5424
  %v5433 = vadd.f32 %v5401, %v5425
  %v5434 = vadd.f32 %v5402, %v5426
  %v5435 = vadd.f32 %v5403, %v5427
  %v5436 = vadd.f32 %v5404, %v5428
  %v5437 = vadd.f32 %v5405, %v5429
  %v5438 = vadd.f32 %v5406, %v5430
  %v5439 = vadd.f32 %v5407, %v5431
  %v5440 = vmul.f32 %v5345, %v5376
  %v5441 = vmul.f32 %v5347, %v5377
  %v5442 = vmul.f32 %v5349, %v5378
  %v5443 = vmul.f32 %v5351, %v5379
  %v5444 = vmul.f32 %v5353, %v5380
  %v5445 = vmul.f32 %v5355, %v5381
  %v5446 = vmul.f32 %v5357, %v5382
  %v5447 = vmul.f32 %v5359, %v5383
  %v5448 = vld [vmem:[%s574 + $0x80] sm:$0xff]
  %v5449 = vld [vmem:[%s574 + $0x88] sm:$0xff]
  %v5450 = vld [vmem:[%s574 + $0x90] sm:$0xff]
  %v5451 = vld [vmem:[%s574 + $0x98] sm:$0xff]
  %v5452 = vld [vmem:[%s574 + $0xa0] sm:$0xff]
  %v5453 = vld [vmem:[%s574 + $0xa8] sm:$0xff]
  %v5454 = vld [vmem:[%s574 + $0xb0] sm:$0xff]
  %v5455 = vld [vmem:[%s574 + $0xb8] sm:$0xff]
  %v5456 = vmul.f32 %v5440, %v5448
  %v5457 = vmul.f32 %v5441, %v5449
  %v5458 = vmul.f32 %v5442, %v5450
  %v5459 = vmul.f32 %v5443, %v5451
  %v5460 = vmul.f32 %v5444, %v5452
  %v5461 = vmul.f32 %v5445, %v5453
  %v5462 = vmul.f32 %v5446, %v5454
  %v5463 = vmul.f32 %v5447, %v5455
  %v5464 = vadd.f32 %v5432, %v5456
  %v5465 = vadd.f32 %v5433, %v5457
  %v5466 = vadd.f32 %v5434, %v5458
  %v5467 = vadd.f32 %v5435, %v5459
  %v5468 = vadd.f32 %v5436, %v5460
  %v5469 = vadd.f32 %v5437, %v5461
  %v5470 = vadd.f32 %v5438, %v5462
  %v5471 = vadd.f32 %v5439, %v5463
  %5472 = vst.msk [vmem:[#allocation4 + $0x80] sm:$0xff] %vm72, %v5464
  %5473 = vst.msk [vmem:[#allocation4 + $0x88] sm:$0xff] %vm72, %v5465
  %5474 = vst.msk [vmem:[#allocation4 + $0x90] sm:$0xff] %vm72, %v5466
  %5475 = vst.msk [vmem:[#allocation4 + $0x98] sm:$0xff] %vm72, %v5467
  %5476 = vst.msk [vmem:[#allocation4 + $0xa0] sm:$0xff] %vm72, %v5468
  %5477 = vst.msk [vmem:[#allocation4 + $0xa8] sm:$0xff] %vm72, %v5469
  %5478 = vst.msk [vmem:[#allocation4 + $0xb0] sm:$0xff] %vm72, %v5470
  %5479 = vst.msk [vmem:[#allocation4 + $0xb8] sm:$0xff] %vm72, %v5471
  %v5480 = vld [vmem:[#allocation4] sm:$0xff]
  %v5481 = vld [vmem:[#allocation4 + $0x8] sm:$0xff]
  %v5482 = vld [vmem:[#allocation4 + $0x10] sm:$0xff]
  %v5483 = vld [vmem:[#allocation4 + $0x18] sm:$0xff]
  %v5484 = vld [vmem:[#allocation4 + $0x20] sm:$0xff]
  %v5485 = vld [vmem:[#allocation4 + $0x28] sm:$0xff]
  %v5486 = vld [vmem:[#allocation4 + $0x30] sm:$0xff]
  %v5487 = vld [vmem:[#allocation4 + $0x38] sm:$0xff]
  %v5488 = vld [vmem:[#allocation4 + $0x40] sm:$0xff]
  %v5489 = vld [vmem:[#allocation4 + $0x48] sm:$0xff]
  %v5490 = vld [vmem:[#allocation4 + $0x50] sm:$0xff]
  %v5491 = vld [vmem:[#allocation4 + $0x58] sm:$0xff]
  %v5492 = vld [vmem:[#allocation4 + $0x60] sm:$0xff]
  %v5493 = vld [vmem:[#allocation4 + $0x68] sm:$0xff]
  %v5494 = vld [vmem:[#allocation4 + $0x70] sm:$0xff]
  %v5495 = vld [vmem:[#allocation4 + $0x78] sm:$0xff]
  %v5496 = vld [vmem:[#allocation4 + $0x80] sm:$0xff]
  %v5497 = vld [vmem:[#allocation4 + $0x88] sm:$0xff]
  %v5498 = vld [vmem:[#allocation4 + $0x90] sm:$0xff]
  %v5499 = vld [vmem:[#allocation4 + $0x98] sm:$0xff]
  %v5500 = vld [vmem:[#allocation4 + $0xa0] sm:$0xff]
  %v5501 = vld [vmem:[#allocation4 + $0xa8] sm:$0xff]
  %v5502 = vld [vmem:[#allocation4 + $0xb0] sm:$0xff]
  %v5503 = vld [vmem:[#allocation4 + $0xb8] sm:$0xff]
  %v5505 = vperm.slane %v3742, 0
  %v5508 = vsel %vm72, %v5480, 0
  %v5511 = vsel %vm72, %v5481, 0
  %v5514 = vsel %vm72, %v5482, 0
  %v5517 = vsel %vm72, %v5483, 0
  %v5520 = vsel %vm72, %v5484, 0
  %v5523 = vsel %vm72, %v5485, 0
  %v5526 = vsel %vm72, %v5486, 0
  %v5529 = vsel %vm72, %v5487, 0
  %v5532 = vsel %vm72, %v5488, 0
  %v5535 = vsel %vm72, %v5489, 0
  %v5538 = vsel %vm72, %v5490, 0
  %v5541 = vsel %vm72, %v5491, 0
  %v5544 = vsel %vm72, %v5492, 0
  %v5547 = vsel %vm72, %v5493, 0
  %v5550 = vsel %vm72, %v5494, 0
  %v5553 = vsel %vm72, %v5495, 0
  %v5556 = vsel %vm72, %v5496, 0
  %v5559 = vsel %vm72, %v5497, 0
  %v5562 = vsel %vm72, %v5498, 0
  %v5565 = vsel %vm72, %v5499, 0
  %v5568 = vsel %vm72, %v5500, 0
  %v5571 = vsel %vm72, %v5501, 0
  %v5574 = vsel %vm72, %v5502, 0
  %v5577 = vsel %vm72, %v5503, 0
  %5579 = vmatpush.msra.mxu0 0.0
  %5580 = vmatpush.msra.mxu0 0.0
  %5581 = vmatpush.msra.mxu0 0.0
  %5582 = vmatpush.msra.mxu0 0.0
  %5583 = vmatpush.msra.mxu0 0.0
  %5584 = vmatpush.msra.mxu0 0.0
  %5585 = vmatpush.msra.mxu0 0.0
  %5586 = vmatpush.msra.mxu0 0.0
  %5587 = vmatpush.msra.mxu0 0.0
  %5588 = vmatpush.msra.mxu0 0.0
  %5589 = vmatpush.msra.mxu0 0.0
  %5590 = vmatpush.msra.mxu0 0.0
  %5591 = vmatpush.msra.mxu0 %v3740
  %5592 = vmatpush.msra.mxu0 %v3739
  %5593 = vmatpush.msra.mxu0 %v3738
  %5594 = vmatpush.msra.mxu0 %v3737
  %5595 = vmatmul.f32.gmra.mxu0 %v5508
  %v5596 = vpop.f32.mrf.mxu0
  %v5597 = vadd.f32 %v5505, %v5596
  %5598 = vmatmul.f32.gmra.mxu0 %v5511
  %v5599 = vpop.f32.mrf.mxu0
  %v5600 = vadd.f32 %v5505, %v5599
  %5601 = vmatmul.f32.gmra.mxu0 %v5514
  %v5602 = vpop.f32.mrf.mxu0
  %v5603 = vadd.f32 %v5505, %v5602
  %5604 = vmatmul.f32.gmra.mxu0 %v5517
  %v5605 = vpop.f32.mrf.mxu0
  %v5606 = vadd.f32 %v5505, %v5605
  %5607 = vmatmul.f32.gmra.mxu0 %v5520
  %v5608 = vpop.f32.mrf.mxu0
  %v5609 = vadd.f32 %v5505, %v5608
  %5610 = vmatmul.f32.gmra.mxu0 %v5523
  %v5611 = vpop.f32.mrf.mxu0
  %v5612 = vadd.f32 %v5505, %v5611
  %5613 = vmatmul.f32.gmra.mxu0 %v5526
  %v5614 = vpop.f32.mrf.mxu0
  %v5615 = vadd.f32 %v5505, %v5614
  %5616 = vmatmul.f32.gmra.mxu0 %v5529
  %v5617 = vpop.f32.mrf.mxu0
  %v5618 = vadd.f32 %v5505, %v5617
  %5619 = vmatmul.f32.gmra.mxu0 %v5532
  %v5620 = vpop.f32.mrf.mxu0
  %v5621 = vadd.f32 %v5505, %v5620
  %5622 = vmatmul.f32.gmra.mxu0 %v5535
  %v5623 = vpop.f32.mrf.mxu0
  %v5624 = vadd.f32 %v5505, %v5623
  %5625 = vmatmul.f32.gmra.mxu0 %v5538
  %v5626 = vpop.f32.mrf.mxu0
  %v5627 = vadd.f32 %v5505, %v5626
  %5628 = vmatmul.f32.gmra.mxu0 %v5541
  %v5629 = vpop.f32.mrf.mxu0
  %v5630 = vadd.f32 %v5505, %v5629
  %5631 = vmatmul.f32.gmra.mxu0 %v5544
  %v5632 = vpop.f32.mrf.mxu0
  %v5633 = vadd.f32 %v5505, %v5632
  %5634 = vmatmul.f32.gmra.mxu0 %v5547
  %v5635 = vpop.f32.mrf.mxu0
  %v5636 = vadd.f32 %v5505, %v5635
  %5637 = vmatmul.f32.gmra.mxu0 %v5550
  %v5638 = vpop.f32.mrf.mxu0
  %v5639 = vadd.f32 %v5505, %v5638
  %5640 = vmatmul.f32.gmra.mxu0 %v5553
  %v5641 = vpop.f32.mrf.mxu0
  %v5642 = vadd.f32 %v5505, %v5641
  %5643 = vmatmul.f32.gmra.mxu0 %v5556
  %v5644 = vpop.f32.mrf.mxu0
  %v5645 = vadd.f32 %v5505, %v5644
  %5646 = vmatmul.f32.gmra.mxu0 %v5559
  %v5647 = vpop.f32.mrf.mxu0
  %v5648 = vadd.f32 %v5505, %v5647
  %5649 = vmatmul.f32.gmra.mxu0 %v5562
  %v5650 = vpop.f32.mrf.mxu0
  %v5651 = vadd.f32 %v5505, %v5650
  %5652 = vmatmul.f32.gmra.mxu0 %v5565
  %v5653 = vpop.f32.mrf.mxu0
  %v5654 = vadd.f32 %v5505, %v5653
  %5655 = vmatmul.f32.gmra.mxu0 %v5568
  %v5656 = vpop.f32.mrf.mxu0
  %v5657 = vadd.f32 %v5505, %v5656
  %5658 = vmatmul.f32.gmra.mxu0 %v5571
  %v5659 = vpop.f32.mrf.mxu0
  %v5660 = vadd.f32 %v5505, %v5659
  %5661 = vmatmul.f32.gmra.mxu0 %v5574
  %v5662 = vpop.f32.mrf.mxu0
  %v5663 = vadd.f32 %v5505, %v5662
  %5664 = vmatmul.f32.gmra.mxu0 %v5577
  %v5665 = vpop.f32.mrf.mxu0
  %v5666 = vadd.f32 %v5505, %v5665
  %5667 = vdwg.mxu0
  %v5668 = vld [vmem:[#allocation2] sm:$0xff]
  %v5669 = vld [vmem:[#allocation2 + $0x8] sm:$0xff]
  %v5670 = vld [vmem:[#allocation2 + $0x10] sm:$0xff]
  %v5671 = vld [vmem:[#allocation2 + $0x18] sm:$0xff]
  %v5672 = vld [vmem:[#allocation2 + $0x20] sm:$0xff]
  %v5673 = vld [vmem:[#allocation2 + $0x28] sm:$0xff]
  %v5674 = vld [vmem:[#allocation2 + $0x30] sm:$0xff]
  %v5675 = vld [vmem:[#allocation2 + $0x38] sm:$0xff]
  %v5676 = vld [vmem:[#allocation2 + $0x40] sm:$0xff]
  %v5677 = vld [vmem:[#allocation2 + $0x48] sm:$0xff]
  %v5678 = vld [vmem:[#allocation2 + $0x50] sm:$0xff]
  %v5679 = vld [vmem:[#allocation2 + $0x58] sm:$0xff]
  %v5680 = vld [vmem:[#allocation2 + $0x60] sm:$0xff]
  %v5681 = vld [vmem:[#allocation2 + $0x68] sm:$0xff]
  %v5682 = vld [vmem:[#allocation2 + $0x70] sm:$0xff]
  %v5683 = vld [vmem:[#allocation2 + $0x78] sm:$0xff]
  %v5684 = vld [vmem:[#allocation2 + $0x80] sm:$0xff]
  %v5685 = vld [vmem:[#allocation2 + $0x88] sm:$0xff]
  %v5686 = vld [vmem:[#allocation2 + $0x90] sm:$0xff]
  %v5687 = vld [vmem:[#allocation2 + $0x98] sm:$0xff]
  %v5688 = vld [vmem:[#allocation2 + $0xa0] sm:$0xff]
  %v5689 = vld [vmem:[#allocation2 + $0xa8] sm:$0xff]
  %v5690 = vld [vmem:[#allocation2 + $0xb0] sm:$0xff]
  %v5691 = vld [vmem:[#allocation2 + $0xb8] sm:$0xff]
  %v5692 = vadd.f32 %v5668, %v5597
  %v5693 = vadd.f32 %v5669, %v5600
  %v5694 = vadd.f32 %v5670, %v5603
  %v5695 = vadd.f32 %v5671, %v5606
  %v5696 = vadd.f32 %v5672, %v5609
  %v5697 = vadd.f32 %v5673, %v5612
  %v5698 = vadd.f32 %v5674, %v5615
  %v5699 = vadd.f32 %v5675, %v5618
  %v5700 = vadd.f32 %v5676, %v5621
  %v5701 = vadd.f32 %v5677, %v5624
  %v5702 = vadd.f32 %v5678, %v5627
  %v5703 = vadd.f32 %v5679, %v5630
  %v5704 = vadd.f32 %v5680, %v5633
  %v5705 = vadd.f32 %v5681, %v5636
  %v5706 = vadd.f32 %v5682, %v5639
  %v5707 = vadd.f32 %v5683, %v5642
  %v5708 = vadd.f32 %v5684, %v5645
  %v5709 = vadd.f32 %v5685, %v5648
  %v5710 = vadd.f32 %v5686, %v5651
  %v5711 = vadd.f32 %v5687, %v5654
  %v5712 = vadd.f32 %v5688, %v5657
  %v5713 = vadd.f32 %v5689, %v5660
  %v5714 = vadd.f32 %v5690, %v5663
  %v5715 = vadd.f32 %v5691, %v5666
  %v5716 = vsel %vm72, %v5692, 0.0
  %5717 = vadd.xlane.f32.xlu0 %v5716
  %v5718 = vpop.xlane.xlu0 %5717
  %v5719 = vsel %vm72, %v5693, 0.0
  %5720 = vadd.xlane.f32.xlu0 %v5719
  %v5721 = vpop.xlane.xlu0 %5720
  %v5722 = vsel %vm72, %v5694, 0.0
  %5723 = vadd.xlane.f32.xlu0 %v5722
  %v5724 = vpop.xlane.xlu0 %5723
  %v5725 = vsel %vm72, %v5695, 0.0
  %5726 = vadd.xlane.f32.xlu0 %v5725
  %v5727 = vpop.xlane.xlu0 %5726
  %v5728 = vsel %vm72, %v5696, 0.0
  %5729 = vadd.xlane.f32.xlu0 %v5728
  %v5730 = vpop.xlane.xlu0 %5729
  %v5731 = vsel %vm72, %v5697, 0.0
  %5732 = vadd.xlane.f32.xlu0 %v5731
  %v5733 = vpop.xlane.xlu0 %5732
  %v5734 = vsel %vm72, %v5698, 0.0
  %5735 = vadd.xlane.f32.xlu0 %v5734
  %v5736 = vpop.xlane.xlu0 %5735
  %v5737 = vsel %vm72, %v5699, 0.0
  %5738 = vadd.xlane.f32.xlu0 %v5737
  %v5739 = vpop.xlane.xlu0 %5738
  %v5740 = vsel %vm72, %v5700, 0.0
  %5741 = vadd.xlane.f32.xlu0 %v5740
  %v5742 = vpop.xlane.xlu0 %5741
  %v5743 = vsel %vm72, %v5701, 0.0
  %5744 = vadd.xlane.f32.xlu0 %v5743
  %v5745 = vpop.xlane.xlu0 %5744
  %v5746 = vsel %vm72, %v5702, 0.0
  %5747 = vadd.xlane.f32.xlu0 %v5746
  %v5748 = vpop.xlane.xlu0 %5747
  %v5749 = vsel %vm72, %v5703, 0.0
  %5750 = vadd.xlane.f32.xlu0 %v5749
  %v5751 = vpop.xlane.xlu0 %5750
  %v5752 = vsel %vm72, %v5704, 0.0
  %5753 = vadd.xlane.f32.xlu0 %v5752
  %v5754 = vpop.xlane.xlu0 %5753
  %v5755 = vsel %vm72, %v5705, 0.0
  %5756 = vadd.xlane.f32.xlu0 %v5755
  %v5757 = vpop.xlane.xlu0 %5756
  %v5758 = vsel %vm72, %v5706, 0.0
  %5759 = vadd.xlane.f32.xlu0 %v5758
  %v5760 = vpop.xlane.xlu0 %5759
  %v5761 = vsel %vm72, %v5707, 0.0
  %5762 = vadd.xlane.f32.xlu0 %v5761
  %v5763 = vpop.xlane.xlu0 %5762
  %v5764 = vsel %vm72, %v5708, 0.0
  %5765 = vadd.xlane.f32.xlu0 %v5764
  %v5766 = vpop.xlane.xlu0 %5765
  %v5767 = vsel %vm72, %v5709, 0.0
  %5768 = vadd.xlane.f32.xlu0 %v5767
  %v5769 = vpop.xlane.xlu0 %5768
  %v5770 = vsel %vm72, %v5710, 0.0
  %5771 = vadd.xlane.f32.xlu0 %v5770
  %v5772 = vpop.xlane.xlu0 %5771
  %v5773 = vsel %vm72, %v5711, 0.0
  %5774 = vadd.xlane.f32.xlu0 %v5773
  %v5775 = vpop.xlane.xlu0 %5774
  %v5776 = vsel %vm72, %v5712, 0.0
  %5777 = vadd.xlane.f32.xlu0 %v5776
  %v5778 = vpop.xlane.xlu0 %5777
  %v5779 = vsel %vm72, %v5713, 0.0
  %5780 = vadd.xlane.f32.xlu0 %v5779
  %v5781 = vpop.xlane.xlu0 %5780
  %v5782 = vsel %vm72, %v5714, 0.0
  %5783 = vadd.xlane.f32.xlu0 %v5782
  %v5784 = vpop.xlane.xlu0 %5783
  %v5785 = vsel %vm72, %v5715, 0.0
  %5786 = vadd.xlane.f32.xlu0 %v5785
  %v5787 = vpop.xlane.xlu0 %5786
  %v5788 = vmul.f32 %v5718, %v2188
  %v5789 = vmul.f32 %v5721, %v2188
  %v5790 = vmul.f32 %v5724, %v2188
  %v5791 = vmul.f32 %v5727, %v2188
  %v5792 = vmul.f32 %v5730, %v2188
  %v5793 = vmul.f32 %v5733, %v2188
  %v5794 = vmul.f32 %v5736, %v2188
  %v5795 = vmul.f32 %v5739, %v2188
  %v5796 = vmul.f32 %v5742, %v2188
  %v5797 = vmul.f32 %v5745, %v2188
  %v5798 = vmul.f32 %v5748, %v2188
  %v5799 = vmul.f32 %v5751, %v2188
  %v5800 = vmul.f32 %v5754, %v2188
  %v5801 = vmul.f32 %v5757, %v2188
  %v5802 = vmul.f32 %v5760, %v2188
  %v5803 = vmul.f32 %v5763, %v2188
  %v5804 = vmul.f32 %v5766, %v2188
  %v5805 = vmul.f32 %v5769, %v2188
  %v5806 = vmul.f32 %v5772, %v2188
  %v5807 = vmul.f32 %v5775, %v2188
  %v5808 = vmul.f32 %v5778, %v2188
  %v5809 = vmul.f32 %v5781, %v2188
  %v5810 = vmul.f32 %v5784, %v2188
  %v5811 = vmul.f32 %v5787, %v2188
  %v5812 = vsub.f32 %v5692, %v5788
  %v5813 = vsub.f32 %v5693, %v5789
  %v5814 = vsub.f32 %v5694, %v5790
  %v5815 = vsub.f32 %v5695, %v5791
  %v5816 = vsub.f32 %v5696, %v5792
  %v5817 = vsub.f32 %v5697, %v5793
  %v5818 = vsub.f32 %v5698, %v5794
  %v5819 = vsub.f32 %v5699, %v5795
  %v5820 = vsub.f32 %v5700, %v5796
  %v5821 = vsub.f32 %v5701, %v5797
  %v5822 = vsub.f32 %v5702, %v5798
  %v5823 = vsub.f32 %v5703, %v5799
  %v5824 = vsub.f32 %v5704, %v5800
  %v5825 = vsub.f32 %v5705, %v5801
  %v5826 = vsub.f32 %v5706, %v5802
  %v5827 = vsub.f32 %v5707, %v5803
  %v5828 = vsub.f32 %v5708, %v5804
  %v5829 = vsub.f32 %v5709, %v5805
  %v5830 = vsub.f32 %v5710, %v5806
  %v5831 = vsub.f32 %v5711, %v5807
  %v5832 = vsub.f32 %v5712, %v5808
  %v5833 = vsub.f32 %v5713, %v5809
  %v5834 = vsub.f32 %v5714, %v5810
  %v5835 = vsub.f32 %v5715, %v5811
  %v5836 = vmul.f32 %v5812, %v5812
  %v5837 = vmul.f32 %v5813, %v5813
  %v5838 = vmul.f32 %v5814, %v5814
  %v5839 = vmul.f32 %v5815, %v5815
  %v5840 = vmul.f32 %v5816, %v5816
  %v5841 = vmul.f32 %v5817, %v5817
  %v5842 = vmul.f32 %v5818, %v5818
  %v5843 = vmul.f32 %v5819, %v5819
  %v5844 = vmul.f32 %v5820, %v5820
  %v5845 = vmul.f32 %v5821, %v5821
  %v5846 = vmul.f32 %v5822, %v5822
  %v5847 = vmul.f32 %v5823, %v5823
  %v5848 = vmul.f32 %v5824, %v5824
  %v5849 = vmul.f32 %v5825, %v5825
  %v5850 = vmul.f32 %v5826, %v5826
  %v5851 = vmul.f32 %v5827, %v5827
  %v5852 = vmul.f32 %v5828, %v5828
  %v5853 = vmul.f32 %v5829, %v5829
  %v5854 = vmul.f32 %v5830, %v5830
  %v5855 = vmul.f32 %v5831, %v5831
  %v5856 = vmul.f32 %v5832, %v5832
  %v5857 = vmul.f32 %v5833, %v5833
  %v5858 = vmul.f32 %v5834, %v5834
  %v5859 = vmul.f32 %v5835, %v5835
  %v5860 = vsel %vm72, %v5836, 0.0
  %5861 = vadd.xlane.f32.xlu0 %v5860
  %v5862 = vpop.xlane.xlu0 %5861
  %v5863 = vsel %vm72, %v5837, 0.0
  %5864 = vadd.xlane.f32.xlu0 %v5863
  %v5865 = vpop.xlane.xlu0 %5864
  %v5866 = vsel %vm72, %v5838, 0.0
  %5867 = vadd.xlane.f32.xlu0 %v5866
  %v5868 = vpop.xlane.xlu0 %5867
  %v5869 = vsel %vm72, %v5839, 0.0
  %5870 = vadd.xlane.f32.xlu0 %v5869
  %v5871 = vpop.xlane.xlu0 %5870
  %v5872 = vsel %vm72, %v5840, 0.0
  %5873 = vadd.xlane.f32.xlu0 %v5872
  %v5874 = vpop.xlane.xlu0 %5873
  %v5875 = vsel %vm72, %v5841, 0.0
  %5876 = vadd.xlane.f32.xlu0 %v5875
  %v5877 = vpop.xlane.xlu0 %5876
  %v5878 = vsel %vm72, %v5842, 0.0
  %5879 = vadd.xlane.f32.xlu0 %v5878
  %v5880 = vpop.xlane.xlu0 %5879
  %v5881 = vsel %vm72, %v5843, 0.0
  %5882 = vadd.xlane.f32.xlu0 %v5881
  %v5883 = vpop.xlane.xlu0 %5882
  %v5884 = vsel %vm72, %v5844, 0.0
  %5885 = vadd.xlane.f32.xlu0 %v5884
  %v5886 = vpop.xlane.xlu0 %5885
  %v5887 = vsel %vm72, %v5845, 0.0
  %5888 = vadd.xlane.f32.xlu0 %v5887
  %v5889 = vpop.xlane.xlu0 %5888
  %v5890 = vsel %vm72, %v5846, 0.0
  %5891 = vadd.xlane.f32.xlu0 %v5890
  %v5892 = vpop.xlane.xlu0 %5891
  %v5893 = vsel %vm72, %v5847, 0.0
  %5894 = vadd.xlane.f32.xlu0 %v5893
  %v5895 = vpop.xlane.xlu0 %5894
  %v5896 = vsel %vm72, %v5848, 0.0
  %5897 = vadd.xlane.f32.xlu0 %v5896
  %v5898 = vpop.xlane.xlu0 %5897
  %v5899 = vsel %vm72, %v5849, 0.0
  %5900 = vadd.xlane.f32.xlu0 %v5899
  %v5901 = vpop.xlane.xlu0 %5900
  %v5902 = vsel %vm72, %v5850, 0.0
  %5903 = vadd.xlane.f32.xlu0 %v5902
  %v5904 = vpop.xlane.xlu0 %5903
  %v5905 = vsel %vm72, %v5851, 0.0
  %5906 = vadd.xlane.f32.xlu0 %v5905
  %v5907 = vpop.xlane.xlu0 %5906
  %v5908 = vsel %vm72, %v5852, 0.0
  %5909 = vadd.xlane.f32.xlu0 %v5908
  %v5910 = vpop.xlane.xlu0 %5909
  %v5911 = vsel %vm72, %v5853, 0.0
  %5912 = vadd.xlane.f32.xlu0 %v5911
  %v5913 = vpop.xlane.xlu0 %5912
  %v5914 = vsel %vm72, %v5854, 0.0
  %5915 = vadd.xlane.f32.xlu0 %v5914
  %v5916 = vpop.xlane.xlu0 %5915
  %v5917 = vsel %vm72, %v5855, 0.0
  %5918 = vadd.xlane.f32.xlu0 %v5917
  %v5919 = vpop.xlane.xlu0 %5918
  %v5920 = vsel %vm72, %v5856, 0.0
  %5921 = vadd.xlane.f32.xlu0 %v5920
  %v5922 = vpop.xlane.xlu0 %5921
  %v5923 = vsel %vm72, %v5857, 0.0
  %5924 = vadd.xlane.f32.xlu0 %v5923
  %v5925 = vpop.xlane.xlu0 %5924
  %v5926 = vsel %vm72, %v5858, 0.0
  %5927 = vadd.xlane.f32.xlu0 %v5926
  %v5928 = vpop.xlane.xlu0 %5927
  %v5929 = vsel %vm72, %v5859, 0.0
  %5930 = vadd.xlane.f32.xlu0 %v5929
  %v5931 = vpop.xlane.xlu0 %5930
  %v5932 = vmul.f32 %v5862, %v2188
  %v5933 = vmul.f32 %v5865, %v2188
  %v5934 = vmul.f32 %v5868, %v2188
  %v5935 = vmul.f32 %v5871, %v2188
  %v5936 = vmul.f32 %v5874, %v2188
  %v5937 = vmul.f32 %v5877, %v2188
  %v5938 = vmul.f32 %v5880, %v2188
  %v5939 = vmul.f32 %v5883, %v2188
  %v5940 = vmul.f32 %v5886, %v2188
  %v5941 = vmul.f32 %v5889, %v2188
  %v5942 = vmul.f32 %v5892, %v2188
  %v5943 = vmul.f32 %v5895, %v2188
  %v5944 = vmul.f32 %v5898, %v2188
  %v5945 = vmul.f32 %v5901, %v2188
  %v5946 = vmul.f32 %v5904, %v2188
  %v5947 = vmul.f32 %v5907, %v2188
  %v5948 = vmul.f32 %v5910, %v2188
  %v5949 = vmul.f32 %v5913, %v2188
  %v5950 = vmul.f32 %v5916, %v2188
  %v5951 = vmul.f32 %v5919, %v2188
  %v5952 = vmul.f32 %v5922, %v2188
  %v5953 = vmul.f32 %v5925, %v2188
  %v5954 = vmul.f32 %v5928, %v2188
  %v5955 = vmul.f32 %v5931, %v2188
  %v5956 = vadd.f32 %v5932, 1e-05
  %v5957 = vadd.f32 %v5933, 1e-05
  %v5958 = vadd.f32 %v5934, 1e-05
  %v5959 = vadd.f32 %v5935, 1e-05
  %v5960 = vadd.f32 %v5936, 1e-05
  %v5961 = vadd.f32 %v5937, 1e-05
  %v5962 = vadd.f32 %v5938, 1e-05
  %v5963 = vadd.f32 %v5939, 1e-05
  %v5964 = vadd.f32 %v5940, 1e-05
  %v5965 = vadd.f32 %v5941, 1e-05
  %v5966 = vadd.f32 %v5942, 1e-05
  %v5967 = vadd.f32 %v5943, 1e-05
  %v5968 = vadd.f32 %v5944, 1e-05
  %v5969 = vadd.f32 %v5945, 1e-05
  %v5970 = vadd.f32 %v5946, 1e-05
  %v5971 = vadd.f32 %v5947, 1e-05
  %v5972 = vadd.f32 %v5948, 1e-05
  %v5973 = vadd.f32 %v5949, 1e-05
  %v5974 = vadd.f32 %v5950, 1e-05
  %v5975 = vadd.f32 %v5951, 1e-05
  %v5976 = vadd.f32 %v5952, 1e-05
  %v5977 = vadd.f32 %v5953, 1e-05
  %v5978 = vadd.f32 %v5954, 1e-05
  %v5979 = vadd.f32 %v5955, 1e-05
  %v5980 = vrsqrt.pop %v5956
  %v5981 = vmul.f32 %v5980, %v5956
  %v5982 = vmul.f32 %v5981, %v5980
  %v5983 = vmul.f32 0.5, %v5982
  %v5984 = vsub.f32 1.5, %v5983
  %v5985 = vmul.f32 %v5980, %v5984
  %vm5986 = vweird.f32 %v5956
  %vm5987 = vweird.f32 %v5980
  %vm5988 = vmor %vm5986, %vm5987
  %v5989 = vsel %vm5988, %v5980, %v5985
  %v5990 = vrsqrt.pop %v5957
  %v5991 = vmul.f32 %v5990, %v5957
  %v5992 = vmul.f32 %v5991, %v5990
  %v5993 = vmul.f32 0.5, %v5992
  %v5994 = vsub.f32 1.5, %v5993
  %v5995 = vmul.f32 %v5990, %v5994
  %vm5996 = vweird.f32 %v5957
  %vm5997 = vweird.f32 %v5990
  %vm5998 = vmor %vm5996, %vm5997
  %v5999 = vsel %vm5998, %v5990, %v5995
  %v6000 = vrsqrt.pop %v5958
  %v6001 = vmul.f32 %v6000, %v5958
  %v6002 = vmul.f32 %v6001, %v6000
  %v6003 = vmul.f32 0.5, %v6002
  %v6004 = vsub.f32 1.5, %v6003
  %v6005 = vmul.f32 %v6000, %v6004
  %vm6006 = vweird.f32 %v5958
  %vm6007 = vweird.f32 %v6000
  %vm6008 = vmor %vm6006, %vm6007
  %v6009 = vsel %vm6008, %v6000, %v6005
  %v6010 = vrsqrt.pop %v5959
  %v6011 = vmul.f32 %v6010, %v5959
  %v6012 = vmul.f32 %v6011, %v6010
  %v6013 = vmul.f32 0.5, %v6012
  %v6014 = vsub.f32 1.5, %v6013
  %v6015 = vmul.f32 %v6010, %v6014
  %vm6016 = vweird.f32 %v5959
  %vm6017 = vweird.f32 %v6010
  %vm6018 = vmor %vm6016, %vm6017
  %v6019 = vsel %vm6018, %v6010, %v6015
  %v6020 = vrsqrt.pop %v5960
  %v6021 = vmul.f32 %v6020, %v5960
  %v6022 = vmul.f32 %v6021, %v6020
  %v6023 = vmul.f32 0.5, %v6022
  %v6024 = vsub.f32 1.5, %v6023
  %v6025 = vmul.f32 %v6020, %v6024
  %vm6026 = vweird.f32 %v5960
  %vm6027 = vweird.f32 %v6020
  %vm6028 = vmor %vm6026, %vm6027
  %v6029 = vsel %vm6028, %v6020, %v6025
  %v6030 = vrsqrt.pop %v5961
  %v6031 = vmul.f32 %v6030, %v5961
  %v6032 = vmul.f32 %v6031, %v6030
  %v6033 = vmul.f32 0.5, %v6032
  %v6034 = vsub.f32 1.5, %v6033
  %v6035 = vmul.f32 %v6030, %v6034
  %vm6036 = vweird.f32 %v5961
  %vm6037 = vweird.f32 %v6030
  %vm6038 = vmor %vm6036, %vm6037
  %v6039 = vsel %vm6038, %v6030, %v6035
  %v6040 = vrsqrt.pop %v5962
  %v6041 = vmul.f32 %v6040, %v5962
  %v6042 = vmul.f32 %v6041, %v6040
  %v6043 = vmul.f32 0.5, %v6042
  %v6044 = vsub.f32 1.5, %v6043
  %v6045 = vmul.f32 %v6040, %v6044
  %vm6046 = vweird.f32 %v5962
  %vm6047 = vweird.f32 %v6040
  %vm6048 = vmor %vm6046, %vm6047
  %v6049 = vsel %vm6048, %v6040, %v6045
  %v6050 = vrsqrt.pop %v5963
  %v6051 = vmul.f32 %v6050, %v5963
  %v6052 = vmul.f32 %v6051, %v6050
  %v6053 = vmul.f32 0.5, %v6052
  %v6054 = vsub.f32 1.5, %v6053
  %v6055 = vmul.f32 %v6050, %v6054
  %vm6056 = vweird.f32 %v5963
  %vm6057 = vweird.f32 %v6050
  %vm6058 = vmor %vm6056, %vm6057
  %v6059 = vsel %vm6058, %v6050, %v6055
  %v6060 = vrsqrt.pop %v5964
  %v6061 = vmul.f32 %v6060, %v5964
  %v6062 = vmul.f32 %v6061, %v6060
  %v6063 = vmul.f32 0.5, %v6062
  %v6064 = vsub.f32 1.5, %v6063
  %v6065 = vmul.f32 %v6060, %v6064
  %vm6066 = vweird.f32 %v5964
  %vm6067 = vweird.f32 %v6060
  %vm6068 = vmor %vm6066, %vm6067
  %v6069 = vsel %vm6068, %v6060, %v6065
  %v6070 = vrsqrt.pop %v5965
  %v6071 = vmul.f32 %v6070, %v5965
  %v6072 = vmul.f32 %v6071, %v6070
  %v6073 = vmul.f32 0.5, %v6072
  %v6074 = vsub.f32 1.5, %v6073
  %v6075 = vmul.f32 %v6070, %v6074
  %vm6076 = vweird.f32 %v5965
  %vm6077 = vweird.f32 %v6070
  %vm6078 = vmor %vm6076, %vm6077
  %v6079 = vsel %vm6078, %v6070, %v6075
  %v6080 = vrsqrt.pop %v5966
  %v6081 = vmul.f32 %v6080, %v5966
  %v6082 = vmul.f32 %v6081, %v6080
  %v6083 = vmul.f32 0.5, %v6082
  %v6084 = vsub.f32 1.5, %v6083
  %v6085 = vmul.f32 %v6080, %v6084
  %vm6086 = vweird.f32 %v5966
  %vm6087 = vweird.f32 %v6080
  %vm6088 = vmor %vm6086, %vm6087
  %v6089 = vsel %vm6088, %v6080, %v6085
  %v6090 = vrsqrt.pop %v5967
  %v6091 = vmul.f32 %v6090, %v5967
  %v6092 = vmul.f32 %v6091, %v6090
  %v6093 = vmul.f32 0.5, %v6092
  %v6094 = vsub.f32 1.5, %v6093
  %v6095 = vmul.f32 %v6090, %v6094
  %vm6096 = vweird.f32 %v5967
  %vm6097 = vweird.f32 %v6090
  %vm6098 = vmor %vm6096, %vm6097
  %v6099 = vsel %vm6098, %v6090, %v6095
  %v6100 = vrsqrt.pop %v5968
  %v6101 = vmul.f32 %v6100, %v5968
  %v6102 = vmul.f32 %v6101, %v6100
  %v6103 = vmul.f32 0.5, %v6102
  %v6104 = vsub.f32 1.5, %v6103
  %v6105 = vmul.f32 %v6100, %v6104
  %vm6106 = vweird.f32 %v5968
  %vm6107 = vweird.f32 %v6100
  %vm6108 = vmor %vm6106, %vm6107
  %v6109 = vsel %vm6108, %v6100, %v6105
  %v6110 = vrsqrt.pop %v5969
  %v6111 = vmul.f32 %v6110, %v5969
  %v6112 = vmul.f32 %v6111, %v6110
  %v6113 = vmul.f32 0.5, %v6112
  %v6114 = vsub.f32 1.5, %v6113
  %v6115 = vmul.f32 %v6110, %v6114
  %vm6116 = vweird.f32 %v5969
  %vm6117 = vweird.f32 %v6110
  %vm6118 = vmor %vm6116, %vm6117
  %v6119 = vsel %vm6118, %v6110, %v6115
  %v6120 = vrsqrt.pop %v5970
  %v6121 = vmul.f32 %v6120, %v5970
  %v6122 = vmul.f32 %v6121, %v6120
  %v6123 = vmul.f32 0.5, %v6122
  %v6124 = vsub.f32 1.5, %v6123
  %v6125 = vmul.f32 %v6120, %v6124
  %vm6126 = vweird.f32 %v5970
  %vm6127 = vweird.f32 %v6120
  %vm6128 = vmor %vm6126, %vm6127
  %v6129 = vsel %vm6128, %v6120, %v6125
  %v6130 = vrsqrt.pop %v5971
  %v6131 = vmul.f32 %v6130, %v5971
  %v6132 = vmul.f32 %v6131, %v6130
  %v6133 = vmul.f32 0.5, %v6132
  %v6134 = vsub.f32 1.5, %v6133
  %v6135 = vmul.f32 %v6130, %v6134
  %vm6136 = vweird.f32 %v5971
  %vm6137 = vweird.f32 %v6130
  %vm6138 = vmor %vm6136, %vm6137
  %v6139 = vsel %vm6138, %v6130, %v6135
  %v6140 = vrsqrt.pop %v5972
  %v6141 = vmul.f32 %v6140, %v5972
  %v6142 = vmul.f32 %v6141, %v6140
  %v6143 = vmul.f32 0.5, %v6142
  %v6144 = vsub.f32 1.5, %v6143
  %v6145 = vmul.f32 %v6140, %v6144
  %vm6146 = vweird.f32 %v5972
  %vm6147 = vweird.f32 %v6140
  %vm6148 = vmor %vm6146, %vm6147
  %v6149 = vsel %vm6148, %v6140, %v6145
  %v6150 = vrsqrt.pop %v5973
  %v6151 = vmul.f32 %v6150, %v5973
  %v6152 = vmul.f32 %v6151, %v6150
  %v6153 = vmul.f32 0.5, %v6152
  %v6154 = vsub.f32 1.5, %v6153
  %v6155 = vmul.f32 %v6150, %v6154
  %vm6156 = vweird.f32 %v5973
  %vm6157 = vweird.f32 %v6150
  %vm6158 = vmor %vm6156, %vm6157
  %v6159 = vsel %vm6158, %v6150, %v6155
  %v6160 = vrsqrt.pop %v5974
  %v6161 = vmul.f32 %v6160, %v5974
  %v6162 = vmul.f32 %v6161, %v6160
  %v6163 = vmul.f32 0.5, %v6162
  %v6164 = vsub.f32 1.5, %v6163
  %v6165 = vmul.f32 %v6160, %v6164
  %vm6166 = vweird.f32 %v5974
  %vm6167 = vweird.f32 %v6160
  %vm6168 = vmor %vm6166, %vm6167
  %v6169 = vsel %vm6168, %v6160, %v6165
  %v6170 = vrsqrt.pop %v5975
  %v6171 = vmul.f32 %v6170, %v5975
  %v6172 = vmul.f32 %v6171, %v6170
  %v6173 = vmul.f32 0.5, %v6172
  %v6174 = vsub.f32 1.5, %v6173
  %v6175 = vmul.f32 %v6170, %v6174
  %vm6176 = vweird.f32 %v5975
  %vm6177 = vweird.f32 %v6170
  %vm6178 = vmor %vm6176, %vm6177
  %v6179 = vsel %vm6178, %v6170, %v6175
  %v6180 = vrsqrt.pop %v5976
  %v6181 = vmul.f32 %v6180, %v5976
  %v6182 = vmul.f32 %v6181, %v6180
  %v6183 = vmul.f32 0.5, %v6182
  %v6184 = vsub.f32 1.5, %v6183
  %v6185 = vmul.f32 %v6180, %v6184
  %vm6186 = vweird.f32 %v5976
  %vm6187 = vweird.f32 %v6180
  %vm6188 = vmor %vm6186, %vm6187
  %v6189 = vsel %vm6188, %v6180, %v6185
  %v6190 = vrsqrt.pop %v5977
  %v6191 = vmul.f32 %v6190, %v5977
  %v6192 = vmul.f32 %v6191, %v6190
  %v6193 = vmul.f32 0.5, %v6192
  %v6194 = vsub.f32 1.5, %v6193
  %v6195 = vmul.f32 %v6190, %v6194
  %vm6196 = vweird.f32 %v5977
  %vm6197 = vweird.f32 %v6190
  %vm6198 = vmor %vm6196, %vm6197
  %v6199 = vsel %vm6198, %v6190, %v6195
  %v6200 = vrsqrt.pop %v5978
  %v6201 = vmul.f32 %v6200, %v5978
  %v6202 = vmul.f32 %v6201, %v6200
  %v6203 = vmul.f32 0.5, %v6202
  %v6204 = vsub.f32 1.5, %v6203
  %v6205 = vmul.f32 %v6200, %v6204
  %vm6206 = vweird.f32 %v5978
  %vm6207 = vweird.f32 %v6200
  %vm6208 = vmor %vm6206, %vm6207
  %v6209 = vsel %vm6208, %v6200, %v6205
  %v6210 = vrsqrt.pop %v5979
  %v6211 = vmul.f32 %v6210, %v5979
  %v6212 = vmul.f32 %v6211, %v6210
  %v6213 = vmul.f32 0.5, %v6212
  %v6214 = vsub.f32 1.5, %v6213
  %v6215 = vmul.f32 %v6210, %v6214
  %vm6216 = vweird.f32 %v5979
  %vm6217 = vweird.f32 %v6210
  %vm6218 = vmor %vm6216, %vm6217
  %v6219 = vsel %vm6218, %v6210, %v6215
  %v6220 = vmul.f32 %v5812, %v5989
  %v6221 = vmul.f32 %v5813, %v5999
  %v6222 = vmul.f32 %v5814, %v6009
  %v6223 = vmul.f32 %v5815, %v6019
  %v6224 = vmul.f32 %v5816, %v6029
  %v6225 = vmul.f32 %v5817, %v6039
  %v6226 = vmul.f32 %v5818, %v6049
  %v6227 = vmul.f32 %v5819, %v6059
  %v6228 = vmul.f32 %v5820, %v6069
  %v6229 = vmul.f32 %v5821, %v6079
  %v6230 = vmul.f32 %v5822, %v6089
  %v6231 = vmul.f32 %v5823, %v6099
  %v6232 = vmul.f32 %v5824, %v6109
  %v6233 = vmul.f32 %v5825, %v6119
  %v6234 = vmul.f32 %v5826, %v6129
  %v6235 = vmul.f32 %v5827, %v6139
  %v6236 = vmul.f32 %v5828, %v6149
  %v6237 = vmul.f32 %v5829, %v6159
  %v6238 = vmul.f32 %v5830, %v6169
  %v6239 = vmul.f32 %v5831, %v6179
  %v6240 = vmul.f32 %v5832, %v6189
  %v6241 = vmul.f32 %v5833, %v6199
  %v6242 = vmul.f32 %v5834, %v6209
  %v6243 = vmul.f32 %v5835, %v6219
  %v6245 = vperm.slane %v3744, 0
  %v6247 = vmul.f32 %v6220, %v6245
  %v6248 = vmul.f32 %v6221, %v6245
  %v6249 = vmul.f32 %v6222, %v6245
  %v6250 = vmul.f32 %v6223, %v6245
  %v6251 = vmul.f32 %v6224, %v6245
  %v6252 = vmul.f32 %v6225, %v6245
  %v6253 = vmul.f32 %v6226, %v6245
  %v6254 = vmul.f32 %v6227, %v6245
  %v6255 = vmul.f32 %v6228, %v6245
  %v6256 = vmul.f32 %v6229, %v6245
  %v6257 = vmul.f32 %v6230, %v6245
  %v6258 = vmul.f32 %v6231, %v6245
  %v6259 = vmul.f32 %v6232, %v6245
  %v6260 = vmul.f32 %v6233, %v6245
  %v6261 = vmul.f32 %v6234, %v6245
  %v6262 = vmul.f32 %v6235, %v6245
  %v6263 = vmul.f32 %v6236, %v6245
  %v6264 = vmul.f32 %v6237, %v6245
  %v6265 = vmul.f32 %v6238, %v6245
  %v6266 = vmul.f32 %v6239, %v6245
  %v6267 = vmul.f32 %v6240, %v6245
  %v6268 = vmul.f32 %v6241, %v6245
  %v6269 = vmul.f32 %v6242, %v6245
  %v6270 = vmul.f32 %v6243, %v6245
  %v6272 = vperm.slane %v3746, 0
  %v6274 = vadd.f32 %v6247, %v6272
  %v6275 = vadd.f32 %v6248, %v6272
  %v6276 = vadd.f32 %v6249, %v6272
  %v6277 = vadd.f32 %v6250, %v6272
  %v6278 = vadd.f32 %v6251, %v6272
  %v6279 = vadd.f32 %v6252, %v6272
  %v6280 = vadd.f32 %v6253, %v6272
  %v6281 = vadd.f32 %v6254, %v6272
  %v6282 = vadd.f32 %v6255, %v6272
  %v6283 = vadd.f32 %v6256, %v6272
  %v6284 = vadd.f32 %v6257, %v6272
  %v6285 = vadd.f32 %v6258, %v6272
  %v6286 = vadd.f32 %v6259, %v6272
  %v6287 = vadd.f32 %v6260, %v6272
  %v6288 = vadd.f32 %v6261, %v6272
  %v6289 = vadd.f32 %v6262, %v6272
  %v6290 = vadd.f32 %v6263, %v6272
  %v6291 = vadd.f32 %v6264, %v6272
  %v6292 = vadd.f32 %v6265, %v6272
  %v6293 = vadd.f32 %v6266, %v6272
  %v6294 = vadd.f32 %v6267, %v6272
  %v6295 = vadd.f32 %v6268, %v6272
  %v6296 = vadd.f32 %v6269, %v6272
  %v6297 = vadd.f32 %v6270, %v6272
  %6298 = vst.msk [vmem:[#allocation2] sm:$0xff] %vm72, %v6274
  %6299 = vst.msk [vmem:[#allocation2 + $0x8] sm:$0xff] %vm72, %v6275
  %6300 = vst.msk [vmem:[#allocation2 + $0x10] sm:$0xff] %vm72, %v6276
  %6301 = vst.msk [vmem:[#allocation2 + $0x18] sm:$0xff] %vm72, %v6277
  %6302 = vst.msk [vmem:[#allocation2 + $0x20] sm:$0xff] %vm72, %v6278
  %6303 = vst.msk [vmem:[#allocation2 + $0x28] sm:$0xff] %vm72, %v6279
  %6304 = vst.msk [vmem:[#allocation2 + $0x30] sm:$0xff] %vm72, %v6280
  %6305 = vst.msk [vmem:[#allocation2 + $0x38] sm:$0xff] %vm72, %v6281
  %6306 = vst.msk [vmem:[#allocation2 + $0x40] sm:$0xff] %vm72, %v6282
  %6307 = vst.msk [vmem:[#allocation2 + $0x48] sm:$0xff] %vm72, %v6283
  %6308 = vst.msk [vmem:[#allocation2 + $0x50] sm:$0xff] %vm72, %v6284
  %6309 = vst.msk [vmem:[#allocation2 + $0x58] sm:$0xff] %vm72, %v6285
  %6310 = vst.msk [vmem:[#allocation2 + $0x60] sm:$0xff] %vm72, %v6286
  %6311 = vst.msk [vmem:[#allocation2 + $0x68] sm:$0xff] %vm72, %v6287
  %6312 = vst.msk [vmem:[#allocation2 + $0x70] sm:$0xff] %vm72, %v6288
  %6313 = vst.msk [vmem:[#allocation2 + $0x78] sm:$0xff] %vm72, %v6289
  %6314 = vst.msk [vmem:[#allocation2 + $0x80] sm:$0xff] %vm72, %v6290
  %6315 = vst.msk [vmem:[#allocation2 + $0x88] sm:$0xff] %vm72, %v6291
  %6316 = vst.msk [vmem:[#allocation2 + $0x90] sm:$0xff] %vm72, %v6292
  %6317 = vst.msk [vmem:[#allocation2 + $0x98] sm:$0xff] %vm72, %v6293
  %6318 = vst.msk [vmem:[#allocation2 + $0xa0] sm:$0xff] %vm72, %v6294
  %6319 = vst.msk [vmem:[#allocation2 + $0xa8] sm:$0xff] %vm72, %v6295
  %6320 = vst.msk [vmem:[#allocation2 + $0xb0] sm:$0xff] %vm72, %v6296
  %6321 = vst.msk [vmem:[#allocation2 + $0xb8] sm:$0xff] %vm72, %v6297
  %v6322 = vld [vmem:[#allocation2] sm:$0xff]
  %v6323 = vld [vmem:[#allocation2 + $0x8] sm:$0xff]
  %v6324 = vld [vmem:[#allocation2 + $0x10] sm:$0xff]
  %v6325 = vld [vmem:[#allocation2 + $0x18] sm:$0xff]
  %v6326 = vld [vmem:[#allocation2 + $0x20] sm:$0xff]
  %v6327 = vld [vmem:[#allocation2 + $0x28] sm:$0xff]
  %v6328 = vld [vmem:[#allocation2 + $0x30] sm:$0xff]
  %v6329 = vld [vmem:[#allocation2 + $0x38] sm:$0xff]
  %v6330 = vld [vmem:[#allocation2 + $0x40] sm:$0xff]
  %v6331 = vld [vmem:[#allocation2 + $0x48] sm:$0xff]
  %v6332 = vld [vmem:[#allocation2 + $0x50] sm:$0xff]
  %v6333 = vld [vmem:[#allocation2 + $0x58] sm:$0xff]
  %v6334 = vld [vmem:[#allocation2 + $0x60] sm:$0xff]
  %v6335 = vld [vmem:[#allocation2 + $0x68] sm:$0xff]
  %v6336 = vld [vmem:[#allocation2 + $0x70] sm:$0xff]
  %v6337 = vld [vmem:[#allocation2 + $0x78] sm:$0xff]
  %v6338 = vld [vmem:[#allocation2 + $0x80] sm:$0xff]
  %v6339 = vld [vmem:[#allocation2 + $0x88] sm:$0xff]
  %v6340 = vld [vmem:[#allocation2 + $0x90] sm:$0xff]
  %v6341 = vld [vmem:[#allocation2 + $0x98] sm:$0xff]
  %v6342 = vld [vmem:[#allocation2 + $0xa0] sm:$0xff]
  %v6343 = vld [vmem:[#allocation2 + $0xa8] sm:$0xff]
  %v6344 = vld [vmem:[#allocation2 + $0xb0] sm:$0xff]
  %v6345 = vld [vmem:[#allocation2 + $0xb8] sm:$0xff]
  %v6347 = vperm.slane %v3757, 0
  %v6350 = vsel %vm72, %v6322, 0
  %v6353 = vsel %vm72, %v6323, 0
  %v6356 = vsel %vm72, %v6324, 0
  %v6359 = vsel %vm72, %v6325, 0
  %v6362 = vsel %vm72, %v6326, 0
  %v6365 = vsel %vm72, %v6327, 0
  %v6368 = vsel %vm72, %v6328, 0
  %v6371 = vsel %vm72, %v6329, 0
  %v6374 = vsel %vm72, %v6330, 0
  %v6377 = vsel %vm72, %v6331, 0
  %v6380 = vsel %vm72, %v6332, 0
  %v6383 = vsel %vm72, %v6333, 0
  %v6386 = vsel %vm72, %v6334, 0
  %v6389 = vsel %vm72, %v6335, 0
  %v6392 = vsel %vm72, %v6336, 0
  %v6395 = vsel %vm72, %v6337, 0
  %v6398 = vsel %vm72, %v6338, 0
  %v6401 = vsel %vm72, %v6339, 0
  %v6404 = vsel %vm72, %v6340, 0
  %v6407 = vsel %vm72, %v6341, 0
  %v6410 = vsel %vm72, %v6342, 0
  %v6413 = vsel %vm72, %v6343, 0
  %v6416 = vsel %vm72, %v6344, 0
  %v6419 = vsel %vm72, %v6345, 0
  %6421 = vmatpush.msra.mxu0 0.0
  %6422 = vmatpush.msra.mxu0 0.0
  %6423 = vmatpush.msra.mxu0 0.0
  %6424 = vmatpush.msra.mxu0 0.0
  %6425 = vmatpush.msra.mxu0 0.0
  %6426 = vmatpush.msra.mxu0 0.0
  %6427 = vmatpush.msra.mxu0 0.0
  %6428 = vmatpush.msra.mxu0 0.0
  %6429 = vmatpush.msra.mxu0 0.0
  %6430 = vmatpush.msra.mxu0 0.0
  %6431 = vmatpush.msra.mxu0 0.0
  %6432 = vmatpush.msra.mxu0 0.0
  %6433 = vmatpush.msra.mxu0 %v3755
  %6434 = vmatpush.msra.mxu0 %v3754
  %6435 = vmatpush.msra.mxu0 %v3753
  %6436 = vmatpush.msra.mxu0 %v3752
  %6437 = vmatmul.f32.gmra.mxu0 %v6350
  %v6438 = vpop.f32.mrf.mxu0
  %v6439 = vadd.f32 %v6347, %v6438
  %6440 = vmatmul.f32.gmra.mxu0 %v6353
  %v6441 = vpop.f32.mrf.mxu0
  %v6442 = vadd.f32 %v6347, %v6441
  %6443 = vmatmul.f32.gmra.mxu0 %v6356
  %v6444 = vpop.f32.mrf.mxu0
  %v6445 = vadd.f32 %v6347, %v6444
  %6446 = vmatmul.f32.gmra.mxu0 %v6359
  %v6447 = vpop.f32.mrf.mxu0
  %v6448 = vadd.f32 %v6347, %v6447
  %6449 = vmatmul.f32.gmra.mxu0 %v6362
  %v6450 = vpop.f32.mrf.mxu0
  %v6451 = vadd.f32 %v6347, %v6450
  %6452 = vmatmul.f32.gmra.mxu0 %v6365
  %v6453 = vpop.f32.mrf.mxu0
  %v6454 = vadd.f32 %v6347, %v6453
  %6455 = vmatmul.f32.gmra.mxu0 %v6368
  %v6456 = vpop.f32.mrf.mxu0
  %v6457 = vadd.f32 %v6347, %v6456
  %6458 = vmatmul.f32.gmra.mxu0 %v6371
  %v6459 = vpop.f32.mrf.mxu0
  %v6460 = vadd.f32 %v6347, %v6459
  %6461 = vmatmul.f32.gmra.mxu0 %v6374
  %v6462 = vpop.f32.mrf.mxu0
  %v6463 = vadd.f32 %v6347, %v6462
  %6464 = vmatmul.f32.gmra.mxu0 %v6377
  %v6465 = vpop.f32.mrf.mxu0
  %v6466 = vadd.f32 %v6347, %v6465
  %6467 = vmatmul.f32.gmra.mxu0 %v6380
  %v6468 = vpop.f32.mrf.mxu0
  %v6469 = vadd.f32 %v6347, %v6468
  %6470 = vmatmul.f32.gmra.mxu0 %v6383
  %v6471 = vpop.f32.mrf.mxu0
  %v6472 = vadd.f32 %v6347, %v6471
  %6473 = vmatmul.f32.gmra.mxu0 %v6386
  %v6474 = vpop.f32.mrf.mxu0
  %v6475 = vadd.f32 %v6347, %v6474
  %6476 = vmatmul.f32.gmra.mxu0 %v6389
  %v6477 = vpop.f32.mrf.mxu0
  %v6478 = vadd.f32 %v6347, %v6477
  %6479 = vmatmul.f32.gmra.mxu0 %v6392
  %v6480 = vpop.f32.mrf.mxu0
  %v6481 = vadd.f32 %v6347, %v6480
  %6482 = vmatmul.f32.gmra.mxu0 %v6395
  %v6483 = vpop.f32.mrf.mxu0
  %v6484 = vadd.f32 %v6347, %v6483
  %6485 = vmatmul.f32.gmra.mxu0 %v6398
  %v6486 = vpop.f32.mrf.mxu0
  %v6487 = vadd.f32 %v6347, %v6486
  %6488 = vmatmul.f32.gmra.mxu0 %v6401
  %v6489 = vpop.f32.mrf.mxu0
  %v6490 = vadd.f32 %v6347, %v6489
  %6491 = vmatmul.f32.gmra.mxu0 %v6404
  %v6492 = vpop.f32.mrf.mxu0
  %v6493 = vadd.f32 %v6347, %v6492
  %6494 = vmatmul.f32.gmra.mxu0 %v6407
  %v6495 = vpop.f32.mrf.mxu0
  %v6496 = vadd.f32 %v6347, %v6495
  %6497 = vmatmul.f32.gmra.mxu0 %v6410
  %v6498 = vpop.f32.mrf.mxu0
  %v6499 = vadd.f32 %v6347, %v6498
  %6500 = vmatmul.f32.gmra.mxu0 %v6413
  %v6501 = vpop.f32.mrf.mxu0
  %v6502 = vadd.f32 %v6347, %v6501
  %6503 = vmatmul.f32.gmra.mxu0 %v6416
  %v6504 = vpop.f32.mrf.mxu0
  %v6505 = vadd.f32 %v6347, %v6504
  %6506 = vmatmul.f32.gmra.mxu0 %v6419
  %v6507 = vpop.f32.mrf.mxu0
  %v6508 = vadd.f32 %v6347, %v6507
  %6509 = vdwg.mxu0
  %v6510 = vmax.f32 %v6439, 0.0
  %v6511 = vmax.f32 %v6442, 0.0
  %v6512 = vmax.f32 %v6445, 0.0
  %v6513 = vmax.f32 %v6448, 0.0
  %v6514 = vmax.f32 %v6451, 0.0
  %v6515 = vmax.f32 %v6454, 0.0
  %v6516 = vmax.f32 %v6457, 0.0
  %v6517 = vmax.f32 %v6460, 0.0
  %v6518 = vmax.f32 %v6463, 0.0
  %v6519 = vmax.f32 %v6466, 0.0
  %v6520 = vmax.f32 %v6469, 0.0
  %v6521 = vmax.f32 %v6472, 0.0
  %v6522 = vmax.f32 %v6475, 0.0
  %v6523 = vmax.f32 %v6478, 0.0
  %v6524 = vmax.f32 %v6481, 0.0
  %v6525 = vmax.f32 %v6484, 0.0
  %v6526 = vmax.f32 %v6487, 0.0
  %v6527 = vmax.f32 %v6490, 0.0
  %v6528 = vmax.f32 %v6493, 0.0
  %v6529 = vmax.f32 %v6496, 0.0
  %v6530 = vmax.f32 %v6499, 0.0
  %v6531 = vmax.f32 %v6502, 0.0
  %v6532 = vmax.f32 %v6505, 0.0
  %v6533 = vmax.f32 %v6508, 0.0
  %6534 = vst [vmem:[#allocation5] sm:$0xff] %v6510
  %6535 = vst [vmem:[#allocation5 + $0x8] sm:$0xff] %v6511
  %6536 = vst [vmem:[#allocation5 + $0x10] sm:$0xff] %v6512
  %6537 = vst [vmem:[#allocation5 + $0x18] sm:$0xff] %v6513
  %6538 = vst [vmem:[#allocation5 + $0x20] sm:$0xff] %v6514
  %6539 = vst [vmem:[#allocation5 + $0x28] sm:$0xff] %v6515
  %6540 = vst [vmem:[#allocation5 + $0x30] sm:$0xff] %v6516
  %6541 = vst [vmem:[#allocation5 + $0x38] sm:$0xff] %v6517
  %6542 = vst [vmem:[#allocation5 + $0x40] sm:$0xff] %v6518
  %6543 = vst [vmem:[#allocation5 + $0x48] sm:$0xff] %v6519
  %6544 = vst [vmem:[#allocation5 + $0x50] sm:$0xff] %v6520
  %6545 = vst [vmem:[#allocation5 + $0x58] sm:$0xff] %v6521
  %6546 = vst [vmem:[#allocation5 + $0x60] sm:$0xff] %v6522
  %6547 = vst [vmem:[#allocation5 + $0x68] sm:$0xff] %v6523
  %6548 = vst [vmem:[#allocation5 + $0x70] sm:$0xff] %v6524
  %6549 = vst [vmem:[#allocation5 + $0x78] sm:$0xff] %v6525
  %6550 = vst [vmem:[#allocation5 + $0x80] sm:$0xff] %v6526
  %6551 = vst [vmem:[#allocation5 + $0x88] sm:$0xff] %v6527
  %6552 = vst [vmem:[#allocation5 + $0x90] sm:$0xff] %v6528
  %6553 = vst [vmem:[#allocation5 + $0x98] sm:$0xff] %v6529
  %6554 = vst [vmem:[#allocation5 + $0xa0] sm:$0xff] %v6530
  %6555 = vst [vmem:[#allocation5 + $0xa8] sm:$0xff] %v6531
  %6556 = vst [vmem:[#allocation5 + $0xb0] sm:$0xff] %v6532
  %6557 = vst [vmem:[#allocation5 + $0xb8] sm:$0xff] %v6533
  %v6558 = vld [vmem:[#allocation5] sm:$0xff]
  %v6559 = vld [vmem:[#allocation5 + $0x8] sm:$0xff]
  %v6560 = vld [vmem:[#allocation5 + $0x10] sm:$0xff]
  %v6561 = vld [vmem:[#allocation5 + $0x18] sm:$0xff]
  %v6562 = vld [vmem:[#allocation5 + $0x20] sm:$0xff]
  %v6563 = vld [vmem:[#allocation5 + $0x28] sm:$0xff]
  %v6564 = vld [vmem:[#allocation5 + $0x30] sm:$0xff]
  %v6565 = vld [vmem:[#allocation5 + $0x38] sm:$0xff]
  %v6566 = vld [vmem:[#allocation5 + $0x40] sm:$0xff]
  %v6567 = vld [vmem:[#allocation5 + $0x48] sm:$0xff]
  %v6568 = vld [vmem:[#allocation5 + $0x50] sm:$0xff]
  %v6569 = vld [vmem:[#allocation5 + $0x58] sm:$0xff]
  %v6570 = vld [vmem:[#allocation5 + $0x60] sm:$0xff]
  %v6571 = vld [vmem:[#allocation5 + $0x68] sm:$0xff]
  %v6572 = vld [vmem:[#allocation5 + $0x70] sm:$0xff]
  %v6573 = vld [vmem:[#allocation5 + $0x78] sm:$0xff]
  %v6574 = vld [vmem:[#allocation5 + $0x80] sm:$0xff]
  %v6575 = vld [vmem:[#allocation5 + $0x88] sm:$0xff]
  %v6576 = vld [vmem:[#allocation5 + $0x90] sm:$0xff]
  %v6577 = vld [vmem:[#allocation5 + $0x98] sm:$0xff]
  %v6578 = vld [vmem:[#allocation5 + $0xa0] sm:$0xff]
  %v6579 = vld [vmem:[#allocation5 + $0xa8] sm:$0xff]
  %v6580 = vld [vmem:[#allocation5 + $0xb0] sm:$0xff]
  %v6581 = vld [vmem:[#allocation5 + $0xb8] sm:$0xff]
  %v6583 = vperm.slane %v3776, 0
  %6585 = vmatpush.msra.mxu0 %v3774
  %6586 = vmatpush.msra.mxu0 %v3773
  %6587 = vmatpush.msra.mxu0 %v3772
  %6588 = vmatpush.msra.mxu0 %v3771
  %6589 = vmatpush.msra.mxu0 %v3770
  %6590 = vmatpush.msra.mxu0 %v3769
  %6591 = vmatpush.msra.mxu0 %v3768
  %6592 = vmatpush.msra.mxu0 %v3767
  %6593 = vmatpush.msra.mxu0 %v3766
  %6594 = vmatpush.msra.mxu0 %v3765
  %6595 = vmatpush.msra.mxu0 %v3764
  %6596 = vmatpush.msra.mxu0 %v3763
  %6597 = vmatpush.msra.mxu0 %v3762
  %6598 = vmatpush.msra.mxu0 %v3761
  %6599 = vmatpush.msra.mxu0 %v3760
  %6600 = vmatpush.msra.mxu0 %v3759
  %6601 = vmatmul.f32.gmra.mxu0 %v6558
  %v6602 = vpop.f32.mrf.mxu0
  %v6603 = vadd.f32 %v6583, %v6602
  %6604 = vmatmul.f32.gmra.mxu0 %v6559
  %v6605 = vpop.f32.mrf.mxu0
  %v6606 = vadd.f32 %v6583, %v6605
  %6607 = vmatmul.f32.gmra.mxu0 %v6560
  %v6608 = vpop.f32.mrf.mxu0
  %v6609 = vadd.f32 %v6583, %v6608
  %6610 = vmatmul.f32.gmra.mxu0 %v6561
  %v6611 = vpop.f32.mrf.mxu0
  %v6612 = vadd.f32 %v6583, %v6611
  %6613 = vmatmul.f32.gmra.mxu0 %v6562
  %v6614 = vpop.f32.mrf.mxu0
  %v6615 = vadd.f32 %v6583, %v6614
  %6616 = vmatmul.f32.gmra.mxu0 %v6563
  %v6617 = vpop.f32.mrf.mxu0
  %v6618 = vadd.f32 %v6583, %v6617
  %6619 = vmatmul.f32.gmra.mxu0 %v6564
  %v6620 = vpop.f32.mrf.mxu0
  %v6621 = vadd.f32 %v6583, %v6620
  %6622 = vmatmul.f32.gmra.mxu0 %v6565
  %v6623 = vpop.f32.mrf.mxu0
  %v6624 = vadd.f32 %v6583, %v6623
  %6625 = vmatmul.f32.gmra.mxu0 %v6566
  %v6626 = vpop.f32.mrf.mxu0
  %v6627 = vadd.f32 %v6583, %v6626
  %6628 = vmatmul.f32.gmra.mxu0 %v6567
  %v6629 = vpop.f32.mrf.mxu0
  %v6630 = vadd.f32 %v6583, %v6629
  %6631 = vmatmul.f32.gmra.mxu0 %v6568
  %v6632 = vpop.f32.mrf.mxu0
  %v6633 = vadd.f32 %v6583, %v6632
  %6634 = vmatmul.f32.gmra.mxu0 %v6569
  %v6635 = vpop.f32.mrf.mxu0
  %v6636 = vadd.f32 %v6583, %v6635
  %6637 = vmatmul.f32.gmra.mxu0 %v6570
  %v6638 = vpop.f32.mrf.mxu0
  %v6639 = vadd.f32 %v6583, %v6638
  %6640 = vmatmul.f32.gmra.mxu0 %v6571
  %v6641 = vpop.f32.mrf.mxu0
  %v6642 = vadd.f32 %v6583, %v6641
  %6643 = vmatmul.f32.gmra.mxu0 %v6572
  %v6644 = vpop.f32.mrf.mxu0
  %v6645 = vadd.f32 %v6583, %v6644
  %6646 = vmatmul.f32.gmra.mxu0 %v6573
  %v6647 = vpop.f32.mrf.mxu0
  %v6648 = vadd.f32 %v6583, %v6647
  %6649 = vmatmul.f32.gmra.mxu0 %v6574
  %v6650 = vpop.f32.mrf.mxu0
  %v6651 = vadd.f32 %v6583, %v6650
  %6652 = vmatmul.f32.gmra.mxu0 %v6575
  %v6653 = vpop.f32.mrf.mxu0
  %v6654 = vadd.f32 %v6583, %v6653
  %6655 = vmatmul.f32.gmra.mxu0 %v6576
  %v6656 = vpop.f32.mrf.mxu0
  %v6657 = vadd.f32 %v6583, %v6656
  %6658 = vmatmul.f32.gmra.mxu0 %v6577
  %v6659 = vpop.f32.mrf.mxu0
  %v6660 = vadd.f32 %v6583, %v6659
  %6661 = vmatmul.f32.gmra.mxu0 %v6578
  %v6662 = vpop.f32.mrf.mxu0
  %v6663 = vadd.f32 %v6583, %v6662
  %6664 = vmatmul.f32.gmra.mxu0 %v6579
  %v6665 = vpop.f32.mrf.mxu0
  %v6666 = vadd.f32 %v6583, %v6665
  %6667 = vmatmul.f32.gmra.mxu0 %v6580
  %v6668 = vpop.f32.mrf.mxu0
  %v6669 = vadd.f32 %v6583, %v6668
  %6670 = vmatmul.f32.gmra.mxu0 %v6581
  %v6671 = vpop.f32.mrf.mxu0
  %v6672 = vadd.f32 %v6583, %v6671
  %6673 = vdwg.mxu0
  %v6674 = vld [vmem:[#allocation2] sm:$0xff]
  %v6675 = vld [vmem:[#allocation2 + $0x8] sm:$0xff]
  %v6676 = vld [vmem:[#allocation2 + $0x10] sm:$0xff]
  %v6677 = vld [vmem:[#allocation2 + $0x18] sm:$0xff]
  %v6678 = vld [vmem:[#allocation2 + $0x20] sm:$0xff]
  %v6679 = vld [vmem:[#allocation2 + $0x28] sm:$0xff]
  %v6680 = vld [vmem:[#allocation2 + $0x30] sm:$0xff]
  %v6681 = vld [vmem:[#allocation2 + $0x38] sm:$0xff]
  %v6682 = vld [vmem:[#allocation2 + $0x40] sm:$0xff]
  %v6683 = vld [vmem:[#allocation2 + $0x48] sm:$0xff]
  %v6684 = vld [vmem:[#allocation2 + $0x50] sm:$0xff]
  %v6685 = vld [vmem:[#allocation2 + $0x58] sm:$0xff]
  %v6686 = vld [vmem:[#allocation2 + $0x60] sm:$0xff]
  %v6687 = vld [vmem:[#allocation2 + $0x68] sm:$0xff]
  %v6688 = vld [vmem:[#allocation2 + $0x70] sm:$0xff]
  %v6689 = vld [vmem:[#allocation2 + $0x78] sm:$0xff]
  %v6690 = vld [vmem:[#allocation2 + $0x80] sm:$0xff]
  %v6691 = vld [vmem:[#allocation2 + $0x88] sm:$0xff]
  %v6692 = vld [vmem:[#allocation2 + $0x90] sm:$0xff]
  %v6693 = vld [vmem:[#allocation2 + $0x98] sm:$0xff]
  %v6694 = vld [vmem:[#allocation2 + $0xa0] sm:$0xff]
  %v6695 = vld [vmem:[#allocation2 + $0xa8] sm:$0xff]
  %v6696 = vld [vmem:[#allocation2 + $0xb0] sm:$0xff]
  %v6697 = vld [vmem:[#allocation2 + $0xb8] sm:$0xff]
  %v6698 = vadd.f32 %v6674, %v6603
  %v6699 = vadd.f32 %v6675, %v6606
  %v6700 = vadd.f32 %v6676, %v6609
  %v6701 = vadd.f32 %v6677, %v6612
  %v6702 = vadd.f32 %v6678, %v6615
  %v6703 = vadd.f32 %v6679, %v6618
  %v6704 = vadd.f32 %v6680, %v6621
  %v6705 = vadd.f32 %v6681, %v6624
  %v6706 = vadd.f32 %v6682, %v6627
  %v6707 = vadd.f32 %v6683, %v6630
  %v6708 = vadd.f32 %v6684, %v6633
  %v6709 = vadd.f32 %v6685, %v6636
  %v6710 = vadd.f32 %v6686, %v6639
  %v6711 = vadd.f32 %v6687, %v6642
  %v6712 = vadd.f32 %v6688, %v6645
  %v6713 = vadd.f32 %v6689, %v6648
  %v6714 = vadd.f32 %v6690, %v6651
  %v6715 = vadd.f32 %v6691, %v6654
  %v6716 = vadd.f32 %v6692, %v6657
  %v6717 = vadd.f32 %v6693, %v6660
  %v6718 = vadd.f32 %v6694, %v6663
  %v6719 = vadd.f32 %v6695, %v6666
  %v6720 = vadd.f32 %v6696, %v6669
  %v6721 = vadd.f32 %v6697, %v6672
  %v6722 = vsel %vm72, %v6698, 0.0
  %6723 = vadd.xlane.f32.xlu0 %v6722
  %v6724 = vpop.xlane.xlu0 %6723
  %v6725 = vsel %vm72, %v6699, 0.0
  %6726 = vadd.xlane.f32.xlu0 %v6725
  %v6727 = vpop.xlane.xlu0 %6726
  %v6728 = vsel %vm72, %v6700, 0.0
  %6729 = vadd.xlane.f32.xlu0 %v6728
  %v6730 = vpop.xlane.xlu0 %6729
  %v6731 = vsel %vm72, %v6701, 0.0
  %6732 = vadd.xlane.f32.xlu0 %v6731
  %v6733 = vpop.xlane.xlu0 %6732
  %v6734 = vsel %vm72, %v6702, 0.0
  %6735 = vadd.xlane.f32.xlu0 %v6734
  %v6736 = vpop.xlane.xlu0 %6735
  %v6737 = vsel %vm72, %v6703, 0.0
  %6738 = vadd.xlane.f32.xlu0 %v6737
  %v6739 = vpop.xlane.xlu0 %6738
  %v6740 = vsel %vm72, %v6704, 0.0
  %6741 = vadd.xlane.f32.xlu0 %v6740
  %v6742 = vpop.xlane.xlu0 %6741
  %v6743 = vsel %vm72, %v6705, 0.0
  %6744 = vadd.xlane.f32.xlu0 %v6743
  %v6745 = vpop.xlane.xlu0 %6744
  %v6746 = vsel %vm72, %v6706, 0.0
  %6747 = vadd.xlane.f32.xlu0 %v6746
  %v6748 = vpop.xlane.xlu0 %6747
  %v6749 = vsel %vm72, %v6707, 0.0
  %6750 = vadd.xlane.f32.xlu0 %v6749
  %v6751 = vpop.xlane.xlu0 %6750
  %v6752 = vsel %vm72, %v6708, 0.0
  %6753 = vadd.xlane.f32.xlu0 %v6752
  %v6754 = vpop.xlane.xlu0 %6753
  %v6755 = vsel %vm72, %v6709, 0.0
  %6756 = vadd.xlane.f32.xlu0 %v6755
  %v6757 = vpop.xlane.xlu0 %6756
  %v6758 = vsel %vm72, %v6710, 0.0
  %6759 = vadd.xlane.f32.xlu0 %v6758
  %v6760 = vpop.xlane.xlu0 %6759
  %v6761 = vsel %vm72, %v6711, 0.0
  %6762 = vadd.xlane.f32.xlu0 %v6761
  %v6763 = vpop.xlane.xlu0 %6762
  %v6764 = vsel %vm72, %v6712, 0.0
  %6765 = vadd.xlane.f32.xlu0 %v6764
  %v6766 = vpop.xlane.xlu0 %6765
  %v6767 = vsel %vm72, %v6713, 0.0
  %6768 = vadd.xlane.f32.xlu0 %v6767
  %v6769 = vpop.xlane.xlu0 %6768
  %v6770 = vsel %vm72, %v6714, 0.0
  %6771 = vadd.xlane.f32.xlu0 %v6770
  %v6772 = vpop.xlane.xlu0 %6771
  %v6773 = vsel %vm72, %v6715, 0.0
  %6774 = vadd.xlane.f32.xlu0 %v6773
  %v6775 = vpop.xlane.xlu0 %6774
  %v6776 = vsel %vm72, %v6716, 0.0
  %6777 = vadd.xlane.f32.xlu0 %v6776
  %v6778 = vpop.xlane.xlu0 %6777
  %v6779 = vsel %vm72, %v6717, 0.0
  %6780 = vadd.xlane.f32.xlu0 %v6779
  %v6781 = vpop.xlane.xlu0 %6780
  %v6782 = vsel %vm72, %v6718, 0.0
  %6783 = vadd.xlane.f32.xlu0 %v6782
  %v6784 = vpop.xlane.xlu0 %6783
  %v6785 = vsel %vm72, %v6719, 0.0
  %6786 = vadd.xlane.f32.xlu0 %v6785
  %v6787 = vpop.xlane.xlu0 %6786
  %v6788 = vsel %vm72, %v6720, 0.0
  %6789 = vadd.xlane.f32.xlu0 %v6788
  %v6790 = vpop.xlane.xlu0 %6789
  %v6791 = vsel %vm72, %v6721, 0.0
  %6792 = vadd.xlane.f32.xlu0 %v6791
  %v6793 = vpop.xlane.xlu0 %6792
  %v6794 = vmul.f32 %v6724, %v2188
  %v6795 = vmul.f32 %v6727, %v2188
  %v6796 = vmul.f32 %v6730, %v2188
  %v6797 = vmul.f32 %v6733, %v2188
  %v6798 = vmul.f32 %v6736, %v2188
  %v6799 = vmul.f32 %v6739, %v2188
  %v6800 = vmul.f32 %v6742, %v2188
  %v6801 = vmul.f32 %v6745, %v2188
  %v6802 = vmul.f32 %v6748, %v2188
  %v6803 = vmul.f32 %v6751, %v2188
  %v6804 = vmul.f32 %v6754, %v2188
  %v6805 = vmul.f32 %v6757, %v2188
  %v6806 = vmul.f32 %v6760, %v2188
  %v6807 = vmul.f32 %v6763, %v2188
  %v6808 = vmul.f32 %v6766, %v2188
  %v6809 = vmul.f32 %v6769, %v2188
  %v6810 = vmul.f32 %v6772, %v2188
  %v6811 = vmul.f32 %v6775, %v2188
  %v6812 = vmul.f32 %v6778, %v2188
  %v6813 = vmul.f32 %v6781, %v2188
  %v6814 = vmul.f32 %v6784, %v2188
  %v6815 = vmul.f32 %v6787, %v2188
  %v6816 = vmul.f32 %v6790, %v2188
  %v6817 = vmul.f32 %v6793, %v2188
  %v6818 = vsub.f32 %v6698, %v6794
  %v6819 = vsub.f32 %v6699, %v6795
  %v6820 = vsub.f32 %v6700, %v6796
  %v6821 = vsub.f32 %v6701, %v6797
  %v6822 = vsub.f32 %v6702, %v6798
  %v6823 = vsub.f32 %v6703, %v6799
  %v6824 = vsub.f32 %v6704, %v6800
  %v6825 = vsub.f32 %v6705, %v6801
  %v6826 = vsub.f32 %v6706, %v6802
  %v6827 = vsub.f32 %v6707, %v6803
  %v6828 = vsub.f32 %v6708, %v6804
  %v6829 = vsub.f32 %v6709, %v6805
  %v6830 = vsub.f32 %v6710, %v6806
  %v6831 = vsub.f32 %v6711, %v6807
  %v6832 = vsub.f32 %v6712, %v6808
  %v6833 = vsub.f32 %v6713, %v6809
  %v6834 = vsub.f32 %v6714, %v6810
  %v6835 = vsub.f32 %v6715, %v6811
  %v6836 = vsub.f32 %v6716, %v6812
  %v6837 = vsub.f32 %v6717, %v6813
  %v6838 = vsub.f32 %v6718, %v6814
  %v6839 = vsub.f32 %v6719, %v6815
  %v6840 = vsub.f32 %v6720, %v6816
  %v6841 = vsub.f32 %v6721, %v6817
  %v6842 = vmul.f32 %v6818, %v6818
  %v6843 = vmul.f32 %v6819, %v6819
  %v6844 = vmul.f32 %v6820, %v6820
  %v6845 = vmul.f32 %v6821, %v6821
  %v6846 = vmul.f32 %v6822, %v6822
  %v6847 = vmul.f32 %v6823, %v6823
  %v6848 = vmul.f32 %v6824, %v6824
  %v6849 = vmul.f32 %v6825, %v6825
  %v6850 = vmul.f32 %v6826, %v6826
  %v6851 = vmul.f32 %v6827, %v6827
  %v6852 = vmul.f32 %v6828, %v6828
  %v6853 = vmul.f32 %v6829, %v6829
  %v6854 = vmul.f32 %v6830, %v6830
  %v6855 = vmul.f32 %v6831, %v6831
  %v6856 = vmul.f32 %v6832, %v6832
  %v6857 = vmul.f32 %v6833, %v6833
  %v6858 = vmul.f32 %v6834, %v6834
  %v6859 = vmul.f32 %v6835, %v6835
  %v6860 = vmul.f32 %v6836, %v6836
  %v6861 = vmul.f32 %v6837, %v6837
  %v6862 = vmul.f32 %v6838, %v6838
  %v6863 = vmul.f32 %v6839, %v6839
  %v6864 = vmul.f32 %v6840, %v6840
  %v6865 = vmul.f32 %v6841, %v6841
  %v6866 = vsel %vm72, %v6842, 0.0
  %6867 = vadd.xlane.f32.xlu0 %v6866
  %v6868 = vpop.xlane.xlu0 %6867
  %v6869 = vsel %vm72, %v6843, 0.0
  %6870 = vadd.xlane.f32.xlu0 %v6869
  %v6871 = vpop.xlane.xlu0 %6870
  %v6872 = vsel %vm72, %v6844, 0.0
  %6873 = vadd.xlane.f32.xlu0 %v6872
  %v6874 = vpop.xlane.xlu0 %6873
  %v6875 = vsel %vm72, %v6845, 0.0
  %6876 = vadd.xlane.f32.xlu0 %v6875
  %v6877 = vpop.xlane.xlu0 %6876
  %v6878 = vsel %vm72, %v6846, 0.0
  %6879 = vadd.xlane.f32.xlu0 %v6878
  %v6880 = vpop.xlane.xlu0 %6879
  %v6881 = vsel %vm72, %v6847, 0.0
  %6882 = vadd.xlane.f32.xlu0 %v6881
  %v6883 = vpop.xlane.xlu0 %6882
  %v6884 = vsel %vm72, %v6848, 0.0
  %6885 = vadd.xlane.f32.xlu0 %v6884
  %v6886 = vpop.xlane.xlu0 %6885
  %v6887 = vsel %vm72, %v6849, 0.0
  %6888 = vadd.xlane.f32.xlu0 %v6887
  %v6889 = vpop.xlane.xlu0 %6888
  %v6890 = vsel %vm72, %v6850, 0.0
  %6891 = vadd.xlane.f32.xlu0 %v6890
  %v6892 = vpop.xlane.xlu0 %6891
  %v6893 = vsel %vm72, %v6851, 0.0
  %6894 = vadd.xlane.f32.xlu0 %v6893
  %v6895 = vpop.xlane.xlu0 %6894
  %v6896 = vsel %vm72, %v6852, 0.0
  %6897 = vadd.xlane.f32.xlu0 %v6896
  %v6898 = vpop.xlane.xlu0 %6897
  %v6899 = vsel %vm72, %v6853, 0.0
  %6900 = vadd.xlane.f32.xlu0 %v6899
  %v6901 = vpop.xlane.xlu0 %6900
  %v6902 = vsel %vm72, %v6854, 0.0
  %6903 = vadd.xlane.f32.xlu0 %v6902
  %v6904 = vpop.xlane.xlu0 %6903
  %v6905 = vsel %vm72, %v6855, 0.0
  %6906 = vadd.xlane.f32.xlu0 %v6905
  %v6907 = vpop.xlane.xlu0 %6906
  %v6908 = vsel %vm72, %v6856, 0.0
  %6909 = vadd.xlane.f32.xlu0 %v6908
  %v6910 = vpop.xlane.xlu0 %6909
  %v6911 = vsel %vm72, %v6857, 0.0
  %6912 = vadd.xlane.f32.xlu0 %v6911
  %v6913 = vpop.xlane.xlu0 %6912
  %v6914 = vsel %vm72, %v6858, 0.0
  %6915 = vadd.xlane.f32.xlu0 %v6914
  %v6916 = vpop.xlane.xlu0 %6915
  %v6917 = vsel %vm72, %v6859, 0.0
  %6918 = vadd.xlane.f32.xlu0 %v6917
  %v6919 = vpop.xlane.xlu0 %6918
  %v6920 = vsel %vm72, %v6860, 0.0
  %6921 = vadd.xlane.f32.xlu0 %v6920
  %v6922 = vpop.xlane.xlu0 %6921
  %v6923 = vsel %vm72, %v6861, 0.0
  %6924 = vadd.xlane.f32.xlu0 %v6923
  %v6925 = vpop.xlane.xlu0 %6924
  %v6926 = vsel %vm72, %v6862, 0.0
  %6927 = vadd.xlane.f32.xlu0 %v6926
  %v6928 = vpop.xlane.xlu0 %6927
  %v6929 = vsel %vm72, %v6863, 0.0
  %6930 = vadd.xlane.f32.xlu0 %v6929
  %v6931 = vpop.xlane.xlu0 %6930
  %v6932 = vsel %vm72, %v6864, 0.0
  %6933 = vadd.xlane.f32.xlu0 %v6932
  %v6934 = vpop.xlane.xlu0 %6933
  %v6935 = vsel %vm72, %v6865, 0.0
  %6936 = vadd.xlane.f32.xlu0 %v6935
  %v6937 = vpop.xlane.xlu0 %6936
  %v6938 = vmul.f32 %v6868, %v2188
  %v6939 = vmul.f32 %v6871, %v2188
  %v6940 = vmul.f32 %v6874, %v2188
  %v6941 = vmul.f32 %v6877, %v2188
  %v6942 = vmul.f32 %v6880, %v2188
  %v6943 = vmul.f32 %v6883, %v2188
  %v6944 = vmul.f32 %v6886, %v2188
  %v6945 = vmul.f32 %v6889, %v2188
  %v6946 = vmul.f32 %v6892, %v2188
  %v6947 = vmul.f32 %v6895, %v2188
  %v6948 = vmul.f32 %v6898, %v2188
  %v6949 = vmul.f32 %v6901, %v2188
  %v6950 = vmul.f32 %v6904, %v2188
  %v6951 = vmul.f32 %v6907, %v2188
  %v6952 = vmul.f32 %v6910, %v2188
  %v6953 = vmul.f32 %v6913, %v2188
  %v6954 = vmul.f32 %v6916, %v2188
  %v6955 = vmul.f32 %v6919, %v2188
  %v6956 = vmul.f32 %v6922, %v2188
  %v6957 = vmul.f32 %v6925, %v2188
  %v6958 = vmul.f32 %v6928, %v2188
  %v6959 = vmul.f32 %v6931, %v2188
  %v6960 = vmul.f32 %v6934, %v2188
  %v6961 = vmul.f32 %v6937, %v2188
  %v6962 = vadd.f32 %v6938, 1e-05
  %v6963 = vadd.f32 %v6939, 1e-05
  %v6964 = vadd.f32 %v6940, 1e-05
  %v6965 = vadd.f32 %v6941, 1e-05
  %v6966 = vadd.f32 %v6942, 1e-05
  %v6967 = vadd.f32 %v6943, 1e-05
  %v6968 = vadd.f32 %v6944, 1e-05
  %v6969 = vadd.f32 %v6945, 1e-05
  %v6970 = vadd.f32 %v6946, 1e-05
  %v6971 = vadd.f32 %v6947, 1e-05
  %v6972 = vadd.f32 %v6948, 1e-05
  %v6973 = vadd.f32 %v6949, 1e-05
  %v6974 = vadd.f32 %v6950, 1e-05
  %v6975 = vadd.f32 %v6951, 1e-05
  %v6976 = vadd.f32 %v6952, 1e-05
  %v6977 = vadd.f32 %v6953, 1e-05
  %v6978 = vadd.f32 %v6954, 1e-05
  %v6979 = vadd.f32 %v6955, 1e-05
  %v6980 = vadd.f32 %v6956, 1e-05
  %v6981 = vadd.f32 %v6957, 1e-05
  %v6982 = vadd.f32 %v6958, 1e-05
  %v6983 = vadd.f32 %v6959, 1e-05
  %v6984 = vadd.f32 %v6960, 1e-05
  %v6985 = vadd.f32 %v6961, 1e-05
  %v6986 = vrsqrt.pop %v6962
  %v6987 = vmul.f32 %v6986, %v6962
  %v6988 = vmul.f32 %v6987, %v6986
  %v6989 = vmul.f32 0.5, %v6988
  %v6990 = vsub.f32 1.5, %v6989
  %v6991 = vmul.f32 %v6986, %v6990
  %vm6992 = vweird.f32 %v6962
  %vm6993 = vweird.f32 %v6986
  %vm6994 = vmor %vm6992, %vm6993
  %v6995 = vsel %vm6994, %v6986, %v6991
  %v6996 = vrsqrt.pop %v6963
  %v6997 = vmul.f32 %v6996, %v6963
  %v6998 = vmul.f32 %v6997, %v6996
  %v6999 = vmul.f32 0.5, %v6998
  %v7000 = vsub.f32 1.5, %v6999
  %v7001 = vmul.f32 %v6996, %v7000
  %vm7002 = vweird.f32 %v6963
  %vm7003 = vweird.f32 %v6996
  %vm7004 = vmor %vm7002, %vm7003
  %v7005 = vsel %vm7004, %v6996, %v7001
  %v7006 = vrsqrt.pop %v6964
  %v7007 = vmul.f32 %v7006, %v6964
  %v7008 = vmul.f32 %v7007, %v7006
  %v7009 = vmul.f32 0.5, %v7008
  %v7010 = vsub.f32 1.5, %v7009
  %v7011 = vmul.f32 %v7006, %v7010
  %vm7012 = vweird.f32 %v6964
  %vm7013 = vweird.f32 %v7006
  %vm7014 = vmor %vm7012, %vm7013
  %v7015 = vsel %vm7014, %v7006, %v7011
  %v7016 = vrsqrt.pop %v6965
  %v7017 = vmul.f32 %v7016, %v6965
  %v7018 = vmul.f32 %v7017, %v7016
  %v7019 = vmul.f32 0.5, %v7018
  %v7020 = vsub.f32 1.5, %v7019
  %v7021 = vmul.f32 %v7016, %v7020
  %vm7022 = vweird.f32 %v6965
  %vm7023 = vweird.f32 %v7016
  %vm7024 = vmor %vm7022, %vm7023
  %v7025 = vsel %vm7024, %v7016, %v7021
  %v7026 = vrsqrt.pop %v6966
  %v7027 = vmul.f32 %v7026, %v6966
  %v7028 = vmul.f32 %v7027, %v7026
  %v7029 = vmul.f32 0.5, %v7028
  %v7030 = vsub.f32 1.5, %v7029
  %v7031 = vmul.f32 %v7026, %v7030
  %vm7032 = vweird.f32 %v6966
  %vm7033 = vweird.f32 %v7026
  %vm7034 = vmor %vm7032, %vm7033
  %v7035 = vsel %vm7034, %v7026, %v7031
  %v7036 = vrsqrt.pop %v6967
  %v7037 = vmul.f32 %v7036, %v6967
  %v7038 = vmul.f32 %v7037, %v7036
  %v7039 = vmul.f32 0.5, %v7038
  %v7040 = vsub.f32 1.5, %v7039
  %v7041 = vmul.f32 %v7036, %v7040
  %vm7042 = vweird.f32 %v6967
  %vm7043 = vweird.f32 %v7036
  %vm7044 = vmor %vm7042, %vm7043
  %v7045 = vsel %vm7044, %v7036, %v7041
  %v7046 = vrsqrt.pop %v6968
  %v7047 = vmul.f32 %v7046, %v6968
  %v7048 = vmul.f32 %v7047, %v7046
  %v7049 = vmul.f32 0.5, %v7048
  %v7050 = vsub.f32 1.5, %v7049
  %v7051 = vmul.f32 %v7046, %v7050
  %vm7052 = vweird.f32 %v6968
  %vm7053 = vweird.f32 %v7046
  %vm7054 = vmor %vm7052, %vm7053
  %v7055 = vsel %vm7054, %v7046, %v7051
  %v7056 = vrsqrt.pop %v6969
  %v7057 = vmul.f32 %v7056, %v6969
  %v7058 = vmul.f32 %v7057, %v7056
  %v7059 = vmul.f32 0.5, %v7058
  %v7060 = vsub.f32 1.5, %v7059
  %v7061 = vmul.f32 %v7056, %v7060
  %vm7062 = vweird.f32 %v6969
  %vm7063 = vweird.f32 %v7056
  %vm7064 = vmor %vm7062, %vm7063
  %v7065 = vsel %vm7064, %v7056, %v7061
  %v7066 = vrsqrt.pop %v6970
  %v7067 = vmul.f32 %v7066, %v6970
  %v7068 = vmul.f32 %v7067, %v7066
  %v7069 = vmul.f32 0.5, %v7068
  %v7070 = vsub.f32 1.5, %v7069
  %v7071 = vmul.f32 %v7066, %v7070
  %vm7072 = vweird.f32 %v6970
  %vm7073 = vweird.f32 %v7066
  %vm7074 = vmor %vm7072, %vm7073
  %v7075 = vsel %vm7074, %v7066, %v7071
  %v7076 = vrsqrt.pop %v6971
  %v7077 = vmul.f32 %v7076, %v6971
  %v7078 = vmul.f32 %v7077, %v7076
  %v7079 = vmul.f32 0.5, %v7078
  %v7080 = vsub.f32 1.5, %v7079
  %v7081 = vmul.f32 %v7076, %v7080
  %vm7082 = vweird.f32 %v6971
  %vm7083 = vweird.f32 %v7076
  %vm7084 = vmor %vm7082, %vm7083
  %v7085 = vsel %vm7084, %v7076, %v7081
  %v7086 = vrsqrt.pop %v6972
  %v7087 = vmul.f32 %v7086, %v6972
  %v7088 = vmul.f32 %v7087, %v7086
  %v7089 = vmul.f32 0.5, %v7088
  %v7090 = vsub.f32 1.5, %v7089
  %v7091 = vmul.f32 %v7086, %v7090
  %vm7092 = vweird.f32 %v6972
  %vm7093 = vweird.f32 %v7086
  %vm7094 = vmor %vm7092, %vm7093
  %v7095 = vsel %vm7094, %v7086, %v7091
  %v7096 = vrsqrt.pop %v6973
  %v7097 = vmul.f32 %v7096, %v6973
  %v7098 = vmul.f32 %v7097, %v7096
  %v7099 = vmul.f32 0.5, %v7098
  %v7100 = vsub.f32 1.5, %v7099
  %v7101 = vmul.f32 %v7096, %v7100
  %vm7102 = vweird.f32 %v6973
  %vm7103 = vweird.f32 %v7096
  %vm7104 = vmor %vm7102, %vm7103
  %v7105 = vsel %vm7104, %v7096, %v7101
  %v7106 = vrsqrt.pop %v6974
  %v7107 = vmul.f32 %v7106, %v6974
  %v7108 = vmul.f32 %v7107, %v7106
  %v7109 = vmul.f32 0.5, %v7108
  %v7110 = vsub.f32 1.5, %v7109
  %v7111 = vmul.f32 %v7106, %v7110
  %vm7112 = vweird.f32 %v6974
  %vm7113 = vweird.f32 %v7106
  %vm7114 = vmor %vm7112, %vm7113
  %v7115 = vsel %vm7114, %v7106, %v7111
  %v7116 = vrsqrt.pop %v6975
  %v7117 = vmul.f32 %v7116, %v6975
  %v7118 = vmul.f32 %v7117, %v7116
  %v7119 = vmul.f32 0.5, %v7118
  %v7120 = vsub.f32 1.5, %v7119
  %v7121 = vmul.f32 %v7116, %v7120
  %vm7122 = vweird.f32 %v6975
  %vm7123 = vweird.f32 %v7116
  %vm7124 = vmor %vm7122, %vm7123
  %v7125 = vsel %vm7124, %v7116, %v7121
  %v7126 = vrsqrt.pop %v6976
  %v7127 = vmul.f32 %v7126, %v6976
  %v7128 = vmul.f32 %v7127, %v7126
  %v7129 = vmul.f32 0.5, %v7128
  %v7130 = vsub.f32 1.5, %v7129
  %v7131 = vmul.f32 %v7126, %v7130
  %vm7132 = vweird.f32 %v6976
  %vm7133 = vweird.f32 %v7126
  %vm7134 = vmor %vm7132, %vm7133
  %v7135 = vsel %vm7134, %v7126, %v7131
  %v7136 = vrsqrt.pop %v6977
  %v7137 = vmul.f32 %v7136, %v6977
  %v7138 = vmul.f32 %v7137, %v7136
  %v7139 = vmul.f32 0.5, %v7138
  %v7140 = vsub.f32 1.5, %v7139
  %v7141 = vmul.f32 %v7136, %v7140
  %vm7142 = vweird.f32 %v6977
  %vm7143 = vweird.f32 %v7136
  %vm7144 = vmor %vm7142, %vm7143
  %v7145 = vsel %vm7144, %v7136, %v7141
  %v7146 = vrsqrt.pop %v6978
  %v7147 = vmul.f32 %v7146, %v6978
  %v7148 = vmul.f32 %v7147, %v7146
  %v7149 = vmul.f32 0.5, %v7148
  %v7150 = vsub.f32 1.5, %v7149
  %v7151 = vmul.f32 %v7146, %v7150
  %vm7152 = vweird.f32 %v6978
  %vm7153 = vweird.f32 %v7146
  %vm7154 = vmor %vm7152, %vm7153
  %v7155 = vsel %vm7154, %v7146, %v7151
  %v7156 = vrsqrt.pop %v6979
  %v7157 = vmul.f32 %v7156, %v6979
  %v7158 = vmul.f32 %v7157, %v7156
  %v7159 = vmul.f32 0.5, %v7158
  %v7160 = vsub.f32 1.5, %v7159
  %v7161 = vmul.f32 %v7156, %v7160
  %vm7162 = vweird.f32 %v6979
  %vm7163 = vweird.f32 %v7156
  %vm7164 = vmor %vm7162, %vm7163
  %v7165 = vsel %vm7164, %v7156, %v7161
  %v7166 = vrsqrt.pop %v6980
  %v7167 = vmul.f32 %v7166, %v6980
  %v7168 = vmul.f32 %v7167, %v7166
  %v7169 = vmul.f32 0.5, %v7168
  %v7170 = vsub.f32 1.5, %v7169
  %v7171 = vmul.f32 %v7166, %v7170
  %vm7172 = vweird.f32 %v6980
  %vm7173 = vweird.f32 %v7166
  %vm7174 = vmor %vm7172, %vm7173
  %v7175 = vsel %vm7174, %v7166, %v7171
  %v7176 = vrsqrt.pop %v6981
  %v7177 = vmul.f32 %v7176, %v6981
  %v7178 = vmul.f32 %v7177, %v7176
  %v7179 = vmul.f32 0.5, %v7178
  %v7180 = vsub.f32 1.5, %v7179
  %v7181 = vmul.f32 %v7176, %v7180
  %vm7182 = vweird.f32 %v6981
  %vm7183 = vweird.f32 %v7176
  %vm7184 = vmor %vm7182, %vm7183
  %v7185 = vsel %vm7184, %v7176, %v7181
  %v7186 = vrsqrt.pop %v6982
  %v7187 = vmul.f32 %v7186, %v6982
  %v7188 = vmul.f32 %v7187, %v7186
  %v7189 = vmul.f32 0.5, %v7188
  %v7190 = vsub.f32 1.5, %v7189
  %v7191 = vmul.f32 %v7186, %v7190
  %vm7192 = vweird.f32 %v6982
  %vm7193 = vweird.f32 %v7186
  %vm7194 = vmor %vm7192, %vm7193
  %v7195 = vsel %vm7194, %v7186, %v7191
  %v7196 = vrsqrt.pop %v6983
  %v7197 = vmul.f32 %v7196, %v6983
  %v7198 = vmul.f32 %v7197, %v7196
  %v7199 = vmul.f32 0.5, %v7198
  %v7200 = vsub.f32 1.5, %v7199
  %v7201 = vmul.f32 %v7196, %v7200
  %vm7202 = vweird.f32 %v6983
  %vm7203 = vweird.f32 %v7196
  %vm7204 = vmor %vm7202, %vm7203
  %v7205 = vsel %vm7204, %v7196, %v7201
  %v7206 = vrsqrt.pop %v6984
  %v7207 = vmul.f32 %v7206, %v6984
  %v7208 = vmul.f32 %v7207, %v7206
  %v7209 = vmul.f32 0.5, %v7208
  %v7210 = vsub.f32 1.5, %v7209
  %v7211 = vmul.f32 %v7206, %v7210
  %vm7212 = vweird.f32 %v6984
  %vm7213 = vweird.f32 %v7206
  %vm7214 = vmor %vm7212, %vm7213
  %v7215 = vsel %vm7214, %v7206, %v7211
  %v7216 = vrsqrt.pop %v6985
  %v7217 = vmul.f32 %v7216, %v6985
  %v7218 = vmul.f32 %v7217, %v7216
  %v7219 = vmul.f32 0.5, %v7218
  %v7220 = vsub.f32 1.5, %v7219
  %v7221 = vmul.f32 %v7216, %v7220
  %vm7222 = vweird.f32 %v6985
  %vm7223 = vweird.f32 %v7216
  %vm7224 = vmor %vm7222, %vm7223
  %v7225 = vsel %vm7224, %v7216, %v7221
  %v7226 = vmul.f32 %v6818, %v6995
  %v7227 = vmul.f32 %v6819, %v7005
  %v7228 = vmul.f32 %v6820, %v7015
  %v7229 = vmul.f32 %v6821, %v7025
  %v7230 = vmul.f32 %v6822, %v7035
  %v7231 = vmul.f32 %v6823, %v7045
  %v7232 = vmul.f32 %v6824, %v7055
  %v7233 = vmul.f32 %v6825, %v7065
  %v7234 = vmul.f32 %v6826, %v7075
  %v7235 = vmul.f32 %v6827, %v7085
  %v7236 = vmul.f32 %v6828, %v7095
  %v7237 = vmul.f32 %v6829, %v7105
  %v7238 = vmul.f32 %v6830, %v7115
  %v7239 = vmul.f32 %v6831, %v7125
  %v7240 = vmul.f32 %v6832, %v7135
  %v7241 = vmul.f32 %v6833, %v7145
  %v7242 = vmul.f32 %v6834, %v7155
  %v7243 = vmul.f32 %v6835, %v7165
  %v7244 = vmul.f32 %v6836, %v7175
  %v7245 = vmul.f32 %v6837, %v7185
  %v7246 = vmul.f32 %v6838, %v7195
  %v7247 = vmul.f32 %v6839, %v7205
  %v7248 = vmul.f32 %v6840, %v7215
  %v7249 = vmul.f32 %v6841, %v7225
  %v7251 = vperm.slane %v3748, 0
  %v7253 = vmul.f32 %v7226, %v7251
  %v7254 = vmul.f32 %v7227, %v7251
  %v7255 = vmul.f32 %v7228, %v7251
  %v7256 = vmul.f32 %v7229, %v7251
  %v7257 = vmul.f32 %v7230, %v7251
  %v7258 = vmul.f32 %v7231, %v7251
  %v7259 = vmul.f32 %v7232, %v7251
  %v7260 = vmul.f32 %v7233, %v7251
  %v7261 = vmul.f32 %v7234, %v7251
  %v7262 = vmul.f32 %v7235, %v7251
  %v7263 = vmul.f32 %v7236, %v7251
  %v7264 = vmul.f32 %v7237, %v7251
  %v7265 = vmul.f32 %v7238, %v7251
  %v7266 = vmul.f32 %v7239, %v7251
  %v7267 = vmul.f32 %v7240, %v7251
  %v7268 = vmul.f32 %v7241, %v7251
  %v7269 = vmul.f32 %v7242, %v7251
  %v7270 = vmul.f32 %v7243, %v7251
  %v7271 = vmul.f32 %v7244, %v7251
  %v7272 = vmul.f32 %v7245, %v7251
  %v7273 = vmul.f32 %v7246, %v7251
  %v7274 = vmul.f32 %v7247, %v7251
  %v7275 = vmul.f32 %v7248, %v7251
  %v7276 = vmul.f32 %v7249, %v7251
  %v7278 = vperm.slane %v3750, 0
  %v7280 = vadd.f32 %v7253, %v7278
  %v7281 = vadd.f32 %v7254, %v7278
  %v7282 = vadd.f32 %v7255, %v7278
  %v7283 = vadd.f32 %v7256, %v7278
  %v7284 = vadd.f32 %v7257, %v7278
  %v7285 = vadd.f32 %v7258, %v7278
  %v7286 = vadd.f32 %v7259, %v7278
  %v7287 = vadd.f32 %v7260, %v7278
  %v7288 = vadd.f32 %v7261, %v7278
  %v7289 = vadd.f32 %v7262, %v7278
  %v7290 = vadd.f32 %v7263, %v7278
  %v7291 = vadd.f32 %v7264, %v7278
  %v7292 = vadd.f32 %v7265, %v7278
  %v7293 = vadd.f32 %v7266, %v7278
  %v7294 = vadd.f32 %v7267, %v7278
  %v7295 = vadd.f32 %v7268, %v7278
  %v7296 = vadd.f32 %v7269, %v7278
  %v7297 = vadd.f32 %v7270, %v7278
  %v7298 = vadd.f32 %v7271, %v7278
  %v7299 = vadd.f32 %v7272, %v7278
  %v7300 = vadd.f32 %v7273, %v7278
  %v7301 = vadd.f32 %v7274, %v7278
  %v7302 = vadd.f32 %v7275, %v7278
  %v7303 = vadd.f32 %v7276, %v7278
  %7304 = vst.msk [vmem:[#allocation2] sm:$0xff] %vm72, %v7280
  %7305 = vst.msk [vmem:[#allocation2 + $0x8] sm:$0xff] %vm72, %v7281
  %7306 = vst.msk [vmem:[#allocation2 + $0x10] sm:$0xff] %vm72, %v7282
  %7307 = vst.msk [vmem:[#allocation2 + $0x18] sm:$0xff] %vm72, %v7283
  %7308 = vst.msk [vmem:[#allocation2 + $0x20] sm:$0xff] %vm72, %v7284
  %7309 = vst.msk [vmem:[#allocation2 + $0x28] sm:$0xff] %vm72, %v7285
  %7310 = vst.msk [vmem:[#allocation2 + $0x30] sm:$0xff] %vm72, %v7286
  %7311 = vst.msk [vmem:[#allocation2 + $0x38] sm:$0xff] %vm72, %v7287
  %7312 = vst.msk [vmem:[#allocation2 + $0x40] sm:$0xff] %vm72, %v7288
  %7313 = vst.msk [vmem:[#allocation2 + $0x48] sm:$0xff] %vm72, %v7289
  %7314 = vst.msk [vmem:[#allocation2 + $0x50] sm:$0xff] %vm72, %v7290
  %7315 = vst.msk [vmem:[#allocation2 + $0x58] sm:$0xff] %vm72, %v7291
  %7316 = vst.msk [vmem:[#allocation2 + $0x60] sm:$0xff] %vm72, %v7292
  %7317 = vst.msk [vmem:[#allocation2 + $0x68] sm:$0xff] %vm72, %v7293
  %7318 = vst.msk [vmem:[#allocation2 + $0x70] sm:$0xff] %vm72, %v7294
  %7319 = vst.msk [vmem:[#allocation2 + $0x78] sm:$0xff] %vm72, %v7295
  %7320 = vst.msk [vmem:[#allocation2 + $0x80] sm:$0xff] %vm72, %v7296
  %7321 = vst.msk [vmem:[#allocation2 + $0x88] sm:$0xff] %vm72, %v7297
  %7322 = vst.msk [vmem:[#allocation2 + $0x90] sm:$0xff] %vm72, %v7298
  %7323 = vst.msk [vmem:[#allocation2 + $0x98] sm:$0xff] %vm72, %v7299
  %7324 = vst.msk [vmem:[#allocation2 + $0xa0] sm:$0xff] %vm72, %v7300
  %7325 = vst.msk [vmem:[#allocation2 + $0xa8] sm:$0xff] %vm72, %v7301
  %7326 = vst.msk [vmem:[#allocation2 + $0xb0] sm:$0xff] %vm72, %v7302
  %7327 = vst.msk [vmem:[#allocation2 + $0xb8] sm:$0xff] %vm72, %v7303
  %s7328 = scalar_lea.vmem %s3, 64
  %v7329 = vld [vmem:[%s7328] sm:$0xff]
  %v7330 = vld [vmem:[%s7328 + $0x8] sm:$0xff]
  %v7331 = vld [vmem:[%s7328 + $0x10] sm:$0xff]
  %v7332 = vld [vmem:[%s7328 + $0x18] sm:$0xff]
  %s7333 = scalar_lea.vmem %s4, 2
  %v7334 = vld [vmem:[%s7333] sm:$0x1]
  %s7335 = scalar_lea.vmem %s5, 64
  %v7336 = vld [vmem:[%s7335] sm:$0xff]
  %v7337 = vld [vmem:[%s7335 + $0x8] sm:$0xff]
  %v7338 = vld [vmem:[%s7335 + $0x10] sm:$0xff]
  %v7339 = vld [vmem:[%s7335 + $0x18] sm:$0xff]
  %s7340 = scalar_lea.vmem %s6, 2
  %v7341 = vld [vmem:[%s7340] sm:$0x1]
  %s7342 = scalar_lea.vmem %s7, 2
  %v7343 = vld [vmem:[%s7342] sm:$0x1]
  %s7344 = scalar_lea.vmem %s8, 2
  %v7345 = vld [vmem:[%s7344] sm:$0x1]
  %s7346 = scalar_lea.vmem %s9, 2
  %v7347 = vld [vmem:[%s7346] sm:$0x1]
  %s7348 = scalar_lea.vmem %s10, 2
  %v7349 = vld [vmem:[%s7348] sm:$0x1]
  %s7350 = scalar_lea.vmem %s11, 64
  %v7351 = vld [vmem:[%s7350] sm:$0xff]
  %v7352 = vld [vmem:[%s7350 + $0x8] sm:$0xff]
  %v7353 = vld [vmem:[%s7350 + $0x10] sm:$0xff]
  %v7354 = vld [vmem:[%s7350 + $0x18] sm:$0xff]
  %s7355 = scalar_lea.vmem %s12, 2
  %v7356 = vld [vmem:[%s7355] sm:$0x1]
  %s7357 = scalar_lea.vmem %s13, 256
  %v7358 = vld [vmem:[%s7357] sm:$0xff]
  %v7359 = vld [vmem:[%s7357 + $0x8] sm:$0xff]
  %v7360 = vld [vmem:[%s7357 + $0x10] sm:$0xff]
  %v7361 = vld [vmem:[%s7357 + $0x18] sm:$0xff]
  %v7362 = vld [vmem:[%s7357 + $0x20] sm:$0xff]
  %v7363 = vld [vmem:[%s7357 + $0x28] sm:$0xff]
  %v7364 = vld [vmem:[%s7357 + $0x30] sm:$0xff]
  %v7365 = vld [vmem:[%s7357 + $0x38] sm:$0xff]
  %v7366 = vld [vmem:[%s7357 + $0x40] sm:$0xff]
  %v7367 = vld [vmem:[%s7357 + $0x48] sm:$0xff]
  %v7368 = vld [vmem:[%s7357 + $0x50] sm:$0xff]
  %v7369 = vld [vmem:[%s7357 + $0x58] sm:$0xff]
  %v7370 = vld [vmem:[%s7357 + $0x60] sm:$0xff]
  %v7371 = vld [vmem:[%s7357 + $0x68] sm:$0xff]
  %v7372 = vld [vmem:[%s7357 + $0x70] sm:$0xff]
  %v7373 = vld [vmem:[%s7357 + $0x78] sm:$0xff]
  %s7374 = scalar_lea.vmem %s14, 2
  %v7375 = vld [vmem:[%s7374] sm:$0x1]
  %v7376 = vld [vmem:[#allocation2] sm:$0xff]
  %v7377 = vld [vmem:[#allocation2 + $0x8] sm:$0xff]
  %v7378 = vld [vmem:[#allocation2 + $0x10] sm:$0xff]
  %v7379 = vld [vmem:[#allocation2 + $0x18] sm:$0xff]
  %v7380 = vld [vmem:[#allocation2 + $0x20] sm:$0xff]
  %v7381 = vld [vmem:[#allocation2 + $0x28] sm:$0xff]
  %v7382 = vld [vmem:[#allocation2 + $0x30] sm:$0xff]
  %v7383 = vld [vmem:[#allocation2 + $0x38] sm:$0xff]
  %v7384 = vld [vmem:[#allocation2 + $0x40] sm:$0xff]
  %v7385 = vld [vmem:[#allocation2 + $0x48] sm:$0xff]
  %v7386 = vld [vmem:[#allocation2 + $0x50] sm:$0xff]
  %v7387 = vld [vmem:[#allocation2 + $0x58] sm:$0xff]
  %v7388 = vld [vmem:[#allocation2 + $0x60] sm:$0xff]
  %v7389 = vld [vmem:[#allocation2 + $0x68] sm:$0xff]
  %v7390 = vld [vmem:[#allocation2 + $0x70] sm:$0xff]
  %v7391 = vld [vmem:[#allocation2 + $0x78] sm:$0xff]
  %v7392 = vld [vmem:[#allocation2 + $0x80] sm:$0xff]
  %v7393 = vld [vmem:[#allocation2 + $0x88] sm:$0xff]
  %v7394 = vld [vmem:[#allocation2 + $0x90] sm:$0xff]
  %v7395 = vld [vmem:[#allocation2 + $0x98] sm:$0xff]
  %v7396 = vld [vmem:[#allocation2 + $0xa0] sm:$0xff]
  %v7397 = vld [vmem:[#allocation2 + $0xa8] sm:$0xff]
  %v7398 = vld [vmem:[#allocation2 + $0xb0] sm:$0xff]
  %v7399 = vld [vmem:[#allocation2 + $0xb8] sm:$0xff]
  %v7401 = vperm.slane %v7334, 0
  %v7404 = vsel %vm72, %v7376, 0
  %v7407 = vsel %vm72, %v7377, 0
  %v7410 = vsel %vm72, %v7378, 0
  %v7413 = vsel %vm72, %v7379, 0
  %v7416 = vsel %vm72, %v7380, 0
  %v7419 = vsel %vm72, %v7381, 0
  %v7422 = vsel %vm72, %v7382, 0
  %v7425 = vsel %vm72, %v7383, 0
  %v7428 = vsel %vm72, %v7384, 0
  %v7431 = vsel %vm72, %v7385, 0
  %v7434 = vsel %vm72, %v7386, 0
  %v7437 = vsel %vm72, %v7387, 0
  %v7440 = vsel %vm72, %v7388, 0
  %v7443 = vsel %vm72, %v7389, 0
  %v7446 = vsel %vm72, %v7390, 0
  %v7449 = vsel %vm72, %v7391, 0
  %v7452 = vsel %vm72, %v7392, 0
  %v7455 = vsel %vm72, %v7393, 0
  %v7458 = vsel %vm72, %v7394, 0
  %v7461 = vsel %vm72, %v7395, 0
  %v7464 = vsel %vm72, %v7396, 0
  %v7467 = vsel %vm72, %v7397, 0
  %v7470 = vsel %vm72, %v7398, 0
  %v7473 = vsel %vm72, %v7399, 0
  %7475 = vmatpush.msra.mxu0 0.0
  %7476 = vmatpush.msra.mxu0 0.0
  %7477 = vmatpush.msra.mxu0 0.0
  %7478 = vmatpush.msra.mxu0 0.0
  %7479 = vmatpush.msra.mxu0 0.0
  %7480 = vmatpush.msra.mxu0 0.0
  %7481 = vmatpush.msra.mxu0 0.0
  %7482 = vmatpush.msra.mxu0 0.0
  %7483 = vmatpush.msra.mxu0 0.0
  %7484 = vmatpush.msra.mxu0 0.0
  %7485 = vmatpush.msra.mxu0 0.0
  %7486 = vmatpush.msra.mxu0 0.0
  %7487 = vmatpush.msra.mxu0 %v7332
  %7488 = vmatpush.msra.mxu0 %v7331
  %7489 = vmatpush.msra.mxu0 %v7330
  %7490 = vmatpush.msra.mxu0 %v7329
  %7491 = vmatmul.f32.gmra.mxu0 %v7404
  %v7492 = vpop.f32.mrf.mxu0
  %v7493 = vadd.f32 %v7401, %v7492
  %7494 = vmatmul.f32.gmra.mxu0 %v7407
  %v7495 = vpop.f32.mrf.mxu0
  %v7496 = vadd.f32 %v7401, %v7495
  %7497 = vmatmul.f32.gmra.mxu0 %v7410
  %v7498 = vpop.f32.mrf.mxu0
  %v7499 = vadd.f32 %v7401, %v7498
  %7500 = vmatmul.f32.gmra.mxu0 %v7413
  %v7501 = vpop.f32.mrf.mxu0
  %v7502 = vadd.f32 %v7401, %v7501
  %7503 = vmatmul.f32.gmra.mxu0 %v7416
  %v7504 = vpop.f32.mrf.mxu0
  %v7505 = vadd.f32 %v7401, %v7504
  %7506 = vmatmul.f32.gmra.mxu0 %v7419
  %v7507 = vpop.f32.mrf.mxu0
  %v7508 = vadd.f32 %v7401, %v7507
  %7509 = vmatmul.f32.gmra.mxu0 %v7422
  %v7510 = vpop.f32.mrf.mxu0
  %v7511 = vadd.f32 %v7401, %v7510
  %7512 = vmatmul.f32.gmra.mxu0 %v7425
  %v7513 = vpop.f32.mrf.mxu0
  %v7514 = vadd.f32 %v7401, %v7513
  %7515 = vmatmul.f32.gmra.mxu0 %v7428
  %v7516 = vpop.f32.mrf.mxu0
  %v7517 = vadd.f32 %v7401, %v7516
  %7518 = vmatmul.f32.gmra.mxu0 %v7431
  %v7519 = vpop.f32.mrf.mxu0
  %v7520 = vadd.f32 %v7401, %v7519
  %7521 = vmatmul.f32.gmra.mxu0 %v7434
  %v7522 = vpop.f32.mrf.mxu0
  %v7523 = vadd.f32 %v7401, %v7522
  %7524 = vmatmul.f32.gmra.mxu0 %v7437
  %v7525 = vpop.f32.mrf.mxu0
  %v7526 = vadd.f32 %v7401, %v7525
  %7527 = vmatmul.f32.gmra.mxu0 %v7440
  %v7528 = vpop.f32.mrf.mxu0
  %v7529 = vadd.f32 %v7401, %v7528
  %7530 = vmatmul.f32.gmra.mxu0 %v7443
  %v7531 = vpop.f32.mrf.mxu0
  %v7532 = vadd.f32 %v7401, %v7531
  %7533 = vmatmul.f32.gmra.mxu0 %v7446
  %v7534 = vpop.f32.mrf.mxu0
  %v7535 = vadd.f32 %v7401, %v7534
  %7536 = vmatmul.f32.gmra.mxu0 %v7449
  %v7537 = vpop.f32.mrf.mxu0
  %v7538 = vadd.f32 %v7401, %v7537
  %7539 = vmatmul.f32.gmra.mxu0 %v7452
  %v7540 = vpop.f32.mrf.mxu0
  %v7541 = vadd.f32 %v7401, %v7540
  %7542 = vmatmul.f32.gmra.mxu0 %v7455
  %v7543 = vpop.f32.mrf.mxu0
  %v7544 = vadd.f32 %v7401, %v7543
  %7545 = vmatmul.f32.gmra.mxu0 %v7458
  %v7546 = vpop.f32.mrf.mxu0
  %v7547 = vadd.f32 %v7401, %v7546
  %7548 = vmatmul.f32.gmra.mxu0 %v7461
  %v7549 = vpop.f32.mrf.mxu0
  %v7550 = vadd.f32 %v7401, %v7549
  %7551 = vmatmul.f32.gmra.mxu0 %v7464
  %v7552 = vpop.f32.mrf.mxu0
  %v7553 = vadd.f32 %v7401, %v7552
  %7554 = vmatmul.f32.gmra.mxu0 %v7467
  %v7555 = vpop.f32.mrf.mxu0
  %v7556 = vadd.f32 %v7401, %v7555
  %7557 = vmatmul.f32.gmra.mxu0 %v7470
  %v7558 = vpop.f32.mrf.mxu0
  %v7559 = vadd.f32 %v7401, %v7558
  %7560 = vmatmul.f32.gmra.mxu0 %v7473
  %v7561 = vpop.f32.mrf.mxu0
  %v7562 = vadd.f32 %v7401, %v7561
  %7563 = vdwg.mxu0
  %7564 = vst.msk [vmem:[#allocation3] sm:$0xff] %vm72, %v7493
  %7565 = vst.msk [vmem:[#allocation3 + $0x8] sm:$0xff] %vm72, %v7496
  %7566 = vst.msk [vmem:[#allocation3 + $0x10] sm:$0xff] %vm72, %v7499
  %7567 = vst.msk [vmem:[#allocation3 + $0x18] sm:$0xff] %vm72, %v7502
  %7568 = vst.msk [vmem:[#allocation3 + $0x20] sm:$0xff] %vm72, %v7505
  %7569 = vst.msk [vmem:[#allocation3 + $0x28] sm:$0xff] %vm72, %v7508
  %7570 = vst.msk [vmem:[#allocation3 + $0x30] sm:$0xff] %vm72, %v7511
  %7571 = vst.msk [vmem:[#allocation3 + $0x38] sm:$0xff] %vm72, %v7514
  %7572 = vst.msk [vmem:[#allocation3 + $0x40] sm:$0xff] %vm72, %v7517
  %7573 = vst.msk [vmem:[#allocation3 + $0x48] sm:$0xff] %vm72, %v7520
  %7574 = vst.msk [vmem:[#allocation3 + $0x50] sm:$0xff] %vm72, %v7523
  %7575 = vst.msk [vmem:[#allocation3 + $0x58] sm:$0xff] %vm72, %v7526
  %7576 = vst.msk [vmem:[#allocation3 + $0x60] sm:$0xff] %vm72, %v7529
  %7577 = vst.msk [vmem:[#allocation3 + $0x68] sm:$0xff] %vm72, %v7532
  %7578 = vst.msk [vmem:[#allocation3 + $0x70] sm:$0xff] %vm72, %v7535
  %7579 = vst.msk [vmem:[#allocation3 + $0x78] sm:$0xff] %vm72, %v7538
  %7580 = vst.msk [vmem:[#allocation3 + $0x80] sm:$0xff] %vm72, %v7541
  %7581 = vst.msk [vmem:[#allocation3 + $0x88] sm:$0xff] %vm72, %v7544
  %7582 = vst.msk [vmem:[#allocation3 + $0x90] sm:$0xff] %vm72, %v7547
  %7583 = vst.msk [vmem:[#allocation3 + $0x98] sm:$0xff] %vm72, %v7550
  %7584 = vst.msk [vmem:[#allocation3 + $0xa0] sm:$0xff] %vm72, %v7553
  %7585 = vst.msk [vmem:[#allocation3 + $0xa8] sm:$0xff] %vm72, %v7556
  %7586 = vst.msk [vmem:[#allocation3 + $0xb0] sm:$0xff] %vm72, %v7559
  %7587 = vst.msk [vmem:[#allocation3 + $0xb8] sm:$0xff] %vm72, %v7562
  %7612 = vrot.lane.b32.xlu0 %v7493, 96
  %v7613 = vpop.permute.xlu0 %7612
  %7614 = vrot.lane.b32.xlu0 %v7496, 96
  %v7615 = vpop.permute.xlu0 %7614
  %7616 = vrot.lane.b32.xlu0 %v7499, 96
  %v7617 = vpop.permute.xlu0 %7616
  %7618 = vrot.lane.b32.xlu0 %v7502, 96
  %v7619 = vpop.permute.xlu0 %7618
  %7620 = vrot.lane.b32.xlu0 %v7505, 96
  %v7621 = vpop.permute.xlu0 %7620
  %7622 = vrot.lane.b32.xlu0 %v7508, 96
  %v7623 = vpop.permute.xlu0 %7622
  %7624 = vrot.lane.b32.xlu0 %v7511, 96
  %v7625 = vpop.permute.xlu0 %7624
  %7626 = vrot.lane.b32.xlu0 %v7514, 96
  %v7627 = vpop.permute.xlu0 %7626
  %7628 = vrot.lane.b32.xlu0 %v7517, 96
  %v7629 = vpop.permute.xlu0 %7628
  %7630 = vrot.lane.b32.xlu0 %v7520, 96
  %v7631 = vpop.permute.xlu0 %7630
  %7632 = vrot.lane.b32.xlu0 %v7523, 96
  %v7633 = vpop.permute.xlu0 %7632
  %7634 = vrot.lane.b32.xlu0 %v7526, 96
  %v7635 = vpop.permute.xlu0 %7634
  %7636 = vrot.lane.b32.xlu0 %v7529, 96
  %v7637 = vpop.permute.xlu0 %7636
  %7638 = vrot.lane.b32.xlu0 %v7532, 96
  %v7639 = vpop.permute.xlu0 %7638
  %7640 = vrot.lane.b32.xlu0 %v7535, 96
  %v7641 = vpop.permute.xlu0 %7640
  %7642 = vrot.lane.b32.xlu0 %v7538, 96
  %v7643 = vpop.permute.xlu0 %7642
  %7644 = vrot.lane.b32.xlu0 %v7541, 96
  %v7645 = vpop.permute.xlu0 %7644
  %7646 = vrot.lane.b32.xlu0 %v7544, 96
  %v7647 = vpop.permute.xlu0 %7646
  %7648 = vrot.lane.b32.xlu0 %v7547, 96
  %v7649 = vpop.permute.xlu0 %7648
  %7650 = vrot.lane.b32.xlu0 %v7550, 96
  %v7651 = vpop.permute.xlu0 %7650
  %7652 = vrot.lane.b32.xlu0 %v7553, 96
  %v7653 = vpop.permute.xlu0 %7652
  %7654 = vrot.lane.b32.xlu0 %v7556, 96
  %v7655 = vpop.permute.xlu0 %7654
  %7656 = vrot.lane.b32.xlu0 %v7559, 96
  %v7657 = vpop.permute.xlu0 %7656
  %7658 = vrot.lane.b32.xlu0 %v7562, 96
  %v7659 = vpop.permute.xlu0 %7658
  %7684 = vst.msk [vmem:[%s477] sm:$0xff] %vm72, %v7613
  %7685 = vst.msk [vmem:[%s477 + $0x8] sm:$0xff] %vm72, %v7615
  %7686 = vst.msk [vmem:[%s477 + $0x10] sm:$0xff] %vm72, %v7617
  %7687 = vst.msk [vmem:[%s477 + $0x18] sm:$0xff] %vm72, %v7619
  %7688 = vst.msk [vmem:[%s477 + $0x20] sm:$0xff] %vm72, %v7621
  %7689 = vst.msk [vmem:[%s477 + $0x28] sm:$0xff] %vm72, %v7623
  %7690 = vst.msk [vmem:[%s477 + $0x30] sm:$0xff] %vm72, %v7625
  %7691 = vst.msk [vmem:[%s477 + $0x38] sm:$0xff] %vm72, %v7627
  %7692 = vst.msk [vmem:[%s477 + $0x40] sm:$0xff] %vm72, %v7629
  %7693 = vst.msk [vmem:[%s477 + $0x48] sm:$0xff] %vm72, %v7631
  %7694 = vst.msk [vmem:[%s477 + $0x50] sm:$0xff] %vm72, %v7633
  %7695 = vst.msk [vmem:[%s477 + $0x58] sm:$0xff] %vm72, %v7635
  %7696 = vst.msk [vmem:[%s477 + $0x60] sm:$0xff] %vm72, %v7637
  %7697 = vst.msk [vmem:[%s477 + $0x68] sm:$0xff] %vm72, %v7639
  %7698 = vst.msk [vmem:[%s477 + $0x70] sm:$0xff] %vm72, %v7641
  %7699 = vst.msk [vmem:[%s477 + $0x78] sm:$0xff] %vm72, %v7643
  %7700 = vst.msk [vmem:[%s477 + $0x80] sm:$0xff] %vm72, %v7645
  %7701 = vst.msk [vmem:[%s477 + $0x88] sm:$0xff] %vm72, %v7647
  %7702 = vst.msk [vmem:[%s477 + $0x90] sm:$0xff] %vm72, %v7649
  %7703 = vst.msk [vmem:[%s477 + $0x98] sm:$0xff] %vm72, %v7651
  %7704 = vst.msk [vmem:[%s477 + $0xa0] sm:$0xff] %vm72, %v7653
  %7705 = vst.msk [vmem:[%s477 + $0xa8] sm:$0xff] %vm72, %v7655
  %7706 = vst.msk [vmem:[%s477 + $0xb0] sm:$0xff] %vm72, %v7657
  %7707 = vst.msk [vmem:[%s477 + $0xb8] sm:$0xff] %vm72, %v7659
  %7708 = vrot.lane.b32.xlu0 %v7493, 64
  %v7709 = vpop.permute.xlu0 %7708
  %7710 = vrot.lane.b32.xlu0 %v7496, 64
  %v7711 = vpop.permute.xlu0 %7710
  %7712 = vrot.lane.b32.xlu0 %v7499, 64
  %v7713 = vpop.permute.xlu0 %7712
  %7714 = vrot.lane.b32.xlu0 %v7502, 64
  %v7715 = vpop.permute.xlu0 %7714
  %7716 = vrot.lane.b32.xlu0 %v7505, 64
  %v7717 = vpop.permute.xlu0 %7716
  %7718 = vrot.lane.b32.xlu0 %v7508, 64
  %v7719 = vpop.permute.xlu0 %7718
  %7720 = vrot.lane.b32.xlu0 %v7511, 64
  %v7721 = vpop.permute.xlu0 %7720
  %7722 = vrot.lane.b32.xlu0 %v7514, 64
  %v7723 = vpop.permute.xlu0 %7722
  %7724 = vrot.lane.b32.xlu0 %v7517, 64
  %v7725 = vpop.permute.xlu0 %7724
  %7726 = vrot.lane.b32.xlu0 %v7520, 64
  %v7727 = vpop.permute.xlu0 %7726
  %7728 = vrot.lane.b32.xlu0 %v7523, 64
  %v7729 = vpop.permute.xlu0 %7728
  %7730 = vrot.lane.b32.xlu0 %v7526, 64
  %v7731 = vpop.permute.xlu0 %7730
  %7732 = vrot.lane.b32.xlu0 %v7529, 64
  %v7733 = vpop.permute.xlu0 %7732
  %7734 = vrot.lane.b32.xlu0 %v7532, 64
  %v7735 = vpop.permute.xlu0 %7734
  %7736 = vrot.lane.b32.xlu0 %v7535, 64
  %v7737 = vpop.permute.xlu0 %7736
  %7738 = vrot.lane.b32.xlu0 %v7538, 64
  %v7739 = vpop.permute.xlu0 %7738
  %7740 = vrot.lane.b32.xlu0 %v7541, 64
  %v7741 = vpop.permute.xlu0 %7740
  %7742 = vrot.lane.b32.xlu0 %v7544, 64
  %v7743 = vpop.permute.xlu0 %7742
  %7744 = vrot.lane.b32.xlu0 %v7547, 64
  %v7745 = vpop.permute.xlu0 %7744
  %7746 = vrot.lane.b32.xlu0 %v7550, 64
  %v7747 = vpop.permute.xlu0 %7746
  %7748 = vrot.lane.b32.xlu0 %v7553, 64
  %v7749 = vpop.permute.xlu0 %7748
  %7750 = vrot.lane.b32.xlu0 %v7556, 64
  %v7751 = vpop.permute.xlu0 %7750
  %7752 = vrot.lane.b32.xlu0 %v7559, 64
  %v7753 = vpop.permute.xlu0 %7752
  %7754 = vrot.lane.b32.xlu0 %v7562, 64
  %v7755 = vpop.permute.xlu0 %7754
  %7780 = vst.msk [vmem:[%s574] sm:$0xff] %vm72, %v7709
  %7781 = vst.msk [vmem:[%s574 + $0x8] sm:$0xff] %vm72, %v7711
  %7782 = vst.msk [vmem:[%s574 + $0x10] sm:$0xff] %vm72, %v7713
  %7783 = vst.msk [vmem:[%s574 + $0x18] sm:$0xff] %vm72, %v7715
  %7784 = vst.msk [vmem:[%s574 + $0x20] sm:$0xff] %vm72, %v7717
  %7785 = vst.msk [vmem:[%s574 + $0x28] sm:$0xff] %vm72, %v7719
  %7786 = vst.msk [vmem:[%s574 + $0x30] sm:$0xff] %vm72, %v7721
  %7787 = vst.msk [vmem:[%s574 + $0x38] sm:$0xff] %vm72, %v7723
  %7788 = vst.msk [vmem:[%s574 + $0x40] sm:$0xff] %vm72, %v7725
  %7789 = vst.msk [vmem:[%s574 + $0x48] sm:$0xff] %vm72, %v7727
  %7790 = vst.msk [vmem:[%s574 + $0x50] sm:$0xff] %vm72, %v7729
  %7791 = vst.msk [vmem:[%s574 + $0x58] sm:$0xff] %vm72, %v7731
  %7792 = vst.msk [vmem:[%s574 + $0x60] sm:$0xff] %vm72, %v7733
  %7793 = vst.msk [vmem:[%s574 + $0x68] sm:$0xff] %vm72, %v7735
  %7794 = vst.msk [vmem:[%s574 + $0x70] sm:$0xff] %vm72, %v7737
  %7795 = vst.msk [vmem:[%s574 + $0x78] sm:$0xff] %vm72, %v7739
  %7796 = vst.msk [vmem:[%s574 + $0x80] sm:$0xff] %vm72, %v7741
  %7797 = vst.msk [vmem:[%s574 + $0x88] sm:$0xff] %vm72, %v7743
  %7798 = vst.msk [vmem:[%s574 + $0x90] sm:$0xff] %vm72, %v7745
  %7799 = vst.msk [vmem:[%s574 + $0x98] sm:$0xff] %vm72, %v7747
  %7800 = vst.msk [vmem:[%s574 + $0xa0] sm:$0xff] %vm72, %v7749
  %7801 = vst.msk [vmem:[%s574 + $0xa8] sm:$0xff] %vm72, %v7751
  %7802 = vst.msk [vmem:[%s574 + $0xb0] sm:$0xff] %vm72, %v7753
  %7803 = vst.msk [vmem:[%s574 + $0xb8] sm:$0xff] %vm72, %v7755
  %v7804 = vld [vmem:[#allocation3] sm:$0xff]
  %v7805 = vld [vmem:[#allocation3 + $0x8] sm:$0xff]
  %v7806 = vld [vmem:[#allocation3 + $0x10] sm:$0xff]
  %v7807 = vld [vmem:[#allocation3 + $0x18] sm:$0xff]
  %v7808 = vld [vmem:[#allocation3 + $0x20] sm:$0xff]
  %v7809 = vld [vmem:[#allocation3 + $0x28] sm:$0xff]
  %v7810 = vld [vmem:[#allocation3 + $0x30] sm:$0xff]
  %v7811 = vld [vmem:[#allocation3 + $0x38] sm:$0xff]
  %v7812 = vld [vmem:[%s477] sm:$0xff]
  %v7813 = vld [vmem:[%s477 + $0x8] sm:$0xff]
  %v7814 = vld [vmem:[%s477 + $0x10] sm:$0xff]
  %v7815 = vld [vmem:[%s477 + $0x18] sm:$0xff]
  %v7816 = vld [vmem:[%s477 + $0x20] sm:$0xff]
  %v7817 = vld [vmem:[%s477 + $0x28] sm:$0xff]
  %v7818 = vld [vmem:[%s477 + $0x30] sm:$0xff]
  %v7819 = vld [vmem:[%s477 + $0x38] sm:$0xff]
  %v7820 = vld [vmem:[%s477 + $0x40] sm:$0xff]
  %v7821 = vld [vmem:[%s477 + $0x48] sm:$0xff]
  %v7822 = vld [vmem:[%s477 + $0x50] sm:$0xff]
  %v7823 = vld [vmem:[%s477 + $0x58] sm:$0xff]
  %v7824 = vld [vmem:[%s477 + $0x60] sm:$0xff]
  %v7825 = vld [vmem:[%s477 + $0x68] sm:$0xff]
  %v7826 = vld [vmem:[%s477 + $0x70] sm:$0xff]
  %v7827 = vld [vmem:[%s477 + $0x78] sm:$0xff]
  %v7828 = vld [vmem:[%s477 + $0x80] sm:$0xff]
  %v7829 = vld [vmem:[%s477 + $0x88] sm:$0xff]
  %v7830 = vld [vmem:[%s477 + $0x90] sm:$0xff]
  %v7831 = vld [vmem:[%s477 + $0x98] sm:$0xff]
  %v7832 = vld [vmem:[%s477 + $0xa0] sm:$0xff]
  %v7833 = vld [vmem:[%s477 + $0xa8] sm:$0xff]
  %v7834 = vld [vmem:[%s477 + $0xb0] sm:$0xff]
  %v7835 = vld [vmem:[%s477 + $0xb8] sm:$0xff]
  %v7836 = vmul.f32 %v7804, %v7812
  %v7837 = vmul.f32 %v7805, %v7813
  %v7838 = vmul.f32 %v7806, %v7814
  %v7839 = vmul.f32 %v7807, %v7815
  %v7840 = vmul.f32 %v7808, %v7816
  %v7841 = vmul.f32 %v7809, %v7817
  %v7842 = vmul.f32 %v7810, %v7818
  %v7843 = vmul.f32 %v7811, %v7819
  %v7844 = vmul.f32 %v7804, %v7820
  %v7845 = vmul.f32 %v7805, %v7821
  %v7846 = vmul.f32 %v7806, %v7822
  %v7847 = vmul.f32 %v7807, %v7823
  %v7848 = vmul.f32 %v7808, %v7824
  %v7849 = vmul.f32 %v7809, %v7825
  %v7850 = vmul.f32 %v7810, %v7826
  %v7851 = vmul.f32 %v7811, %v7827
  %v7852 = vmul.f32 %v7804, %v7828
  %v7853 = vmul.f32 %v7805, %v7829
  %v7854 = vmul.f32 %v7806, %v7830
  %v7855 = vmul.f32 %v7807, %v7831
  %v7856 = vmul.f32 %v7808, %v7832
  %v7857 = vmul.f32 %v7809, %v7833
  %v7858 = vmul.f32 %v7810, %v7834
  %v7859 = vmul.f32 %v7811, %v7835
  %v7861 = vsel %vm72, %v7836, 0
  %v7864 = vsel %vm72, %v7837, 0
  %v7867 = vsel %vm72, %v7838, 0
  %v7870 = vsel %vm72, %v7839, 0
  %v7873 = vsel %vm72, %v7840, 0
  %v7876 = vsel %vm72, %v7841, 0
  %v7879 = vsel %vm72, %v7842, 0
  %v7882 = vsel %vm72, %v7843, 0
  %v7885 = vsel %vm72, %v7844, 0
  %v7888 = vsel %vm72, %v7845, 0
  %v7891 = vsel %vm72, %v7846, 0
  %v7894 = vsel %vm72, %v7847, 0
  %v7897 = vsel %vm72, %v7848, 0
  %v7900 = vsel %vm72, %v7849, 0
  %v7903 = vsel %vm72, %v7850, 0
  %v7906 = vsel %vm72, %v7851, 0
  %v7909 = vsel %vm72, %v7852, 0
  %v7912 = vsel %vm72, %v7853, 0
  %v7915 = vsel %vm72, %v7854, 0
  %v7918 = vsel %vm72, %v7855, 0
  %v7921 = vsel %vm72, %v7856, 0
  %v7924 = vsel %vm72, %v7857, 0
  %v7927 = vsel %vm72, %v7858, 0
  %v7930 = vsel %vm72, %v7859, 0
  %7932 = vmatpush.msra.mxu0 0.0
  %7933 = vmatpush.msra.mxu0 0.0
  %7934 = vmatpush.msra.mxu0 0.0
  %7935 = vmatpush.msra.mxu0 0.0
  %7936 = vmatpush.msra.mxu0 0.0
  %7937 = vmatpush.msra.mxu0 0.0
  %7938 = vmatpush.msra.mxu0 0.0
  %7939 = vmatpush.msra.mxu0 0.0
  %7940 = vmatpush.msra.mxu0 0.0
  %7941 = vmatpush.msra.mxu0 0.0
  %7942 = vmatpush.msra.mxu0 0.0
  %7943 = vmatpush.msra.mxu0 0.0
  %7944 = vmatpush.msra.mxu0 %v53
  %7945 = vmatpush.msra.mxu0 %v52
  %7946 = vmatpush.msra.mxu0 %v51
  %7947 = vmatpush.msra.mxu0 %v50
  %7948 = vmatmul.f32.gmra.mxu0 %v7861
  %v7949 = vpop.f32.mrf.mxu0
  %v7950 = vadd.f32 0.0, %v7949
  %7951 = vmatmul.f32.gmra.mxu0 %v7864
  %v7952 = vpop.f32.mrf.mxu0
  %v7953 = vadd.f32 0.0, %v7952
  %7954 = vmatmul.f32.gmra.mxu0 %v7867
  %v7955 = vpop.f32.mrf.mxu0
  %v7956 = vadd.f32 0.0, %v7955
  %7957 = vmatmul.f32.gmra.mxu0 %v7870
  %v7958 = vpop.f32.mrf.mxu0
  %v7959 = vadd.f32 0.0, %v7958
  %7960 = vmatmul.f32.gmra.mxu0 %v7873
  %v7961 = vpop.f32.mrf.mxu0
  %v7962 = vadd.f32 0.0, %v7961
  %7963 = vmatmul.f32.gmra.mxu0 %v7876
  %v7964 = vpop.f32.mrf.mxu0
  %v7965 = vadd.f32 0.0, %v7964
  %7966 = vmatmul.f32.gmra.mxu0 %v7879
  %v7967 = vpop.f32.mrf.mxu0
  %v7968 = vadd.f32 0.0, %v7967
  %7969 = vmatmul.f32.gmra.mxu0 %v7882
  %v7970 = vpop.f32.mrf.mxu0
  %v7971 = vadd.f32 0.0, %v7970
  %7972 = vmatmul.f32.gmra.mxu0 %v7885
  %v7973 = vpop.f32.mrf.mxu0
  %v7974 = vadd.f32 0.0, %v7973
  %7975 = vmatmul.f32.gmra.mxu0 %v7888
  %v7976 = vpop.f32.mrf.mxu0
  %v7977 = vadd.f32 0.0, %v7976
  %7978 = vmatmul.f32.gmra.mxu0 %v7891
  %v7979 = vpop.f32.mrf.mxu0
  %v7980 = vadd.f32 0.0, %v7979
  %7981 = vmatmul.f32.gmra.mxu0 %v7894
  %v7982 = vpop.f32.mrf.mxu0
  %v7983 = vadd.f32 0.0, %v7982
  %7984 = vmatmul.f32.gmra.mxu0 %v7897
  %v7985 = vpop.f32.mrf.mxu0
  %v7986 = vadd.f32 0.0, %v7985
  %7987 = vmatmul.f32.gmra.mxu0 %v7900
  %v7988 = vpop.f32.mrf.mxu0
  %v7989 = vadd.f32 0.0, %v7988
  %7990 = vmatmul.f32.gmra.mxu0 %v7903
  %v7991 = vpop.f32.mrf.mxu0
  %v7992 = vadd.f32 0.0, %v7991
  %7993 = vmatmul.f32.gmra.mxu0 %v7906
  %v7994 = vpop.f32.mrf.mxu0
  %v7995 = vadd.f32 0.0, %v7994
  %7996 = vmatmul.f32.gmra.mxu0 %v7909
  %v7997 = vpop.f32.mrf.mxu0
  %v7998 = vadd.f32 0.0, %v7997
  %7999 = vmatmul.f32.gmra.mxu0 %v7912
  %v8000 = vpop.f32.mrf.mxu0
  %v8001 = vadd.f32 0.0, %v8000
  %8002 = vmatmul.f32.gmra.mxu0 %v7915
  %v8003 = vpop.f32.mrf.mxu0
  %v8004 = vadd.f32 0.0, %v8003
  %8005 = vmatmul.f32.gmra.mxu0 %v7918
  %v8006 = vpop.f32.mrf.mxu0
  %v8007 = vadd.f32 0.0, %v8006
  %8008 = vmatmul.f32.gmra.mxu0 %v7921
  %v8009 = vpop.f32.mrf.mxu0
  %v8010 = vadd.f32 0.0, %v8009
  %8011 = vmatmul.f32.gmra.mxu0 %v7924
  %v8012 = vpop.f32.mrf.mxu0
  %v8013 = vadd.f32 0.0, %v8012
  %8014 = vmatmul.f32.gmra.mxu0 %v7927
  %v8015 = vpop.f32.mrf.mxu0
  %v8016 = vadd.f32 0.0, %v8015
  %8017 = vmatmul.f32.gmra.mxu0 %v7930
  %v8018 = vpop.f32.mrf.mxu0
  %v8019 = vadd.f32 0.0, %v8018
  %8020 = vdwg.mxu0
  %v8021 = vmax.f32 %v7950, %v7974
  %v8022 = vmax.f32 %v7953, %v7977
  %v8023 = vmax.f32 %v7956, %v7980
  %v8024 = vmax.f32 %v7959, %v7983
  %v8025 = vmax.f32 %v7962, %v7986
  %v8026 = vmax.f32 %v7965, %v7989
  %v8027 = vmax.f32 %v7968, %v7992
  %v8028 = vmax.f32 %v7971, %v7995
  %v8029 = vmax.f32 %v8021, %v7998
  %v8030 = vmax.f32 %v8022, %v8001
  %v8031 = vmax.f32 %v8023, %v8004
  %v8032 = vmax.f32 %v8024, %v8007
  %v8033 = vmax.f32 %v8025, %v8010
  %v8034 = vmax.f32 %v8026, %v8013
  %v8035 = vmax.f32 %v8027, %v8016
  %v8036 = vmax.f32 %v8028, %v8019
  %v8037 = vsub.f32 %v7950, %v8029
  %v8038 = vsub.f32 %v7953, %v8030
  %v8039 = vsub.f32 %v7956, %v8031
  %v8040 = vsub.f32 %v7959, %v8032
  %v8041 = vsub.f32 %v7962, %v8033
  %v8042 = vsub.f32 %v7965, %v8034
  %v8043 = vsub.f32 %v7968, %v8035
  %v8044 = vsub.f32 %v7971, %v8036
  %v8045 = vmul.f32 %v8037, 1.442695
  %v8046 = vpow.pop %v8045
  %v8047 = vmul.f32 %v8038, 1.442695
  %v8048 = vpow.pop %v8047
  %v8049 = vmul.f32 %v8039, 1.442695
  %v8050 = vpow.pop %v8049
  %v8051 = vmul.f32 %v8040, 1.442695
  %v8052 = vpow.pop %v8051
  %v8053 = vmul.f32 %v8041, 1.442695
  %v8054 = vpow.pop %v8053
  %v8055 = vmul.f32 %v8042, 1.442695
  %v8056 = vpow.pop %v8055
  %v8057 = vmul.f32 %v8043, 1.442695
  %v8058 = vpow.pop %v8057
  %v8059 = vmul.f32 %v8044, 1.442695
  %v8060 = vpow.pop %v8059
  %v8061 = vsub.f32 %v7974, %v8029
  %v8062 = vsub.f32 %v7977, %v8030
  %v8063 = vsub.f32 %v7980, %v8031
  %v8064 = vsub.f32 %v7983, %v8032
  %v8065 = vsub.f32 %v7986, %v8033
  %v8066 = vsub.f32 %v7989, %v8034
  %v8067 = vsub.f32 %v7992, %v8035
  %v8068 = vsub.f32 %v7995, %v8036
  %v8069 = vmul.f32 %v8061, 1.442695
  %v8070 = vpow.pop %v8069
  %v8071 = vmul.f32 %v8062, 1.442695
  %v8072 = vpow.pop %v8071
  %v8073 = vmul.f32 %v8063, 1.442695
  %v8074 = vpow.pop %v8073
  %v8075 = vmul.f32 %v8064, 1.442695
  %v8076 = vpow.pop %v8075
  %v8077 = vmul.f32 %v8065, 1.442695
  %v8078 = vpow.pop %v8077
  %v8079 = vmul.f32 %v8066, 1.442695
  %v8080 = vpow.pop %v8079
  %v8081 = vmul.f32 %v8067, 1.442695
  %v8082 = vpow.pop %v8081
  %v8083 = vmul.f32 %v8068, 1.442695
  %v8084 = vpow.pop %v8083
  %v8085 = vsub.f32 %v7998, %v8029
  %v8086 = vsub.f32 %v8001, %v8030
  %v8087 = vsub.f32 %v8004, %v8031
  %v8088 = vsub.f32 %v8007, %v8032
  %v8089 = vsub.f32 %v8010, %v8033
  %v8090 = vsub.f32 %v8013, %v8034
  %v8091 = vsub.f32 %v8016, %v8035
  %v8092 = vsub.f32 %v8019, %v8036
  %v8093 = vmul.f32 %v8085, 1.442695
  %v8094 = vpow.pop %v8093
  %v8095 = vmul.f32 %v8086, 1.442695
  %v8096 = vpow.pop %v8095
  %v8097 = vmul.f32 %v8087, 1.442695
  %v8098 = vpow.pop %v8097
  %v8099 = vmul.f32 %v8088, 1.442695
  %v8100 = vpow.pop %v8099
  %v8101 = vmul.f32 %v8089, 1.442695
  %v8102 = vpow.pop %v8101
  %v8103 = vmul.f32 %v8090, 1.442695
  %v8104 = vpow.pop %v8103
  %v8105 = vmul.f32 %v8091, 1.442695
  %v8106 = vpow.pop %v8105
  %v8107 = vmul.f32 %v8092, 1.442695
  %v8108 = vpow.pop %v8107
  %v8109 = vadd.f32 %v8046, %v8070
  %v8110 = vadd.f32 %v8048, %v8072
  %v8111 = vadd.f32 %v8050, %v8074
  %v8112 = vadd.f32 %v8052, %v8076
  %v8113 = vadd.f32 %v8054, %v8078
  %v8114 = vadd.f32 %v8056, %v8080
  %v8115 = vadd.f32 %v8058, %v8082
  %v8116 = vadd.f32 %v8060, %v8084
  %v8117 = vadd.f32 %v8109, %v8094
  %v8118 = vadd.f32 %v8110, %v8096
  %v8119 = vadd.f32 %v8111, %v8098
  %v8120 = vadd.f32 %v8112, %v8100
  %v8121 = vadd.f32 %v8113, %v8102
  %v8122 = vadd.f32 %v8114, %v8104
  %v8123 = vadd.f32 %v8115, %v8106
  %v8124 = vadd.f32 %v8116, %v8108
  %v8125 = vrcp.pop %v8117
  %v8126 = vrcp.pop %v8118
  %v8127 = vrcp.pop %v8119
  %v8128 = vrcp.pop %v8120
  %v8129 = vrcp.pop %v8121
  %v8130 = vrcp.pop %v8122
  %v8131 = vrcp.pop %v8123
  %v8132 = vrcp.pop %v8124
  %v8133 = vmul.f32 %v8046, %v8125
  %v8134 = vmul.f32 %v8048, %v8126
  %v8135 = vmul.f32 %v8050, %v8127
  %v8136 = vmul.f32 %v8052, %v8128
  %v8137 = vmul.f32 %v8054, %v8129
  %v8138 = vmul.f32 %v8056, %v8130
  %v8139 = vmul.f32 %v8058, %v8131
  %v8140 = vmul.f32 %v8060, %v8132
  %v8141 = vld [vmem:[%s574] sm:$0xff]
  %v8142 = vld [vmem:[%s574 + $0x8] sm:$0xff]
  %v8143 = vld [vmem:[%s574 + $0x10] sm:$0xff]
  %v8144 = vld [vmem:[%s574 + $0x18] sm:$0xff]
  %v8145 = vld [vmem:[%s574 + $0x20] sm:$0xff]
  %v8146 = vld [vmem:[%s574 + $0x28] sm:$0xff]
  %v8147 = vld [vmem:[%s574 + $0x30] sm:$0xff]
  %v8148 = vld [vmem:[%s574 + $0x38] sm:$0xff]
  %v8149 = vmul.f32 %v8133, %v8141
  %v8150 = vmul.f32 %v8134, %v8142
  %v8151 = vmul.f32 %v8135, %v8143
  %v8152 = vmul.f32 %v8136, %v8144
  %v8153 = vmul.f32 %v8137, %v8145
  %v8154 = vmul.f32 %v8138, %v8146
  %v8155 = vmul.f32 %v8139, %v8147
  %v8156 = vmul.f32 %v8140, %v8148
  %v8157 = vmul.f32 %v8070, %v8125
  %v8158 = vmul.f32 %v8072, %v8126
  %v8159 = vmul.f32 %v8074, %v8127
  %v8160 = vmul.f32 %v8076, %v8128
  %v8161 = vmul.f32 %v8078, %v8129
  %v8162 = vmul.f32 %v8080, %v8130
  %v8163 = vmul.f32 %v8082, %v8131
  %v8164 = vmul.f32 %v8084, %v8132
  %v8165 = vld [vmem:[%s574 + $0x40] sm:$0xff]
  %v8166 = vld [vmem:[%s574 + $0x48] sm:$0xff]
  %v8167 = vld [vmem:[%s574 + $0x50] sm:$0xff]
  %v8168 = vld [vmem:[%s574 + $0x58] sm:$0xff]
  %v8169 = vld [vmem:[%s574 + $0x60] sm:$0xff]
  %v8170 = vld [vmem:[%s574 + $0x68] sm:$0xff]
  %v8171 = vld [vmem:[%s574 + $0x70] sm:$0xff]
  %v8172 = vld [vmem:[%s574 + $0x78] sm:$0xff]
  %v8173 = vmul.f32 %v8157, %v8165
  %v8174 = vmul.f32 %v8158, %v8166
  %v8175 = vmul.f32 %v8159, %v8167
  %v8176 = vmul.f32 %v8160, %v8168
  %v8177 = vmul.f32 %v8161, %v8169
  %v8178 = vmul.f32 %v8162, %v8170
  %v8179 = vmul.f32 %v8163, %v8171
  %v8180 = vmul.f32 %v8164, %v8172
  %v8181 = vadd.f32 %v8149, %v8173
  %v8182 = vadd.f32 %v8150, %v8174
  %v8183 = vadd.f32 %v8151, %v8175
  %v8184 = vadd.f32 %v8152, %v8176
  %v8185 = vadd.f32 %v8153, %v8177
  %v8186 = vadd.f32 %v8154, %v8178
  %v8187 = vadd.f32 %v8155, %v8179
  %v8188 = vadd.f32 %v8156, %v8180
  %v8189 = vmul.f32 %v8094, %v8125
  %v8190 = vmul.f32 %v8096, %v8126
  %v8191 = vmul.f32 %v8098, %v8127
  %v8192 = vmul.f32 %v8100, %v8128
  %v8193 = vmul.f32 %v8102, %v8129
  %v8194 = vmul.f32 %v8104, %v8130
  %v8195 = vmul.f32 %v8106, %v8131
  %v8196 = vmul.f32 %v8108, %v8132
  %v8197 = vld [vmem:[%s574 + $0x80] sm:$0xff]
  %v8198 = vld [vmem:[%s574 + $0x88] sm:$0xff]
  %v8199 = vld [vmem:[%s574 + $0x90] sm:$0xff]
  %v8200 = vld [vmem:[%s574 + $0x98] sm:$0xff]
  %v8201 = vld [vmem:[%s574 + $0xa0] sm:$0xff]
  %v8202 = vld [vmem:[%s574 + $0xa8] sm:$0xff]
  %v8203 = vld [vmem:[%s574 + $0xb0] sm:$0xff]
  %v8204 = vld [vmem:[%s574 + $0xb8] sm:$0xff]
  %v8205 = vmul.f32 %v8189, %v8197
  %v8206 = vmul.f32 %v8190, %v8198
  %v8207 = vmul.f32 %v8191, %v8199
  %v8208 = vmul.f32 %v8192, %v8200
  %v8209 = vmul.f32 %v8193, %v8201
  %v8210 = vmul.f32 %v8194, %v8202
  %v8211 = vmul.f32 %v8195, %v8203
  %v8212 = vmul.f32 %v8196, %v8204
  %v8213 = vadd.f32 %v8181, %v8205
  %v8214 = vadd.f32 %v8182, %v8206
  %v8215 = vadd.f32 %v8183, %v8207
  %v8216 = vadd.f32 %v8184, %v8208
  %v8217 = vadd.f32 %v8185, %v8209
  %v8218 = vadd.f32 %v8186, %v8210
  %v8219 = vadd.f32 %v8187, %v8211
  %v8220 = vadd.f32 %v8188, %v8212
  %8221 = vst.msk [vmem:[#allocation4] sm:$0xff] %vm72, %v8213
  %8222 = vst.msk [vmem:[#allocation4 + $0x8] sm:$0xff] %vm72, %v8214
  %8223 = vst.msk [vmem:[#allocation4 + $0x10] sm:$0xff] %vm72, %v8215
  %8224 = vst.msk [vmem:[#allocation4 + $0x18] sm:$0xff] %vm72, %v8216
  %8225 = vst.msk [vmem:[#allocation4 + $0x20] sm:$0xff] %vm72, %v8217
  %8226 = vst.msk [vmem:[#allocation4 + $0x28] sm:$0xff] %vm72, %v8218
  %8227 = vst.msk [vmem:[#allocation4 + $0x30] sm:$0xff] %vm72, %v8219
  %8228 = vst.msk [vmem:[#allocation4 + $0x38] sm:$0xff] %vm72, %v8220
  %v8229 = vld [vmem:[#allocation3 + $0x40] sm:$0xff]
  %v8230 = vld [vmem:[#allocation3 + $0x48] sm:$0xff]
  %v8231 = vld [vmem:[#allocation3 + $0x50] sm:$0xff]
  %v8232 = vld [vmem:[#allocation3 + $0x58] sm:$0xff]
  %v8233 = vld [vmem:[#allocation3 + $0x60] sm:$0xff]
  %v8234 = vld [vmem:[#allocation3 + $0x68] sm:$0xff]
  %v8235 = vld [vmem:[#allocation3 + $0x70] sm:$0xff]
  %v8236 = vld [vmem:[#allocation3 + $0x78] sm:$0xff]
  %v8237 = vld [vmem:[%s477] sm:$0xff]
  %v8238 = vld [vmem:[%s477 + $0x8] sm:$0xff]
  %v8239 = vld [vmem:[%s477 + $0x10] sm:$0xff]
  %v8240 = vld [vmem:[%s477 + $0x18] sm:$0xff]
  %v8241 = vld [vmem:[%s477 + $0x20] sm:$0xff]
  %v8242 = vld [vmem:[%s477 + $0x28] sm:$0xff]
  %v8243 = vld [vmem:[%s477 + $0x30] sm:$0xff]
  %v8244 = vld [vmem:[%s477 + $0x38] sm:$0xff]
  %v8245 = vld [vmem:[%s477 + $0x40] sm:$0xff]
  %v8246 = vld [vmem:[%s477 + $0x48] sm:$0xff]
  %v8247 = vld [vmem:[%s477 + $0x50] sm:$0xff]
  %v8248 = vld [vmem:[%s477 + $0x58] sm:$0xff]
  %v8249 = vld [vmem:[%s477 + $0x60] sm:$0xff]
  %v8250 = vld [vmem:[%s477 + $0x68] sm:$0xff]
  %v8251 = vld [vmem:[%s477 + $0x70] sm:$0xff]
  %v8252 = vld [vmem:[%s477 + $0x78] sm:$0xff]
  %v8253 = vld [vmem:[%s477 + $0x80] sm:$0xff]
  %v8254 = vld [vmem:[%s477 + $0x88] sm:$0xff]
  %v8255 = vld [vmem:[%s477 + $0x90] sm:$0xff]
  %v8256 = vld [vmem:[%s477 + $0x98] sm:$0xff]
  %v8257 = vld [vmem:[%s477 + $0xa0] sm:$0xff]
  %v8258 = vld [vmem:[%s477 + $0xa8] sm:$0xff]
  %v8259 = vld [vmem:[%s477 + $0xb0] sm:$0xff]
  %v8260 = vld [vmem:[%s477 + $0xb8] sm:$0xff]
  %v8261 = vmul.f32 %v8229, %v8237
  %v8262 = vmul.f32 %v8230, %v8238
  %v8263 = vmul.f32 %v8231, %v8239
  %v8264 = vmul.f32 %v8232, %v8240
  %v8265 = vmul.f32 %v8233, %v8241
  %v8266 = vmul.f32 %v8234, %v8242
  %v8267 = vmul.f32 %v8235, %v8243
  %v8268 = vmul.f32 %v8236, %v8244
  %v8269 = vmul.f32 %v8229, %v8245
  %v8270 = vmul.f32 %v8230, %v8246
  %v8271 = vmul.f32 %v8231, %v8247
  %v8272 = vmul.f32 %v8232, %v8248
  %v8273 = vmul.f32 %v8233, %v8249
  %v8274 = vmul.f32 %v8234, %v8250
  %v8275 = vmul.f32 %v8235, %v8251
  %v8276 = vmul.f32 %v8236, %v8252
  %v8277 = vmul.f32 %v8229, %v8253
  %v8278 = vmul.f32 %v8230, %v8254
  %v8279 = vmul.f32 %v8231, %v8255
  %v8280 = vmul.f32 %v8232, %v8256
  %v8281 = vmul.f32 %v8233, %v8257
  %v8282 = vmul.f32 %v8234, %v8258
  %v8283 = vmul.f32 %v8235, %v8259
  %v8284 = vmul.f32 %v8236, %v8260
  %v8286 = vsel %vm72, %v8261, 0
  %v8289 = vsel %vm72, %v8262, 0
  %v8292 = vsel %vm72, %v8263, 0
  %v8295 = vsel %vm72, %v8264, 0
  %v8298 = vsel %vm72, %v8265, 0
  %v8301 = vsel %vm72, %v8266, 0
  %v8304 = vsel %vm72, %v8267, 0
  %v8307 = vsel %vm72, %v8268, 0
  %v8310 = vsel %vm72, %v8269, 0
  %v8313 = vsel %vm72, %v8270, 0
  %v8316 = vsel %vm72, %v8271, 0
  %v8319 = vsel %vm72, %v8272, 0
  %v8322 = vsel %vm72, %v8273, 0
  %v8325 = vsel %vm72, %v8274, 0
  %v8328 = vsel %vm72, %v8275, 0
  %v8331 = vsel %vm72, %v8276, 0
  %v8334 = vsel %vm72, %v8277, 0
  %v8337 = vsel %vm72, %v8278, 0
  %v8340 = vsel %vm72, %v8279, 0
  %v8343 = vsel %vm72, %v8280, 0
  %v8346 = vsel %vm72, %v8281, 0
  %v8349 = vsel %vm72, %v8282, 0
  %v8352 = vsel %vm72, %v8283, 0
  %v8355 = vsel %vm72, %v8284, 0
  %8357 = vmatpush.msra.mxu0 0.0
  %8358 = vmatpush.msra.mxu0 0.0
  %8359 = vmatpush.msra.mxu0 0.0
  %8360 = vmatpush.msra.mxu0 0.0
  %8361 = vmatpush.msra.mxu0 0.0
  %8362 = vmatpush.msra.mxu0 0.0
  %8363 = vmatpush.msra.mxu0 0.0
  %8364 = vmatpush.msra.mxu0 0.0
  %8365 = vmatpush.msra.mxu0 0.0
  %8366 = vmatpush.msra.mxu0 0.0
  %8367 = vmatpush.msra.mxu0 0.0
  %8368 = vmatpush.msra.mxu0 0.0
  %8369 = vmatpush.msra.mxu0 %v53
  %8370 = vmatpush.msra.mxu0 %v52
  %8371 = vmatpush.msra.mxu0 %v51
  %8372 = vmatpush.msra.mxu0 %v50
  %8373 = vmatmul.f32.gmra.mxu0 %v8286
  %v8374 = vpop.f32.mrf.mxu0
  %v8375 = vadd.f32 0.0, %v8374
  %8376 = vmatmul.f32.gmra.mxu0 %v8289
  %v8377 = vpop.f32.mrf.mxu0
  %v8378 = vadd.f32 0.0, %v8377
  %8379 = vmatmul.f32.gmra.mxu0 %v8292
  %v8380 = vpop.f32.mrf.mxu0
  %v8381 = vadd.f32 0.0, %v8380
  %8382 = vmatmul.f32.gmra.mxu0 %v8295
  %v8383 = vpop.f32.mrf.mxu0
  %v8384 = vadd.f32 0.0, %v8383
  %8385 = vmatmul.f32.gmra.mxu0 %v8298
  %v8386 = vpop.f32.mrf.mxu0
  %v8387 = vadd.f32 0.0, %v8386
  %8388 = vmatmul.f32.gmra.mxu0 %v8301
  %v8389 = vpop.f32.mrf.mxu0
  %v8390 = vadd.f32 0.0, %v8389
  %8391 = vmatmul.f32.gmra.mxu0 %v8304
  %v8392 = vpop.f32.mrf.mxu0
  %v8393 = vadd.f32 0.0, %v8392
  %8394 = vmatmul.f32.gmra.mxu0 %v8307
  %v8395 = vpop.f32.mrf.mxu0
  %v8396 = vadd.f32 0.0, %v8395
  %8397 = vmatmul.f32.gmra.mxu0 %v8310
  %v8398 = vpop.f32.mrf.mxu0
  %v8399 = vadd.f32 0.0, %v8398
  %8400 = vmatmul.f32.gmra.mxu0 %v8313
  %v8401 = vpop.f32.mrf.mxu0
  %v8402 = vadd.f32 0.0, %v8401
  %8403 = vmatmul.f32.gmra.mxu0 %v8316
  %v8404 = vpop.f32.mrf.mxu0
  %v8405 = vadd.f32 0.0, %v8404
  %8406 = vmatmul.f32.gmra.mxu0 %v8319
  %v8407 = vpop.f32.mrf.mxu0
  %v8408 = vadd.f32 0.0, %v8407
  %8409 = vmatmul.f32.gmra.mxu0 %v8322
  %v8410 = vpop.f32.mrf.mxu0
  %v8411 = vadd.f32 0.0, %v8410
  %8412 = vmatmul.f32.gmra.mxu0 %v8325
  %v8413 = vpop.f32.mrf.mxu0
  %v8414 = vadd.f32 0.0, %v8413
  %8415 = vmatmul.f32.gmra.mxu0 %v8328
  %v8416 = vpop.f32.mrf.mxu0
  %v8417 = vadd.f32 0.0, %v8416
  %8418 = vmatmul.f32.gmra.mxu0 %v8331
  %v8419 = vpop.f32.mrf.mxu0
  %v8420 = vadd.f32 0.0, %v8419
  %8421 = vmatmul.f32.gmra.mxu0 %v8334
  %v8422 = vpop.f32.mrf.mxu0
  %v8423 = vadd.f32 0.0, %v8422
  %8424 = vmatmul.f32.gmra.mxu0 %v8337
  %v8425 = vpop.f32.mrf.mxu0
  %v8426 = vadd.f32 0.0, %v8425
  %8427 = vmatmul.f32.gmra.mxu0 %v8340
  %v8428 = vpop.f32.mrf.mxu0
  %v8429 = vadd.f32 0.0, %v8428
  %8430 = vmatmul.f32.gmra.mxu0 %v8343
  %v8431 = vpop.f32.mrf.mxu0
  %v8432 = vadd.f32 0.0, %v8431
  %8433 = vmatmul.f32.gmra.mxu0 %v8346
  %v8434 = vpop.f32.mrf.mxu0
  %v8435 = vadd.f32 0.0, %v8434
  %8436 = vmatmul.f32.gmra.mxu0 %v8349
  %v8437 = vpop.f32.mrf.mxu0
  %v8438 = vadd.f32 0.0, %v8437
  %8439 = vmatmul.f32.gmra.mxu0 %v8352
  %v8440 = vpop.f32.mrf.mxu0
  %v8441 = vadd.f32 0.0, %v8440
  %8442 = vmatmul.f32.gmra.mxu0 %v8355
  %v8443 = vpop.f32.mrf.mxu0
  %v8444 = vadd.f32 0.0, %v8443
  %8445 = vdwg.mxu0
  %v8446 = vmax.f32 %v8375, %v8399
  %v8447 = vmax.f32 %v8378, %v8402
  %v8448 = vmax.f32 %v8381, %v8405
  %v8449 = vmax.f32 %v8384, %v8408
  %v8450 = vmax.f32 %v8387, %v8411
  %v8451 = vmax.f32 %v8390, %v8414
  %v8452 = vmax.f32 %v8393, %v8417
  %v8453 = vmax.f32 %v8396, %v8420
  %v8454 = vmax.f32 %v8446, %v8423
  %v8455 = vmax.f32 %v8447, %v8426
  %v8456 = vmax.f32 %v8448, %v8429
  %v8457 = vmax.f32 %v8449, %v8432
  %v8458 = vmax.f32 %v8450, %v8435
  %v8459 = vmax.f32 %v8451, %v8438
  %v8460 = vmax.f32 %v8452, %v8441
  %v8461 = vmax.f32 %v8453, %v8444
  %v8462 = vsub.f32 %v8375, %v8454
  %v8463 = vsub.f32 %v8378, %v8455
  %v8464 = vsub.f32 %v8381, %v8456
  %v8465 = vsub.f32 %v8384, %v8457
  %v8466 = vsub.f32 %v8387, %v8458
  %v8467 = vsub.f32 %v8390, %v8459
  %v8468 = vsub.f32 %v8393, %v8460
  %v8469 = vsub.f32 %v8396, %v8461
  %v8470 = vmul.f32 %v8462, 1.442695
  %v8471 = vpow.pop %v8470
  %v8472 = vmul.f32 %v8463, 1.442695
  %v8473 = vpow.pop %v8472
  %v8474 = vmul.f32 %v8464, 1.442695
  %v8475 = vpow.pop %v8474
  %v8476 = vmul.f32 %v8465, 1.442695
  %v8477 = vpow.pop %v8476
  %v8478 = vmul.f32 %v8466, 1.442695
  %v8479 = vpow.pop %v8478
  %v8480 = vmul.f32 %v8467, 1.442695
  %v8481 = vpow.pop %v8480
  %v8482 = vmul.f32 %v8468, 1.442695
  %v8483 = vpow.pop %v8482
  %v8484 = vmul.f32 %v8469, 1.442695
  %v8485 = vpow.pop %v8484
  %v8486 = vsub.f32 %v8399, %v8454
  %v8487 = vsub.f32 %v8402, %v8455
  %v8488 = vsub.f32 %v8405, %v8456
  %v8489 = vsub.f32 %v8408, %v8457
  %v8490 = vsub.f32 %v8411, %v8458
  %v8491 = vsub.f32 %v8414, %v8459
  %v8492 = vsub.f32 %v8417, %v8460
  %v8493 = vsub.f32 %v8420, %v8461
  %v8494 = vmul.f32 %v8486, 1.442695
  %v8495 = vpow.pop %v8494
  %v8496 = vmul.f32 %v8487, 1.442695
  %v8497 = vpow.pop %v8496
  %v8498 = vmul.f32 %v8488, 1.442695
  %v8499 = vpow.pop %v8498
  %v8500 = vmul.f32 %v8489, 1.442695
  %v8501 = vpow.pop %v8500
  %v8502 = vmul.f32 %v8490, 1.442695
  %v8503 = vpow.pop %v8502
  %v8504 = vmul.f32 %v8491, 1.442695
  %v8505 = vpow.pop %v8504
  %v8506 = vmul.f32 %v8492, 1.442695
  %v8507 = vpow.pop %v8506
  %v8508 = vmul.f32 %v8493, 1.442695
  %v8509 = vpow.pop %v8508
  %v8510 = vsub.f32 %v8423, %v8454
  %v8511 = vsub.f32 %v8426, %v8455
  %v8512 = vsub.f32 %v8429, %v8456
  %v8513 = vsub.f32 %v8432, %v8457
  %v8514 = vsub.f32 %v8435, %v8458
  %v8515 = vsub.f32 %v8438, %v8459
  %v8516 = vsub.f32 %v8441, %v8460
  %v8517 = vsub.f32 %v8444, %v8461
  %v8518 = vmul.f32 %v8510, 1.442695
  %v8519 = vpow.pop %v8518
  %v8520 = vmul.f32 %v8511, 1.442695
  %v8521 = vpow.pop %v8520
  %v8522 = vmul.f32 %v8512, 1.442695
  %v8523 = vpow.pop %v8522
  %v8524 = vmul.f32 %v8513, 1.442695
  %v8525 = vpow.pop %v8524
  %v8526 = vmul.f32 %v8514, 1.442695
  %v8527 = vpow.pop %v8526
  %v8528 = vmul.f32 %v8515, 1.442695
  %v8529 = vpow.pop %v8528
  %v8530 = vmul.f32 %v8516, 1.442695
  %v8531 = vpow.pop %v8530
  %v8532 = vmul.f32 %v8517, 1.442695
  %v8533 = vpow.pop %v8532
  %v8534 = vadd.f32 %v8471, %v8495
  %v8535 = vadd.f32 %v8473, %v8497
  %v8536 = vadd.f32 %v8475, %v8499
  %v8537 = vadd.f32 %v8477, %v8501
  %v8538 = vadd.f32 %v8479, %v8503
  %v8539 = vadd.f32 %v8481, %v8505
  %v8540 = vadd.f32 %v8483, %v8507
  %v8541 = vadd.f32 %v8485, %v8509
  %v8542 = vadd.f32 %v8534, %v8519
  %v8543 = vadd.f32 %v8535, %v8521
  %v8544 = vadd.f32 %v8536, %v8523
  %v8545 = vadd.f32 %v8537, %v8525
  %v8546 = vadd.f32 %v8538, %v8527
  %v8547 = vadd.f32 %v8539, %v8529
  %v8548 = vadd.f32 %v8540, %v8531
  %v8549 = vadd.f32 %v8541, %v8533
  %v8550 = vrcp.pop %v8542
  %v8551 = vrcp.pop %v8543
  %v8552 = vrcp.pop %v8544
  %v8553 = vrcp.pop %v8545
  %v8554 = vrcp.pop %v8546
  %v8555 = vrcp.pop %v8547
  %v8556 = vrcp.pop %v8548
  %v8557 = vrcp.pop %v8549
  %v8558 = vmul.f32 %v8471, %v8550
  %v8559 = vmul.f32 %v8473, %v8551
  %v8560 = vmul.f32 %v8475, %v8552
  %v8561 = vmul.f32 %v8477, %v8553
  %v8562 = vmul.f32 %v8479, %v8554
  %v8563 = vmul.f32 %v8481, %v8555
  %v8564 = vmul.f32 %v8483, %v8556
  %v8565 = vmul.f32 %v8485, %v8557
  %v8566 = vld [vmem:[%s574] sm:$0xff]
  %v8567 = vld [vmem:[%s574 + $0x8] sm:$0xff]
  %v8568 = vld [vmem:[%s574 + $0x10] sm:$0xff]
  %v8569 = vld [vmem:[%s574 + $0x18] sm:$0xff]
  %v8570 = vld [vmem:[%s574 + $0x20] sm:$0xff]
  %v8571 = vld [vmem:[%s574 + $0x28] sm:$0xff]
  %v8572 = vld [vmem:[%s574 + $0x30] sm:$0xff]
  %v8573 = vld [vmem:[%s574 + $0x38] sm:$0xff]
  %v8574 = vmul.f32 %v8558, %v8566
  %v8575 = vmul.f32 %v8559, %v8567
  %v8576 = vmul.f32 %v8560, %v8568
  %v8577 = vmul.f32 %v8561, %v8569
  %v8578 = vmul.f32 %v8562, %v8570
  %v8579 = vmul.f32 %v8563, %v8571
  %v8580 = vmul.f32 %v8564, %v8572
  %v8581 = vmul.f32 %v8565, %v8573
  %v8582 = vmul.f32 %v8495, %v8550
  %v8583 = vmul.f32 %v8497, %v8551
  %v8584 = vmul.f32 %v8499, %v8552
  %v8585 = vmul.f32 %v8501, %v8553
  %v8586 = vmul.f32 %v8503, %v8554
  %v8587 = vmul.f32 %v8505, %v8555
  %v8588 = vmul.f32 %v8507, %v8556
  %v8589 = vmul.f32 %v8509, %v8557
  %v8590 = vld [vmem:[%s574 + $0x40] sm:$0xff]
  %v8591 = vld [vmem:[%s574 + $0x48] sm:$0xff]
  %v8592 = vld [vmem:[%s574 + $0x50] sm:$0xff]
  %v8593 = vld [vmem:[%s574 + $0x58] sm:$0xff]
  %v8594 = vld [vmem:[%s574 + $0x60] sm:$0xff]
  %v8595 = vld [vmem:[%s574 + $0x68] sm:$0xff]
  %v8596 = vld [vmem:[%s574 + $0x70] sm:$0xff]
  %v8597 = vld [vmem:[%s574 + $0x78] sm:$0xff]
  %v8598 = vmul.f32 %v8582, %v8590
  %v8599 = vmul.f32 %v8583, %v8591
  %v8600 = vmul.f32 %v8584, %v8592
  %v8601 = vmul.f32 %v8585, %v8593
  %v8602 = vmul.f32 %v8586, %v8594
  %v8603 = vmul.f32 %v8587, %v8595
  %v8604 = vmul.f32 %v8588, %v8596
  %v8605 = vmul.f32 %v8589, %v8597
  %v8606 = vadd.f32 %v8574, %v8598
  %v8607 = vadd.f32 %v8575, %v8599
  %v8608 = vadd.f32 %v8576, %v8600
  %v8609 = vadd.f32 %v8577, %v8601
  %v8610 = vadd.f32 %v8578, %v8602
  %v8611 = vadd.f32 %v8579, %v8603
  %v8612 = vadd.f32 %v8580, %v8604
  %v8613 = vadd.f32 %v8581, %v8605
  %v8614 = vmul.f32 %v8519, %v8550
  %v8615 = vmul.f32 %v8521, %v8551
  %v8616 = vmul.f32 %v8523, %v8552
  %v8617 = vmul.f32 %v8525, %v8553
  %v8618 = vmul.f32 %v8527, %v8554
  %v8619 = vmul.f32 %v8529, %v8555
  %v8620 = vmul.f32 %v8531, %v8556
  %v8621 = vmul.f32 %v8533, %v8557
  %v8622 = vld [vmem:[%s574 + $0x80] sm:$0xff]
  %v8623 = vld [vmem:[%s574 + $0x88] sm:$0xff]
  %v8624 = vld [vmem:[%s574 + $0x90] sm:$0xff]
  %v8625 = vld [vmem:[%s574 + $0x98] sm:$0xff]
  %v8626 = vld [vmem:[%s574 + $0xa0] sm:$0xff]
  %v8627 = vld [vmem:[%s574 + $0xa8] sm:$0xff]
  %v8628 = vld [vmem:[%s574 + $0xb0] sm:$0xff]
  %v8629 = vld [vmem:[%s574 + $0xb8] sm:$0xff]
  %v8630 = vmul.f32 %v8614, %v8622
  %v8631 = vmul.f32 %v8615, %v8623
  %v8632 = vmul.f32 %v8616, %v8624
  %v8633 = vmul.f32 %v8617, %v8625
  %v8634 = vmul.f32 %v8618, %v8626
  %v8635 = vmul.f32 %v8619, %v8627
  %v8636 = vmul.f32 %v8620, %v8628
  %v8637 = vmul.f32 %v8621, %v8629
  %v8638 = vadd.f32 %v8606, %v8630
  %v8639 = vadd.f32 %v8607, %v8631
  %v8640 = vadd.f32 %v8608, %v8632
  %v8641 = vadd.f32 %v8609, %v8633
  %v8642 = vadd.f32 %v8610, %v8634
  %v8643 = vadd.f32 %v8611, %v8635
  %v8644 = vadd.f32 %v8612, %v8636
  %v8645 = vadd.f32 %v8613, %v8637
  %8646 = vst.msk [vmem:[#allocation4 + $0x40] sm:$0xff] %vm72, %v8638
  %8647 = vst.msk [vmem:[#allocation4 + $0x48] sm:$0xff] %vm72, %v8639
  %8648 = vst.msk [vmem:[#allocation4 + $0x50] sm:$0xff] %vm72, %v8640
  %8649 = vst.msk [vmem:[#allocation4 + $0x58] sm:$0xff] %vm72, %v8641
  %8650 = vst.msk [vmem:[#allocation4 + $0x60] sm:$0xff] %vm72, %v8642
  %8651 = vst.msk [vmem:[#allocation4 + $0x68] sm:$0xff] %vm72, %v8643
  %8652 = vst.msk [vmem:[#allocation4 + $0x70] sm:$0xff] %vm72, %v8644
  %8653 = vst.msk [vmem:[#allocation4 + $0x78] sm:$0xff] %vm72, %v8645
  %v8654 = vld [vmem:[#allocation3 + $0x80] sm:$0xff]
  %v8655 = vld [vmem:[#allocation3 + $0x88] sm:$0xff]
  %v8656 = vld [vmem:[#allocation3 + $0x90] sm:$0xff]
  %v8657 = vld [vmem:[#allocation3 + $0x98] sm:$0xff]
  %v8658 = vld [vmem:[#allocation3 + $0xa0] sm:$0xff]
  %v8659 = vld [vmem:[#allocation3 + $0xa8] sm:$0xff]
  %v8660 = vld [vmem:[#allocation3 + $0xb0] sm:$0xff]
  %v8661 = vld [vmem:[#allocation3 + $0xb8] sm:$0xff]
  %v8662 = vld [vmem:[%s477] sm:$0xff]
  %v8663 = vld [vmem:[%s477 + $0x8] sm:$0xff]
  %v8664 = vld [vmem:[%s477 + $0x10] sm:$0xff]
  %v8665 = vld [vmem:[%s477 + $0x18] sm:$0xff]
  %v8666 = vld [vmem:[%s477 + $0x20] sm:$0xff]
  %v8667 = vld [vmem:[%s477 + $0x28] sm:$0xff]
  %v8668 = vld [vmem:[%s477 + $0x30] sm:$0xff]
  %v8669 = vld [vmem:[%s477 + $0x38] sm:$0xff]
  %v8670 = vld [vmem:[%s477 + $0x40] sm:$0xff]
  %v8671 = vld [vmem:[%s477 + $0x48] sm:$0xff]
  %v8672 = vld [vmem:[%s477 + $0x50] sm:$0xff]
  %v8673 = vld [vmem:[%s477 + $0x58] sm:$0xff]
  %v8674 = vld [vmem:[%s477 + $0x60] sm:$0xff]
  %v8675 = vld [vmem:[%s477 + $0x68] sm:$0xff]
  %v8676 = vld [vmem:[%s477 + $0x70] sm:$0xff]
  %v8677 = vld [vmem:[%s477 + $0x78] sm:$0xff]
  %v8678 = vld [vmem:[%s477 + $0x80] sm:$0xff]
  %v8679 = vld [vmem:[%s477 + $0x88] sm:$0xff]
  %v8680 = vld [vmem:[%s477 + $0x90] sm:$0xff]
  %v8681 = vld [vmem:[%s477 + $0x98] sm:$0xff]
  %v8682 = vld [vmem:[%s477 + $0xa0] sm:$0xff]
  %v8683 = vld [vmem:[%s477 + $0xa8] sm:$0xff]
  %v8684 = vld [vmem:[%s477 + $0xb0] sm:$0xff]
  %v8685 = vld [vmem:[%s477 + $0xb8] sm:$0xff]
  %v8686 = vmul.f32 %v8654, %v8662
  %v8687 = vmul.f32 %v8655, %v8663
  %v8688 = vmul.f32 %v8656, %v8664
  %v8689 = vmul.f32 %v8657, %v8665
  %v8690 = vmul.f32 %v8658, %v8666
  %v8691 = vmul.f32 %v8659, %v8667
  %v8692 = vmul.f32 %v8660, %v8668
  %v8693 = vmul.f32 %v8661, %v8669
  %v8694 = vmul.f32 %v8654, %v8670
  %v8695 = vmul.f32 %v8655, %v8671
  %v8696 = vmul.f32 %v8656, %v8672
  %v8697 = vmul.f32 %v8657, %v8673
  %v8698 = vmul.f32 %v8658, %v8674
  %v8699 = vmul.f32 %v8659, %v8675
  %v8700 = vmul.f32 %v8660, %v8676
  %v8701 = vmul.f32 %v8661, %v8677
  %v8702 = vmul.f32 %v8654, %v8678
  %v8703 = vmul.f32 %v8655, %v8679
  %v8704 = vmul.f32 %v8656, %v8680
  %v8705 = vmul.f32 %v8657, %v8681
  %v8706 = vmul.f32 %v8658, %v8682
  %v8707 = vmul.f32 %v8659, %v8683
  %v8708 = vmul.f32 %v8660, %v8684
  %v8709 = vmul.f32 %v8661, %v8685
  %v8711 = vsel %vm72, %v8686, 0
  %v8714 = vsel %vm72, %v8687, 0
  %v8717 = vsel %vm72, %v8688, 0
  %v8720 = vsel %vm72, %v8689, 0
  %v8723 = vsel %vm72, %v8690, 0
  %v8726 = vsel %vm72, %v8691, 0
  %v8729 = vsel %vm72, %v8692, 0
  %v8732 = vsel %vm72, %v8693, 0
  %v8735 = vsel %vm72, %v8694, 0
  %v8738 = vsel %vm72, %v8695, 0
  %v8741 = vsel %vm72, %v8696, 0
  %v8744 = vsel %vm72, %v8697, 0
  %v8747 = vsel %vm72, %v8698, 0
  %v8750 = vsel %vm72, %v8699, 0
  %v8753 = vsel %vm72, %v8700, 0
  %v8756 = vsel %vm72, %v8701, 0
  %v8759 = vsel %vm72, %v8702, 0
  %v8762 = vsel %vm72, %v8703, 0
  %v8765 = vsel %vm72, %v8704, 0
  %v8768 = vsel %vm72, %v8705, 0
  %v8771 = vsel %vm72, %v8706, 0
  %v8774 = vsel %vm72, %v8707, 0
  %v8777 = vsel %vm72, %v8708, 0
  %v8780 = vsel %vm72, %v8709, 0
  %8782 = vmatpush.msra.mxu0 0.0
  %8783 = vmatpush.msra.mxu0 0.0
  %8784 = vmatpush.msra.mxu0 0.0
  %8785 = vmatpush.msra.mxu0 0.0
  %8786 = vmatpush.msra.mxu0 0.0
  %8787 = vmatpush.msra.mxu0 0.0
  %8788 = vmatpush.msra.mxu0 0.0
  %8789 = vmatpush.msra.mxu0 0.0
  %8790 = vmatpush.msra.mxu0 0.0
  %8791 = vmatpush.msra.mxu0 0.0
  %8792 = vmatpush.msra.mxu0 0.0
  %8793 = vmatpush.msra.mxu0 0.0
  %8794 = vmatpush.msra.mxu0 %v53
  %8795 = vmatpush.msra.mxu0 %v52
  %8796 = vmatpush.msra.mxu0 %v51
  %8797 = vmatpush.msra.mxu0 %v50
  %8798 = vmatmul.f32.gmra.mxu0 %v8711
  %v8799 = vpop.f32.mrf.mxu0
  %v8800 = vadd.f32 0.0, %v8799
  %8801 = vmatmul.f32.gmra.mxu0 %v8714
  %v8802 = vpop.f32.mrf.mxu0
  %v8803 = vadd.f32 0.0, %v8802
  %8804 = vmatmul.f32.gmra.mxu0 %v8717
  %v8805 = vpop.f32.mrf.mxu0
  %v8806 = vadd.f32 0.0, %v8805
  %8807 = vmatmul.f32.gmra.mxu0 %v8720
  %v8808 = vpop.f32.mrf.mxu0
  %v8809 = vadd.f32 0.0, %v8808
  %8810 = vmatmul.f32.gmra.mxu0 %v8723
  %v8811 = vpop.f32.mrf.mxu0
  %v8812 = vadd.f32 0.0, %v8811
  %8813 = vmatmul.f32.gmra.mxu0 %v8726
  %v8814 = vpop.f32.mrf.mxu0
  %v8815 = vadd.f32 0.0, %v8814
  %8816 = vmatmul.f32.gmra.mxu0 %v8729
  %v8817 = vpop.f32.mrf.mxu0
  %v8818 = vadd.f32 0.0, %v8817
  %8819 = vmatmul.f32.gmra.mxu0 %v8732
  %v8820 = vpop.f32.mrf.mxu0
  %v8821 = vadd.f32 0.0, %v8820
  %8822 = vmatmul.f32.gmra.mxu0 %v8735
  %v8823 = vpop.f32.mrf.mxu0
  %v8824 = vadd.f32 0.0, %v8823
  %8825 = vmatmul.f32.gmra.mxu0 %v8738
  %v8826 = vpop.f32.mrf.mxu0
  %v8827 = vadd.f32 0.0, %v8826
  %8828 = vmatmul.f32.gmra.mxu0 %v8741
  %v8829 = vpop.f32.mrf.mxu0
  %v8830 = vadd.f32 0.0, %v8829
  %8831 = vmatmul.f32.gmra.mxu0 %v8744
  %v8832 = vpop.f32.mrf.mxu0
  %v8833 = vadd.f32 0.0, %v8832
  %8834 = vmatmul.f32.gmra.mxu0 %v8747
  %v8835 = vpop.f32.mrf.mxu0
  %v8836 = vadd.f32 0.0, %v8835
  %8837 = vmatmul.f32.gmra.mxu0 %v8750
  %v8838 = vpop.f32.mrf.mxu0
  %v8839 = vadd.f32 0.0, %v8838
  %8840 = vmatmul.f32.gmra.mxu0 %v8753
  %v8841 = vpop.f32.mrf.mxu0
  %v8842 = vadd.f32 0.0, %v8841
  %8843 = vmatmul.f32.gmra.mxu0 %v8756
  %v8844 = vpop.f32.mrf.mxu0
  %v8845 = vadd.f32 0.0, %v8844
  %8846 = vmatmul.f32.gmra.mxu0 %v8759
  %v8847 = vpop.f32.mrf.mxu0
  %v8848 = vadd.f32 0.0, %v8847
  %8849 = vmatmul.f32.gmra.mxu0 %v8762
  %v8850 = vpop.f32.mrf.mxu0
  %v8851 = vadd.f32 0.0, %v8850
  %8852 = vmatmul.f32.gmra.mxu0 %v8765
  %v8853 = vpop.f32.mrf.mxu0
  %v8854 = vadd.f32 0.0, %v8853
  %8855 = vmatmul.f32.gmra.mxu0 %v8768
  %v8856 = vpop.f32.mrf.mxu0
  %v8857 = vadd.f32 0.0, %v8856
  %8858 = vmatmul.f32.gmra.mxu0 %v8771
  %v8859 = vpop.f32.mrf.mxu0
  %v8860 = vadd.f32 0.0, %v8859
  %8861 = vmatmul.f32.gmra.mxu0 %v8774
  %v8862 = vpop.f32.mrf.mxu0
  %v8863 = vadd.f32 0.0, %v8862
  %8864 = vmatmul.f32.gmra.mxu0 %v8777
  %v8865 = vpop.f32.mrf.mxu0
  %v8866 = vadd.f32 0.0, %v8865
  %8867 = vmatmul.f32.gmra.mxu0 %v8780
  %v8868 = vpop.f32.mrf.mxu0
  %v8869 = vadd.f32 0.0, %v8868
  %8870 = vdwg.mxu0
  %v8871 = vmax.f32 %v8800, %v8824
  %v8872 = vmax.f32 %v8803, %v8827
  %v8873 = vmax.f32 %v8806, %v8830
  %v8874 = vmax.f32 %v8809, %v8833
  %v8875 = vmax.f32 %v8812, %v8836
  %v8876 = vmax.f32 %v8815, %v8839
  %v8877 = vmax.f32 %v8818, %v8842
  %v8878 = vmax.f32 %v8821, %v8845
  %v8879 = vmax.f32 %v8871, %v8848
  %v8880 = vmax.f32 %v8872, %v8851
  %v8881 = vmax.f32 %v8873, %v8854
  %v8882 = vmax.f32 %v8874, %v8857
  %v8883 = vmax.f32 %v8875, %v8860
  %v8884 = vmax.f32 %v8876, %v8863
  %v8885 = vmax.f32 %v8877, %v8866
  %v8886 = vmax.f32 %v8878, %v8869
  %v8887 = vsub.f32 %v8800, %v8879
  %v8888 = vsub.f32 %v8803, %v8880
  %v8889 = vsub.f32 %v8806, %v8881
  %v8890 = vsub.f32 %v8809, %v8882
  %v8891 = vsub.f32 %v8812, %v8883
  %v8892 = vsub.f32 %v8815, %v8884
  %v8893 = vsub.f32 %v8818, %v8885
  %v8894 = vsub.f32 %v8821, %v8886
  %v8895 = vmul.f32 %v8887, 1.442695
  %v8896 = vpow.pop %v8895
  %v8897 = vmul.f32 %v8888, 1.442695
  %v8898 = vpow.pop %v8897
  %v8899 = vmul.f32 %v8889, 1.442695
  %v8900 = vpow.pop %v8899
  %v8901 = vmul.f32 %v8890, 1.442695
  %v8902 = vpow.pop %v8901
  %v8903 = vmul.f32 %v8891, 1.442695
  %v8904 = vpow.pop %v8903
  %v8905 = vmul.f32 %v8892, 1.442695
  %v8906 = vpow.pop %v8905
  %v8907 = vmul.f32 %v8893, 1.442695
  %v8908 = vpow.pop %v8907
  %v8909 = vmul.f32 %v8894, 1.442695
  %v8910 = vpow.pop %v8909
  %v8911 = vsub.f32 %v8824, %v8879
  %v8912 = vsub.f32 %v8827, %v8880
  %v8913 = vsub.f32 %v8830, %v8881
  %v8914 = vsub.f32 %v8833, %v8882
  %v8915 = vsub.f32 %v8836, %v8883
  %v8916 = vsub.f32 %v8839, %v8884
  %v8917 = vsub.f32 %v8842, %v8885
  %v8918 = vsub.f32 %v8845, %v8886
  %v8919 = vmul.f32 %v8911, 1.442695
  %v8920 = vpow.pop %v8919
  %v8921 = vmul.f32 %v8912, 1.442695
  %v8922 = vpow.pop %v8921
  %v8923 = vmul.f32 %v8913, 1.442695
  %v8924 = vpow.pop %v8923
  %v8925 = vmul.f32 %v8914, 1.442695
  %v8926 = vpow.pop %v8925
  %v8927 = vmul.f32 %v8915, 1.442695
  %v8928 = vpow.pop %v8927
  %v8929 = vmul.f32 %v8916, 1.442695
  %v8930 = vpow.pop %v8929
  %v8931 = vmul.f32 %v8917, 1.442695
  %v8932 = vpow.pop %v8931
  %v8933 = vmul.f32 %v8918, 1.442695
  %v8934 = vpow.pop %v8933
  %v8935 = vsub.f32 %v8848, %v8879
  %v8936 = vsub.f32 %v8851, %v8880
  %v8937 = vsub.f32 %v8854, %v8881
  %v8938 = vsub.f32 %v8857, %v8882
  %v8939 = vsub.f32 %v8860, %v8883
  %v8940 = vsub.f32 %v8863, %v8884
  %v8941 = vsub.f32 %v8866, %v8885
  %v8942 = vsub.f32 %v8869, %v8886
  %v8943 = vmul.f32 %v8935, 1.442695
  %v8944 = vpow.pop %v8943
  %v8945 = vmul.f32 %v8936, 1.442695
  %v8946 = vpow.pop %v8945
  %v8947 = vmul.f32 %v8937, 1.442695
  %v8948 = vpow.pop %v8947
  %v8949 = vmul.f32 %v8938, 1.442695
  %v8950 = vpow.pop %v8949
  %v8951 = vmul.f32 %v8939, 1.442695
  %v8952 = vpow.pop %v8951
  %v8953 = vmul.f32 %v8940, 1.442695
  %v8954 = vpow.pop %v8953
  %v8955 = vmul.f32 %v8941, 1.442695
  %v8956 = vpow.pop %v8955
  %v8957 = vmul.f32 %v8942, 1.442695
  %v8958 = vpow.pop %v8957
  %v8959 = vadd.f32 %v8896, %v8920
  %v8960 = vadd.f32 %v8898, %v8922
  %v8961 = vadd.f32 %v8900, %v8924
  %v8962 = vadd.f32 %v8902, %v8926
  %v8963 = vadd.f32 %v8904, %v8928
  %v8964 = vadd.f32 %v8906, %v8930
  %v8965 = vadd.f32 %v8908, %v8932
  %v8966 = vadd.f32 %v8910, %v8934
  %v8967 = vadd.f32 %v8959, %v8944
  %v8968 = vadd.f32 %v8960, %v8946
  %v8969 = vadd.f32 %v8961, %v8948
  %v8970 = vadd.f32 %v8962, %v8950
  %v8971 = vadd.f32 %v8963, %v8952
  %v8972 = vadd.f32 %v8964, %v8954
  %v8973 = vadd.f32 %v8965, %v8956
  %v8974 = vadd.f32 %v8966, %v8958
  %v8975 = vrcp.pop %v8967
  %v8976 = vrcp.pop %v8968
  %v8977 = vrcp.pop %v8969
  %v8978 = vrcp.pop %v8970
  %v8979 = vrcp.pop %v8971
  %v8980 = vrcp.pop %v8972
  %v8981 = vrcp.pop %v8973
  %v8982 = vrcp.pop %v8974
  %v8983 = vmul.f32 %v8896, %v8975
  %v8984 = vmul.f32 %v8898, %v8976
  %v8985 = vmul.f32 %v8900, %v8977
  %v8986 = vmul.f32 %v8902, %v8978
  %v8987 = vmul.f32 %v8904, %v8979
  %v8988 = vmul.f32 %v8906, %v8980
  %v8989 = vmul.f32 %v8908, %v8981
  %v8990 = vmul.f32 %v8910, %v8982
  %v8991 = vld [vmem:[%s574] sm:$0xff]
  %v8992 = vld [vmem:[%s574 + $0x8] sm:$0xff]
  %v8993 = vld [vmem:[%s574 + $0x10] sm:$0xff]
  %v8994 = vld [vmem:[%s574 + $0x18] sm:$0xff]
  %v8995 = vld [vmem:[%s574 + $0x20] sm:$0xff]
  %v8996 = vld [vmem:[%s574 + $0x28] sm:$0xff]
  %v8997 = vld [vmem:[%s574 + $0x30] sm:$0xff]
  %v8998 = vld [vmem:[%s574 + $0x38] sm:$0xff]
  %v8999 = vmul.f32 %v8983, %v8991
  %v9000 = vmul.f32 %v8984, %v8992
  %v9001 = vmul.f32 %v8985, %v8993
  %v9002 = vmul.f32 %v8986, %v8994
  %v9003 = vmul.f32 %v8987, %v8995
  %v9004 = vmul.f32 %v8988, %v8996
  %v9005 = vmul.f32 %v8989, %v8997
  %v9006 = vmul.f32 %v8990, %v8998
  %v9007 = vmul.f32 %v8920, %v8975
  %v9008 = vmul.f32 %v8922, %v8976
  %v9009 = vmul.f32 %v8924, %v8977
  %v9010 = vmul.f32 %v8926, %v8978
  %v9011 = vmul.f32 %v8928, %v8979
  %v9012 = vmul.f32 %v8930, %v8980
  %v9013 = vmul.f32 %v8932, %v8981
  %v9014 = vmul.f32 %v8934, %v8982
  %v9015 = vld [vmem:[%s574 + $0x40] sm:$0xff]
  %v9016 = vld [vmem:[%s574 + $0x48] sm:$0xff]
  %v9017 = vld [vmem:[%s574 + $0x50] sm:$0xff]
  %v9018 = vld [vmem:[%s574 + $0x58] sm:$0xff]
  %v9019 = vld [vmem:[%s574 + $0x60] sm:$0xff]
  %v9020 = vld [vmem:[%s574 + $0x68] sm:$0xff]
  %v9021 = vld [vmem:[%s574 + $0x70] sm:$0xff]
  %v9022 = vld [vmem:[%s574 + $0x78] sm:$0xff]
  %v9023 = vmul.f32 %v9007, %v9015
  %v9024 = vmul.f32 %v9008, %v9016
  %v9025 = vmul.f32 %v9009, %v9017
  %v9026 = vmul.f32 %v9010, %v9018
  %v9027 = vmul.f32 %v9011, %v9019
  %v9028 = vmul.f32 %v9012, %v9020
  %v9029 = vmul.f32 %v9013, %v9021
  %v9030 = vmul.f32 %v9014, %v9022
  %v9031 = vadd.f32 %v8999, %v9023
  %v9032 = vadd.f32 %v9000, %v9024
  %v9033 = vadd.f32 %v9001, %v9025
  %v9034 = vadd.f32 %v9002, %v9026
  %v9035 = vadd.f32 %v9003, %v9027
  %v9036 = vadd.f32 %v9004, %v9028
  %v9037 = vadd.f32 %v9005, %v9029
  %v9038 = vadd.f32 %v9006, %v9030
  %v9039 = vmul.f32 %v8944, %v8975
  %v9040 = vmul.f32 %v8946, %v8976
  %v9041 = vmul.f32 %v8948, %v8977
  %v9042 = vmul.f32 %v8950, %v8978
  %v9043 = vmul.f32 %v8952, %v8979
  %v9044 = vmul.f32 %v8954, %v8980
  %v9045 = vmul.f32 %v8956, %v8981
  %v9046 = vmul.f32 %v8958, %v8982
  %v9047 = vld [vmem:[%s574 + $0x80] sm:$0xff]
  %v9048 = vld [vmem:[%s574 + $0x88] sm:$0xff]
  %v9049 = vld [vmem:[%s574 + $0x90] sm:$0xff]
  %v9050 = vld [vmem:[%s574 + $0x98] sm:$0xff]
  %v9051 = vld [vmem:[%s574 + $0xa0] sm:$0xff]
  %v9052 = vld [vmem:[%s574 + $0xa8] sm:$0xff]
  %v9053 = vld [vmem:[%s574 + $0xb0] sm:$0xff]
  %v9054 = vld [vmem:[%s574 + $0xb8] sm:$0xff]
  %v9055 = vmul.f32 %v9039, %v9047
  %v9056 = vmul.f32 %v9040, %v9048
  %v9057 = vmul.f32 %v9041, %v9049
  %v9058 = vmul.f32 %v9042, %v9050
  %v9059 = vmul.f32 %v9043, %v9051
  %v9060 = vmul.f32 %v9044, %v9052
  %v9061 = vmul.f32 %v9045, %v9053
  %v9062 = vmul.f32 %v9046, %v9054
  %v9063 = vadd.f32 %v9031, %v9055
  %v9064 = vadd.f32 %v9032, %v9056
  %v9065 = vadd.f32 %v9033, %v9057
  %v9066 = vadd.f32 %v9034, %v9058
  %v9067 = vadd.f32 %v9035, %v9059
  %v9068 = vadd.f32 %v9036, %v9060
  %v9069 = vadd.f32 %v9037, %v9061
  %v9070 = vadd.f32 %v9038, %v9062
  %9071 = vst.msk [vmem:[#allocation4 + $0x80] sm:$0xff] %vm72, %v9063
  %9072 = vst.msk [vmem:[#allocation4 + $0x88] sm:$0xff] %vm72, %v9064
  %9073 = vst.msk [vmem:[#allocation4 + $0x90] sm:$0xff] %vm72, %v9065
  %9074 = vst.msk [vmem:[#allocation4 + $0x98] sm:$0xff] %vm72, %v9066
  %9075 = vst.msk [vmem:[#allocation4 + $0xa0] sm:$0xff] %vm72, %v9067
  %9076 = vst.msk [vmem:[#allocation4 + $0xa8] sm:$0xff] %vm72, %v9068
  %9077 = vst.msk [vmem:[#allocation4 + $0xb0] sm:$0xff] %vm72, %v9069
  %9078 = vst.msk [vmem:[#allocation4 + $0xb8] sm:$0xff] %vm72, %v9070
  %v9079 = vld [vmem:[#allocation4] sm:$0xff]
  %v9080 = vld [vmem:[#allocation4 + $0x8] sm:$0xff]
  %v9081 = vld [vmem:[#allocation4 + $0x10] sm:$0xff]
  %v9082 = vld [vmem:[#allocation4 + $0x18] sm:$0xff]
  %v9083 = vld [vmem:[#allocation4 + $0x20] sm:$0xff]
  %v9084 = vld [vmem:[#allocation4 + $0x28] sm:$0xff]
  %v9085 = vld [vmem:[#allocation4 + $0x30] sm:$0xff]
  %v9086 = vld [vmem:[#allocation4 + $0x38] sm:$0xff]
  %v9087 = vld [vmem:[#allocation4 + $0x40] sm:$0xff]
  %v9088 = vld [vmem:[#allocation4 + $0x48] sm:$0xff]
  %v9089 = vld [vmem:[#allocation4 + $0x50] sm:$0xff]
  %v9090 = vld [vmem:[#allocation4 + $0x58] sm:$0xff]
  %v9091 = vld [vmem:[#allocation4 + $0x60] sm:$0xff]
  %v9092 = vld [vmem:[#allocation4 + $0x68] sm:$0xff]
  %v9093 = vld [vmem:[#allocation4 + $0x70] sm:$0xff]
  %v9094 = vld [vmem:[#allocation4 + $0x78] sm:$0xff]
  %v9095 = vld [vmem:[#allocation4 + $0x80] sm:$0xff]
  %v9096 = vld [vmem:[#allocation4 + $0x88] sm:$0xff]
  %v9097 = vld [vmem:[#allocation4 + $0x90] sm:$0xff]
  %v9098 = vld [vmem:[#allocation4 + $0x98] sm:$0xff]
  %v9099 = vld [vmem:[#allocation4 + $0xa0] sm:$0xff]
  %v9100 = vld [vmem:[#allocation4 + $0xa8] sm:$0xff]
  %v9101 = vld [vmem:[#allocation4 + $0xb0] sm:$0xff]
  %v9102 = vld [vmem:[#allocation4 + $0xb8] sm:$0xff]
  %v9104 = vperm.slane %v7341, 0
  %v9107 = vsel %vm72, %v9079, 0
  %v9110 = vsel %vm72, %v9080, 0
  %v9113 = vsel %vm72, %v9081, 0
  %v9116 = vsel %vm72, %v9082, 0
  %v9119 = vsel %vm72, %v9083, 0
  %v9122 = vsel %vm72, %v9084, 0
  %v9125 = vsel %vm72, %v9085, 0
  %v9128 = vsel %vm72, %v9086, 0
  %v9131 = vsel %vm72, %v9087, 0
  %v9134 = vsel %vm72, %v9088, 0
  %v9137 = vsel %vm72, %v9089, 0
  %v9140 = vsel %vm72, %v9090, 0
  %v9143 = vsel %vm72, %v9091, 0
  %v9146 = vsel %vm72, %v9092, 0
  %v9149 = vsel %vm72, %v9093, 0
  %v9152 = vsel %vm72, %v9094, 0
  %v9155 = vsel %vm72, %v9095, 0
  %v9158 = vsel %vm72, %v9096, 0
  %v9161 = vsel %vm72, %v9097, 0
  %v9164 = vsel %vm72, %v9098, 0
  %v9167 = vsel %vm72, %v9099, 0
  %v9170 = vsel %vm72, %v9100, 0
  %v9173 = vsel %vm72, %v9101, 0
  %v9176 = vsel %vm72, %v9102, 0
  %9178 = vmatpush.msra.mxu0 0.0
  %9179 = vmatpush.msra.mxu0 0.0
  %9180 = vmatpush.msra.mxu0 0.0
  %9181 = vmatpush.msra.mxu0 0.0
  %9182 = vmatpush.msra.mxu0 0.0
  %9183 = vmatpush.msra.mxu0 0.0
  %9184 = vmatpush.msra.mxu0 0.0
  %9185 = vmatpush.msra.mxu0 0.0
  %9186 = vmatpush.msra.mxu0 0.0
  %9187 = vmatpush.msra.mxu0 0.0
  %9188 = vmatpush.msra.mxu0 0.0
  %9189 = vmatpush.msra.mxu0 0.0
  %9190 = vmatpush.msra.mxu0 %v7339
  %9191 = vmatpush.msra.mxu0 %v7338
  %9192 = vmatpush.msra.mxu0 %v7337
  %9193 = vmatpush.msra.mxu0 %v7336
  %9194 = vmatmul.f32.gmra.mxu0 %v9107
  %v9195 = vpop.f32.mrf.mxu0
  %v9196 = vadd.f32 %v9104, %v9195
  %9197 = vmatmul.f32.gmra.mxu0 %v9110
  %v9198 = vpop.f32.mrf.mxu0
  %v9199 = vadd.f32 %v9104, %v9198
  %9200 = vmatmul.f32.gmra.mxu0 %v9113
  %v9201 = vpop.f32.mrf.mxu0
  %v9202 = vadd.f32 %v9104, %v9201
  %9203 = vmatmul.f32.gmra.mxu0 %v9116
  %v9204 = vpop.f32.mrf.mxu0
  %v9205 = vadd.f32 %v9104, %v9204
  %9206 = vmatmul.f32.gmra.mxu0 %v9119
  %v9207 = vpop.f32.mrf.mxu0
  %v9208 = vadd.f32 %v9104, %v9207
  %9209 = vmatmul.f32.gmra.mxu0 %v9122
  %v9210 = vpop.f32.mrf.mxu0
  %v9211 = vadd.f32 %v9104, %v9210
  %9212 = vmatmul.f32.gmra.mxu0 %v9125
  %v9213 = vpop.f32.mrf.mxu0
  %v9214 = vadd.f32 %v9104, %v9213
  %9215 = vmatmul.f32.gmra.mxu0 %v9128
  %v9216 = vpop.f32.mrf.mxu0
  %v9217 = vadd.f32 %v9104, %v9216
  %9218 = vmatmul.f32.gmra.mxu0 %v9131
  %v9219 = vpop.f32.mrf.mxu0
  %v9220 = vadd.f32 %v9104, %v9219
  %9221 = vmatmul.f32.gmra.mxu0 %v9134
  %v9222 = vpop.f32.mrf.mxu0
  %v9223 = vadd.f32 %v9104, %v9222
  %9224 = vmatmul.f32.gmra.mxu0 %v9137
  %v9225 = vpop.f32.mrf.mxu0
  %v9226 = vadd.f32 %v9104, %v9225
  %9227 = vmatmul.f32.gmra.mxu0 %v9140
  %v9228 = vpop.f32.mrf.mxu0
  %v9229 = vadd.f32 %v9104, %v9228
  %9230 = vmatmul.f32.gmra.mxu0 %v9143
  %v9231 = vpop.f32.mrf.mxu0
  %v9232 = vadd.f32 %v9104, %v9231
  %9233 = vmatmul.f32.gmra.mxu0 %v9146
  %v9234 = vpop.f32.mrf.mxu0
  %v9235 = vadd.f32 %v9104, %v9234
  %9236 = vmatmul.f32.gmra.mxu0 %v9149
  %v9237 = vpop.f32.mrf.mxu0
  %v9238 = vadd.f32 %v9104, %v9237
  %9239 = vmatmul.f32.gmra.mxu0 %v9152
  %v9240 = vpop.f32.mrf.mxu0
  %v9241 = vadd.f32 %v9104, %v9240
  %9242 = vmatmul.f32.gmra.mxu0 %v9155
  %v9243 = vpop.f32.mrf.mxu0
  %v9244 = vadd.f32 %v9104, %v9243
  %9245 = vmatmul.f32.gmra.mxu0 %v9158
  %v9246 = vpop.f32.mrf.mxu0
  %v9247 = vadd.f32 %v9104, %v9246
  %9248 = vmatmul.f32.gmra.mxu0 %v9161
  %v9249 = vpop.f32.mrf.mxu0
  %v9250 = vadd.f32 %v9104, %v9249
  %9251 = vmatmul.f32.gmra.mxu0 %v9164
  %v9252 = vpop.f32.mrf.mxu0
  %v9253 = vadd.f32 %v9104, %v9252
  %9254 = vmatmul.f32.gmra.mxu0 %v9167
  %v9255 = vpop.f32.mrf.mxu0
  %v9256 = vadd.f32 %v9104, %v9255
  %9257 = vmatmul.f32.gmra.mxu0 %v9170
  %v9258 = vpop.f32.mrf.mxu0
  %v9259 = vadd.f32 %v9104, %v9258
  %9260 = vmatmul.f32.gmra.mxu0 %v9173
  %v9261 = vpop.f32.mrf.mxu0
  %v9262 = vadd.f32 %v9104, %v9261
  %9263 = vmatmul.f32.gmra.mxu0 %v9176
  %v9264 = vpop.f32.mrf.mxu0
  %v9265 = vadd.f32 %v9104, %v9264
  %9266 = vdwg.mxu0
  %v9267 = vld [vmem:[#allocation2] sm:$0xff]
  %v9268 = vld [vmem:[#allocation2 + $0x8] sm:$0xff]
  %v9269 = vld [vmem:[#allocation2 + $0x10] sm:$0xff]
  %v9270 = vld [vmem:[#allocation2 + $0x18] sm:$0xff]
  %v9271 = vld [vmem:[#allocation2 + $0x20] sm:$0xff]
  %v9272 = vld [vmem:[#allocation2 + $0x28] sm:$0xff]
  %v9273 = vld [vmem:[#allocation2 + $0x30] sm:$0xff]
  %v9274 = vld [vmem:[#allocation2 + $0x38] sm:$0xff]
  %v9275 = vld [vmem:[#allocation2 + $0x40] sm:$0xff]
  %v9276 = vld [vmem:[#allocation2 + $0x48] sm:$0xff]
  %v9277 = vld [vmem:[#allocation2 + $0x50] sm:$0xff]
  %v9278 = vld [vmem:[#allocation2 + $0x58] sm:$0xff]
  %v9279 = vld [vmem:[#allocation2 + $0x60] sm:$0xff]
  %v9280 = vld [vmem:[#allocation2 + $0x68] sm:$0xff]
  %v9281 = vld [vmem:[#allocation2 + $0x70] sm:$0xff]
  %v9282 = vld [vmem:[#allocation2 + $0x78] sm:$0xff]
  %v9283 = vld [vmem:[#allocation2 + $0x80] sm:$0xff]
  %v9284 = vld [vmem:[#allocation2 + $0x88] sm:$0xff]
  %v9285 = vld [vmem:[#allocation2 + $0x90] sm:$0xff]
  %v9286 = vld [vmem:[#allocation2 + $0x98] sm:$0xff]
  %v9287 = vld [vmem:[#allocation2 + $0xa0] sm:$0xff]
  %v9288 = vld [vmem:[#allocation2 + $0xa8] sm:$0xff]
  %v9289 = vld [vmem:[#allocation2 + $0xb0] sm:$0xff]
  %v9290 = vld [vmem:[#allocation2 + $0xb8] sm:$0xff]
  %v9291 = vadd.f32 %v9267, %v9196
  %v9292 = vadd.f32 %v9268, %v9199
  %v9293 = vadd.f32 %v9269, %v9202
  %v9294 = vadd.f32 %v9270, %v9205
  %v9295 = vadd.f32 %v9271, %v9208
  %v9296 = vadd.f32 %v9272, %v9211
  %v9297 = vadd.f32 %v9273, %v9214
  %v9298 = vadd.f32 %v9274, %v9217
  %v9299 = vadd.f32 %v9275, %v9220
  %v9300 = vadd.f32 %v9276, %v9223
  %v9301 = vadd.f32 %v9277, %v9226
  %v9302 = vadd.f32 %v9278, %v9229
  %v9303 = vadd.f32 %v9279, %v9232
  %v9304 = vadd.f32 %v9280, %v9235
  %v9305 = vadd.f32 %v9281, %v9238
  %v9306 = vadd.f32 %v9282, %v9241
  %v9307 = vadd.f32 %v9283, %v9244
  %v9308 = vadd.f32 %v9284, %v9247
  %v9309 = vadd.f32 %v9285, %v9250
  %v9310 = vadd.f32 %v9286, %v9253
  %v9311 = vadd.f32 %v9287, %v9256
  %v9312 = vadd.f32 %v9288, %v9259
  %v9313 = vadd.f32 %v9289, %v9262
  %v9314 = vadd.f32 %v9290, %v9265
  %v9315 = vsel %vm72, %v9291, 0.0
  %9316 = vadd.xlane.f32.xlu0 %v9315
  %v9317 = vpop.xlane.xlu0 %9316
  %v9318 = vsel %vm72, %v9292, 0.0
  %9319 = vadd.xlane.f32.xlu0 %v9318
  %v9320 = vpop.xlane.xlu0 %9319
  %v9321 = vsel %vm72, %v9293, 0.0
  %9322 = vadd.xlane.f32.xlu0 %v9321
  %v9323 = vpop.xlane.xlu0 %9322
  %v9324 = vsel %vm72, %v9294, 0.0
  %9325 = vadd.xlane.f32.xlu0 %v9324
  %v9326 = vpop.xlane.xlu0 %9325
  %v9327 = vsel %vm72, %v9295, 0.0
  %9328 = vadd.xlane.f32.xlu0 %v9327
  %v9329 = vpop.xlane.xlu0 %9328
  %v9330 = vsel %vm72, %v9296, 0.0
  %9331 = vadd.xlane.f32.xlu0 %v9330
  %v9332 = vpop.xlane.xlu0 %9331
  %v9333 = vsel %vm72, %v9297, 0.0
  %9334 = vadd.xlane.f32.xlu0 %v9333
  %v9335 = vpop.xlane.xlu0 %9334
  %v9336 = vsel %vm72, %v9298, 0.0
  %9337 = vadd.xlane.f32.xlu0 %v9336
  %v9338 = vpop.xlane.xlu0 %9337
  %v9339 = vsel %vm72, %v9299, 0.0
  %9340 = vadd.xlane.f32.xlu0 %v9339
  %v9341 = vpop.xlane.xlu0 %9340
  %v9342 = vsel %vm72, %v9300, 0.0
  %9343 = vadd.xlane.f32.xlu0 %v9342
  %v9344 = vpop.xlane.xlu0 %9343
  %v9345 = vsel %vm72, %v9301, 0.0
  %9346 = vadd.xlane.f32.xlu0 %v9345
  %v9347 = vpop.xlane.xlu0 %9346
  %v9348 = vsel %vm72, %v9302, 0.0
  %9349 = vadd.xlane.f32.xlu0 %v9348
  %v9350 = vpop.xlane.xlu0 %9349
  %v9351 = vsel %vm72, %v9303, 0.0
  %9352 = vadd.xlane.f32.xlu0 %v9351
  %v9353 = vpop.xlane.xlu0 %9352
  %v9354 = vsel %vm72, %v9304, 0.0
  %9355 = vadd.xlane.f32.xlu0 %v9354
  %v9356 = vpop.xlane.xlu0 %9355
  %v9357 = vsel %vm72, %v9305, 0.0
  %9358 = vadd.xlane.f32.xlu0 %v9357
  %v9359 = vpop.xlane.xlu0 %9358
  %v9360 = vsel %vm72, %v9306, 0.0
  %9361 = vadd.xlane.f32.xlu0 %v9360
  %v9362 = vpop.xlane.xlu0 %9361
  %v9363 = vsel %vm72, %v9307, 0.0
  %9364 = vadd.xlane.f32.xlu0 %v9363
  %v9365 = vpop.xlane.xlu0 %9364
  %v9366 = vsel %vm72, %v9308, 0.0
  %9367 = vadd.xlane.f32.xlu0 %v9366
  %v9368 = vpop.xlane.xlu0 %9367
  %v9369 = vsel %vm72, %v9309, 0.0
  %9370 = vadd.xlane.f32.xlu0 %v9369
  %v9371 = vpop.xlane.xlu0 %9370
  %v9372 = vsel %vm72, %v9310, 0.0
  %9373 = vadd.xlane.f32.xlu0 %v9372
  %v9374 = vpop.xlane.xlu0 %9373
  %v9375 = vsel %vm72, %v9311, 0.0
  %9376 = vadd.xlane.f32.xlu0 %v9375
  %v9377 = vpop.xlane.xlu0 %9376
  %v9378 = vsel %vm72, %v9312, 0.0
  %9379 = vadd.xlane.f32.xlu0 %v9378
  %v9380 = vpop.xlane.xlu0 %9379
  %v9381 = vsel %vm72, %v9313, 0.0
  %9382 = vadd.xlane.f32.xlu0 %v9381
  %v9383 = vpop.xlane.xlu0 %9382
  %v9384 = vsel %vm72, %v9314, 0.0
  %9385 = vadd.xlane.f32.xlu0 %v9384
  %v9386 = vpop.xlane.xlu0 %9385
  %v9387 = vmul.f32 %v9317, %v2188
  %v9388 = vmul.f32 %v9320, %v2188
  %v9389 = vmul.f32 %v9323, %v2188
  %v9390 = vmul.f32 %v9326, %v2188
  %v9391 = vmul.f32 %v9329, %v2188
  %v9392 = vmul.f32 %v9332, %v2188
  %v9393 = vmul.f32 %v9335, %v2188
  %v9394 = vmul.f32 %v9338, %v2188
  %v9395 = vmul.f32 %v9341, %v2188
  %v9396 = vmul.f32 %v9344, %v2188
  %v9397 = vmul.f32 %v9347, %v2188
  %v9398 = vmul.f32 %v9350, %v2188
  %v9399 = vmul.f32 %v9353, %v2188
  %v9400 = vmul.f32 %v9356, %v2188
  %v9401 = vmul.f32 %v9359, %v2188
  %v9402 = vmul.f32 %v9362, %v2188
  %v9403 = vmul.f32 %v9365, %v2188
  %v9404 = vmul.f32 %v9368, %v2188
  %v9405 = vmul.f32 %v9371, %v2188
  %v9406 = vmul.f32 %v9374, %v2188
  %v9407 = vmul.f32 %v9377, %v2188
  %v9408 = vmul.f32 %v9380, %v2188
  %v9409 = vmul.f32 %v9383, %v2188
  %v9410 = vmul.f32 %v9386, %v2188
  %v9411 = vsub.f32 %v9291, %v9387
  %v9412 = vsub.f32 %v9292, %v9388
  %v9413 = vsub.f32 %v9293, %v9389
  %v9414 = vsub.f32 %v9294, %v9390
  %v9415 = vsub.f32 %v9295, %v9391
  %v9416 = vsub.f32 %v9296, %v9392
  %v9417 = vsub.f32 %v9297, %v9393
  %v9418 = vsub.f32 %v9298, %v9394
  %v9419 = vsub.f32 %v9299, %v9395
  %v9420 = vsub.f32 %v9300, %v9396
  %v9421 = vsub.f32 %v9301, %v9397
  %v9422 = vsub.f32 %v9302, %v9398
  %v9423 = vsub.f32 %v9303, %v9399
  %v9424 = vsub.f32 %v9304, %v9400
  %v9425 = vsub.f32 %v9305, %v9401
  %v9426 = vsub.f32 %v9306, %v9402
  %v9427 = vsub.f32 %v9307, %v9403
  %v9428 = vsub.f32 %v9308, %v9404
  %v9429 = vsub.f32 %v9309, %v9405
  %v9430 = vsub.f32 %v9310, %v9406
  %v9431 = vsub.f32 %v9311, %v9407
  %v9432 = vsub.f32 %v9312, %v9408
  %v9433 = vsub.f32 %v9313, %v9409
  %v9434 = vsub.f32 %v9314, %v9410
  %v9435 = vmul.f32 %v9411, %v9411
  %v9436 = vmul.f32 %v9412, %v9412
  %v9437 = vmul.f32 %v9413, %v9413
  %v9438 = vmul.f32 %v9414, %v9414
  %v9439 = vmul.f32 %v9415, %v9415
  %v9440 = vmul.f32 %v9416, %v9416
  %v9441 = vmul.f32 %v9417, %v9417
  %v9442 = vmul.f32 %v9418, %v9418
  %v9443 = vmul.f32 %v9419, %v9419
  %v9444 = vmul.f32 %v9420, %v9420
  %v9445 = vmul.f32 %v9421, %v9421
  %v9446 = vmul.f32 %v9422, %v9422
  %v9447 = vmul.f32 %v9423, %v9423
  %v9448 = vmul.f32 %v9424, %v9424
  %v9449 = vmul.f32 %v9425, %v9425
  %v9450 = vmul.f32 %v9426, %v9426
  %v9451 = vmul.f32 %v9427, %v9427
  %v9452 = vmul.f32 %v9428, %v9428
  %v9453 = vmul.f32 %v9429, %v9429
  %v9454 = vmul.f32 %v9430, %v9430
  %v9455 = vmul.f32 %v9431, %v9431
  %v9456 = vmul.f32 %v9432, %v9432
  %v9457 = vmul.f32 %v9433, %v9433
  %v9458 = vmul.f32 %v9434, %v9434
  %v9459 = vsel %vm72, %v9435, 0.0
  %9460 = vadd.xlane.f32.xlu0 %v9459
  %v9461 = vpop.xlane.xlu0 %9460
  %v9462 = vsel %vm72, %v9436, 0.0
  %9463 = vadd.xlane.f32.xlu0 %v9462
  %v9464 = vpop.xlane.xlu0 %9463
  %v9465 = vsel %vm72, %v9437, 0.0
  %9466 = vadd.xlane.f32.xlu0 %v9465
  %v9467 = vpop.xlane.xlu0 %9466
  %v9468 = vsel %vm72, %v9438, 0.0
  %9469 = vadd.xlane.f32.xlu0 %v9468
  %v9470 = vpop.xlane.xlu0 %9469
  %v9471 = vsel %vm72, %v9439, 0.0
  %9472 = vadd.xlane.f32.xlu0 %v9471
  %v9473 = vpop.xlane.xlu0 %9472
  %v9474 = vsel %vm72, %v9440, 0.0
  %9475 = vadd.xlane.f32.xlu0 %v9474
  %v9476 = vpop.xlane.xlu0 %9475
  %v9477 = vsel %vm72, %v9441, 0.0
  %9478 = vadd.xlane.f32.xlu0 %v9477
  %v9479 = vpop.xlane.xlu0 %9478
  %v9480 = vsel %vm72, %v9442, 0.0
  %9481 = vadd.xlane.f32.xlu0 %v9480
  %v9482 = vpop.xlane.xlu0 %9481
  %v9483 = vsel %vm72, %v9443, 0.0
  %9484 = vadd.xlane.f32.xlu0 %v9483
  %v9485 = vpop.xlane.xlu0 %9484
  %v9486 = vsel %vm72, %v9444, 0.0
  %9487 = vadd.xlane.f32.xlu0 %v9486
  %v9488 = vpop.xlane.xlu0 %9487
  %v9489 = vsel %vm72, %v9445, 0.0
  %9490 = vadd.xlane.f32.xlu0 %v9489
  %v9491 = vpop.xlane.xlu0 %9490
  %v9492 = vsel %vm72, %v9446, 0.0
  %9493 = vadd.xlane.f32.xlu0 %v9492
  %v9494 = vpop.xlane.xlu0 %9493
  %v9495 = vsel %vm72, %v9447, 0.0
  %9496 = vadd.xlane.f32.xlu0 %v9495
  %v9497 = vpop.xlane.xlu0 %9496
  %v9498 = vsel %vm72, %v9448, 0.0
  %9499 = vadd.xlane.f32.xlu0 %v9498
  %v9500 = vpop.xlane.xlu0 %9499
  %v9501 = vsel %vm72, %v9449, 0.0
  %9502 = vadd.xlane.f32.xlu0 %v9501
  %v9503 = vpop.xlane.xlu0 %9502
  %v9504 = vsel %vm72, %v9450, 0.0
  %9505 = vadd.xlane.f32.xlu0 %v9504
  %v9506 = vpop.xlane.xlu0 %9505
  %v9507 = vsel %vm72, %v9451, 0.0
  %9508 = vadd.xlane.f32.xlu0 %v9507
  %v9509 = vpop.xlane.xlu0 %9508
  %v9510 = vsel %vm72, %v9452, 0.0
  %9511 = vadd.xlane.f32.xlu0 %v9510
  %v9512 = vpop.xlane.xlu0 %9511
  %v9513 = vsel %vm72, %v9453, 0.0
  %9514 = vadd.xlane.f32.xlu0 %v9513
  %v9515 = vpop.xlane.xlu0 %9514
  %v9516 = vsel %vm72, %v9454, 0.0
  %9517 = vadd.xlane.f32.xlu0 %v9516
  %v9518 = vpop.xlane.xlu0 %9517
  %v9519 = vsel %vm72, %v9455, 0.0
  %9520 = vadd.xlane.f32.xlu0 %v9519
  %v9521 = vpop.xlane.xlu0 %9520
  %v9522 = vsel %vm72, %v9456, 0.0
  %9523 = vadd.xlane.f32.xlu0 %v9522
  %v9524 = vpop.xlane.xlu0 %9523
  %v9525 = vsel %vm72, %v9457, 0.0
  %9526 = vadd.xlane.f32.xlu0 %v9525
  %v9527 = vpop.xlane.xlu0 %9526
  %v9528 = vsel %vm72, %v9458, 0.0
  %9529 = vadd.xlane.f32.xlu0 %v9528
  %v9530 = vpop.xlane.xlu0 %9529
  %v9531 = vmul.f32 %v9461, %v2188
  %v9532 = vmul.f32 %v9464, %v2188
  %v9533 = vmul.f32 %v9467, %v2188
  %v9534 = vmul.f32 %v9470, %v2188
  %v9535 = vmul.f32 %v9473, %v2188
  %v9536 = vmul.f32 %v9476, %v2188
  %v9537 = vmul.f32 %v9479, %v2188
  %v9538 = vmul.f32 %v9482, %v2188
  %v9539 = vmul.f32 %v9485, %v2188
  %v9540 = vmul.f32 %v9488, %v2188
  %v9541 = vmul.f32 %v9491, %v2188
  %v9542 = vmul.f32 %v9494, %v2188
  %v9543 = vmul.f32 %v9497, %v2188
  %v9544 = vmul.f32 %v9500, %v2188
  %v9545 = vmul.f32 %v9503, %v2188
  %v9546 = vmul.f32 %v9506, %v2188
  %v9547 = vmul.f32 %v9509, %v2188
  %v9548 = vmul.f32 %v9512, %v2188
  %v9549 = vmul.f32 %v9515, %v2188
  %v9550 = vmul.f32 %v9518, %v2188
  %v9551 = vmul.f32 %v9521, %v2188
  %v9552 = vmul.f32 %v9524, %v2188
  %v9553 = vmul.f32 %v9527, %v2188
  %v9554 = vmul.f32 %v9530, %v2188
  %v9555 = vadd.f32 %v9531, 1e-05
  %v9556 = vadd.f32 %v9532, 1e-05
  %v9557 = vadd.f32 %v9533, 1e-05
  %v9558 = vadd.f32 %v9534, 1e-05
  %v9559 = vadd.f32 %v9535, 1e-05
  %v9560 = vadd.f32 %v9536, 1e-05
  %v9561 = vadd.f32 %v9537, 1e-05
  %v9562 = vadd.f32 %v9538, 1e-05
  %v9563 = vadd.f32 %v9539, 1e-05
  %v9564 = vadd.f32 %v9540, 1e-05
  %v9565 = vadd.f32 %v9541, 1e-05
  %v9566 = vadd.f32 %v9542, 1e-05
  %v9567 = vadd.f32 %v9543, 1e-05
  %v9568 = vadd.f32 %v9544, 1e-05
  %v9569 = vadd.f32 %v9545, 1e-05
  %v9570 = vadd.f32 %v9546, 1e-05
  %v9571 = vadd.f32 %v9547, 1e-05
  %v9572 = vadd.f32 %v9548, 1e-05
  %v9573 = vadd.f32 %v9549, 1e-05
  %v9574 = vadd.f32 %v9550, 1e-05
  %v9575 = vadd.f32 %v9551, 1e-05
  %v9576 = vadd.f32 %v9552, 1e-05
  %v9577 = vadd.f32 %v9553, 1e-05
  %v9578 = vadd.f32 %v9554, 1e-05
  %v9579 = vrsqrt.pop %v9555
  %v9580 = vmul.f32 %v9579, %v9555
  %v9581 = vmul.f32 %v9580, %v9579
  %v9582 = vmul.f32 0.5, %v9581
  %v9583 = vsub.f32 1.5, %v9582
  %v9584 = vmul.f32 %v9579, %v9583
  %vm9585 = vweird.f32 %v9555
  %vm9586 = vweird.f32 %v9579
  %vm9587 = vmor %vm9585, %vm9586
  %v9588 = vsel %vm9587, %v9579, %v9584
  %v9589 = vrsqrt.pop %v9556
  %v9590 = vmul.f32 %v9589, %v9556
  %v9591 = vmul.f32 %v9590, %v9589
  %v9592 = vmul.f32 0.5, %v9591
  %v9593 = vsub.f32 1.5, %v9592
  %v9594 = vmul.f32 %v9589, %v9593
  %vm9595 = vweird.f32 %v9556
  %vm9596 = vweird.f32 %v9589
  %vm9597 = vmor %vm9595, %vm9596
  %v9598 = vsel %vm9597, %v9589, %v9594
  %v9599 = vrsqrt.pop %v9557
  %v9600 = vmul.f32 %v9599, %v9557
  %v9601 = vmul.f32 %v9600, %v9599
  %v9602 = vmul.f32 0.5, %v9601
  %v9603 = vsub.f32 1.5, %v9602
  %v9604 = vmul.f32 %v9599, %v9603
  %vm9605 = vweird.f32 %v9557
  %vm9606 = vweird.f32 %v9599
  %vm9607 = vmor %vm9605, %vm9606
  %v9608 = vsel %vm9607, %v9599, %v9604
  %v9609 = vrsqrt.pop %v9558
  %v9610 = vmul.f32 %v9609, %v9558
  %v9611 = vmul.f32 %v9610, %v9609
  %v9612 = vmul.f32 0.5, %v9611
  %v9613 = vsub.f32 1.5, %v9612
  %v9614 = vmul.f32 %v9609, %v9613
  %vm9615 = vweird.f32 %v9558
  %vm9616 = vweird.f32 %v9609
  %vm9617 = vmor %vm9615, %vm9616
  %v9618 = vsel %vm9617, %v9609, %v9614
  %v9619 = vrsqrt.pop %v9559
  %v9620 = vmul.f32 %v9619, %v9559
  %v9621 = vmul.f32 %v9620, %v9619
  %v9622 = vmul.f32 0.5, %v9621
  %v9623 = vsub.f32 1.5, %v9622
  %v9624 = vmul.f32 %v9619, %v9623
  %vm9625 = vweird.f32 %v9559
  %vm9626 = vweird.f32 %v9619
  %vm9627 = vmor %vm9625, %vm9626
  %v9628 = vsel %vm9627, %v9619, %v9624
  %v9629 = vrsqrt.pop %v9560
  %v9630 = vmul.f32 %v9629, %v9560
  %v9631 = vmul.f32 %v9630, %v9629
  %v9632 = vmul.f32 0.5, %v9631
  %v9633 = vsub.f32 1.5, %v9632
  %v9634 = vmul.f32 %v9629, %v9633
  %vm9635 = vweird.f32 %v9560
  %vm9636 = vweird.f32 %v9629
  %vm9637 = vmor %vm9635, %vm9636
  %v9638 = vsel %vm9637, %v9629, %v9634
  %v9639 = vrsqrt.pop %v9561
  %v9640 = vmul.f32 %v9639, %v9561
  %v9641 = vmul.f32 %v9640, %v9639
  %v9642 = vmul.f32 0.5, %v9641
  %v9643 = vsub.f32 1.5, %v9642
  %v9644 = vmul.f32 %v9639, %v9643
  %vm9645 = vweird.f32 %v9561
  %vm9646 = vweird.f32 %v9639
  %vm9647 = vmor %vm9645, %vm9646
  %v9648 = vsel %vm9647, %v9639, %v9644
  %v9649 = vrsqrt.pop %v9562
  %v9650 = vmul.f32 %v9649, %v9562
  %v9651 = vmul.f32 %v9650, %v9649
  %v9652 = vmul.f32 0.5, %v9651
  %v9653 = vsub.f32 1.5, %v9652
  %v9654 = vmul.f32 %v9649, %v9653
  %vm9655 = vweird.f32 %v9562
  %vm9656 = vweird.f32 %v9649
  %vm9657 = vmor %vm9655, %vm9656
  %v9658 = vsel %vm9657, %v9649, %v9654
  %v9659 = vrsqrt.pop %v9563
  %v9660 = vmul.f32 %v9659, %v9563
  %v9661 = vmul.f32 %v9660, %v9659
  %v9662 = vmul.f32 0.5, %v9661
  %v9663 = vsub.f32 1.5, %v9662
  %v9664 = vmul.f32 %v9659, %v9663
  %vm9665 = vweird.f32 %v9563
  %vm9666 = vweird.f32 %v9659
  %vm9667 = vmor %vm9665, %vm9666
  %v9668 = vsel %vm9667, %v9659, %v9664
  %v9669 = vrsqrt.pop %v9564
  %v9670 = vmul.f32 %v9669, %v9564
  %v9671 = vmul.f32 %v9670, %v9669
  %v9672 = vmul.f32 0.5, %v9671
  %v9673 = vsub.f32 1.5, %v9672
  %v9674 = vmul.f32 %v9669, %v9673
  %vm9675 = vweird.f32 %v9564
  %vm9676 = vweird.f32 %v9669
  %vm9677 = vmor %vm9675, %vm9676
  %v9678 = vsel %vm9677, %v9669, %v9674
  %v9679 = vrsqrt.pop %v9565
  %v9680 = vmul.f32 %v9679, %v9565
  %v9681 = vmul.f32 %v9680, %v9679
  %v9682 = vmul.f32 0.5, %v9681
  %v9683 = vsub.f32 1.5, %v9682
  %v9684 = vmul.f32 %v9679, %v9683
  %vm9685 = vweird.f32 %v9565
  %vm9686 = vweird.f32 %v9679
  %vm9687 = vmor %vm9685, %vm9686
  %v9688 = vsel %vm9687, %v9679, %v9684
  %v9689 = vrsqrt.pop %v9566
  %v9690 = vmul.f32 %v9689, %v9566
  %v9691 = vmul.f32 %v9690, %v9689
  %v9692 = vmul.f32 0.5, %v9691
  %v9693 = vsub.f32 1.5, %v9692
  %v9694 = vmul.f32 %v9689, %v9693
  %vm9695 = vweird.f32 %v9566
  %vm9696 = vweird.f32 %v9689
  %vm9697 = vmor %vm9695, %vm9696
  %v9698 = vsel %vm9697, %v9689, %v9694
  %v9699 = vrsqrt.pop %v9567
  %v9700 = vmul.f32 %v9699, %v9567
  %v9701 = vmul.f32 %v9700, %v9699
  %v9702 = vmul.f32 0.5, %v9701
  %v9703 = vsub.f32 1.5, %v9702
  %v9704 = vmul.f32 %v9699, %v9703
  %vm9705 = vweird.f32 %v9567
  %vm9706 = vweird.f32 %v9699
  %vm9707 = vmor %vm9705, %vm9706
  %v9708 = vsel %vm9707, %v9699, %v9704
  %v9709 = vrsqrt.pop %v9568
  %v9710 = vmul.f32 %v9709, %v9568
  %v9711 = vmul.f32 %v9710, %v9709
  %v9712 = vmul.f32 0.5, %v9711
  %v9713 = vsub.f32 1.5, %v9712
  %v9714 = vmul.f32 %v9709, %v9713
  %vm9715 = vweird.f32 %v9568
  %vm9716 = vweird.f32 %v9709
  %vm9717 = vmor %vm9715, %vm9716
  %v9718 = vsel %vm9717, %v9709, %v9714
  %v9719 = vrsqrt.pop %v9569
  %v9720 = vmul.f32 %v9719, %v9569
  %v9721 = vmul.f32 %v9720, %v9719
  %v9722 = vmul.f32 0.5, %v9721
  %v9723 = vsub.f32 1.5, %v9722
  %v9724 = vmul.f32 %v9719, %v9723
  %vm9725 = vweird.f32 %v9569
  %vm9726 = vweird.f32 %v9719
  %vm9727 = vmor %vm9725, %vm9726
  %v9728 = vsel %vm9727, %v9719, %v9724
  %v9729 = vrsqrt.pop %v9570
  %v9730 = vmul.f32 %v9729, %v9570
  %v9731 = vmul.f32 %v9730, %v9729
  %v9732 = vmul.f32 0.5, %v9731
  %v9733 = vsub.f32 1.5, %v9732
  %v9734 = vmul.f32 %v9729, %v9733
  %vm9735 = vweird.f32 %v9570
  %vm9736 = vweird.f32 %v9729
  %vm9737 = vmor %vm9735, %vm9736
  %v9738 = vsel %vm9737, %v9729, %v9734
  %v9739 = vrsqrt.pop %v9571
  %v9740 = vmul.f32 %v9739, %v9571
  %v9741 = vmul.f32 %v9740, %v9739
  %v9742 = vmul.f32 0.5, %v9741
  %v9743 = vsub.f32 1.5, %v9742
  %v9744 = vmul.f32 %v9739, %v9743
  %vm9745 = vweird.f32 %v9571
  %vm9746 = vweird.f32 %v9739
  %vm9747 = vmor %vm9745, %vm9746
  %v9748 = vsel %vm9747, %v9739, %v9744
  %v9749 = vrsqrt.pop %v9572
  %v9750 = vmul.f32 %v9749, %v9572
  %v9751 = vmul.f32 %v9750, %v9749
  %v9752 = vmul.f32 0.5, %v9751
  %v9753 = vsub.f32 1.5, %v9752
  %v9754 = vmul.f32 %v9749, %v9753
  %vm9755 = vweird.f32 %v9572
  %vm9756 = vweird.f32 %v9749
  %vm9757 = vmor %vm9755, %vm9756
  %v9758 = vsel %vm9757, %v9749, %v9754
  %v9759 = vrsqrt.pop %v9573
  %v9760 = vmul.f32 %v9759, %v9573
  %v9761 = vmul.f32 %v9760, %v9759
  %v9762 = vmul.f32 0.5, %v9761
  %v9763 = vsub.f32 1.5, %v9762
  %v9764 = vmul.f32 %v9759, %v9763
  %vm9765 = vweird.f32 %v9573
  %vm9766 = vweird.f32 %v9759
  %vm9767 = vmor %vm9765, %vm9766
  %v9768 = vsel %vm9767, %v9759, %v9764
  %v9769 = vrsqrt.pop %v9574
  %v9770 = vmul.f32 %v9769, %v9574
  %v9771 = vmul.f32 %v9770, %v9769
  %v9772 = vmul.f32 0.5, %v9771
  %v9773 = vsub.f32 1.5, %v9772
  %v9774 = vmul.f32 %v9769, %v9773
  %vm9775 = vweird.f32 %v9574
  %vm9776 = vweird.f32 %v9769
  %vm9777 = vmor %vm9775, %vm9776
  %v9778 = vsel %vm9777, %v9769, %v9774
  %v9779 = vrsqrt.pop %v9575
  %v9780 = vmul.f32 %v9779, %v9575
  %v9781 = vmul.f32 %v9780, %v9779
  %v9782 = vmul.f32 0.5, %v9781
  %v9783 = vsub.f32 1.5, %v9782
  %v9784 = vmul.f32 %v9779, %v9783
  %vm9785 = vweird.f32 %v9575
  %vm9786 = vweird.f32 %v9779
  %vm9787 = vmor %vm9785, %vm9786
  %v9788 = vsel %vm9787, %v9779, %v9784
  %v9789 = vrsqrt.pop %v9576
  %v9790 = vmul.f32 %v9789, %v9576
  %v9791 = vmul.f32 %v9790, %v9789
  %v9792 = vmul.f32 0.5, %v9791
  %v9793 = vsub.f32 1.5, %v9792
  %v9794 = vmul.f32 %v9789, %v9793
  %vm9795 = vweird.f32 %v9576
  %vm9796 = vweird.f32 %v9789
  %vm9797 = vmor %vm9795, %vm9796
  %v9798 = vsel %vm9797, %v9789, %v9794
  %v9799 = vrsqrt.pop %v9577
  %v9800 = vmul.f32 %v9799, %v9577
  %v9801 = vmul.f32 %v9800, %v9799
  %v9802 = vmul.f32 0.5, %v9801
  %v9803 = vsub.f32 1.5, %v9802
  %v9804 = vmul.f32 %v9799, %v9803
  %vm9805 = vweird.f32 %v9577
  %vm9806 = vweird.f32 %v9799
  %vm9807 = vmor %vm9805, %vm9806
  %v9808 = vsel %vm9807, %v9799, %v9804
  %v9809 = vrsqrt.pop %v9578
  %v9810 = vmul.f32 %v9809, %v9578
  %v9811 = vmul.f32 %v9810, %v9809
  %v9812 = vmul.f32 0.5, %v9811
  %v9813 = vsub.f32 1.5, %v9812
  %v9814 = vmul.f32 %v9809, %v9813
  %vm9815 = vweird.f32 %v9578
  %vm9816 = vweird.f32 %v9809
  %vm9817 = vmor %vm9815, %vm9816
  %v9818 = vsel %vm9817, %v9809, %v9814
  %v9819 = vmul.f32 %v9411, %v9588
  %v9820 = vmul.f32 %v9412, %v9598
  %v9821 = vmul.f32 %v9413, %v9608
  %v9822 = vmul.f32 %v9414, %v9618
  %v9823 = vmul.f32 %v9415, %v9628
  %v9824 = vmul.f32 %v9416, %v9638
  %v9825 = vmul.f32 %v9417, %v9648
  %v9826 = vmul.f32 %v9418, %v9658
  %v9827 = vmul.f32 %v9419, %v9668
  %v9828 = vmul.f32 %v9420, %v9678
  %v9829 = vmul.f32 %v9421, %v9688
  %v9830 = vmul.f32 %v9422, %v9698
  %v9831 = vmul.f32 %v9423, %v9708
  %v9832 = vmul.f32 %v9424, %v9718
  %v9833 = vmul.f32 %v9425, %v9728
  %v9834 = vmul.f32 %v9426, %v9738
  %v9835 = vmul.f32 %v9427, %v9748
  %v9836 = vmul.f32 %v9428, %v9758
  %v9837 = vmul.f32 %v9429, %v9768
  %v9838 = vmul.f32 %v9430, %v9778
  %v9839 = vmul.f32 %v9431, %v9788
  %v9840 = vmul.f32 %v9432, %v9798
  %v9841 = vmul.f32 %v9433, %v9808
  %v9842 = vmul.f32 %v9434, %v9818
  %v9844 = vperm.slane %v7343, 0
  %v9846 = vmul.f32 %v9819, %v9844
  %v9847 = vmul.f32 %v9820, %v9844
  %v9848 = vmul.f32 %v9821, %v9844
  %v9849 = vmul.f32 %v9822, %v9844
  %v9850 = vmul.f32 %v9823, %v9844
  %v9851 = vmul.f32 %v9824, %v9844
  %v9852 = vmul.f32 %v9825, %v9844
  %v9853 = vmul.f32 %v9826, %v9844
  %v9854 = vmul.f32 %v9827, %v9844
  %v9855 = vmul.f32 %v9828, %v9844
  %v9856 = vmul.f32 %v9829, %v9844
  %v9857 = vmul.f32 %v9830, %v9844
  %v9858 = vmul.f32 %v9831, %v9844
  %v9859 = vmul.f32 %v9832, %v9844
  %v9860 = vmul.f32 %v9833, %v9844
  %v9861 = vmul.f32 %v9834, %v9844
  %v9862 = vmul.f32 %v9835, %v9844
  %v9863 = vmul.f32 %v9836, %v9844
  %v9864 = vmul.f32 %v9837, %v9844
  %v9865 = vmul.f32 %v9838, %v9844
  %v9866 = vmul.f32 %v9839, %v9844
  %v9867 = vmul.f32 %v9840, %v9844
  %v9868 = vmul.f32 %v9841, %v9844
  %v9869 = vmul.f32 %v9842, %v9844
  %v9871 = vperm.slane %v7345, 0
  %v9873 = vadd.f32 %v9846, %v9871
  %v9874 = vadd.f32 %v9847, %v9871
  %v9875 = vadd.f32 %v9848, %v9871
  %v9876 = vadd.f32 %v9849, %v9871
  %v9877 = vadd.f32 %v9850, %v9871
  %v9878 = vadd.f32 %v9851, %v9871
  %v9879 = vadd.f32 %v9852, %v9871
  %v9880 = vadd.f32 %v9853, %v9871
  %v9881 = vadd.f32 %v9854, %v9871
  %v9882 = vadd.f32 %v9855, %v9871
  %v9883 = vadd.f32 %v9856, %v9871
  %v9884 = vadd.f32 %v9857, %v9871
  %v9885 = vadd.f32 %v9858, %v9871
  %v9886 = vadd.f32 %v9859, %v9871
  %v9887 = vadd.f32 %v9860, %v9871
  %v9888 = vadd.f32 %v9861, %v9871
  %v9889 = vadd.f32 %v9862, %v9871
  %v9890 = vadd.f32 %v9863, %v9871
  %v9891 = vadd.f32 %v9864, %v9871
  %v9892 = vadd.f32 %v9865, %v9871
  %v9893 = vadd.f32 %v9866, %v9871
  %v9894 = vadd.f32 %v9867, %v9871
  %v9895 = vadd.f32 %v9868, %v9871
  %v9896 = vadd.f32 %v9869, %v9871
  %9897 = vst.msk [vmem:[#allocation2] sm:$0xff] %vm72, %v9873
  %9898 = vst.msk [vmem:[#allocation2 + $0x8] sm:$0xff] %vm72, %v9874
  %9899 = vst.msk [vmem:[#allocation2 + $0x10] sm:$0xff] %vm72, %v9875
  %9900 = vst.msk [vmem:[#allocation2 + $0x18] sm:$0xff] %vm72, %v9876
  %9901 = vst.msk [vmem:[#allocation2 + $0x20] sm:$0xff] %vm72, %v9877
  %9902 = vst.msk [vmem:[#allocation2 + $0x28] sm:$0xff] %vm72, %v9878
  %9903 = vst.msk [vmem:[#allocation2 + $0x30] sm:$0xff] %vm72, %v9879
  %9904 = vst.msk [vmem:[#allocation2 + $0x38] sm:$0xff] %vm72, %v9880
  %9905 = vst.msk [vmem:[#allocation2 + $0x40] sm:$0xff] %vm72, %v9881
  %9906 = vst.msk [vmem:[#allocation2 + $0x48] sm:$0xff] %vm72, %v9882
  %9907 = vst.msk [vmem:[#allocation2 + $0x50] sm:$0xff] %vm72, %v9883
  %9908 = vst.msk [vmem:[#allocation2 + $0x58] sm:$0xff] %vm72, %v9884
  %9909 = vst.msk [vmem:[#allocation2 + $0x60] sm:$0xff] %vm72, %v9885
  %9910 = vst.msk [vmem:[#allocation2 + $0x68] sm:$0xff] %vm72, %v9886
  %9911 = vst.msk [vmem:[#allocation2 + $0x70] sm:$0xff] %vm72, %v9887
  %9912 = vst.msk [vmem:[#allocation2 + $0x78] sm:$0xff] %vm72, %v9888
  %9913 = vst.msk [vmem:[#allocation2 + $0x80] sm:$0xff] %vm72, %v9889
  %9914 = vst.msk [vmem:[#allocation2 + $0x88] sm:$0xff] %vm72, %v9890
  %9915 = vst.msk [vmem:[#allocation2 + $0x90] sm:$0xff] %vm72, %v9891
  %9916 = vst.msk [vmem:[#allocation2 + $0x98] sm:$0xff] %vm72, %v9892
  %9917 = vst.msk [vmem:[#allocation2 + $0xa0] sm:$0xff] %vm72, %v9893
  %9918 = vst.msk [vmem:[#allocation2 + $0xa8] sm:$0xff] %vm72, %v9894
  %9919 = vst.msk [vmem:[#allocation2 + $0xb0] sm:$0xff] %vm72, %v9895
  %9920 = vst.msk [vmem:[#allocation2 + $0xb8] sm:$0xff] %vm72, %v9896
  %v9921 = vld [vmem:[#allocation2] sm:$0xff]
  %v9922 = vld [vmem:[#allocation2 + $0x8] sm:$0xff]
  %v9923 = vld [vmem:[#allocation2 + $0x10] sm:$0xff]
  %v9924 = vld [vmem:[#allocation2 + $0x18] sm:$0xff]
  %v9925 = vld [vmem:[#allocation2 + $0x20] sm:$0xff]
  %v9926 = vld [vmem:[#allocation2 + $0x28] sm:$0xff]
  %v9927 = vld [vmem:[#allocation2 + $0x30] sm:$0xff]
  %v9928 = vld [vmem:[#allocation2 + $0x38] sm:$0xff]
  %v9929 = vld [vmem:[#allocation2 + $0x40] sm:$0xff]
  %v9930 = vld [vmem:[#allocation2 + $0x48] sm:$0xff]
  %v9931 = vld [vmem:[#allocation2 + $0x50] sm:$0xff]
  %v9932 = vld [vmem:[#allocation2 + $0x58] sm:$0xff]
  %v9933 = vld [vmem:[#allocation2 + $0x60] sm:$0xff]
  %v9934 = vld [vmem:[#allocation2 + $0x68] sm:$0xff]
  %v9935 = vld [vmem:[#allocation2 + $0x70] sm:$0xff]
  %v9936 = vld [vmem:[#allocation2 + $0x78] sm:$0xff]
  %v9937 = vld [vmem:[#allocation2 + $0x80] sm:$0xff]
  %v9938 = vld [vmem:[#allocation2 + $0x88] sm:$0xff]
  %v9939 = vld [vmem:[#allocation2 + $0x90] sm:$0xff]
  %v9940 = vld [vmem:[#allocation2 + $0x98] sm:$0xff]
  %v9941 = vld [vmem:[#allocation2 + $0xa0] sm:$0xff]
  %v9942 = vld [vmem:[#allocation2 + $0xa8] sm:$0xff]
  %v9943 = vld [vmem:[#allocation2 + $0xb0] sm:$0xff]
  %v9944 = vld [vmem:[#allocation2 + $0xb8] sm:$0xff]
  %v9946 = vperm.slane %v7356, 0
  %v9949 = vsel %vm72, %v9921, 0
  %v9952 = vsel %vm72, %v9922, 0
  %v9955 = vsel %vm72, %v9923, 0
  %v9958 = vsel %vm72, %v9924, 0
  %v9961 = vsel %vm72, %v9925, 0
  %v9964 = vsel %vm72, %v9926, 0
  %v9967 = vsel %vm72, %v9927, 0
  %v9970 = vsel %vm72, %v9928, 0
  %v9973 = vsel %vm72, %v9929, 0
  %v9976 = vsel %vm72, %v9930, 0
  %v9979 = vsel %vm72, %v9931, 0
  %v9982 = vsel %vm72, %v9932, 0
  %v9985 = vsel %vm72, %v9933, 0
  %v9988 = vsel %vm72, %v9934, 0
  %v9991 = vsel %vm72, %v9935, 0
  %v9994 = vsel %vm72, %v9936, 0
  %v9997 = vsel %vm72, %v9937, 0
  %v10000 = vsel %vm72, %v9938, 0
  %v10003 = vsel %vm72, %v9939, 0
  %v10006 = vsel %vm72, %v9940, 0
  %v10009 = vsel %vm72, %v9941, 0
  %v10012 = vsel %vm72, %v9942, 0
  %v10015 = vsel %vm72, %v9943, 0
  %v10018 = vsel %vm72, %v9944, 0
  %10020 = vmatpush.msra.mxu0 0.0
  %10021 = vmatpush.msra.mxu0 0.0
  %10022 = vmatpush.msra.mxu0 0.0
  %10023 = vmatpush.msra.mxu0 0.0
  %10024 = vmatpush.msra.mxu0 0.0
  %10025 = vmatpush.msra.mxu0 0.0
  %10026 = vmatpush.msra.mxu0 0.0
  %10027 = vmatpush.msra.mxu0 0.0
  %10028 = vmatpush.msra.mxu0 0.0
  %10029 = vmatpush.msra.mxu0 0.0
  %10030 = vmatpush.msra.mxu0 0.0
  %10031 = vmatpush.msra.mxu0 0.0
  %10032 = vmatpush.msra.mxu0 %v7354
  %10033 = vmatpush.msra.mxu0 %v7353
  %10034 = vmatpush.msra.mxu0 %v7352
  %10035 = vmatpush.msra.mxu0 %v7351
  %10036 = vmatmul.f32.gmra.mxu0 %v9949
  %v10037 = vpop.f32.mrf.mxu0
  %v10038 = vadd.f32 %v9946, %v10037
  %10039 = vmatmul.f32.gmra.mxu0 %v9952
  %v10040 = vpop.f32.mrf.mxu0
  %v10041 = vadd.f32 %v9946, %v10040
  %10042 = vmatmul.f32.gmra.mxu0 %v9955
  %v10043 = vpop.f32.mrf.mxu0
  %v10044 = vadd.f32 %v9946, %v10043
  %10045 = vmatmul.f32.gmra.mxu0 %v9958
  %v10046 = vpop.f32.mrf.mxu0
  %v10047 = vadd.f32 %v9946, %v10046
  %10048 = vmatmul.f32.gmra.mxu0 %v9961
  %v10049 = vpop.f32.mrf.mxu0
  %v10050 = vadd.f32 %v9946, %v10049
  %10051 = vmatmul.f32.gmra.mxu0 %v9964
  %v10052 = vpop.f32.mrf.mxu0
  %v10053 = vadd.f32 %v9946, %v10052
  %10054 = vmatmul.f32.gmra.mxu0 %v9967
  %v10055 = vpop.f32.mrf.mxu0
  %v10056 = vadd.f32 %v9946, %v10055
  %10057 = vmatmul.f32.gmra.mxu0 %v9970
  %v10058 = vpop.f32.mrf.mxu0
  %v10059 = vadd.f32 %v9946, %v10058
  %10060 = vmatmul.f32.gmra.mxu0 %v9973
  %v10061 = vpop.f32.mrf.mxu0
  %v10062 = vadd.f32 %v9946, %v10061
  %10063 = vmatmul.f32.gmra.mxu0 %v9976
  %v10064 = vpop.f32.mrf.mxu0
  %v10065 = vadd.f32 %v9946, %v10064
  %10066 = vmatmul.f32.gmra.mxu0 %v9979
  %v10067 = vpop.f32.mrf.mxu0
  %v10068 = vadd.f32 %v9946, %v10067
  %10069 = vmatmul.f32.gmra.mxu0 %v9982
  %v10070 = vpop.f32.mrf.mxu0
  %v10071 = vadd.f32 %v9946, %v10070
  %10072 = vmatmul.f32.gmra.mxu0 %v9985
  %v10073 = vpop.f32.mrf.mxu0
  %v10074 = vadd.f32 %v9946, %v10073
  %10075 = vmatmul.f32.gmra.mxu0 %v9988
  %v10076 = vpop.f32.mrf.mxu0
  %v10077 = vadd.f32 %v9946, %v10076
  %10078 = vmatmul.f32.gmra.mxu0 %v9991
  %v10079 = vpop.f32.mrf.mxu0
  %v10080 = vadd.f32 %v9946, %v10079
  %10081 = vmatmul.f32.gmra.mxu0 %v9994
  %v10082 = vpop.f32.mrf.mxu0
  %v10083 = vadd.f32 %v9946, %v10082
  %10084 = vmatmul.f32.gmra.mxu0 %v9997
  %v10085 = vpop.f32.mrf.mxu0
  %v10086 = vadd.f32 %v9946, %v10085
  %10087 = vmatmul.f32.gmra.mxu0 %v10000
  %v10088 = vpop.f32.mrf.mxu0
  %v10089 = vadd.f32 %v9946, %v10088
  %10090 = vmatmul.f32.gmra.mxu0 %v10003
  %v10091 = vpop.f32.mrf.mxu0
  %v10092 = vadd.f32 %v9946, %v10091
  %10093 = vmatmul.f32.gmra.mxu0 %v10006
  %v10094 = vpop.f32.mrf.mxu0
  %v10095 = vadd.f32 %v9946, %v10094
  %10096 = vmatmul.f32.gmra.mxu0 %v10009
  %v10097 = vpop.f32.mrf.mxu0
  %v10098 = vadd.f32 %v9946, %v10097
  %10099 = vmatmul.f32.gmra.mxu0 %v10012
  %v10100 = vpop.f32.mrf.mxu0
  %v10101 = vadd.f32 %v9946, %v10100
  %10102 = vmatmul.f32.gmra.mxu0 %v10015
  %v10103 = vpop.f32.mrf.mxu0
  %v10104 = vadd.f32 %v9946, %v10103
  %10105 = vmatmul.f32.gmra.mxu0 %v10018
  %v10106 = vpop.f32.mrf.mxu0
  %v10107 = vadd.f32 %v9946, %v10106
  %10108 = vdwg.mxu0
  %v10109 = vmax.f32 %v10038, 0.0
  %v10110 = vmax.f32 %v10041, 0.0
  %v10111 = vmax.f32 %v10044, 0.0
  %v10112 = vmax.f32 %v10047, 0.0
  %v10113 = vmax.f32 %v10050, 0.0
  %v10114 = vmax.f32 %v10053, 0.0
  %v10115 = vmax.f32 %v10056, 0.0
  %v10116 = vmax.f32 %v10059, 0.0
  %v10117 = vmax.f32 %v10062, 0.0
  %v10118 = vmax.f32 %v10065, 0.0
  %v10119 = vmax.f32 %v10068, 0.0
  %v10120 = vmax.f32 %v10071, 0.0
  %v10121 = vmax.f32 %v10074, 0.0
  %v10122 = vmax.f32 %v10077, 0.0
  %v10123 = vmax.f32 %v10080, 0.0
  %v10124 = vmax.f32 %v10083, 0.0
  %v10125 = vmax.f32 %v10086, 0.0
  %v10126 = vmax.f32 %v10089, 0.0
  %v10127 = vmax.f32 %v10092, 0.0
  %v10128 = vmax.f32 %v10095, 0.0
  %v10129 = vmax.f32 %v10098, 0.0
  %v10130 = vmax.f32 %v10101, 0.0
  %v10131 = vmax.f32 %v10104, 0.0
  %v10132 = vmax.f32 %v10107, 0.0
  %10133 = vst [vmem:[#allocation5] sm:$0xff] %v10109
  %10134 = vst [vmem:[#allocation5 + $0x8] sm:$0xff] %v10110
  %10135 = vst [vmem:[#allocation5 + $0x10] sm:$0xff] %v10111
  %10136 = vst [vmem:[#allocation5 + $0x18] sm:$0xff] %v10112
  %10137 = vst [vmem:[#allocation5 + $0x20] sm:$0xff] %v10113
  %10138 = vst [vmem:[#allocation5 + $0x28] sm:$0xff] %v10114
  %10139 = vst [vmem:[#allocation5 + $0x30] sm:$0xff] %v10115
  %10140 = vst [vmem:[#allocation5 + $0x38] sm:$0xff] %v10116
  %10141 = vst [vmem:[#allocation5 + $0x40] sm:$0xff] %v10117
  %10142 = vst [vmem:[#allocation5 + $0x48] sm:$0xff] %v10118
  %10143 = vst [vmem:[#allocation5 + $0x50] sm:$0xff] %v10119
  %10144 = vst [vmem:[#allocation5 + $0x58] sm:$0xff] %v10120
  %10145 = vst [vmem:[#allocation5 + $0x60] sm:$0xff] %v10121
  %10146 = vst [vmem:[#allocation5 + $0x68] sm:$0xff] %v10122
  %10147 = vst [vmem:[#allocation5 + $0x70] sm:$0xff] %v10123
  %10148 = vst [vmem:[#allocation5 + $0x78] sm:$0xff] %v10124
  %10149 = vst [vmem:[#allocation5 + $0x80] sm:$0xff] %v10125
  %10150 = vst [vmem:[#allocation5 + $0x88] sm:$0xff] %v10126
  %10151 = vst [vmem:[#allocation5 + $0x90] sm:$0xff] %v10127
  %10152 = vst [vmem:[#allocation5 + $0x98] sm:$0xff] %v10128
  %10153 = vst [vmem:[#allocation5 + $0xa0] sm:$0xff] %v10129
  %10154 = vst [vmem:[#allocation5 + $0xa8] sm:$0xff] %v10130
  %10155 = vst [vmem:[#allocation5 + $0xb0] sm:$0xff] %v10131
  %10156 = vst [vmem:[#allocation5 + $0xb8] sm:$0xff] %v10132
  %v10157 = vld [vmem:[#allocation5] sm:$0xff]
  %v10158 = vld [vmem:[#allocation5 + $0x8] sm:$0xff]
  %v10159 = vld [vmem:[#allocation5 + $0x10] sm:$0xff]
  %v10160 = vld [vmem:[#allocation5 + $0x18] sm:$0xff]
  %v10161 = vld [vmem:[#allocation5 + $0x20] sm:$0xff]
  %v10162 = vld [vmem:[#allocation5 + $0x28] sm:$0xff]
  %v10163 = vld [vmem:[#allocation5 + $0x30] sm:$0xff]
  %v10164 = vld [vmem:[#allocation5 + $0x38] sm:$0xff]
  %v10165 = vld [vmem:[#allocation5 + $0x40] sm:$0xff]
  %v10166 = vld [vmem:[#allocation5 + $0x48] sm:$0xff]
  %v10167 = vld [vmem:[#allocation5 + $0x50] sm:$0xff]
  %v10168 = vld [vmem:[#allocation5 + $0x58] sm:$0xff]
  %v10169 = vld [vmem:[#allocation5 + $0x60] sm:$0xff]
  %v10170 = vld [vmem:[#allocation5 + $0x68] sm:$0xff]
  %v10171 = vld [vmem:[#allocation5 + $0x70] sm:$0xff]
  %v10172 = vld [vmem:[#allocation5 + $0x78] sm:$0xff]
  %v10173 = vld [vmem:[#allocation5 + $0x80] sm:$0xff]
  %v10174 = vld [vmem:[#allocation5 + $0x88] sm:$0xff]
  %v10175 = vld [vmem:[#allocation5 + $0x90] sm:$0xff]
  %v10176 = vld [vmem:[#allocation5 + $0x98] sm:$0xff]
  %v10177 = vld [vmem:[#allocation5 + $0xa0] sm:$0xff]
  %v10178 = vld [vmem:[#allocation5 + $0xa8] sm:$0xff]
  %v10179 = vld [vmem:[#allocation5 + $0xb0] sm:$0xff]
  %v10180 = vld [vmem:[#allocation5 + $0xb8] sm:$0xff]
  %v10182 = vperm.slane %v7375, 0
  %10184 = vmatpush.msra.mxu0 %v7373
  %10185 = vmatpush.msra.mxu0 %v7372
  %10186 = vmatpush.msra.mxu0 %v7371
  %10187 = vmatpush.msra.mxu0 %v7370
  %10188 = vmatpush.msra.mxu0 %v7369
  %10189 = vmatpush.msra.mxu0 %v7368
  %10190 = vmatpush.msra.mxu0 %v7367
  %10191 = vmatpush.msra.mxu0 %v7366
  %10192 = vmatpush.msra.mxu0 %v7365
  %10193 = vmatpush.msra.mxu0 %v7364
  %10194 = vmatpush.msra.mxu0 %v7363
  %10195 = vmatpush.msra.mxu0 %v7362
  %10196 = vmatpush.msra.mxu0 %v7361
  %10197 = vmatpush.msra.mxu0 %v7360
  %10198 = vmatpush.msra.mxu0 %v7359
  %10199 = vmatpush.msra.mxu0 %v7358
  %10200 = vmatmul.f32.gmra.mxu0 %v10157
  %v10201 = vpop.f32.mrf.mxu0
  %v10202 = vadd.f32 %v10182, %v10201
  %10203 = vmatmul.f32.gmra.mxu0 %v10158
  %v10204 = vpop.f32.mrf.mxu0
  %v10205 = vadd.f32 %v10182, %v10204
  %10206 = vmatmul.f32.gmra.mxu0 %v10159
  %v10207 = vpop.f32.mrf.mxu0
  %v10208 = vadd.f32 %v10182, %v10207
  %10209 = vmatmul.f32.gmra.mxu0 %v10160
  %v10210 = vpop.f32.mrf.mxu0
  %v10211 = vadd.f32 %v10182, %v10210
  %10212 = vmatmul.f32.gmra.mxu0 %v10161
  %v10213 = vpop.f32.mrf.mxu0
  %v10214 = vadd.f32 %v10182, %v10213
  %10215 = vmatmul.f32.gmra.mxu0 %v10162
  %v10216 = vpop.f32.mrf.mxu0
  %v10217 = vadd.f32 %v10182, %v10216
  %10218 = vmatmul.f32.gmra.mxu0 %v10163
  %v10219 = vpop.f32.mrf.mxu0
  %v10220 = vadd.f32 %v10182, %v10219
  %10221 = vmatmul.f32.gmra.mxu0 %v10164
  %v10222 = vpop.f32.mrf.mxu0
  %v10223 = vadd.f32 %v10182, %v10222
  %10224 = vmatmul.f32.gmra.mxu0 %v10165
  %v10225 = vpop.f32.mrf.mxu0
  %v10226 = vadd.f32 %v10182, %v10225
  %10227 = vmatmul.f32.gmra.mxu0 %v10166
  %v10228 = vpop.f32.mrf.mxu0
  %v10229 = vadd.f32 %v10182, %v10228
  %10230 = vmatmul.f32.gmra.mxu0 %v10167
  %v10231 = vpop.f32.mrf.mxu0
  %v10232 = vadd.f32 %v10182, %v10231
  %10233 = vmatmul.f32.gmra.mxu0 %v10168
  %v10234 = vpop.f32.mrf.mxu0
  %v10235 = vadd.f32 %v10182, %v10234
  %10236 = vmatmul.f32.gmra.mxu0 %v10169
  %v10237 = vpop.f32.mrf.mxu0
  %v10238 = vadd.f32 %v10182, %v10237
  %10239 = vmatmul.f32.gmra.mxu0 %v10170
  %v10240 = vpop.f32.mrf.mxu0
  %v10241 = vadd.f32 %v10182, %v10240
  %10242 = vmatmul.f32.gmra.mxu0 %v10171
  %v10243 = vpop.f32.mrf.mxu0
  %v10244 = vadd.f32 %v10182, %v10243
  %10245 = vmatmul.f32.gmra.mxu0 %v10172
  %v10246 = vpop.f32.mrf.mxu0
  %v10247 = vadd.f32 %v10182, %v10246
  %10248 = vmatmul.f32.gmra.mxu0 %v10173
  %v10249 = vpop.f32.mrf.mxu0
  %v10250 = vadd.f32 %v10182, %v10249
  %10251 = vmatmul.f32.gmra.mxu0 %v10174
  %v10252 = vpop.f32.mrf.mxu0
  %v10253 = vadd.f32 %v10182, %v10252
  %10254 = vmatmul.f32.gmra.mxu0 %v10175
  %v10255 = vpop.f32.mrf.mxu0
  %v10256 = vadd.f32 %v10182, %v10255
  %10257 = vmatmul.f32.gmra.mxu0 %v10176
  %v10258 = vpop.f32.mrf.mxu0
  %v10259 = vadd.f32 %v10182, %v10258
  %10260 = vmatmul.f32.gmra.mxu0 %v10177
  %v10261 = vpop.f32.mrf.mxu0
  %v10262 = vadd.f32 %v10182, %v10261
  %10263 = vmatmul.f32.gmra.mxu0 %v10178
  %v10264 = vpop.f32.mrf.mxu0
  %v10265 = vadd.f32 %v10182, %v10264
  %10266 = vmatmul.f32.gmra.mxu0 %v10179
  %v10267 = vpop.f32.mrf.mxu0
  %v10268 = vadd.f32 %v10182, %v10267
  %10269 = vmatmul.f32.gmra.mxu0 %v10180
  %v10270 = vpop.f32.mrf.mxu0
  %v10271 = vadd.f32 %v10182, %v10270
  %10272 = vdwg.mxu0
  %v10273 = vld [vmem:[#allocation2] sm:$0xff]
  %v10274 = vld [vmem:[#allocation2 + $0x8] sm:$0xff]
  %v10275 = vld [vmem:[#allocation2 + $0x10] sm:$0xff]
  %v10276 = vld [vmem:[#allocation2 + $0x18] sm:$0xff]
  %v10277 = vld [vmem:[#allocation2 + $0x20] sm:$0xff]
  %v10278 = vld [vmem:[#allocation2 + $0x28] sm:$0xff]
  %v10279 = vld [vmem:[#allocation2 + $0x30] sm:$0xff]
  %v10280 = vld [vmem:[#allocation2 + $0x38] sm:$0xff]
  %v10281 = vld [vmem:[#allocation2 + $0x40] sm:$0xff]
  %v10282 = vld [vmem:[#allocation2 + $0x48] sm:$0xff]
  %v10283 = vld [vmem:[#allocation2 + $0x50] sm:$0xff]
  %v10284 = vld [vmem:[#allocation2 + $0x58] sm:$0xff]
  %v10285 = vld [vmem:[#allocation2 + $0x60] sm:$0xff]
  %v10286 = vld [vmem:[#allocation2 + $0x68] sm:$0xff]
  %v10287 = vld [vmem:[#allocation2 + $0x70] sm:$0xff]
  %v10288 = vld [vmem:[#allocation2 + $0x78] sm:$0xff]
  %v10289 = vld [vmem:[#allocation2 + $0x80] sm:$0xff]
  %v10290 = vld [vmem:[#allocation2 + $0x88] sm:$0xff]
  %v10291 = vld [vmem:[#allocation2 + $0x90] sm:$0xff]
  %v10292 = vld [vmem:[#allocation2 + $0x98] sm:$0xff]
  %v10293 = vld [vmem:[#allocation2 + $0xa0] sm:$0xff]
  %v10294 = vld [vmem:[#allocation2 + $0xa8] sm:$0xff]
  %v10295 = vld [vmem:[#allocation2 + $0xb0] sm:$0xff]
  %v10296 = vld [vmem:[#allocation2 + $0xb8] sm:$0xff]
  %v10297 = vadd.f32 %v10273, %v10202
  %v10298 = vadd.f32 %v10274, %v10205
  %v10299 = vadd.f32 %v10275, %v10208
  %v10300 = vadd.f32 %v10276, %v10211
  %v10301 = vadd.f32 %v10277, %v10214
  %v10302 = vadd.f32 %v10278, %v10217
  %v10303 = vadd.f32 %v10279, %v10220
  %v10304 = vadd.f32 %v10280, %v10223
  %v10305 = vadd.f32 %v10281, %v10226
  %v10306 = vadd.f32 %v10282, %v10229
  %v10307 = vadd.f32 %v10283, %v10232
  %v10308 = vadd.f32 %v10284, %v10235
  %v10309 = vadd.f32 %v10285, %v10238
  %v10310 = vadd.f32 %v10286, %v10241
  %v10311 = vadd.f32 %v10287, %v10244
  %v10312 = vadd.f32 %v10288, %v10247
  %v10313 = vadd.f32 %v10289, %v10250
  %v10314 = vadd.f32 %v10290, %v10253
  %v10315 = vadd.f32 %v10291, %v10256
  %v10316 = vadd.f32 %v10292, %v10259
  %v10317 = vadd.f32 %v10293, %v10262
  %v10318 = vadd.f32 %v10294, %v10265
  %v10319 = vadd.f32 %v10295, %v10268
  %v10320 = vadd.f32 %v10296, %v10271
  %v10321 = vsel %vm72, %v10297, 0.0
  %10322 = vadd.xlane.f32.xlu0 %v10321
  %v10323 = vpop.xlane.xlu0 %10322
  %v10324 = vsel %vm72, %v10298, 0.0
  %10325 = vadd.xlane.f32.xlu0 %v10324
  %v10326 = vpop.xlane.xlu0 %10325
  %v10327 = vsel %vm72, %v10299, 0.0
  %10328 = vadd.xlane.f32.xlu0 %v10327
  %v10329 = vpop.xlane.xlu0 %10328
  %v10330 = vsel %vm72, %v10300, 0.0
  %10331 = vadd.xlane.f32.xlu0 %v10330
  %v10332 = vpop.xlane.xlu0 %10331
  %v10333 = vsel %vm72, %v10301, 0.0
  %10334 = vadd.xlane.f32.xlu0 %v10333
  %v10335 = vpop.xlane.xlu0 %10334
  %v10336 = vsel %vm72, %v10302, 0.0
  %10337 = vadd.xlane.f32.xlu0 %v10336
  %v10338 = vpop.xlane.xlu0 %10337
  %v10339 = vsel %vm72, %v10303, 0.0
  %10340 = vadd.xlane.f32.xlu0 %v10339
  %v10341 = vpop.xlane.xlu0 %10340
  %v10342 = vsel %vm72, %v10304, 0.0
  %10343 = vadd.xlane.f32.xlu0 %v10342
  %v10344 = vpop.xlane.xlu0 %10343
  %v10345 = vsel %vm72, %v10305, 0.0
  %10346 = vadd.xlane.f32.xlu0 %v10345
  %v10347 = vpop.xlane.xlu0 %10346
  %v10348 = vsel %vm72, %v10306, 0.0
  %10349 = vadd.xlane.f32.xlu0 %v10348
  %v10350 = vpop.xlane.xlu0 %10349
  %v10351 = vsel %vm72, %v10307, 0.0
  %10352 = vadd.xlane.f32.xlu0 %v10351
  %v10353 = vpop.xlane.xlu0 %10352
  %v10354 = vsel %vm72, %v10308, 0.0
  %10355 = vadd.xlane.f32.xlu0 %v10354
  %v10356 = vpop.xlane.xlu0 %10355
  %v10357 = vsel %vm72, %v10309, 0.0
  %10358 = vadd.xlane.f32.xlu0 %v10357
  %v10359 = vpop.xlane.xlu0 %10358
  %v10360 = vsel %vm72, %v10310, 0.0
  %10361 = vadd.xlane.f32.xlu0 %v10360
  %v10362 = vpop.xlane.xlu0 %10361
  %v10363 = vsel %vm72, %v10311, 0.0
  %10364 = vadd.xlane.f32.xlu0 %v10363
  %v10365 = vpop.xlane.xlu0 %10364
  %v10366 = vsel %vm72, %v10312, 0.0
  %10367 = vadd.xlane.f32.xlu0 %v10366
  %v10368 = vpop.xlane.xlu0 %10367
  %v10369 = vsel %vm72, %v10313, 0.0
  %10370 = vadd.xlane.f32.xlu0 %v10369
  %v10371 = vpop.xlane.xlu0 %10370
  %v10372 = vsel %vm72, %v10314, 0.0
  %10373 = vadd.xlane.f32.xlu0 %v10372
  %v10374 = vpop.xlane.xlu0 %10373
  %v10375 = vsel %vm72, %v10315, 0.0
  %10376 = vadd.xlane.f32.xlu0 %v10375
  %v10377 = vpop.xlane.xlu0 %10376
  %v10378 = vsel %vm72, %v10316, 0.0
  %10379 = vadd.xlane.f32.xlu0 %v10378
  %v10380 = vpop.xlane.xlu0 %10379
  %v10381 = vsel %vm72, %v10317, 0.0
  %10382 = vadd.xlane.f32.xlu0 %v10381
  %v10383 = vpop.xlane.xlu0 %10382
  %v10384 = vsel %vm72, %v10318, 0.0
  %10385 = vadd.xlane.f32.xlu0 %v10384
  %v10386 = vpop.xlane.xlu0 %10385
  %v10387 = vsel %vm72, %v10319, 0.0
  %10388 = vadd.xlane.f32.xlu0 %v10387
  %v10389 = vpop.xlane.xlu0 %10388
  %v10390 = vsel %vm72, %v10320, 0.0
  %10391 = vadd.xlane.f32.xlu0 %v10390
  %v10392 = vpop.xlane.xlu0 %10391
  %v10393 = vmul.f32 %v10323, %v2188
  %v10394 = vmul.f32 %v10326, %v2188
  %v10395 = vmul.f32 %v10329, %v2188
  %v10396 = vmul.f32 %v10332, %v2188
  %v10397 = vmul.f32 %v10335, %v2188
  %v10398 = vmul.f32 %v10338, %v2188
  %v10399 = vmul.f32 %v10341, %v2188
  %v10400 = vmul.f32 %v10344, %v2188
  %v10401 = vmul.f32 %v10347, %v2188
  %v10402 = vmul.f32 %v10350, %v2188
  %v10403 = vmul.f32 %v10353, %v2188
  %v10404 = vmul.f32 %v10356, %v2188
  %v10405 = vmul.f32 %v10359, %v2188
  %v10406 = vmul.f32 %v10362, %v2188
  %v10407 = vmul.f32 %v10365, %v2188
  %v10408 = vmul.f32 %v10368, %v2188
  %v10409 = vmul.f32 %v10371, %v2188
  %v10410 = vmul.f32 %v10374, %v2188
  %v10411 = vmul.f32 %v10377, %v2188
  %v10412 = vmul.f32 %v10380, %v2188
  %v10413 = vmul.f32 %v10383, %v2188
  %v10414 = vmul.f32 %v10386, %v2188
  %v10415 = vmul.f32 %v10389, %v2188
  %v10416 = vmul.f32 %v10392, %v2188
  %v10417 = vsub.f32 %v10297, %v10393
  %v10418 = vsub.f32 %v10298, %v10394
  %v10419 = vsub.f32 %v10299, %v10395
  %v10420 = vsub.f32 %v10300, %v10396
  %v10421 = vsub.f32 %v10301, %v10397
  %v10422 = vsub.f32 %v10302, %v10398
  %v10423 = vsub.f32 %v10303, %v10399
  %v10424 = vsub.f32 %v10304, %v10400
  %v10425 = vsub.f32 %v10305, %v10401
  %v10426 = vsub.f32 %v10306, %v10402
  %v10427 = vsub.f32 %v10307, %v10403
  %v10428 = vsub.f32 %v10308, %v10404
  %v10429 = vsub.f32 %v10309, %v10405
  %v10430 = vsub.f32 %v10310, %v10406
  %v10431 = vsub.f32 %v10311, %v10407
  %v10432 = vsub.f32 %v10312, %v10408
  %v10433 = vsub.f32 %v10313, %v10409
  %v10434 = vsub.f32 %v10314, %v10410
  %v10435 = vsub.f32 %v10315, %v10411
  %v10436 = vsub.f32 %v10316, %v10412
  %v10437 = vsub.f32 %v10317, %v10413
  %v10438 = vsub.f32 %v10318, %v10414
  %v10439 = vsub.f32 %v10319, %v10415
  %v10440 = vsub.f32 %v10320, %v10416
  %v10441 = vmul.f32 %v10417, %v10417
  %v10442 = vmul.f32 %v10418, %v10418
  %v10443 = vmul.f32 %v10419, %v10419
  %v10444 = vmul.f32 %v10420, %v10420
  %v10445 = vmul.f32 %v10421, %v10421
  %v10446 = vmul.f32 %v10422, %v10422
  %v10447 = vmul.f32 %v10423, %v10423
  %v10448 = vmul.f32 %v10424, %v10424
  %v10449 = vmul.f32 %v10425, %v10425
  %v10450 = vmul.f32 %v10426, %v10426
  %v10451 = vmul.f32 %v10427, %v10427
  %v10452 = vmul.f32 %v10428, %v10428
  %v10453 = vmul.f32 %v10429, %v10429
  %v10454 = vmul.f32 %v10430, %v10430
  %v10455 = vmul.f32 %v10431, %v10431
  %v10456 = vmul.f32 %v10432, %v10432
  %v10457 = vmul.f32 %v10433, %v10433
  %v10458 = vmul.f32 %v10434, %v10434
  %v10459 = vmul.f32 %v10435, %v10435
  %v10460 = vmul.f32 %v10436, %v10436
  %v10461 = vmul.f32 %v10437, %v10437
  %v10462 = vmul.f32 %v10438, %v10438
  %v10463 = vmul.f32 %v10439, %v10439
  %v10464 = vmul.f32 %v10440, %v10440
  %v10465 = vsel %vm72, %v10441, 0.0
  %10466 = vadd.xlane.f32.xlu0 %v10465
  %v10467 = vpop.xlane.xlu0 %10466
  %v10468 = vsel %vm72, %v10442, 0.0
  %10469 = vadd.xlane.f32.xlu0 %v10468
  %v10470 = vpop.xlane.xlu0 %10469
  %v10471 = vsel %vm72, %v10443, 0.0
  %10472 = vadd.xlane.f32.xlu0 %v10471
  %v10473 = vpop.xlane.xlu0 %10472
  %v10474 = vsel %vm72, %v10444, 0.0
  %10475 = vadd.xlane.f32.xlu0 %v10474
  %v10476 = vpop.xlane.xlu0 %10475
  %v10477 = vsel %vm72, %v10445, 0.0
  %10478 = vadd.xlane.f32.xlu0 %v10477
  %v10479 = vpop.xlane.xlu0 %10478
  %v10480 = vsel %vm72, %v10446, 0.0
  %10481 = vadd.xlane.f32.xlu0 %v10480
  %v10482 = vpop.xlane.xlu0 %10481
  %v10483 = vsel %vm72, %v10447, 0.0
  %10484 = vadd.xlane.f32.xlu0 %v10483
  %v10485 = vpop.xlane.xlu0 %10484
  %v10486 = vsel %vm72, %v10448, 0.0
  %10487 = vadd.xlane.f32.xlu0 %v10486
  %v10488 = vpop.xlane.xlu0 %10487
  %v10489 = vsel %vm72, %v10449, 0.0
  %10490 = vadd.xlane.f32.xlu0 %v10489
  %v10491 = vpop.xlane.xlu0 %10490
  %v10492 = vsel %vm72, %v10450, 0.0
  %10493 = vadd.xlane.f32.xlu0 %v10492
  %v10494 = vpop.xlane.xlu0 %10493
  %v10495 = vsel %vm72, %v10451, 0.0
  %10496 = vadd.xlane.f32.xlu0 %v10495
  %v10497 = vpop.xlane.xlu0 %10496
  %v10498 = vsel %vm72, %v10452, 0.0
  %10499 = vadd.xlane.f32.xlu0 %v10498
  %v10500 = vpop.xlane.xlu0 %10499
  %v10501 = vsel %vm72, %v10453, 0.0
  %10502 = vadd.xlane.f32.xlu0 %v10501
  %v10503 = vpop.xlane.xlu0 %10502
  %v10504 = vsel %vm72, %v10454, 0.0
  %10505 = vadd.xlane.f32.xlu0 %v10504
  %v10506 = vpop.xlane.xlu0 %10505
  %v10507 = vsel %vm72, %v10455, 0.0
  %10508 = vadd.xlane.f32.xlu0 %v10507
  %v10509 = vpop.xlane.xlu0 %10508
  %v10510 = vsel %vm72, %v10456, 0.0
  %10511 = vadd.xlane.f32.xlu0 %v10510
  %v10512 = vpop.xlane.xlu0 %10511
  %v10513 = vsel %vm72, %v10457, 0.0
  %10514 = vadd.xlane.f32.xlu0 %v10513
  %v10515 = vpop.xlane.xlu0 %10514
  %v10516 = vsel %vm72, %v10458, 0.0
  %10517 = vadd.xlane.f32.xlu0 %v10516
  %v10518 = vpop.xlane.xlu0 %10517
  %v10519 = vsel %vm72, %v10459, 0.0
  %10520 = vadd.xlane.f32.xlu0 %v10519
  %v10521 = vpop.xlane.xlu0 %10520
  %v10522 = vsel %vm72, %v10460, 0.0
  %10523 = vadd.xlane.f32.xlu0 %v10522
  %v10524 = vpop.xlane.xlu0 %10523
  %v10525 = vsel %vm72, %v10461, 0.0
  %10526 = vadd.xlane.f32.xlu0 %v10525
  %v10527 = vpop.xlane.xlu0 %10526
  %v10528 = vsel %vm72, %v10462, 0.0
  %10529 = vadd.xlane.f32.xlu0 %v10528
  %v10530 = vpop.xlane.xlu0 %10529
  %v10531 = vsel %vm72, %v10463, 0.0
  %10532 = vadd.xlane.f32.xlu0 %v10531
  %v10533 = vpop.xlane.xlu0 %10532
  %v10534 = vsel %vm72, %v10464, 0.0
  %10535 = vadd.xlane.f32.xlu0 %v10534
  %v10536 = vpop.xlane.xlu0 %10535
  %v10537 = vmul.f32 %v10467, %v2188
  %v10538 = vmul.f32 %v10470, %v2188
  %v10539 = vmul.f32 %v10473, %v2188
  %v10540 = vmul.f32 %v10476, %v2188
  %v10541 = vmul.f32 %v10479, %v2188
  %v10542 = vmul.f32 %v10482, %v2188
  %v10543 = vmul.f32 %v10485, %v2188
  %v10544 = vmul.f32 %v10488, %v2188
  %v10545 = vmul.f32 %v10491, %v2188
  %v10546 = vmul.f32 %v10494, %v2188
  %v10547 = vmul.f32 %v10497, %v2188
  %v10548 = vmul.f32 %v10500, %v2188
  %v10549 = vmul.f32 %v10503, %v2188
  %v10550 = vmul.f32 %v10506, %v2188
  %v10551 = vmul.f32 %v10509, %v2188
  %v10552 = vmul.f32 %v10512, %v2188
  %v10553 = vmul.f32 %v10515, %v2188
  %v10554 = vmul.f32 %v10518, %v2188
  %v10555 = vmul.f32 %v10521, %v2188
  %v10556 = vmul.f32 %v10524, %v2188
  %v10557 = vmul.f32 %v10527, %v2188
  %v10558 = vmul.f32 %v10530, %v2188
  %v10559 = vmul.f32 %v10533, %v2188
  %v10560 = vmul.f32 %v10536, %v2188
  %v10561 = vadd.f32 %v10537, 1e-05
  %v10562 = vadd.f32 %v10538, 1e-05
  %v10563 = vadd.f32 %v10539, 1e-05
  %v10564 = vadd.f32 %v10540, 1e-05
  %v10565 = vadd.f32 %v10541, 1e-05
  %v10566 = vadd.f32 %v10542, 1e-05
  %v10567 = vadd.f32 %v10543, 1e-05
  %v10568 = vadd.f32 %v10544, 1e-05
  %v10569 = vadd.f32 %v10545, 1e-05
  %v10570 = vadd.f32 %v10546, 1e-05
  %v10571 = vadd.f32 %v10547, 1e-05
  %v10572 = vadd.f32 %v10548, 1e-05
  %v10573 = vadd.f32 %v10549, 1e-05
  %v10574 = vadd.f32 %v10550, 1e-05
  %v10575 = vadd.f32 %v10551, 1e-05
  %v10576 = vadd.f32 %v10552, 1e-05
  %v10577 = vadd.f32 %v10553, 1e-05
  %v10578 = vadd.f32 %v10554, 1e-05
  %v10579 = vadd.f32 %v10555, 1e-05
  %v10580 = vadd.f32 %v10556, 1e-05
  %v10581 = vadd.f32 %v10557, 1e-05
  %v10582 = vadd.f32 %v10558, 1e-05
  %v10583 = vadd.f32 %v10559, 1e-05
  %v10584 = vadd.f32 %v10560, 1e-05
  %v10585 = vrsqrt.pop %v10561
  %v10586 = vmul.f32 %v10585, %v10561
  %v10587 = vmul.f32 %v10586, %v10585
  %v10588 = vmul.f32 0.5, %v10587
  %v10589 = vsub.f32 1.5, %v10588
  %v10590 = vmul.f32 %v10585, %v10589
  %vm10591 = vweird.f32 %v10561
  %vm10592 = vweird.f32 %v10585
  %vm10593 = vmor %vm10591, %vm10592
  %v10594 = vsel %vm10593, %v10585, %v10590
  %v10595 = vrsqrt.pop %v10562
  %v10596 = vmul.f32 %v10595, %v10562
  %v10597 = vmul.f32 %v10596, %v10595
  %v10598 = vmul.f32 0.5, %v10597
  %v10599 = vsub.f32 1.5, %v10598
  %v10600 = vmul.f32 %v10595, %v10599
  %vm10601 = vweird.f32 %v10562
  %vm10602 = vweird.f32 %v10595
  %vm10603 = vmor %vm10601, %vm10602
  %v10604 = vsel %vm10603, %v10595, %v10600
  %v10605 = vrsqrt.pop %v10563
  %v10606 = vmul.f32 %v10605, %v10563
  %v10607 = vmul.f32 %v10606, %v10605
  %v10608 = vmul.f32 0.5, %v10607
  %v10609 = vsub.f32 1.5, %v10608
  %v10610 = vmul.f32 %v10605, %v10609
  %vm10611 = vweird.f32 %v10563
  %vm10612 = vweird.f32 %v10605
  %vm10613 = vmor %vm10611, %vm10612
  %v10614 = vsel %vm10613, %v10605, %v10610
  %v10615 = vrsqrt.pop %v10564
  %v10616 = vmul.f32 %v10615, %v10564
  %v10617 = vmul.f32 %v10616, %v10615
  %v10618 = vmul.f32 0.5, %v10617
  %v10619 = vsub.f32 1.5, %v10618
  %v10620 = vmul.f32 %v10615, %v10619
  %vm10621 = vweird.f32 %v10564
  %vm10622 = vweird.f32 %v10615
  %vm10623 = vmor %vm10621, %vm10622
  %v10624 = vsel %vm10623, %v10615, %v10620
  %v10625 = vrsqrt.pop %v10565
  %v10626 = vmul.f32 %v10625, %v10565
  %v10627 = vmul.f32 %v10626, %v10625
  %v10628 = vmul.f32 0.5, %v10627
  %v10629 = vsub.f32 1.5, %v10628
  %v10630 = vmul.f32 %v10625, %v10629
  %vm10631 = vweird.f32 %v10565
  %vm10632 = vweird.f32 %v10625
  %vm10633 = vmor %vm10631, %vm10632
  %v10634 = vsel %vm10633, %v10625, %v10630
  %v10635 = vrsqrt.pop %v10566
  %v10636 = vmul.f32 %v10635, %v10566
  %v10637 = vmul.f32 %v10636, %v10635
  %v10638 = vmul.f32 0.5, %v10637
  %v10639 = vsub.f32 1.5, %v10638
  %v10640 = vmul.f32 %v10635, %v10639
  %vm10641 = vweird.f32 %v10566
  %vm10642 = vweird.f32 %v10635
  %vm10643 = vmor %vm10641, %vm10642
  %v10644 = vsel %vm10643, %v10635, %v10640
  %v10645 = vrsqrt.pop %v10567
  %v10646 = vmul.f32 %v10645, %v10567
  %v10647 = vmul.f32 %v10646, %v10645
  %v10648 = vmul.f32 0.5, %v10647
  %v10649 = vsub.f32 1.5, %v10648
  %v10650 = vmul.f32 %v10645, %v10649
  %vm10651 = vweird.f32 %v10567
  %vm10652 = vweird.f32 %v10645
  %vm10653 = vmor %vm10651, %vm10652
  %v10654 = vsel %vm10653, %v10645, %v10650
  %v10655 = vrsqrt.pop %v10568
  %v10656 = vmul.f32 %v10655, %v10568
  %v10657 = vmul.f32 %v10656, %v10655
  %v10658 = vmul.f32 0.5, %v10657
  %v10659 = vsub.f32 1.5, %v10658
  %v10660 = vmul.f32 %v10655, %v10659
  %vm10661 = vweird.f32 %v10568
  %vm10662 = vweird.f32 %v10655
  %vm10663 = vmor %vm10661, %vm10662
  %v10664 = vsel %vm10663, %v10655, %v10660
  %v10665 = vrsqrt.pop %v10569
  %v10666 = vmul.f32 %v10665, %v10569
  %v10667 = vmul.f32 %v10666, %v10665
  %v10668 = vmul.f32 0.5, %v10667
  %v10669 = vsub.f32 1.5, %v10668
  %v10670 = vmul.f32 %v10665, %v10669
  %vm10671 = vweird.f32 %v10569
  %vm10672 = vweird.f32 %v10665
  %vm10673 = vmor %vm10671, %vm10672
  %v10674 = vsel %vm10673, %v10665, %v10670
  %v10675 = vrsqrt.pop %v10570
  %v10676 = vmul.f32 %v10675, %v10570
  %v10677 = vmul.f32 %v10676, %v10675
  %v10678 = vmul.f32 0.5, %v10677
  %v10679 = vsub.f32 1.5, %v10678
  %v10680 = vmul.f32 %v10675, %v10679
  %vm10681 = vweird.f32 %v10570
  %vm10682 = vweird.f32 %v10675
  %vm10683 = vmor %vm10681, %vm10682
  %v10684 = vsel %vm10683, %v10675, %v10680
  %v10685 = vrsqrt.pop %v10571
  %v10686 = vmul.f32 %v10685, %v10571
  %v10687 = vmul.f32 %v10686, %v10685
  %v10688 = vmul.f32 0.5, %v10687
  %v10689 = vsub.f32 1.5, %v10688
  %v10690 = vmul.f32 %v10685, %v10689
  %vm10691 = vweird.f32 %v10571
  %vm10692 = vweird.f32 %v10685
  %vm10693 = vmor %vm10691, %vm10692
  %v10694 = vsel %vm10693, %v10685, %v10690
  %v10695 = vrsqrt.pop %v10572
  %v10696 = vmul.f32 %v10695, %v10572
  %v10697 = vmul.f32 %v10696, %v10695
  %v10698 = vmul.f32 0.5, %v10697
  %v10699 = vsub.f32 1.5, %v10698
  %v10700 = vmul.f32 %v10695, %v10699
  %vm10701 = vweird.f32 %v10572
  %vm10702 = vweird.f32 %v10695
  %vm10703 = vmor %vm10701, %vm10702
  %v10704 = vsel %vm10703, %v10695, %v10700
  %v10705 = vrsqrt.pop %v10573
  %v10706 = vmul.f32 %v10705, %v10573
  %v10707 = vmul.f32 %v10706, %v10705
  %v10708 = vmul.f32 0.5, %v10707
  %v10709 = vsub.f32 1.5, %v10708
  %v10710 = vmul.f32 %v10705, %v10709
  %vm10711 = vweird.f32 %v10573
  %vm10712 = vweird.f32 %v10705
  %vm10713 = vmor %vm10711, %vm10712
  %v10714 = vsel %vm10713, %v10705, %v10710
  %v10715 = vrsqrt.pop %v10574
  %v10716 = vmul.f32 %v10715, %v10574
  %v10717 = vmul.f32 %v10716, %v10715
  %v10718 = vmul.f32 0.5, %v10717
  %v10719 = vsub.f32 1.5, %v10718
  %v10720 = vmul.f32 %v10715, %v10719
  %vm10721 = vweird.f32 %v10574
  %vm10722 = vweird.f32 %v10715
  %vm10723 = vmor %vm10721, %vm10722
  %v10724 = vsel %vm10723, %v10715, %v10720
  %v10725 = vrsqrt.pop %v10575
  %v10726 = vmul.f32 %v10725, %v10575
  %v10727 = vmul.f32 %v10726, %v10725
  %v10728 = vmul.f32 0.5, %v10727
  %v10729 = vsub.f32 1.5, %v10728
  %v10730 = vmul.f32 %v10725, %v10729
  %vm10731 = vweird.f32 %v10575
  %vm10732 = vweird.f32 %v10725
  %vm10733 = vmor %vm10731, %vm10732
  %v10734 = vsel %vm10733, %v10725, %v10730
  %v10735 = vrsqrt.pop %v10576
  %v10736 = vmul.f32 %v10735, %v10576
  %v10737 = vmul.f32 %v10736, %v10735
  %v10738 = vmul.f32 0.5, %v10737
  %v10739 = vsub.f32 1.5, %v10738
  %v10740 = vmul.f32 %v10735, %v10739
  %vm10741 = vweird.f32 %v10576
  %vm10742 = vweird.f32 %v10735
  %vm10743 = vmor %vm10741, %vm10742
  %v10744 = vsel %vm10743, %v10735, %v10740
  %v10745 = vrsqrt.pop %v10577
  %v10746 = vmul.f32 %v10745, %v10577
  %v10747 = vmul.f32 %v10746, %v10745
  %v10748 = vmul.f32 0.5, %v10747
  %v10749 = vsub.f32 1.5, %v10748
  %v10750 = vmul.f32 %v10745, %v10749
  %vm10751 = vweird.f32 %v10577
  %vm10752 = vweird.f32 %v10745
  %vm10753 = vmor %vm10751, %vm10752
  %v10754 = vsel %vm10753, %v10745, %v10750
  %v10755 = vrsqrt.pop %v10578
  %v10756 = vmul.f32 %v10755, %v10578
  %v10757 = vmul.f32 %v10756, %v10755
  %v10758 = vmul.f32 0.5, %v10757
  %v10759 = vsub.f32 1.5, %v10758
  %v10760 = vmul.f32 %v10755, %v10759
  %vm10761 = vweird.f32 %v10578
  %vm10762 = vweird.f32 %v10755
  %vm10763 = vmor %vm10761, %vm10762
  %v10764 = vsel %vm10763, %v10755, %v10760
  %v10765 = vrsqrt.pop %v10579
  %v10766 = vmul.f32 %v10765, %v10579
  %v10767 = vmul.f32 %v10766, %v10765
  %v10768 = vmul.f32 0.5, %v10767
  %v10769 = vsub.f32 1.5, %v10768
  %v10770 = vmul.f32 %v10765, %v10769
  %vm10771 = vweird.f32 %v10579
  %vm10772 = vweird.f32 %v10765
  %vm10773 = vmor %vm10771, %vm10772
  %v10774 = vsel %vm10773, %v10765, %v10770
  %v10775 = vrsqrt.pop %v10580
  %v10776 = vmul.f32 %v10775, %v10580
  %v10777 = vmul.f32 %v10776, %v10775
  %v10778 = vmul.f32 0.5, %v10777
  %v10779 = vsub.f32 1.5, %v10778
  %v10780 = vmul.f32 %v10775, %v10779
  %vm10781 = vweird.f32 %v10580
  %vm10782 = vweird.f32 %v10775
  %vm10783 = vmor %vm10781, %vm10782
  %v10784 = vsel %vm10783, %v10775, %v10780
  %v10785 = vrsqrt.pop %v10581
  %v10786 = vmul.f32 %v10785, %v10581
  %v10787 = vmul.f32 %v10786, %v10785
  %v10788 = vmul.f32 0.5, %v10787
  %v10789 = vsub.f32 1.5, %v10788
  %v10790 = vmul.f32 %v10785, %v10789
  %vm10791 = vweird.f32 %v10581
  %vm10792 = vweird.f32 %v10785
  %vm10793 = vmor %vm10791, %vm10792
  %v10794 = vsel %vm10793, %v10785, %v10790
  %v10795 = vrsqrt.pop %v10582
  %v10796 = vmul.f32 %v10795, %v10582
  %v10797 = vmul.f32 %v10796, %v10795
  %v10798 = vmul.f32 0.5, %v10797
  %v10799 = vsub.f32 1.5, %v10798
  %v10800 = vmul.f32 %v10795, %v10799
  %vm10801 = vweird.f32 %v10582
  %vm10802 = vweird.f32 %v10795
  %vm10803 = vmor %vm10801, %vm10802
  %v10804 = vsel %vm10803, %v10795, %v10800
  %v10805 = vrsqrt.pop %v10583
  %v10806 = vmul.f32 %v10805, %v10583
  %v10807 = vmul.f32 %v10806, %v10805
  %v10808 = vmul.f32 0.5, %v10807
  %v10809 = vsub.f32 1.5, %v10808
  %v10810 = vmul.f32 %v10805, %v10809
  %vm10811 = vweird.f32 %v10583
  %vm10812 = vweird.f32 %v10805
  %vm10813 = vmor %vm10811, %vm10812
  %v10814 = vsel %vm10813, %v10805, %v10810
  %v10815 = vrsqrt.pop %v10584
  %v10816 = vmul.f32 %v10815, %v10584
  %v10817 = vmul.f32 %v10816, %v10815
  %v10818 = vmul.f32 0.5, %v10817
  %v10819 = vsub.f32 1.5, %v10818
  %v10820 = vmul.f32 %v10815, %v10819
  %vm10821 = vweird.f32 %v10584
  %vm10822 = vweird.f32 %v10815
  %vm10823 = vmor %vm10821, %vm10822
  %v10824 = vsel %vm10823, %v10815, %v10820
  %v10825 = vmul.f32 %v10417, %v10594
  %v10826 = vmul.f32 %v10418, %v10604
  %v10827 = vmul.f32 %v10419, %v10614
  %v10828 = vmul.f32 %v10420, %v10624
  %v10829 = vmul.f32 %v10421, %v10634
  %v10830 = vmul.f32 %v10422, %v10644
  %v10831 = vmul.f32 %v10423, %v10654
  %v10832 = vmul.f32 %v10424, %v10664
  %v10833 = vmul.f32 %v10425, %v10674
  %v10834 = vmul.f32 %v10426, %v10684
  %v10835 = vmul.f32 %v10427, %v10694
  %v10836 = vmul.f32 %v10428, %v10704
  %v10837 = vmul.f32 %v10429, %v10714
  %v10838 = vmul.f32 %v10430, %v10724
  %v10839 = vmul.f32 %v10431, %v10734
  %v10840 = vmul.f32 %v10432, %v10744
  %v10841 = vmul.f32 %v10433, %v10754
  %v10842 = vmul.f32 %v10434, %v10764
  %v10843 = vmul.f32 %v10435, %v10774
  %v10844 = vmul.f32 %v10436, %v10784
  %v10845 = vmul.f32 %v10437, %v10794
  %v10846 = vmul.f32 %v10438, %v10804
  %v10847 = vmul.f32 %v10439, %v10814
  %v10848 = vmul.f32 %v10440, %v10824
  %v10850 = vperm.slane %v7347, 0
  %v10852 = vmul.f32 %v10825, %v10850
  %v10853 = vmul.f32 %v10826, %v10850
  %v10854 = vmul.f32 %v10827, %v10850
  %v10855 = vmul.f32 %v10828, %v10850
  %v10856 = vmul.f32 %v10829, %v10850
  %v10857 = vmul.f32 %v10830, %v10850
  %v10858 = vmul.f32 %v10831, %v10850
  %v10859 = vmul.f32 %v10832, %v10850
  %v10860 = vmul.f32 %v10833, %v10850
  %v10861 = vmul.f32 %v10834, %v10850
  %v10862 = vmul.f32 %v10835, %v10850
  %v10863 = vmul.f32 %v10836, %v10850
  %v10864 = vmul.f32 %v10837, %v10850
  %v10865 = vmul.f32 %v10838, %v10850
  %v10866 = vmul.f32 %v10839, %v10850
  %v10867 = vmul.f32 %v10840, %v10850
  %v10868 = vmul.f32 %v10841, %v10850
  %v10869 = vmul.f32 %v10842, %v10850
  %v10870 = vmul.f32 %v10843, %v10850
  %v10871 = vmul.f32 %v10844, %v10850
  %v10872 = vmul.f32 %v10845, %v10850
  %v10873 = vmul.f32 %v10846, %v10850
  %v10874 = vmul.f32 %v10847, %v10850
  %v10875 = vmul.f32 %v10848, %v10850
  %v10877 = vperm.slane %v7349, 0
  %v10879 = vadd.f32 %v10852, %v10877
  %v10880 = vadd.f32 %v10853, %v10877
  %v10881 = vadd.f32 %v10854, %v10877
  %v10882 = vadd.f32 %v10855, %v10877
  %v10883 = vadd.f32 %v10856, %v10877
  %v10884 = vadd.f32 %v10857, %v10877
  %v10885 = vadd.f32 %v10858, %v10877
  %v10886 = vadd.f32 %v10859, %v10877
  %v10887 = vadd.f32 %v10860, %v10877
  %v10888 = vadd.f32 %v10861, %v10877
  %v10889 = vadd.f32 %v10862, %v10877
  %v10890 = vadd.f32 %v10863, %v10877
  %v10891 = vadd.f32 %v10864, %v10877
  %v10892 = vadd.f32 %v10865, %v10877
  %v10893 = vadd.f32 %v10866, %v10877
  %v10894 = vadd.f32 %v10867, %v10877
  %v10895 = vadd.f32 %v10868, %v10877
  %v10896 = vadd.f32 %v10869, %v10877
  %v10897 = vadd.f32 %v10870, %v10877
  %v10898 = vadd.f32 %v10871, %v10877
  %v10899 = vadd.f32 %v10872, %v10877
  %v10900 = vadd.f32 %v10873, %v10877
  %v10901 = vadd.f32 %v10874, %v10877
  %v10902 = vadd.f32 %v10875, %v10877
  %10903 = vst.msk [vmem:[#allocation2] sm:$0xff] %vm72, %v10879
  %10904 = vst.msk [vmem:[#allocation2 + $0x8] sm:$0xff] %vm72, %v10880
  %10905 = vst.msk [vmem:[#allocation2 + $0x10] sm:$0xff] %vm72, %v10881
  %10906 = vst.msk [vmem:[#allocation2 + $0x18] sm:$0xff] %vm72, %v10882
  %10907 = vst.msk [vmem:[#allocation2 + $0x20] sm:$0xff] %vm72, %v10883
  %10908 = vst.msk [vmem:[#allocation2 + $0x28] sm:$0xff] %vm72, %v10884
  %10909 = vst.msk [vmem:[#allocation2 + $0x30] sm:$0xff] %vm72, %v10885
  %10910 = vst.msk [vmem:[#allocation2 + $0x38] sm:$0xff] %vm72, %v10886
  %10911 = vst.msk [vmem:[#allocation2 + $0x40] sm:$0xff] %vm72, %v10887
  %10912 = vst.msk [vmem:[#allocation2 + $0x48] sm:$0xff] %vm72, %v10888
  %10913 = vst.msk [vmem:[#allocation2 + $0x50] sm:$0xff] %vm72, %v10889
  %10914 = vst.msk [vmem:[#allocation2 + $0x58] sm:$0xff] %vm72, %v10890
  %10915 = vst.msk [vmem:[#allocation2 + $0x60] sm:$0xff] %vm72, %v10891
  %10916 = vst.msk [vmem:[#allocation2 + $0x68] sm:$0xff] %vm72, %v10892
  %10917 = vst.msk [vmem:[#allocation2 + $0x70] sm:$0xff] %vm72, %v10893
  %10918 = vst.msk [vmem:[#allocation2 + $0x78] sm:$0xff] %vm72, %v10894
  %10919 = vst.msk [vmem:[#allocation2 + $0x80] sm:$0xff] %vm72, %v10895
  %10920 = vst.msk [vmem:[#allocation2 + $0x88] sm:$0xff] %vm72, %v10896
  %10921 = vst.msk [vmem:[#allocation2 + $0x90] sm:$0xff] %vm72, %v10897
  %10922 = vst.msk [vmem:[#allocation2 + $0x98] sm:$0xff] %vm72, %v10898
  %10923 = vst.msk [vmem:[#allocation2 + $0xa0] sm:$0xff] %vm72, %v10899
  %10924 = vst.msk [vmem:[#allocation2 + $0xa8] sm:$0xff] %vm72, %v10900
  %10925 = vst.msk [vmem:[#allocation2 + $0xb0] sm:$0xff] %vm72, %v10901
  %10926 = vst.msk [vmem:[#allocation2 + $0xb8] sm:$0xff] %vm72, %v10902
  %v10927 = vld [vmem:[#allocation2] sm:$0xff]
  %v10928 = vld [vmem:[#allocation2 + $0x8] sm:$0xff]
  %v10929 = vld [vmem:[#allocation2 + $0x10] sm:$0xff]
  %v10930 = vld [vmem:[#allocation2 + $0x18] sm:$0xff]
  %v10931 = vld [vmem:[#allocation2 + $0x20] sm:$0xff]
  %v10932 = vld [vmem:[#allocation2 + $0x28] sm:$0xff]
  %v10933 = vld [vmem:[#allocation2 + $0x30] sm:$0xff]
  %v10934 = vld [vmem:[#allocation2 + $0x38] sm:$0xff]
  %v10935 = vld [vmem:[#allocation2 + $0x40] sm:$0xff]
  %v10936 = vld [vmem:[#allocation2 + $0x48] sm:$0xff]
  %v10937 = vld [vmem:[#allocation2 + $0x50] sm:$0xff]
  %v10938 = vld [vmem:[#allocation2 + $0x58] sm:$0xff]
  %v10939 = vld [vmem:[#allocation2 + $0x60] sm:$0xff]
  %v10940 = vld [vmem:[#allocation2 + $0x68] sm:$0xff]
  %v10941 = vld [vmem:[#allocation2 + $0x70] sm:$0xff]
  %v10942 = vld [vmem:[#allocation2 + $0x78] sm:$0xff]
  %v10943 = vadd.f32 %v10927, %v10935
  %v10944 = vadd.f32 %v10928, %v10936
  %v10945 = vadd.f32 %v10929, %v10937
  %v10946 = vadd.f32 %v10930, %v10938
  %v10947 = vadd.f32 %v10931, %v10939
  %v10948 = vadd.f32 %v10932, %v10940
  %v10949 = vadd.f32 %v10933, %v10941
  %v10950 = vadd.f32 %v10934, %v10942
  %v10951 = vld [vmem:[#allocation2 + $0x80] sm:$0xff]
  %v10952 = vld [vmem:[#allocation2 + $0x88] sm:$0xff]
  %v10953 = vld [vmem:[#allocation2 + $0x90] sm:$0xff]
  %v10954 = vld [vmem:[#allocation2 + $0x98] sm:$0xff]
  %v10955 = vld [vmem:[#allocation2 + $0xa0] sm:$0xff]
  %v10956 = vld [vmem:[#allocation2 + $0xa8] sm:$0xff]
  %v10957 = vld [vmem:[#allocation2 + $0xb0] sm:$0xff]
  %v10958 = vld [vmem:[#allocation2 + $0xb8] sm:$0xff]
  %v10959 = vadd.f32 %v10943, %v10951
  %v10960 = vadd.f32 %v10944, %v10952
  %v10961 = vadd.f32 %v10945, %v10953
  %v10962 = vadd.f32 %v10946, %v10954
  %v10963 = vadd.f32 %v10947, %v10955
  %v10964 = vadd.f32 %v10948, %v10956
  %v10965 = vadd.f32 %v10949, %v10957
  %v10966 = vadd.f32 %v10950, %v10958
  %v10967 = vmul.f32 %v10959, 0.33333334
  %v10968 = vmul.f32 %v10960, 0.33333334
  %v10969 = vmul.f32 %v10961, 0.33333334
  %v10970 = vmul.f32 %v10962, 0.33333334
  %v10971 = vmul.f32 %v10963, 0.33333334
  %v10972 = vmul.f32 %v10964, 0.33333334
  %v10973 = vmul.f32 %v10965, 0.33333334
  %v10974 = vmul.f32 %v10966, 0.33333334
  %10975 = vst.msk [vmem:[%s15] sm:$0xff] %vm72, %v10967
  %10976 = vst.msk [vmem:[%s15 + $0x8] sm:$0xff] %vm72, %v10968
  %10977 = vst.msk [vmem:[%s15 + $0x10] sm:$0xff] %vm72, %v10969
  %10978 = vst.msk [vmem:[%s15 + $0x18] sm:$0xff] %vm72, %v10970
  %10979 = vst.msk [vmem:[%s15 + $0x20] sm:$0xff] %vm72, %v10971
  %10980 = vst.msk [vmem:[%s15 + $0x28] sm:$0xff] %vm72, %v10972
  %10981 = vst.msk [vmem:[%s15 + $0x30] sm:$0xff] %vm72, %v10973
  %10982 = vst.msk [vmem:[%s15 + $0x38] sm:$0xff] %vm72, %v10974
  // Predicated region
  $region62: #{tpu_custom_call.1} parent=0 // pred_check
    _
  $region63: #{tpu_custom_call.1} parent=0 // pred_check_branch
    %10984 = sbr.rel (0) target = $region65
  $region64: #{tpu_custom_call.1} parent=0 // pred_region
    _
  $region65: #{tpu_custom_call.1} parent=0 // pred_fallthru
    _
  // Predicated region
  $region66: #{tpu_custom_call.1} parent=0 // pred_check
    _
  $region67: #{tpu_custom_call.1} parent=0 // pred_check_branch
    %10986 = sbr.rel (0) target = $region69
  $region68: #{tpu_custom_call.1} parent=0 // pred_region
    _
  $region69: #{tpu_custom_call.1} parent=0 // pred_fallthru
    _

</llo_original>
